<compile_context>
chip_gen: v6e
topology: v6e:2x2x1
jax: 0.10.0
libtpu: 0.0.40
codegen_flags: <defaults>
</compile_context>

<pallas_src>
import functools
import math

import jax
import jax.numpy as jnp
from jax import lax
from jax.experimental import pallas as pl
from jax.experimental.pallas import tpu as pltpu


_UNROLL_T_MAX = 16          # fully unroll the fused time loop up to this T


def _round_up(v, m):
    return ((v + m - 1) // m) * m


def _vmem_capacity_bytes():
    """Generation-aware VMEM size (128 MiB on v5e/v6e, 64 MiB on v7x)."""
    try:
        return int(pltpu.get_tpu_info().vmem_capacity_bytes)
    except Exception:
        return 64 * 1024 * 1024      # conservative (v7x-sized) fallback


def _choose_batch_tile(T, B, Ep, Hp, budget_bytes):
    """Largest multiple-of-8 batch tile whose per-tile VMEM footprint fits.

    Accounts for: double-buffered streamed blocks (x, out), double-buffered
    constant weights, the lane-padded lengths block, and the gx scratch.
    `budget_bytes` already carries ~15% headroom for compiler scratch.
    """
    weight_bytes = 2 * 4 * (
        Ep * 6 * Hp            # fused W_ih
        + 8 * 6 * Hp           # fused/folded bias (sublane-padded)
        + 2 * Hp * 6 * Hp      # block-diagonal W_hh
        + 8 * 2 * Hp           # b_hn (fwd|bwd)
        + 2 * 8 * 2 * Hp       # gamma, beta
    )

    def footprint(bt):
        streamed = 2 * 4 * (T * bt * Ep          # x       (double buffered)
                            + T * bt * 2 * Hp    # output  (double buffered)
                            + bt * 128)          # lengths (lane-padded)
        scratch = 4 * T * bt * 6 * Hp            # gx scratch (single)
        return weight_bytes + streamed + scratch

    bt = _round_up(max(B, 1), 8)
    while bt > 8 and footprint(bt) > budget_bytes:
        bt -= 8
    return max(bt, 8)


# ----------------------------------------------------------------------------
# Pallas kernel: fused bi-GRU over padded sequences + fused LayerNorm.
# ----------------------------------------------------------------------------
def _bigru_layernorm_kernel(
    len_ref,     # [Bt, 1]     int32 sequence lengths (>= 1)
    x_ref,       # [T, Bt, Ep] f32
    wbig_ref,    # [Ep, 6Hp]   fused fwd|bwd input projection (gate-block layout)
    bbig_ref,    # [1, 6Hp]    b_ih with b_hh(r,z) folded in
    whh_ref,     # [2Hp, 6Hp]  block-diagonal recurrent weight (fwd | bwd)
    bhn_ref,     # [1, 2Hp]    n-gate hidden bias (fwd | bwd)
    gamma_ref,   # [1, 1, 2Hp]
    beta_ref,    # [1, 1, 2Hp]
    out_ref,     # [T, Bt, 2Hp]
    gx_ref,      # scratch [T, Bt, 6Hp]
    *, hp, h_real, inv_feat,
):
    T, Bt, Ep = x_ref.shape

    # --- 1) fused input projection for BOTH directions: one big MXU matmul.
    x2d = x_ref[...].reshape(T * Bt, Ep)
    gx_ref[...] = (
        jnp.dot(x2d, wbig_ref[...], preferred_element_type=jnp.float32)
        + bbig_ref[...]
    ).reshape(T, Bt, 6 * hp)

    lens = len_ref[...]                                   # [Bt, 1] int32

    # --- in-place LayerNorm of one completed time row (two-pass form).
    def _layernorm_row(idx):
        y = out_ref[idx]                                  # [Bt, 2Hp]
        lane = lax.broadcasted_iota(jnp.int32, (1, 2 * hp), 1)
        feat = ((lane % hp) < h_real).astype(jnp.float32)  # 0 on padded lanes
        mean = jnp.sum(y, axis=-1, keepdims=True) * inv_feat
        diff = (y - mean) * feat
        var = jnp.sum(diff * diff, axis=-1, keepdims=True) * inv_feat
        out_ref[idx] = (diff * lax.rsqrt(var + 1e-5)) * gamma_ref[0] + beta_ref[0]

    # --- 2) fused fwd/bwd recurrence: one serial loop over T.
    def step(s, carry):
        h_f, h_b = carry                                  # each [Bt, Hp]
        tb = T - 1 - s

        # One K = 2*Hp matmul per step for both directions (block-diag whh).
        # whh is read from VMEM inside the loop (no long vreg live range).
        h_cat = jnp.concatenate([h_f, h_b], axis=1)       # [Bt, 2Hp]
        gh = jnp.dot(h_cat, whh_ref[...],
                     preferred_element_type=jnp.float32)  # [Bt, 6Hp]

        gx_f = gx_ref[s, :, pl.ds(0, 3 * hp)]             # [Bt, 3Hp]
        gx_b = gx_ref[tb, :, pl.ds(3 * hp, 3 * hp)]       # [Bt, 3Hp]
        bhn_f = bhn_ref[:, pl.ds(0, hp)]
        bhn_b = bhn_ref[:, pl.ds(hp, hp)]

        # Forward direction at time s (all slices 128-lane aligned).
        r_f = jax.nn.sigmoid(gx_f[:, :hp] + gh[:, :hp])
        z_f = jax.nn.sigmoid(gx_f[:, hp:2 * hp] + gh[:, hp:2 * hp])
        n_f = jnp.tanh(gx_f[:, 2 * hp:] + r_f * (gh[:, 2 * hp:3 * hp] + bhn_f))
        hf_new = (1.0 - z_f) * n_f + z_f * h_f

        # Backward direction at time T-1-s.
        r_b = jax.nn.sigmoid(gx_b[:, :hp] + gh[:, 3 * hp:4 * hp])
        z_b = jax.nn.sigmoid(gx_b[:, hp:2 * hp] + gh[:, 4 * hp:5 * hp])
        n_b = jnp.tanh(gx_b[:, 2 * hp:] + r_b * (gh[:, 5 * hp:] + bhn_b))
        hb_new = (1.0 - z_b) * n_b + z_b * h_b

        vf = lens > s                                     # [Bt, 1] bool
        vb = lens > tb
        out_ref[s, :, pl.ds(0, hp)] = jnp.where(vf, hf_new, 0.0)
        out_ref[tb, :, pl.ds(hp, hp)] = jnp.where(vb, hb_new, 0.0)

        # --- fused LayerNorm: rows s and T-1-s are complete once 2s >= T-1.
        if isinstance(s, int):                            # trace-time unrolled path
            if 2 * s >= T - 1:
                _layernorm_row(s)
            if 2 * s > T - 1:
                _layernorm_row(tb)
        else:                                             # fori_loop path
            pl.when(2 * s >= T - 1)(lambda: _layernorm_row(s))
            pl.when(2 * s > T - 1)(lambda: _layernorm_row(tb))

        # Carry h only through valid steps (packed-sequence semantics).
        return (jnp.where(vf, hf_new, h_f), jnp.where(vb, hb_new, h_b))

    h0 = (jnp.zeros((Bt, hp), jnp.float32), jnp.zeros((Bt, hp), jnp.float32))
    if T <= _UNROLL_T_MAX:
        # Full trace-time unroll: maximal LLO scheduler visibility for short T.
        carry = h0
        for s in range(T):
            carry = step(s, carry)
    else:
        lax.fori_loop(0, T, step, h0)


# ----------------------------------------------------------------------------
# Parameter packing helpers (PyTorch layouts -> padded, gate-block layouts).
# ----------------------------------------------------------------------------
def _pack_gate_cols(w, H, Hp, rows_p):
    """[3H, in] gate-stacked weight -> [rows_p, 3*Hp] transposed; each gate's
    columns padded to a full 128-lane block (zeros), rows padded to rows_p."""
    in_dim = w.shape[1]
    blocks = []
    for g in range(3):
        wg = jnp.transpose(w[g * H:(g + 1) * H, :])               # [in, H]
        blocks.append(jnp.pad(wg, ((0, rows_p - in_dim), (0, Hp - H))))
    return jnp.concatenate(blocks, axis=1)


def _pack_gate_bias(parts, Hp):
    H = parts[0].shape[0]
    return jnp.concatenate([jnp.pad(p, (0, Hp - H)) for p in parts])[None, :]


# ----------------------------------------------------------------------------
# Wrapper
# ----------------------------------------------------------------------------
def temporal_graph_encoder(x, mask, params, *, min_batch_tiles=1):
    """x: [B, T, E] f32, mask: [B, T] -> encoded [B, T, hidden_dim].

    min_batch_tiles: set to 2 on 2-TensorCore chips (v7x) so the "parallel"
    batch grid axis gives every core work; keep 1 on single-TC chips (the
    recurrence is latency-bound, so splitting tiles there only adds steps).
    """
    B, T, E = x.shape
    H = params["w_hh_f"].shape[1]              # hidden_dim // 2 (real)
    Hp = _round_up(H, 128)                     # padded per-direction width
    Ep = _round_up(E, 128)

    # Generation-aware VMEM sizing (v5e/v6e: 128 MiB, v7x: 64 MiB).
    vmem_cap = _vmem_capacity_bytes()
    vmem_limit = max(32 << 20, min(int(vmem_cap * 0.82), vmem_cap - (8 << 20)))
    budget = int(vmem_limit * 0.85)            # headroom for compiler scratch

    Bt = _choose_batch_tile(T, B, Ep, Hp, budget)
    if min_batch_tiles > 1 and _round_up(B, 8) >= 8 * min_batch_tiles:
        Bt = max(8, min(Bt, _round_up(-(-B // min_batch_tiles), 8)))
    Bp = _round_up(B, Bt)
    num_tiles = Bp // Bt

    # ---- inputs: time-major, padded to (8, 128)-aligned tiles ----------------
    x_tm = jnp.transpose(x, (1, 0, 2)).astype(jnp.float32)        # [T, B, E]
    x_tm = jnp.pad(x_tm, ((0, 0), (0, Bp - B), (0, Ep - E)))      # [T, Bp, Ep]

    lengths = jnp.maximum(jnp.sum(mask.astype(jnp.int32), axis=1), 1)     # [B]
    lengths = jnp.pad(lengths, (0, Bp - B), constant_values=1)
    lengths = lengths.astype(jnp.int32)[:, None]                  # [Bp, 1]

    # ---- weights: fuse directions, fold r/z hidden biases, pad gate-blockwise
    w_big = jnp.concatenate(
        [_pack_gate_cols(params["w_ih_f"], H, Hp, Ep),
         _pack_gate_cols(params["w_ih_b"], H, Hp, Ep)], axis=1)   # [Ep, 6Hp]

    def fold_bias(b_ih, b_hh):
        return [b_ih[:H] + b_hh[:H], b_ih[H:2 * H] + b_hh[H:2 * H], b_ih[2 * H:]]

    b_big = jnp.concatenate(
        [_pack_gate_bias(fold_bias(params["b_ih_f"], params["b_hh_f"]), Hp),
         _pack_gate_bias(fold_bias(params["b_ih_b"], params["b_hh_b"]), Hp)],
        axis=1)                                                   # [1, 6Hp]

    whh_f = _pack_gate_cols(params["w_hh_f"], H, Hp, Hp)          # [Hp, 3Hp]
    whh_b = _pack_gate_cols(params["w_hh_b"], H, Hp, Hp)
    whh_cat = jnp.zeros((2 * Hp, 6 * Hp), jnp.float32)
    whh_cat = whh_cat.at[:Hp, :3 * Hp].set(whh_f)
    whh_cat = whh_cat.at[Hp:, 3 * Hp:].set(whh_b)                 # block-diagonal

    bhn_cat = jnp.concatenate(
        [jnp.pad(params["b_hh_f"][2 * H:], (0, Hp - H)),
         jnp.pad(params["b_hh_b"][2 * H:], (0, Hp - H))])[None, :]  # [1, 2Hp]

    def split_pad(v):  # [2H] -> [1, 1, 2Hp] with fwd/bwd halves each 128-padded
        return jnp.concatenate([jnp.pad(v[:H], (0, Hp - H)),
                                jnp.pad(v[H:], (0, Hp - H))])[None, None, :]

    gamma_p = split_pad(params["gamma"])
    beta_p = split_pad(params["beta"])

    kernel = functools.partial(_bigru_layernorm_kernel,
                               hp=Hp, h_real=H, inv_feat=1.0 / float(2 * H))

    in_specs = [
        pl.BlockSpec((Bt, 1), lambda i: (i, 0)),                  # lengths
        pl.BlockSpec((T, Bt, Ep), lambda i: (0, i, 0)),           # x
        pl.BlockSpec((Ep, 6 * Hp), lambda i: (0, 0)),             # fused W_ih
        pl.BlockSpec((1, 6 * Hp), lambda i: (0, 0)),              # fused/folded b
        pl.BlockSpec((2 * Hp, 6 * Hp), lambda i: (0, 0)),         # block-diag W_hh
        pl.BlockSpec((1, 2 * Hp), lambda i: (0, 0)),              # b_hn (fwd|bwd)
        pl.BlockSpec((1, 1, 2 * Hp), lambda i: (0, 0, 0)),        # gamma
        pl.BlockSpec((1, 1, 2 * Hp), lambda i: (0, 0, 0)),        # beta
    ]

    out_tm_p = pl.pallas_call(
        kernel,
        out_shape=jax.ShapeDtypeStruct((T, Bp, 2 * Hp), jnp.float32),
        grid=(num_tiles,),
        in_specs=in_specs,
        out_specs=pl.BlockSpec((T, Bt, 2 * Hp), lambda i: (0, i, 0)),
        scratch_shapes=[
            pltpu.VMEM((T, Bt, 6 * Hp), jnp.float32),   # gate pre-activations
        ],
        compiler_params=pltpu.CompilerParams(
            dimension_semantics=("parallel",),
            vmem_limit_bytes=vmem_limit,
        ),
    )(lengths, x_tm, w_big, b_big, whh_cat, bhn_cat, gamma_p, beta_p)

    # Strip padding: fwd real features are lanes [0:H], bwd are [Hp:Hp+H].
    out_tm = out_tm_p[:, :B, :]
    out_tm = jnp.concatenate([out_tm[..., :H], out_tm[..., Hp:Hp + H]], axis=-1)
    return jnp.transpose(out_tm, (1, 0, 2))                       # [B, T, 2H]


# ----------------------------------------------------------------------------
# Pure-JAX reference (same math, lax.scan) for a correctness check.
# ----------------------------------------------------------------------------
def reference_encoder(x, mask, params):
    B, T, E = x.shape
    H = params["w_hh_f"].shape[1]
    lengths = jnp.maximum(jnp.sum(mask.astype(jnp.float32), axis=1), 1.0)  # [B]
    x_tm = jnp.transpose(x, (1, 0, 2))

    def run(w_ih, w_hh, b_ih, b_hh, reverse):
        gx = jnp.einsum("tbe,ge->tbg", x_tm, w_ih) + b_ih

        def step(h, inp):
            gxt, t = inp
            gh = h @ w_hh.T + b_hh
            r = jax.nn.sigmoid(gxt[:, :H] + gh[:, :H])
            z = jax.nn.sigmoid(gxt[:, H:2 * H] + gh[:, H:2 * H])
            n = jnp.tanh(gxt[:, 2 * H:] + r * gh[:, 2 * H:])
            h_new = (1.0 - z) * n + z * h
            valid = (lengths > t).astype(x.dtype)[:, None]
            return valid * h_new + (1.0 - valid) * h, valid * h_new

        idxs = jnp.arange(T)[::-1] if reverse else jnp.arange(T)
        _, outs = lax.scan(step, jnp.zeros((B, H), x.dtype), (gx[idxs], idxs))
        return outs[::-1] if reverse else outs

    f = run(params["w_ih_f"], params["w_hh_f"], params["b_ih_f"], params["b_hh_f"], False)
    b = run(params["w_ih_b"], params["w_hh_b"], params["b_ih_b"], params["b_hh_b"], True)
    y = jnp.concatenate([f, b], axis=-1)                       # [T, B, 2H]
    mean = jnp.mean(y, axis=-1, keepdims=True)
    var = jnp.mean((y - mean) ** 2, axis=-1, keepdims=True)
    y = (y - mean) / jnp.sqrt(var + 1e-5) * params["gamma"] + params["beta"]
    return jnp.transpose(y, (1, 0, 2))


# ----------------------------------------------------------------------------
# Deterministic parameter init (mimics nn.init.xavier_uniform_(gain=0.1)).
# ----------------------------------------------------------------------------
def init_params(key, embed_dim, hidden_dim):
    H = hidden_dim // 2

    def xavier(k, shape):
        fan_out, fan_in = shape
        bound = 0.1 * math.sqrt(6.0 / (fan_in + fan_out))
        return jax.random.uniform(k, shape, jnp.float32, -bound, bound)

    ks = jax.random.split(key, 4)
    return {
        "w_ih_f": xavier(ks[0], (3 * H, embed_dim)),
        "w_hh_f": xavier(ks[1], (3 * H, H)),
        "b_ih_f": jnp.zeros((3 * H,), jnp.float32),
        "b_hh_f": jnp.zeros((3 * H,), jnp.float32),
        "w_ih_b": xavier(ks[2], (3 * H, embed_dim)),
        "w_hh_b": xavier(ks[3], (3 * H, H)),
        "b_ih_b": jnp.zeros((3 * H,), jnp.float32),
        "b_hh_b": jnp.zeros((3 * H,), jnp.float32),
        "gamma": jnp.ones((hidden_dim,), jnp.float32),
        "beta": jnp.zeros((hidden_dim,), jnp.float32),
    }


if __name__ == "__main__":
    # ---- Test 1: small shapes (unrolled time loop, single batch tile) -------
    B, T, embed_dim, hidden_dim = 2, 8, 32, 32

    key = jax.random.PRNGKey(0)
    k_x, k_p, k_x2, k_p2, k_l2 = jax.random.split(key, 5)

    x = jax.random.normal(k_x, (B, T, embed_dim), jnp.float32)
    lengths = jnp.array([5, 8], dtype=jnp.int32)
    mask = (jnp.arange(T)[None, :] < lengths[:, None]).astype(jnp.float32)

    params = init_params(k_p, embed_dim, hidden_dim)

    out = jax.jit(temporal_graph_encoder)(x, mask, params)
    out = jax.block_until_ready(out)
    assert out.shape == (B, T, hidden_dim)

    ref = reference_encoder(x, mask, params)
    assert jnp.allclose(out, ref, atol=2e-4, rtol=2e-4), (
        "Pallas output does not match pure-JAX reference (test 1)"
    )

    # ---- Test 2: H = 128 lanes exactly, B > Bt (multi-tile batch grid),
    #              T > _UNROLL_T_MAX (fori_loop + pl.when LayerNorm path) -----
    B2, T2, embed_dim2, hidden_dim2 = 20, 20, 48, 256
    x2 = jax.random.normal(k_x2, (B2, T2, embed_dim2), jnp.float32)
    lengths2 = jax.random.randint(k_l2, (B2,), 1, T2 + 1)
    mask2 = (jnp.arange(T2)[None, :] < lengths2[:, None]).astype(jnp.float32)
    params2 = init_params(k_p2, embed_dim2, hidden_dim2)

    enc2 = jax.jit(functools.partial(temporal_graph_encoder, min_batch_tiles=2))
    out2 = jax.block_until_ready(enc2(x2, mask2, params2))
    assert out2.shape == (B2, T2, hidden_dim2)

    ref2 = reference_encoder(x2, mask2, params2)
    assert jnp.allclose(out2, ref2, atol=2e-4, rtol=2e-4), (
        "Pallas output does not match pure-JAX reference (test 2)"
    )

    print("KERNEL_OK")
</pallas_src>

<mosaic_0001>
module attributes {stable_mosaic.version = 11 : i64} {
  func.func @_bigru_layernorm_kernel(%arg0: i32, %arg1: memref<8x1xi32, #tpu.memory_space<vmem>>, %arg2: memref<8x8x128xf32, #tpu.memory_space<vmem>>, %arg3: memref<128x768xf32, #tpu.memory_space<vmem>>, %arg4: memref<1x768xf32, #tpu.memory_space<vmem>>, %arg5: memref<256x768xf32, #tpu.memory_space<vmem>>, %arg6: memref<1x256xf32, #tpu.memory_space<vmem>>, %arg7: memref<1x1x256xf32, #tpu.memory_space<vmem>>, %arg8: memref<1x1x256xf32, #tpu.memory_space<vmem>>, %arg9: memref<8x8x256xf32, #tpu.memory_space<vmem>>, %arg10: memref<8x8x768xf32, #tpu.memory_space<vmem>>) attributes {dimension_semantics = [#tpu.dimension_semantics<parallel>], iteration_bounds = array<i64: 1>, scalar_prefetch = 0 : i64, scratch_operands = 1 : i64, tpu.core_type = #tpu.core_type<tc>, window_params = [{transform_indices = @transform_0, window_bounds = array<i64: 8, 1>}, {transform_indices = @transform_1, window_bounds = array<i64: 8, 8, 128>}, {pipeline_mode = #tpu.pipeline_mode<synchronous>, transform_indices = @transform_2, window_bounds = array<i64: 128, 768>}, {pipeline_mode = #tpu.pipeline_mode<synchronous>, transform_indices = @transform_3, window_bounds = array<i64: 1, 768>}, {pipeline_mode = #tpu.pipeline_mode<synchronous>, transform_indices = @transform_4, window_bounds = array<i64: 256, 768>}, {pipeline_mode = #tpu.pipeline_mode<synchronous>, transform_indices = @transform_5, window_bounds = array<i64: 1, 256>}, {pipeline_mode = #tpu.pipeline_mode<synchronous>, transform_indices = @transform_6, window_bounds = array<i64: 1, 1, 256>}, {pipeline_mode = #tpu.pipeline_mode<synchronous>, transform_indices = @transform_7, window_bounds = array<i64: 1, 1, 256>}, {transform_indices = @transform_8, window_bounds = array<i64: 8, 8, 256>}]} {
    %c0 = arith.constant 0 : index
    %c0_0 = arith.constant 0 : index
    %c0_1 = arith.constant 0 : index
    %0 = vector.load %arg2[%c0, %c0_0, %c0_1] : memref<8x8x128xf32, #tpu.memory_space<vmem>>, vector<8x8x128xf32>
    %1 = vector.shape_cast %0 : vector<8x8x128xf32> to vector<64x128xf32>
    %c0_2 = arith.constant 0 : index
    %c0_3 = arith.constant 0 : index
    %2 = vector.load %arg3[%c0_2, %c0_3] : memref<128x768xf32, #tpu.memory_space<vmem>>, vector<128x768xf32>
    %cst = arith.constant dense<0.000000e+00> : vector<64x768xf32>
    %3 = tpu.matmul %1, %2, %cst {dimension_numbers = #tpu.dot_dimension_numbers<[1], [0], [0], [1], [0, 0, 1, 1], [], []>} : vector<64x128xf32>, vector<128x768xf32>, vector<64x768xf32> -> vector<64x768xf32>
    %c0_4 = arith.constant 0 : index
    %c0_5 = arith.constant 0 : index
    %4 = vector.load %arg4[%c0_4, %c0_5] : memref<1x768xf32, #tpu.memory_space<vmem>>, vector<1x768xf32>
    %5 = vector.broadcast %4 : vector<1x768xf32> to vector<64x768xf32>
    %6 = arith.addf %3, %5 : vector<64x768xf32>
    %7 = vector.shape_cast %6 : vector<64x768xf32> to vector<8x8x768xf32>
    %c0_6 = arith.constant 0 : index
    %c0_7 = arith.constant 0 : index
    %c0_8 = arith.constant 0 : index
    %8 = vector.load %arg10[%c0_6, %c0_7, %c0_8] : memref<8x8x768xf32, #tpu.memory_space<vmem>>, vector<8x8x768xf32>
    tpu.vector_store %arg10[%c0_6, %c0_7, %c0_8], %7 {strides = array<i32>} : memref<8x8x768xf32, #tpu.memory_space<vmem>>, vector<8x8x768xf32>,
    %c0_9 = arith.constant 0 : index
    %c0_10 = arith.constant 0 : index
    %9 = vector.load %arg1[%c0_9, %c0_10] : memref<8x1xi32, #tpu.memory_space<vmem>>, vector<8x1xi32>
    %cst_11 = arith.constant 0.000000e+00 : f32
    %10 = vector.broadcast %cst_11 : f32 to vector<8x128xf32>
    %cst_12 = arith.constant 0.000000e+00 : f32
    %11 = vector.broadcast %cst_12 : f32 to vector<8x128xf32>
    %12 = tpu.concatenate %10, %11 in 1 : vector<8x128xf32>, vector<8x128xf32> -> vector<8x256xf32>
    %c0_13 = arith.constant 0 : index
    %c0_14 = arith.constant 0 : index
    %13 = vector.load %arg5[%c0_13, %c0_14] : memref<256x768xf32, #tpu.memory_space<vmem>>, vector<256x768xf32>
    %cst_15 = arith.constant dense<0.000000e+00> : vector<8x768xf32>
    %14 = tpu.matmul %12, %13, %cst_15 {dimension_numbers = #tpu.dot_dimension_numbers<[1], [0], [0], [1], [0, 0, 1, 1], [], []>} : vector<8x256xf32>, vector<256x768xf32>, vector<8x768xf32> -> vector<8x768xf32>
    %c0_16 = arith.constant 0 : index
    %c0_17 = arith.constant 0 : index
    %c0_18 = arith.constant 0 : index
    %15 = vector.load %arg10[%c0_16, %c0_17, %c0_18] : memref<8x8x768xf32, #tpu.memory_space<vmem>>, vector<1x8x384xf32>
    %16 = vector.shape_cast %15 : vector<1x8x384xf32> to vector<8x384xf32>
    %c7 = arith.constant 7 : index
    %c0_19 = arith.constant 0 : index
    %c384 = arith.constant 384 : index
    %17 = vector.load %arg10[%c7, %c0_19, %c384] : memref<8x8x768xf32, #tpu.memory_space<vmem>>, vector<1x8x384xf32>
    %18 = vector.shape_cast %17 : vector<1x8x384xf32> to vector<8x384xf32>
    %c0_20 = arith.constant 0 : index
    %c0_21 = arith.constant 0 : index
    %19 = vector.load %arg6[%c0_20, %c0_21] : memref<1x256xf32, #tpu.memory_space<vmem>>, vector<1x128xf32>
    %c0_22 = arith.constant 0 : index
    %c128 = arith.constant 128 : index
    %20 = vector.load %arg6[%c0_22, %c128] : memref<1x256xf32, #tpu.memory_space<vmem>>, vector<1x128xf32>
    %21 = vector.extract_strided_slice %16 {offsets = [0, 0], sizes = [8, 128], strides = [1, 1]} : vector<8x384xf32> to vector<8x128xf32>
    %22 = vector.extract_strided_slice %14 {offsets = [0, 0], sizes = [8, 128], strides = [1, 1]} : vector<8x768xf32> to vector<8x128xf32>
    %23 = arith.addf %21, %22 : vector<8x128xf32>
    %24 = arith.negf %23 : vector<8x128xf32>
    %25 = math.exp %24 : vector<8x128xf32>
    %cst_23 = arith.constant 1.000000e+00 : f32
    %26 = vector.broadcast %cst_23 : f32 to vector<8x128xf32>
    %27 = arith.addf %26, %25 : vector<8x128xf32>
    %28 = arith.divf %26, %27 : vector<8x128xf32>
    %29 = vector.extract_strided_slice %16 {offsets = [0, 128], sizes = [8, 128], strides = [1, 1]} : vector<8x384xf32> to vector<8x128xf32>
    %30 = vector.extract_strided_slice %14 {offsets = [0, 128], sizes = [8, 128], strides = [1, 1]} : vector<8x768xf32> to vector<8x128xf32>
    %31 = arith.addf %29, %30 : vector<8x128xf32>
    %32 = arith.negf %31 : vector<8x128xf32>
    %33 = math.exp %32 : vector<8x128xf32>
    %cst_24 = arith.constant 1.000000e+00 : f32
    %34 = vector.broadcast %cst_24 : f32 to vector<8x128xf32>
    %35 = arith.addf %34, %33 : vector<8x128xf32>
    %36 = arith.divf %34, %35 : vector<8x128xf32>
    %37 = vector.extract_strided_slice %16 {offsets = [0, 256], sizes = [8, 128], strides = [1, 1]} : vector<8x384xf32> to vector<8x128xf32>
    %38 = vector.extract_strided_slice %14 {offsets = [0, 256], sizes = [8, 128], strides = [1, 1]} : vector<8x768xf32> to vector<8x128xf32>
    %39 = vector.broadcast %19 : vector<1x128xf32> to vector<8x128xf32>
    %40 = arith.addf %38, %39 : vector<8x128xf32>
    %41 = arith.mulf %28, %40 : vector<8x128xf32>
    %42 = arith.addf %37, %41 : vector<8x128xf32>
    %43 = math.tanh %42 : vector<8x128xf32>
    %cst_25 = arith.constant 1.000000e+00 : f32
    %44 = vector.broadcast %cst_25 : f32 to vector<8x128xf32>
    %45 = arith.subf %44, %36 : vector<8x128xf32>
    %46 = arith.mulf %45, %43 : vector<8x128xf32>
    %47 = arith.mulf %36, %10 : vector<8x128xf32>
    %48 = arith.addf %46, %47 : vector<8x128xf32>
    %49 = vector.extract_strided_slice %18 {offsets = [0, 0], sizes = [8, 128], strides = [1, 1]} : vector<8x384xf32> to vector<8x128xf32>
    %50 = vector.extract_strided_slice %14 {offsets = [0, 384], sizes = [8, 128], strides = [1, 1]} : vector<8x768xf32> to vector<8x128xf32>
    %51 = arith.addf %49, %50 : vector<8x128xf32>
    %52 = arith.negf %51 : vector<8x128xf32>
    %53 = math.exp %52 : vector<8x128xf32>
    %cst_26 = arith.constant 1.000000e+00 : f32
    %54 = vector.broadcast %cst_26 : f32 to vector<8x128xf32>
    %55 = arith.addf %54, %53 : vector<8x128xf32>
    %56 = arith.divf %54, %55 : vector<8x128xf32>
    %57 = vector.extract_strided_slice %18 {offsets = [0, 128], sizes = [8, 128], strides = [1, 1]} : vector<8x384xf32> to vector<8x128xf32>
    %58 = vector.extract_strided_slice %14 {offsets = [0, 512], sizes = [8, 128], strides = [1, 1]} : vector<8x768xf32> to vector<8x128xf32>
    %59 = arith.addf %57, %58 : vector<8x128xf32>
    %60 = arith.negf %59 : vector<8x128xf32>
    %61 = math.exp %60 : vector<8x128xf32>
    %cst_27 = arith.constant 1.000000e+00 : f32
    %62 = vector.broadcast %cst_27 : f32 to vector<8x128xf32>
    %63 = arith.addf %62, %61 : vector<8x128xf32>
    %64 = arith.divf %62, %63 : vector<8x128xf32>
    %65 = vector.extract_strided_slice %18 {offsets = [0, 256], sizes = [8, 128], strides = [1, 1]} : vector<8x384xf32> to vector<8x128xf32>
    %66 = vector.extract_strided_slice %14 {offsets = [0, 640], sizes = [8, 128], strides = [1, 1]} : vector<8x768xf32> to vector<8x128xf32>
    %67 = vector.broadcast %20 : vector<1x128xf32> to vector<8x128xf32>
    %68 = arith.addf %66, %67 : vector<8x128xf32>
    %69 = arith.mulf %56, %68 : vector<8x128xf32>
    %70 = arith.addf %65, %69 : vector<8x128xf32>
    %71 = math.tanh %70 : vector<8x128xf32>
    %cst_28 = arith.constant 1.000000e+00 : f32
    %72 = vector.broadcast %cst_28 : f32 to vector<8x128xf32>
    %73 = arith.subf %72, %64 : vector<8x128xf32>
    %74 = arith.mulf %73, %71 : vector<8x128xf32>
    %75 = arith.mulf %64, %11 : vector<8x128xf32>
    %76 = arith.addf %74, %75 : vector<8x128xf32>
    %c0_i32 = arith.constant 0 : i32
    %77 = vector.broadcast %c0_i32 : i32 to vector<8x1xi32>
    %78 = arith.cmpi sgt, %9, %77 : vector<8x1xi32>
    %c7_i32 = arith.constant 7 : i32
    %79 = vector.broadcast %c7_i32 : i32 to vector<8x1xi32>
    %80 = arith.cmpi sgt, %9, %79 : vector<8x1xi32>
    %cst_29 = arith.constant 0.000000e+00 : f32
    %81 = vector.shape_cast %78 : vector<8x1xi1> to vector<8x1xi1>
    %82 = vector.broadcast %81 : vector<8x1xi1> to vector<8x128xi1>
    %83 = vector.broadcast %cst_29 : f32 to vector<8x128xf32>
    %84 = arith.select %82, %48, %83 : vector<8x128xi1>, vector<8x128xf32>
    %c0_30 = arith.constant 0 : index
    %c0_31 = arith.constant 0 : index
    %c0_32 = arith.constant 0 : index
    %85 = vector.load %arg9[%c0_30, %c0_31, %c0_32] : memref<8x8x256xf32, #tpu.memory_space<vmem>>, vector<1x8x128xf32>
    %86 = vector.shape_cast %85 : vector<1x8x128xf32> to vector<8x128xf32>
    %87 = vector.shape_cast %84 : vector<8x128xf32> to vector<1x8x128xf32>
    tpu.vector_store %arg9[%c0_30, %c0_31, %c0_32], %87 {strides = array<i32>} : memref<8x8x256xf32, #tpu.memory_space<vmem>>, vector<1x8x128xf32>,
    %cst_33 = arith.constant 0.000000e+00 : f32
    %88 = vector.shape_cast %80 : vector<8x1xi1> to vector<8x1xi1>
    %89 = vector.broadcast %88 : vector<8x1xi1> to vector<8x128xi1>
    %90 = vector.broadcast %cst_33 : f32 to vector<8x128xf32>
    %91 = arith.select %89, %76, %90 : vector<8x128xi1>, vector<8x128xf32>
    %c7_34 = arith.constant 7 : index
    %c0_35 = arith.constant 0 : index
    %c128_36 = arith.constant 128 : index
    %92 = vector.load %arg9[%c7_34, %c0_35, %c128_36] : memref<8x8x256xf32, #tpu.memory_space<vmem>>, vector<1x8x128xf32>
    %93 = vector.shape_cast %92 : vector<1x8x128xf32> to vector<8x128xf32>
    %94 = vector.shape_cast %91 : vector<8x128xf32> to vector<1x8x128xf32>
    tpu.vector_store %arg9[%c7_34, %c0_35, %c128_36], %94 {strides = array<i32>} : memref<8x8x256xf32, #tpu.memory_space<vmem>>, vector<1x8x128xf32>,
    %95 = vector.shape_cast %78 : vector<8x1xi1> to vector<8x1xi1>
    %96 = vector.broadcast %95 : vector<8x1xi1> to vector<8x128xi1>
    %97 = arith.select %96, %48, %10 : vector<8x128xi1>, vector<8x128xf32>
    %98 = vector.shape_cast %80 : vector<8x1xi1> to vector<8x1xi1>
    %99 = vector.broadcast %98 : vector<8x1xi1> to vector<8x128xi1>
    %100 = arith.select %99, %76, %11 : vector<8x128xi1>, vector<8x128xf32>
    %101 = tpu.concatenate %97, %100 in 1 : vector<8x128xf32>, vector<8x128xf32> -> vector<8x256xf32>
    %c0_37 = arith.constant 0 : index
    %c0_38 = arith.constant 0 : index
    %102 = vector.load %arg5[%c0_37, %c0_38] : memref<256x768xf32, #tpu.memory_space<vmem>>, vector<256x768xf32>
    %cst_39 = arith.constant dense<0.000000e+00> : vector<8x768xf32>
    %103 = tpu.matmul %101, %102, %cst_39 {dimension_numbers = #tpu.dot_dimension_numbers<[1], [0], [0], [1], [0, 0, 1, 1], [], []>} : vector<8x256xf32>, vector<256x768xf32>, vector<8x768xf32> -> vector<8x768xf32>
    %c1 = arith.constant 1 : index
    %c0_40 = arith.constant 0 : index
    %c0_41 = arith.constant 0 : index
    %104 = vector.load %arg10[%c1, %c0_40, %c0_41] : memref<8x8x768xf32, #tpu.memory_space<vmem>>, vector<1x8x384xf32>
    %105 = vector.shape_cast %104 : vector<1x8x384xf32> to vector<8x384xf32>
    %c6 = arith.constant 6 : index
    %c0_42 = arith.constant 0 : index
    %c384_43 = arith.constant 384 : index
    %106 = vector.load %arg10[%c6, %c0_42, %c384_43] : memref<8x8x768xf32, #tpu.memory_space<vmem>>, vector<1x8x384xf32>
    %107 = vector.shape_cast %106 : vector<1x8x384xf32> to vector<8x384xf32>
    %c0_44 = arith.constant 0 : index
    %c0_45 = arith.constant 0 : index
    %108 = vector.load %arg6[%c0_44, %c0_45] : memref<1x256xf32, #tpu.memory_space<vmem>>, vector<1x128xf32>
    %c0_46 = arith.constant 0 : index
    %c128_47 = arith.constant 128 : index
    %109 = vector.load %arg6[%c0_46, %c128_47] : memref<1x256xf32, #tpu.memory_space<vmem>>, vector<1x128xf32>
    %110 = vector.extract_strided_slice %105 {offsets = [0, 0], sizes = [8, 128], strides = [1, 1]} : vector<8x384xf32> to vector<8x128xf32>
    %111 = vector.extract_strided_slice %103 {offsets = [0, 0], sizes = [8, 128], strides = [1, 1]} : vector<8x768xf32> to vector<8x128xf32>
    %112 = arith.addf %110, %111 : vector<8x128xf32>
    %113 = arith.negf %112 : vector<8x128xf32>
    %114 = math.exp %113 : vector<8x128xf32>
    %cst_48 = arith.constant 1.000000e+00 : f32
    %115 = vector.broadcast %cst_48 : f32 to vector<8x128xf32>
    %116 = arith.addf %115, %114 : vector<8x128xf32>
    %117 = arith.divf %115, %116 : vector<8x128xf32>
    %118 = vector.extract_strided_slice %105 {offsets = [0, 128], sizes = [8, 128], strides = [1, 1]} : vector<8x384xf32> to vector<8x128xf32>
    %119 = vector.extract_strided_slice %103 {offsets = [0, 128], sizes = [8, 128], strides = [1, 1]} : vector<8x768xf32> to vector<8x128xf32>
    %120 = arith.addf %118, %119 : vector<8x128xf32>
    %121 = arith.negf %120 : vector<8x128xf32>
    %122 = math.exp %121 : vector<8x128xf32>
    %cst_49 = arith.constant 1.000000e+00 : f32
    %123 = vector.broadcast %cst_49 : f32 to vector<8x128xf32>
    %124 = arith.addf %123, %122 : vector<8x128xf32>
    %125 = arith.divf %123, %124 : vector<8x128xf32>
    %126 = vector.extract_strided_slice %105 {offsets = [0, 256], sizes = [8, 128], strides = [1, 1]} : vector<8x384xf32> to vector<8x128xf32>
    %127 = vector.extract_strided_slice %103 {offsets = [0, 256], sizes = [8, 128], strides = [1, 1]} : vector<8x768xf32> to vector<8x128xf32>
    %128 = vector.broadcast %108 : vector<1x128xf32> to vector<8x128xf32>
    %129 = arith.addf %127, %128 : vector<8x128xf32>
    %130 = arith.mulf %117, %129 : vector<8x128xf32>
    %131 = arith.addf %126, %130 : vector<8x128xf32>
    %132 = math.tanh %131 : vector<8x128xf32>
    %cst_50 = arith.constant 1.000000e+00 : f32
    %133 = vector.broadcast %cst_50 : f32 to vector<8x128xf32>
    %134 = arith.subf %133, %125 : vector<8x128xf32>
    %135 = arith.mulf %134, %132 : vector<8x128xf32>
    %136 = arith.mulf %125, %97 : vector<8x128xf32>
    %137 = arith.addf %135, %136 : vector<8x128xf32>
    %138 = vector.extract_strided_slice %107 {offsets = [0, 0], sizes = [8, 128], strides = [1, 1]} : vector<8x384xf32> to vector<8x128xf32>
    %139 = vector.extract_strided_slice %103 {offsets = [0, 384], sizes = [8, 128], strides = [1, 1]} : vector<8x768xf32> to vector<8x128xf32>
    %140 = arith.addf %138, %139 : vector<8x128xf32>
    %141 = arith.negf %140 : vector<8x128xf32>
    %142 = math.exp %141 : vector<8x128xf32>
    %cst_51 = arith.constant 1.000000e+00 : f32
    %143 = vector.broadcast %cst_51 : f32 to vector<8x128xf32>
    %144 = arith.addf %143, %142 : vector<8x128xf32>
    %145 = arith.divf %143, %144 : vector<8x128xf32>
    %146 = vector.extract_strided_slice %107 {offsets = [0, 128], sizes = [8, 128], strides = [1, 1]} : vector<8x384xf32> to vector<8x128xf32>
    %147 = vector.extract_strided_slice %103 {offsets = [0, 512], sizes = [8, 128], strides = [1, 1]} : vector<8x768xf32> to vector<8x128xf32>
    %148 = arith.addf %146, %147 : vector<8x128xf32>
    %149 = arith.negf %148 : vector<8x128xf32>
    %150 = math.exp %149 : vector<8x128xf32>
    %cst_52 = arith.constant 1.000000e+00 : f32
    %151 = vector.broadcast %cst_52 : f32 to vector<8x128xf32>
    %152 = arith.addf %151, %150 : vector<8x128xf32>
    %153 = arith.divf %151, %152 : vector<8x128xf32>
    %154 = vector.extract_strided_slice %107 {offsets = [0, 256], sizes = [8, 128], strides = [1, 1]} : vector<8x384xf32> to vector<8x128xf32>
    %155 = vector.extract_strided_slice %103 {offsets = [0, 640], sizes = [8, 128], strides = [1, 1]} : vector<8x768xf32> to vector<8x128xf32>
    %156 = vector.broadcast %109 : vector<1x128xf32> to vector<8x128xf32>
    %157 = arith.addf %155, %156 : vector<8x128xf32>
    %158 = arith.mulf %145, %157 : vector<8x128xf32>
    %159 = arith.addf %154, %158 : vector<8x128xf32>
    %160 = math.tanh %159 : vector<8x128xf32>
    %cst_53 = arith.constant 1.000000e+00 : f32
    %161 = vector.broadcast %cst_53 : f32 to vector<8x128xf32>
    %162 = arith.subf %161, %153 : vector<8x128xf32>
    %163 = arith.mulf %162, %160 : vector<8x128xf32>
    %164 = arith.mulf %153, %100 : vector<8x128xf32>
    %165 = arith.addf %163, %164 : vector<8x128xf32>
    %c1_i32 = arith.constant 1 : i32
    %166 = vector.broadcast %c1_i32 : i32 to vector<8x1xi32>
    %167 = arith.cmpi sgt, %9, %166 : vector<8x1xi32>
    %c6_i32 = arith.constant 6 : i32
    %168 = vector.broadcast %c6_i32 : i32 to vector<8x1xi32>
    %169 = arith.cmpi sgt, %9, %168 : vector<8x1xi32>
    %cst_54 = arith.constant 0.000000e+00 : f32
    %170 = vector.shape_cast %167 : vector<8x1xi1> to vector<8x1xi1>
    %171 = vector.broadcast %170 : vector<8x1xi1> to vector<8x128xi1>
    %172 = vector.broadcast %cst_54 : f32 to vector<8x128xf32>
    %173 = arith.select %171, %137, %172 : vector<8x128xi1>, vector<8x128xf32>
    %c1_55 = arith.constant 1 : index
    %c0_56 = arith.constant 0 : index
    %c0_57 = arith.constant 0 : index
    %174 = vector.load %arg9[%c1_55, %c0_56, %c0_57] : memref<8x8x256xf32, #tpu.memory_space<vmem>>, vector<1x8x128xf32>
    %175 = vector.shape_cast %174 : vector<1x8x128xf32> to vector<8x128xf32>
    %176 = vector.shape_cast %173 : vector<8x128xf32> to vector<1x8x128xf32>
    tpu.vector_store %arg9[%c1_55, %c0_56, %c0_57], %176 {strides = array<i32>} : memref<8x8x256xf32, #tpu.memory_space<vmem>>, vector<1x8x128xf32>,
    %cst_58 = arith.constant 0.000000e+00 : f32
    %177 = vector.shape_cast %169 : vector<8x1xi1> to vector<8x1xi1>
    %178 = vector.broadcast %177 : vector<8x1xi1> to vector<8x128xi1>
    %179 = vector.broadcast %cst_58 : f32 to vector<8x128xf32>
    %180 = arith.select %178, %165, %179 : vector<8x128xi1>, vector<8x128xf32>
    %c6_59 = arith.constant 6 : index
    %c0_60 = arith.constant 0 : index
    %c128_61 = arith.constant 128 : index
    %181 = vector.load %arg9[%c6_59, %c0_60, %c128_61] : memref<8x8x256xf32, #tpu.memory_space<vmem>>, vector<1x8x128xf32>
    %182 = vector.shape_cast %181 : vector<1x8x128xf32> to vector<8x128xf32>
    %183 = vector.shape_cast %180 : vector<8x128xf32> to vector<1x8x128xf32>
    tpu.vector_store %arg9[%c6_59, %c0_60, %c128_61], %183 {strides = array<i32>} : memref<8x8x256xf32, #tpu.memory_space<vmem>>, vector<1x8x128xf32>,
    %184 = vector.shape_cast %167 : vector<8x1xi1> to vector<8x1xi1>
    %185 = vector.broadcast %184 : vector<8x1xi1> to vector<8x128xi1>
    %186 = arith.select %185, %137, %97 : vector<8x128xi1>, vector<8x128xf32>
    %187 = vector.shape_cast %169 : vector<8x1xi1> to vector<8x1xi1>
    %188 = vector.broadcast %187 : vector<8x1xi1> to vector<8x128xi1>
    %189 = arith.select %188, %165, %100 : vector<8x128xi1>, vector<8x128xf32>
    %190 = tpu.concatenate %186, %189 in 1 : vector<8x128xf32>, vector<8x128xf32> -> vector<8x256xf32>
    %c0_62 = arith.constant 0 : index
    %c0_63 = arith.constant 0 : index
    %191 = vector.load %arg5[%c0_62, %c0_63] : memref<256x768xf32, #tpu.memory_space<vmem>>, vector<256x768xf32>
    %cst_64 = arith.constant dense<0.000000e+00> : vector<8x768xf32>
    %192 = tpu.matmul %190, %191, %cst_64 {dimension_numbers = #tpu.dot_dimension_numbers<[1], [0], [0], [1], [0, 0, 1, 1], [], []>} : vector<8x256xf32>, vector<256x768xf32>, vector<8x768xf32> -> vector<8x768xf32>
    %c2 = arith.constant 2 : index
    %c0_65 = arith.constant 0 : index
    %c0_66 = arith.constant 0 : index
    %193 = vector.load %arg10[%c2, %c0_65, %c0_66] : memref<8x8x768xf32, #tpu.memory_space<vmem>>, vector<1x8x384xf32>
    %194 = vector.shape_cast %193 : vector<1x8x384xf32> to vector<8x384xf32>
    %c5 = arith.constant 5 : index
    %c0_67 = arith.constant 0 : index
    %c384_68 = arith.constant 384 : index
    %195 = vector.load %arg10[%c5, %c0_67, %c384_68] : memref<8x8x768xf32, #tpu.memory_space<vmem>>, vector<1x8x384xf32>
    %196 = vector.shape_cast %195 : vector<1x8x384xf32> to vector<8x384xf32>
    %c0_69 = arith.constant 0 : index
    %c0_70 = arith.constant 0 : index
    %197 = vector.load %arg6[%c0_69, %c0_70] : memref<1x256xf32, #tpu.memory_space<vmem>>, vector<1x128xf32>
    %c0_71 = arith.constant 0 : index
    %c128_72 = arith.constant 128 : index
    %198 = vector.load %arg6[%c0_71, %c128_72] : memref<1x256xf32, #tpu.memory_space<vmem>>, vector<1x128xf32>
    %199 = vector.extract_strided_slice %194 {offsets = [0, 0], sizes = [8, 128], strides = [1, 1]} : vector<8x384xf32> to vector<8x128xf32>
    %200 = vector.extract_strided_slice %192 {offsets = [0, 0], sizes = [8, 128], strides = [1, 1]} : vector<8x768xf32> to vector<8x128xf32>
    %201 = arith.addf %199, %200 : vector<8x128xf32>
    %202 = arith.negf %201 : vector<8x128xf32>
    %203 = math.exp %202 : vector<8x128xf32>
    %cst_73 = arith.constant 1.000000e+00 : f32
    %204 = vector.broadcast %cst_73 : f32 to vector<8x128xf32>
    %205 = arith.addf %204, %203 : vector<8x128xf32>
    %206 = arith.divf %204, %205 : vector<8x128xf32>
    %207 = vector.extract_strided_slice %194 {offsets = [0, 128], sizes = [8, 128], strides = [1, 1]} : vector<8x384xf32> to vector<8x128xf32>
    %208 = vector.extract_strided_slice %192 {offsets = [0, 128], sizes = [8, 128], strides = [1, 1]} : vector<8x768xf32> to vector<8x128xf32>
    %209 = arith.addf %207, %208 : vector<8x128xf32>
    %210 = arith.negf %209 : vector<8x128xf32>
    %211 = math.exp %210 : vector<8x128xf32>
    %cst_74 = arith.constant 1.000000e+00 : f32
    %212 = vector.broadcast %cst_74 : f32 to vector<8x128xf32>
    %213 = arith.addf %212, %211 : vector<8x128xf32>
    %214 = arith.divf %212, %213 : vector<8x128xf32>
    %215 = vector.extract_strided_slice %194 {offsets = [0, 256], sizes = [8, 128], strides = [1, 1]} : vector<8x384xf32> to vector<8x128xf32>
    %216 = vector.extract_strided_slice %192 {offsets = [0, 256], sizes = [8, 128], strides = [1, 1]} : vector<8x768xf32> to vector<8x128xf32>
    %217 = vector.broadcast %197 : vector<1x128xf32> to vector<8x128xf32>
    %218 = arith.addf %216, %217 : vector<8x128xf32>
    %219 = arith.mulf %206, %218 : vector<8x128xf32>
    %220 = arith.addf %215, %219 : vector<8x128xf32>
    %221 = math.tanh %220 : vector<8x128xf32>
    %cst_75 = arith.constant 1.000000e+00 : f32
    %222 = vector.broadcast %cst_75 : f32 to vector<8x128xf32>
    %223 = arith.subf %222, %214 : vector<8x128xf32>
    %224 = arith.mulf %223, %221 : vector<8x128xf32>
    %225 = arith.mulf %214, %186 : vector<8x128xf32>
    %226 = arith.addf %224, %225 : vector<8x128xf32>
    %227 = vector.extract_strided_slice %196 {offsets = [0, 0], sizes = [8, 128], strides = [1, 1]} : vector<8x384xf32> to vector<8x128xf32>
    %228 = vector.extract_strided_slice %192 {offsets = [0, 384], sizes = [8, 128], strides = [1, 1]} : vector<8x768xf32> to vector<8x128xf32>
    %229 = arith.addf %227, %228 : vector<8x128xf32>
    %230 = arith.negf %229 : vector<8x128xf32>
    %231 = math.exp %230 : vector<8x128xf32>
    %cst_76 = arith.constant 1.000000e+00 : f32
    %232 = vector.broadcast %cst_76 : f32 to vector<8x128xf32>
    %233 = arith.addf %232, %231 : vector<8x128xf32>
    %234 = arith.divf %232, %233 : vector<8x128xf32>
    %235 = vector.extract_strided_slice %196 {offsets = [0, 128], sizes = [8, 128], strides = [1, 1]} : vector<8x384xf32> to vector<8x128xf32>
    %236 = vector.extract_strided_slice %192 {offsets = [0, 512], sizes = [8, 128], strides = [1, 1]} : vector<8x768xf32> to vector<8x128xf32>
    %237 = arith.addf %235, %236 : vector<8x128xf32>
    %238 = arith.negf %237 : vector<8x128xf32>
    %239 = math.exp %238 : vector<8x128xf32>
    %cst_77 = arith.constant 1.000000e+00 : f32
    %240 = vector.broadcast %cst_77 : f32 to vector<8x128xf32>
    %241 = arith.addf %240, %239 : vector<8x128xf32>
    %242 = arith.divf %240, %241 : vector<8x128xf32>
    %243 = vector.extract_strided_slice %196 {offsets = [0, 256], sizes = [8, 128], strides = [1, 1]} : vector<8x384xf32> to vector<8x128xf32>
    %244 = vector.extract_strided_slice %192 {offsets = [0, 640], sizes = [8, 128], strides = [1, 1]} : vector<8x768xf32> to vector<8x128xf32>
    %245 = vector.broadcast %198 : vector<1x128xf32> to vector<8x128xf32>
    %246 = arith.addf %244, %245 : vector<8x128xf32>
    %247 = arith.mulf %234, %246 : vector<8x128xf32>
    %248 = arith.addf %243, %247 : vector<8x128xf32>
    %249 = math.tanh %248 : vector<8x128xf32>
    %cst_78 = arith.constant 1.000000e+00 : f32
    %250 = vector.broadcast %cst_78 : f32 to vector<8x128xf32>
    %251 = arith.subf %250, %242 : vector<8x128xf32>
    %252 = arith.mulf %251, %249 : vector<8x128xf32>
    %253 = arith.mulf %242, %189 : vector<8x128xf32>
    %254 = arith.addf %252, %253 : vector<8x128xf32>
    %c2_i32 = arith.constant 2 : i32
    %255 = vector.broadcast %c2_i32 : i32 to vector<8x1xi32>
    %256 = arith.cmpi sgt, %9, %255 : vector<8x1xi32>
    %c5_i32 = arith.constant 5 : i32
    %257 = vector.broadcast %c5_i32 : i32 to vector<8x1xi32>
    %258 = arith.cmpi sgt, %9, %257 : vector<8x1xi32>
    %cst_79 = arith.constant 0.000000e+00 : f32
    %259 = vector.shape_cast %256 : vector<8x1xi1> to vector<8x1xi1>
    %260 = vector.broadcast %259 : vector<8x1xi1> to vector<8x128xi1>
    %261 = vector.broadcast %cst_79 : f32 to vector<8x128xf32>
    %262 = arith.select %260, %226, %261 : vector<8x128xi1>, vector<8x128xf32>
    %c2_80 = arith.constant 2 : index
    %c0_81 = arith.constant 0 : index
    %c0_82 = arith.constant 0 : index
    %263 = vector.load %arg9[%c2_80, %c0_81, %c0_82] : memref<8x8x256xf32, #tpu.memory_space<vmem>>, vector<1x8x128xf32>
    %264 = vector.shape_cast %263 : vector<1x8x128xf32> to vector<8x128xf32>
    %265 = vector.shape_cast %262 : vector<8x128xf32> to vector<1x8x128xf32>
    tpu.vector_store %arg9[%c2_80, %c0_81, %c0_82], %265 {strides = array<i32>} : memref<8x8x256xf32, #tpu.memory_space<vmem>>, vector<1x8x128xf32>,
    %cst_83 = arith.constant 0.000000e+00 : f32
    %266 = vector.shape_cast %258 : vector<8x1xi1> to vector<8x1xi1>
    %267 = vector.broadcast %266 : vector<8x1xi1> to vector<8x128xi1>
    %268 = vector.broadcast %cst_83 : f32 to vector<8x128xf32>
    %269 = arith.select %267, %254, %268 : vector<8x128xi1>, vector<8x128xf32>
    %c5_84 = arith.constant 5 : index
    %c0_85 = arith.constant 0 : index
    %c128_86 = arith.constant 128 : index
    %270 = vector.load %arg9[%c5_84, %c0_85, %c128_86] : memref<8x8x256xf32, #tpu.memory_space<vmem>>, vector<1x8x128xf32>
    %271 = vector.shape_cast %270 : vector<1x8x128xf32> to vector<8x128xf32>
    %272 = vector.shape_cast %269 : vector<8x128xf32> to vector<1x8x128xf32>
    tpu.vector_store %arg9[%c5_84, %c0_85, %c128_86], %272 {strides = array<i32>} : memref<8x8x256xf32, #tpu.memory_space<vmem>>, vector<1x8x128xf32>,
    %273 = vector.shape_cast %256 : vector<8x1xi1> to vector<8x1xi1>
    %274 = vector.broadcast %273 : vector<8x1xi1> to vector<8x128xi1>
    %275 = arith.select %274, %226, %186 : vector<8x128xi1>, vector<8x128xf32>
    %276 = vector.shape_cast %258 : vector<8x1xi1> to vector<8x1xi1>
    %277 = vector.broadcast %276 : vector<8x1xi1> to vector<8x128xi1>
    %278 = arith.select %277, %254, %189 : vector<8x128xi1>, vector<8x128xf32>
    %279 = tpu.concatenate %275, %278 in 1 : vector<8x128xf32>, vector<8x128xf32> -> vector<8x256xf32>
    %c0_87 = arith.constant 0 : index
    %c0_88 = arith.constant 0 : index
    %280 = vector.load %arg5[%c0_87, %c0_88] : memref<256x768xf32, #tpu.memory_space<vmem>>, vector<256x768xf32>
    %cst_89 = arith.constant dense<0.000000e+00> : vector<8x768xf32>
    %281 = tpu.matmul %279, %280, %cst_89 {dimension_numbers = #tpu.dot_dimension_numbers<[1], [0], [0], [1], [0, 0, 1, 1], [], []>} : vector<8x256xf32>, vector<256x768xf32>, vector<8x768xf32> -> vector<8x768xf32>
    %c3 = arith.constant 3 : index
    %c0_90 = arith.constant 0 : index
    %c0_91 = arith.constant 0 : index
    %282 = vector.load %arg10[%c3, %c0_90, %c0_91] : memref<8x8x768xf32, #tpu.memory_space<vmem>>, vector<1x8x384xf32>
    %283 = vector.shape_cast %282 : vector<1x8x384xf32> to vector<8x384xf32>
    %c4 = arith.constant 4 : index
    %c0_92 = arith.constant 0 : index
    %c384_93 = arith.constant 384 : index
    %284 = vector.load %arg10[%c4, %c0_92, %c384_93] : memref<8x8x768xf32, #tpu.memory_space<vmem>>, vector<1x8x384xf32>
    %285 = vector.shape_cast %284 : vector<1x8x384xf32> to vector<8x384xf32>
    %c0_94 = arith.constant 0 : index
    %c0_95 = arith.constant 0 : index
    %286 = vector.load %arg6[%c0_94, %c0_95] : memref<1x256xf32, #tpu.memory_space<vmem>>, vector<1x128xf32>
    %c0_96 = arith.constant 0 : index
    %c128_97 = arith.constant 128 : index
    %287 = vector.load %arg6[%c0_96, %c128_97] : memref<1x256xf32, #tpu.memory_space<vmem>>, vector<1x128xf32>
    %288 = vector.extract_strided_slice %283 {offsets = [0, 0], sizes = [8, 128], strides = [1, 1]} : vector<8x384xf32> to vector<8x128xf32>
    %289 = vector.extract_strided_slice %281 {offsets = [0, 0], sizes = [8, 128], strides = [1, 1]} : vector<8x768xf32> to vector<8x128xf32>
    %290 = arith.addf %288, %289 : vector<8x128xf32>
    %291 = arith.negf %290 : vector<8x128xf32>
    %292 = math.exp %291 : vector<8x128xf32>
    %cst_98 = arith.constant 1.000000e+00 : f32
    %293 = vector.broadcast %cst_98 : f32 to vector<8x128xf32>
    %294 = arith.addf %293, %292 : vector<8x128xf32>
    %295 = arith.divf %293, %294 : vector<8x128xf32>
    %296 = vector.extract_strided_slice %283 {offsets = [0, 128], sizes = [8, 128], strides = [1, 1]} : vector<8x384xf32> to vector<8x128xf32>
    %297 = vector.extract_strided_slice %281 {offsets = [0, 128], sizes = [8, 128], strides = [1, 1]} : vector<8x768xf32> to vector<8x128xf32>
    %298 = arith.addf %296, %297 : vector<8x128xf32>
    %299 = arith.negf %298 : vector<8x128xf32>
    %300 = math.exp %299 : vector<8x128xf32>
    %cst_99 = arith.constant 1.000000e+00 : f32
    %301 = vector.broadcast %cst_99 : f32 to vector<8x128xf32>
    %302 = arith.addf %301, %300 : vector<8x128xf32>
    %303 = arith.divf %301, %302 : vector<8x128xf32>
    %304 = vector.extract_strided_slice %283 {offsets = [0, 256], sizes = [8, 128], strides = [1, 1]} : vector<8x384xf32> to vector<8x128xf32>
    %305 = vector.extract_strided_slice %281 {offsets = [0, 256], sizes = [8, 128], strides = [1, 1]} : vector<8x768xf32> to vector<8x128xf32>
    %306 = vector.broadcast %286 : vector<1x128xf32> to vector<8x128xf32>
    %307 = arith.addf %305, %306 : vector<8x128xf32>
    %308 = arith.mulf %295, %307 : vector<8x128xf32>
    %309 = arith.addf %304, %308 : vector<8x128xf32>
    %310 = math.tanh %309 : vector<8x128xf32>
    %cst_100 = arith.constant 1.000000e+00 : f32
    %311 = vector.broadcast %cst_100 : f32 to vector<8x128xf32>
    %312 = arith.subf %311, %303 : vector<8x128xf32>
    %313 = arith.mulf %312, %310 : vector<8x128xf32>
    %314 = arith.mulf %303, %275 : vector<8x128xf32>
    %315 = arith.addf %313, %314 : vector<8x128xf32>
    %316 = vector.extract_strided_slice %285 {offsets = [0, 0], sizes = [8, 128], strides = [1, 1]} : vector<8x384xf32> to vector<8x128xf32>
    %317 = vector.extract_strided_slice %281 {offsets = [0, 384], sizes = [8, 128], strides = [1, 1]} : vector<8x768xf32> to vector<8x128xf32>
    %318 = arith.addf %316, %317 : vector<8x128xf32>
    %319 = arith.negf %318 : vector<8x128xf32>
    %320 = math.exp %319 : vector<8x128xf32>
    %cst_101 = arith.constant 1.000000e+00 : f32
    %321 = vector.broadcast %cst_101 : f32 to vector<8x128xf32>
    %322 = arith.addf %321, %320 : vector<8x128xf32>
    %323 = arith.divf %321, %322 : vector<8x128xf32>
    %324 = vector.extract_strided_slice %285 {offsets = [0, 128], sizes = [8, 128], strides = [1, 1]} : vector<8x384xf32> to vector<8x128xf32>
    %325 = vector.extract_strided_slice %281 {offsets = [0, 512], sizes = [8, 128], strides = [1, 1]} : vector<8x768xf32> to vector<8x128xf32>
    %326 = arith.addf %324, %325 : vector<8x128xf32>
    %327 = arith.negf %326 : vector<8x128xf32>
    %328 = math.exp %327 : vector<8x128xf32>
    %cst_102 = arith.constant 1.000000e+00 : f32
    %329 = vector.broadcast %cst_102 : f32 to vector<8x128xf32>
    %330 = arith.addf %329, %328 : vector<8x128xf32>
    %331 = arith.divf %329, %330 : vector<8x128xf32>
    %332 = vector.extract_strided_slice %285 {offsets = [0, 256], sizes = [8, 128], strides = [1, 1]} : vector<8x384xf32> to vector<8x128xf32>
    %333 = vector.extract_strided_slice %281 {offsets = [0, 640], sizes = [8, 128], strides = [1, 1]} : vector<8x768xf32> to vector<8x128xf32>
    %334 = vector.broadcast %287 : vector<1x128xf32> to vector<8x128xf32>
    %335 = arith.addf %333, %334 : vector<8x128xf32>
    %336 = arith.mulf %323, %335 : vector<8x128xf32>
    %337 = arith.addf %332, %336 : vector<8x128xf32>
    %338 = math.tanh %337 : vector<8x128xf32>
    %cst_103 = arith.constant 1.000000e+00 : f32
    %339 = vector.broadcast %cst_103 : f32 to vector<8x128xf32>
    %340 = arith.subf %339, %331 : vector<8x128xf32>
    %341 = arith.mulf %340, %338 : vector<8x128xf32>
    %342 = arith.mulf %331, %278 : vector<8x128xf32>
    %343 = arith.addf %341, %342 : vector<8x128xf32>
    %c3_i32 = arith.constant 3 : i32
    %344 = vector.broadcast %c3_i32 : i32 to vector<8x1xi32>
    %345 = arith.cmpi sgt, %9, %344 : vector<8x1xi32>
    %c4_i32 = arith.constant 4 : i32
    %346 = vector.broadcast %c4_i32 : i32 to vector<8x1xi32>
    %347 = arith.cmpi sgt, %9, %346 : vector<8x1xi32>
    %cst_104 = arith.constant 0.000000e+00 : f32
    %348 = vector.shape_cast %345 : vector<8x1xi1> to vector<8x1xi1>
    %349 = vector.broadcast %348 : vector<8x1xi1> to vector<8x128xi1>
    %350 = vector.broadcast %cst_104 : f32 to vector<8x128xf32>
    %351 = arith.select %349, %315, %350 : vector<8x128xi1>, vector<8x128xf32>
    %c3_105 = arith.constant 3 : index
    %c0_106 = arith.constant 0 : index
    %c0_107 = arith.constant 0 : index
    %352 = vector.load %arg9[%c3_105, %c0_106, %c0_107] : memref<8x8x256xf32, #tpu.memory_space<vmem>>, vector<1x8x128xf32>
    %353 = vector.shape_cast %352 : vector<1x8x128xf32> to vector<8x128xf32>
    %354 = vector.shape_cast %351 : vector<8x128xf32> to vector<1x8x128xf32>
    tpu.vector_store %arg9[%c3_105, %c0_106, %c0_107], %354 {strides = array<i32>} : memref<8x8x256xf32, #tpu.memory_space<vmem>>, vector<1x8x128xf32>,
    %cst_108 = arith.constant 0.000000e+00 : f32
    %355 = vector.shape_cast %347 : vector<8x1xi1> to vector<8x1xi1>
    %356 = vector.broadcast %355 : vector<8x1xi1> to vector<8x128xi1>
    %357 = vector.broadcast %cst_108 : f32 to vector<8x128xf32>
    %358 = arith.select %356, %343, %357 : vector<8x128xi1>, vector<8x128xf32>
    %c4_109 = arith.constant 4 : index
    %c0_110 = arith.constant 0 : index
    %c128_111 = arith.constant 128 : index
    %359 = vector.load %arg9[%c4_109, %c0_110, %c128_111] : memref<8x8x256xf32, #tpu.memory_space<vmem>>, vector<1x8x128xf32>
    %360 = vector.shape_cast %359 : vector<1x8x128xf32> to vector<8x128xf32>
    %361 = vector.shape_cast %358 : vector<8x128xf32> to vector<1x8x128xf32>
    tpu.vector_store %arg9[%c4_109, %c0_110, %c128_111], %361 {strides = array<i32>} : memref<8x8x256xf32, #tpu.memory_space<vmem>>, vector<1x8x128xf32>,
    %362 = vector.shape_cast %345 : vector<8x1xi1> to vector<8x1xi1>
    %363 = vector.broadcast %362 : vector<8x1xi1> to vector<8x128xi1>
    %364 = arith.select %363, %315, %275 : vector<8x128xi1>, vector<8x128xf32>
    %365 = vector.shape_cast %347 : vector<8x1xi1> to vector<8x1xi1>
    %366 = vector.broadcast %365 : vector<8x1xi1> to vector<8x128xi1>
    %367 = arith.select %366, %343, %278 : vector<8x128xi1>, vector<8x128xf32>
    %368 = tpu.concatenate %364, %367 in 1 : vector<8x128xf32>, vector<8x128xf32> -> vector<8x256xf32>
    %c0_112 = arith.constant 0 : index
    %c0_113 = arith.constant 0 : index
    %369 = vector.load %arg5[%c0_112, %c0_113] : memref<256x768xf32, #tpu.memory_space<vmem>>, vector<256x768xf32>
    %cst_114 = arith.constant dense<0.000000e+00> : vector<8x768xf32>
    %370 = tpu.matmul %368, %369, %cst_114 {dimension_numbers = #tpu.dot_dimension_numbers<[1], [0], [0], [1], [0, 0, 1, 1], [], []>} : vector<8x256xf32>, vector<256x768xf32>, vector<8x768xf32> -> vector<8x768xf32>
    %c4_115 = arith.constant 4 : index
    %c0_116 = arith.constant 0 : index
    %c0_117 = arith.constant 0 : index
    %371 = vector.load %arg10[%c4_115, %c0_116, %c0_117] : memref<8x8x768xf32, #tpu.memory_space<vmem>>, vector<1x8x384xf32>
    %372 = vector.shape_cast %371 : vector<1x8x384xf32> to vector<8x384xf32>
    %c3_118 = arith.constant 3 : index
    %c0_119 = arith.constant 0 : index
    %c384_120 = arith.constant 384 : index
    %373 = vector.load %arg10[%c3_118, %c0_119, %c384_120] : memref<8x8x768xf32, #tpu.memory_space<vmem>>, vector<1x8x384xf32>
    %374 = vector.shape_cast %373 : vector<1x8x384xf32> to vector<8x384xf32>
    %c0_121 = arith.constant 0 : index
    %c0_122 = arith.constant 0 : index
    %375 = vector.load %arg6[%c0_121, %c0_122] : memref<1x256xf32, #tpu.memory_space<vmem>>, vector<1x128xf32>
    %c0_123 = arith.constant 0 : index
    %c128_124 = arith.constant 128 : index
    %376 = vector.load %arg6[%c0_123, %c128_124] : memref<1x256xf32, #tpu.memory_space<vmem>>, vector<1x128xf32>
    %377 = vector.extract_strided_slice %372 {offsets = [0, 0], sizes = [8, 128], strides = [1, 1]} : vector<8x384xf32> to vector<8x128xf32>
    %378 = vector.extract_strided_slice %370 {offsets = [0, 0], sizes = [8, 128], strides = [1, 1]} : vector<8x768xf32> to vector<8x128xf32>
    %379 = arith.addf %377, %378 : vector<8x128xf32>
    %380 = arith.negf %379 : vector<8x128xf32>
    %381 = math.exp %380 : vector<8x128xf32>
    %cst_125 = arith.constant 1.000000e+00 : f32
    %382 = vector.broadcast %cst_125 : f32 to vector<8x128xf32>
    %383 = arith.addf %382, %381 : vector<8x128xf32>
    %384 = arith.divf %382, %383 : vector<8x128xf32>
    %385 = vector.extract_strided_slice %372 {offsets = [0, 128], sizes = [8, 128], strides = [1, 1]} : vector<8x384xf32> to vector<8x128xf32>
    %386 = vector.extract_strided_slice %370 {offsets = [0, 128], sizes = [8, 128], strides = [1, 1]} : vector<8x768xf32> to vector<8x128xf32>
    %387 = arith.addf %385, %386 : vector<8x128xf32>
    %388 = arith.negf %387 : vector<8x128xf32>
    %389 = math.exp %388 : vector<8x128xf32>
    %cst_126 = arith.constant 1.000000e+00 : f32
    %390 = vector.broadcast %cst_126 : f32 to vector<8x128xf32>
    %391 = arith.addf %390, %389 : vector<8x128xf32>
    %392 = arith.divf %390, %391 : vector<8x128xf32>
    %393 = vector.extract_strided_slice %372 {offsets = [0, 256], sizes = [8, 128], strides = [1, 1]} : vector<8x384xf32> to vector<8x128xf32>
    %394 = vector.extract_strided_slice %370 {offsets = [0, 256], sizes = [8, 128], strides = [1, 1]} : vector<8x768xf32> to vector<8x128xf32>
    %395 = vector.broadcast %375 : vector<1x128xf32> to vector<8x128xf32>
    %396 = arith.addf %394, %395 : vector<8x128xf32>
    %397 = arith.mulf %384, %396 : vector<8x128xf32>
    %398 = arith.addf %393, %397 : vector<8x128xf32>
    %399 = math.tanh %398 : vector<8x128xf32>
    %cst_127 = arith.constant 1.000000e+00 : f32
    %400 = vector.broadcast %cst_127 : f32 to vector<8x128xf32>
    %401 = arith.subf %400, %392 : vector<8x128xf32>
    %402 = arith.mulf %401, %399 : vector<8x128xf32>
    %403 = arith.mulf %392, %364 : vector<8x128xf32>
    %404 = arith.addf %402, %403 : vector<8x128xf32>
    %405 = vector.extract_strided_slice %374 {offsets = [0, 0], sizes = [8, 128], strides = [1, 1]} : vector<8x384xf32> to vector<8x128xf32>
    %406 = vector.extract_strided_slice %370 {offsets = [0, 384], sizes = [8, 128], strides = [1, 1]} : vector<8x768xf32> to vector<8x128xf32>
    %407 = arith.addf %405, %406 : vector<8x128xf32>
    %408 = arith.negf %407 : vector<8x128xf32>
    %409 = math.exp %408 : vector<8x128xf32>
    %cst_128 = arith.constant 1.000000e+00 : f32
    %410 = vector.broadcast %cst_128 : f32 to vector<8x128xf32>
    %411 = arith.addf %410, %409 : vector<8x128xf32>
    %412 = arith.divf %410, %411 : vector<8x128xf32>
    %413 = vector.extract_strided_slice %374 {offsets = [0, 128], sizes = [8, 128], strides = [1, 1]} : vector<8x384xf32> to vector<8x128xf32>
    %414 = vector.extract_strided_slice %370 {offsets = [0, 512], sizes = [8, 128], strides = [1, 1]} : vector<8x768xf32> to vector<8x128xf32>
    %415 = arith.addf %413, %414 : vector<8x128xf32>
    %416 = arith.negf %415 : vector<8x128xf32>
    %417 = math.exp %416 : vector<8x128xf32>
    %cst_129 = arith.constant 1.000000e+00 : f32
    %418 = vector.broadcast %cst_129 : f32 to vector<8x128xf32>
    %419 = arith.addf %418, %417 : vector<8x128xf32>
    %420 = arith.divf %418, %419 : vector<8x128xf32>
    %421 = vector.extract_strided_slice %374 {offsets = [0, 256], sizes = [8, 128], strides = [1, 1]} : vector<8x384xf32> to vector<8x128xf32>
    %422 = vector.extract_strided_slice %370 {offsets = [0, 640], sizes = [8, 128], strides = [1, 1]} : vector<8x768xf32> to vector<8x128xf32>
    %423 = vector.broadcast %376 : vector<1x128xf32> to vector<8x128xf32>
    %424 = arith.addf %422, %423 : vector<8x128xf32>
    %425 = arith.mulf %412, %424 : vector<8x128xf32>
    %426 = arith.addf %421, %425 : vector<8x128xf32>
    %427 = math.tanh %426 : vector<8x128xf32>
    %cst_130 = arith.constant 1.000000e+00 : f32
    %428 = vector.broadcast %cst_130 : f32 to vector<8x128xf32>
    %429 = arith.subf %428, %420 : vector<8x128xf32>
    %430 = arith.mulf %429, %427 : vector<8x128xf32>
    %431 = arith.mulf %420, %367 : vector<8x128xf32>
    %432 = arith.addf %430, %431 : vector<8x128xf32>
    %c4_i32_131 = arith.constant 4 : i32
    %433 = vector.broadcast %c4_i32_131 : i32 to vector<8x1xi32>
    %434 = arith.cmpi sgt, %9, %433 : vector<8x1xi32>
    %c3_i32_132 = arith.constant 3 : i32
    %435 = vector.broadcast %c3_i32_132 : i32 to vector<8x1xi32>
    %436 = arith.cmpi sgt, %9, %435 : vector<8x1xi32>
    %cst_133 = arith.constant 0.000000e+00 : f32
    %437 = vector.shape_cast %434 : vector<8x1xi1> to vector<8x1xi1>
    %438 = vector.broadcast %437 : vector<8x1xi1> to vector<8x128xi1>
    %439 = vector.broadcast %cst_133 : f32 to vector<8x128xf32>
    %440 = arith.select %438, %404, %439 : vector<8x128xi1>, vector<8x128xf32>
    %c4_134 = arith.constant 4 : index
    %c0_135 = arith.constant 0 : index
    %c0_136 = arith.constant 0 : index
    %441 = vector.load %arg9[%c4_134, %c0_135, %c0_136] : memref<8x8x256xf32, #tpu.memory_space<vmem>>, vector<1x8x128xf32>
    %442 = vector.shape_cast %441 : vector<1x8x128xf32> to vector<8x128xf32>
    %443 = vector.shape_cast %440 : vector<8x128xf32> to vector<1x8x128xf32>
    tpu.vector_store %arg9[%c4_134, %c0_135, %c0_136], %443 {strides = array<i32>} : memref<8x8x256xf32, #tpu.memory_space<vmem>>, vector<1x8x128xf32>,
    %cst_137 = arith.constant 0.000000e+00 : f32
    %444 = vector.shape_cast %436 : vector<8x1xi1> to vector<8x1xi1>
    %445 = vector.broadcast %444 : vector<8x1xi1> to vector<8x128xi1>
    %446 = vector.broadcast %cst_137 : f32 to vector<8x128xf32>
    %447 = arith.select %445, %432, %446 : vector<8x128xi1>, vector<8x128xf32>
    %c3_138 = arith.constant 3 : index
    %c0_139 = arith.constant 0 : index
    %c128_140 = arith.constant 128 : index
    %448 = vector.load %arg9[%c3_138, %c0_139, %c128_140] : memref<8x8x256xf32, #tpu.memory_space<vmem>>, vector<1x8x128xf32>
    %449 = vector.shape_cast %448 : vector<1x8x128xf32> to vector<8x128xf32>
    %450 = vector.shape_cast %447 : vector<8x128xf32> to vector<1x8x128xf32>
    tpu.vector_store %arg9[%c3_138, %c0_139, %c128_140], %450 {strides = array<i32>} : memref<8x8x256xf32, #tpu.memory_space<vmem>>, vector<1x8x128xf32>,
    %c4_141 = arith.constant 4 : index
    %c0_142 = arith.constant 0 : index
    %c0_143 = arith.constant 0 : index
    %451 = vector.load %arg9[%c4_141, %c0_142, %c0_143] : memref<8x8x256xf32, #tpu.memory_space<vmem>>, vector<1x8x256xf32>
    %452 = vector.shape_cast %451 : vector<1x8x256xf32> to vector<8x256xf32>
    %453 = tpu.iota {dimensions = array<i32: 1>} : vector<1x256xi32>
    %c128_i32 = arith.constant 128 : i32
    %c0_i32_144 = arith.constant 0 : i32
    %454 = arith.cmpi eq, %c128_i32, %c0_i32_144 : i32
    %c1_i32_145 = arith.constant 1 : i32
    %455 = arith.select %454, %c1_i32_145, %c128_i32 : i32
    %456 = vector.broadcast %455 : i32 to vector<1x256xi32>
    %457 = arith.remsi %453, %456 : vector<1x256xi32>
    %c0_i32_146 = arith.constant 0 : i32
    %458 = vector.broadcast %c0_i32_146 : i32 to vector<1x256xi32>
    %459 = arith.cmpi ne, %457, %458 : vector<1x256xi32>
    %c0_i32_147 = arith.constant 0 : i32
    %460 = vector.broadcast %c0_i32_147 : i32 to vector<1x256xi32>
    %461 = arith.cmpi slt, %457, %460 : vector<1x256xi32>
    %c0_i32_148 = arith.constant 0 : i32
    %462 = arith.cmpi slt, %455, %c0_i32_148 : i32
    %463 = vector.broadcast %462 : i1 to vector<1x256xi1>
    %464 = vector.broadcast %463 : vector<1x256xi1> to vector<1x256xi1>
    %465 = arith.xori %461, %464 : vector<1x256xi1>
    %466 = arith.andi %465, %459 : vector<1x256xi1>
    %467 = vector.broadcast %455 : i32 to vector<1x256xi32>
    %468 = arith.addi %457, %467 : vector<1x256xi32>
    %469 = arith.select %466, %468, %457 : vector<1x256xi1>, vector<1x256xi32>
    %c16_i32 = arith.constant 16 : i32
    %470 = vector.broadcast %c16_i32 : i32 to vector<1x256xi32>
    %471 = arith.cmpi slt, %469, %470 : vector<1x256xi32>
    %472 = arith.extui %471 : vector<1x256xi1> to vector<1x256xi32>
    %473 = arith.sitofp %472 : vector<1x256xi32> to vector<1x256xf32>
    %cst_149 = arith.constant dense<0.000000e+00> : vector<8xf32>
    %474 = vector.multi_reduction <add>, %452, %cst_149 [1] : vector<8x256xf32> to vector<8xf32>
    %475 = vector.shape_cast %474 : vector<8xf32> to vector<8x1xf32>
    %cst_150 = arith.constant 3.125000e-02 : f32
    %476 = vector.broadcast %cst_150 : f32 to vector<8x1xf32>
    %477 = arith.mulf %475, %476 : vector<8x1xf32>
    %478 = vector.broadcast %477 : vector<8x1xf32> to vector<8x256xf32>
    %479 = arith.subf %452, %478 : vector<8x256xf32>
    %480 = vector.broadcast %473 : vector<1x256xf32> to vector<8x256xf32>
    %481 = arith.mulf %479, %480 : vector<8x256xf32>
    %482 = arith.mulf %481, %481 : vector<8x256xf32>
    %cst_151 = arith.constant dense<0.000000e+00> : vector<8xf32>
    %483 = vector.multi_reduction <add>, %482, %cst_151 [1] : vector<8x256xf32> to vector<8xf32>
    %484 = vector.shape_cast %483 : vector<8xf32> to vector<8x1xf32>
    %cst_152 = arith.constant 3.125000e-02 : f32
    %485 = vector.broadcast %cst_152 : f32 to vector<8x1xf32>
    %486 = arith.mulf %484, %485 : vector<8x1xf32>
    %cst_153 = arith.constant 9.99999974E-6 : f32
    %487 = vector.broadcast %cst_153 : f32 to vector<8x1xf32>
    %488 = arith.addf %486, %487 : vector<8x1xf32>
    %489 = math.rsqrt %488 : vector<8x1xf32>
    %490 = vector.broadcast %489 : vector<8x1xf32> to vector<8x256xf32>
    %491 = arith.mulf %481, %490 : vector<8x256xf32>
    %c0_154 = arith.constant 0 : index
    %c0_155 = arith.constant 0 : index
    %c0_156 = arith.constant 0 : index
    %492 = vector.load %arg7[%c0_154, %c0_155, %c0_156] : memref<1x1x256xf32, #tpu.memory_space<vmem>>, vector<1x1x256xf32>
    %493 = vector.shape_cast %492 : vector<1x1x256xf32> to vector<1x256xf32>
    %494 = vector.broadcast %493 : vector<1x256xf32> to vector<8x256xf32>
    %495 = arith.mulf %491, %494 : vector<8x256xf32>
    %c0_157 = arith.constant 0 : index
    %c0_158 = arith.constant 0 : index
    %c0_159 = arith.constant 0 : index
    %496 = vector.load %arg8[%c0_157, %c0_158, %c0_159] : memref<1x1x256xf32, #tpu.memory_space<vmem>>, vector<1x1x256xf32>
    %497 = vector.shape_cast %496 : vector<1x1x256xf32> to vector<1x256xf32>
    %498 = vector.broadcast %497 : vector<1x256xf32> to vector<8x256xf32>
    %499 = arith.addf %495, %498 : vector<8x256xf32>
    %c4_160 = arith.constant 4 : index
    %c0_161 = arith.constant 0 : index
    %c0_162 = arith.constant 0 : index
    %500 = vector.load %arg9[%c4_160, %c0_161, %c0_162] : memref<8x8x256xf32, #tpu.memory_space<vmem>>, vector<1x8x256xf32>
    %501 = vector.shape_cast %500 : vector<1x8x256xf32> to vector<8x256xf32>
    %502 = vector.shape_cast %499 : vector<8x256xf32> to vector<1x8x256xf32>
    tpu.vector_store %arg9[%c4_160, %c0_161, %c0_162], %502 {strides = array<i32>} : memref<8x8x256xf32, #tpu.memory_space<vmem>>, vector<1x8x256xf32>,
    %c3_163 = arith.constant 3 : index
    %c0_164 = arith.constant 0 : index
    %c0_165 = arith.constant 0 : index
    %503 = vector.load %arg9[%c3_163, %c0_164, %c0_165] : memref<8x8x256xf32, #tpu.memory_space<vmem>>, vector<1x8x256xf32>
    %504 = vector.shape_cast %503 : vector<1x8x256xf32> to vector<8x256xf32>
    %505 = tpu.iota {dimensions = array<i32: 1>} : vector<1x256xi32>
    %c128_i32_166 = arith.constant 128 : i32
    %c0_i32_167 = arith.constant 0 : i32
    %506 = arith.cmpi eq, %c128_i32_166, %c0_i32_167 : i32
    %c1_i32_168 = arith.constant 1 : i32
    %507 = arith.select %506, %c1_i32_168, %c128_i32_166 : i32
    %508 = vector.broadcast %507 : i32 to vector<1x256xi32>
    %509 = arith.remsi %505, %508 : vector<1x256xi32>
    %c0_i32_169 = arith.constant 0 : i32
    %510 = vector.broadcast %c0_i32_169 : i32 to vector<1x256xi32>
    %511 = arith.cmpi ne, %509, %510 : vector<1x256xi32>
    %c0_i32_170 = arith.constant 0 : i32
    %512 = vector.broadcast %c0_i32_170 : i32 to vector<1x256xi32>
    %513 = arith.cmpi slt, %509, %512 : vector<1x256xi32>
    %c0_i32_171 = arith.constant 0 : i32
    %514 = arith.cmpi slt, %507, %c0_i32_171 : i32
    %515 = vector.broadcast %514 : i1 to vector<1x256xi1>
    %516 = vector.broadcast %515 : vector<1x256xi1> to vector<1x256xi1>
    %517 = arith.xori %513, %516 : vector<1x256xi1>
    %518 = arith.andi %517, %511 : vector<1x256xi1>
    %519 = vector.broadcast %507 : i32 to vector<1x256xi32>
    %520 = arith.addi %509, %519 : vector<1x256xi32>
    %521 = arith.select %518, %520, %509 : vector<1x256xi1>, vector<1x256xi32>
    %c16_i32_172 = arith.constant 16 : i32
    %522 = vector.broadcast %c16_i32_172 : i32 to vector<1x256xi32>
    %523 = arith.cmpi slt, %521, %522 : vector<1x256xi32>
    %524 = arith.extui %523 : vector<1x256xi1> to vector<1x256xi32>
    %525 = arith.sitofp %524 : vector<1x256xi32> to vector<1x256xf32>
    %cst_173 = arith.constant dense<0.000000e+00> : vector<8xf32>
    %526 = vector.multi_reduction <add>, %504, %cst_173 [1] : vector<8x256xf32> to vector<8xf32>
    %527 = vector.shape_cast %526 : vector<8xf32> to vector<8x1xf32>
    %cst_174 = arith.constant 3.125000e-02 : f32
    %528 = vector.broadcast %cst_174 : f32 to vector<8x1xf32>
    %529 = arith.mulf %527, %528 : vector<8x1xf32>
    %530 = vector.broadcast %529 : vector<8x1xf32> to vector<8x256xf32>
    %531 = arith.subf %504, %530 : vector<8x256xf32>
    %532 = vector.broadcast %525 : vector<1x256xf32> to vector<8x256xf32>
    %533 = arith.mulf %531, %532 : vector<8x256xf32>
    %534 = arith.mulf %533, %533 : vector<8x256xf32>
    %cst_175 = arith.constant dense<0.000000e+00> : vector<8xf32>
    %535 = vector.multi_reduction <add>, %534, %cst_175 [1] : vector<8x256xf32> to vector<8xf32>
    %536 = vector.shape_cast %535 : vector<8xf32> to vector<8x1xf32>
    %cst_176 = arith.constant 3.125000e-02 : f32
    %537 = vector.broadcast %cst_176 : f32 to vector<8x1xf32>
    %538 = arith.mulf %536, %537 : vector<8x1xf32>
    %cst_177 = arith.constant 9.99999974E-6 : f32
    %539 = vector.broadcast %cst_177 : f32 to vector<8x1xf32>
    %540 = arith.addf %538, %539 : vector<8x1xf32>
    %541 = math.rsqrt %540 : vector<8x1xf32>
    %542 = vector.broadcast %541 : vector<8x1xf32> to vector<8x256xf32>
    %543 = arith.mulf %533, %542 : vector<8x256xf32>
    %c0_178 = arith.constant 0 : index
    %c0_179 = arith.constant 0 : index
    %c0_180 = arith.constant 0 : index
    %544 = vector.load %arg7[%c0_178, %c0_179, %c0_180] : memref<1x1x256xf32, #tpu.memory_space<vmem>>, vector<1x1x256xf32>
    %545 = vector.shape_cast %544 : vector<1x1x256xf32> to vector<1x256xf32>
    %546 = vector.broadcast %545 : vector<1x256xf32> to vector<8x256xf32>
    %547 = arith.mulf %543, %546 : vector<8x256xf32>
    %c0_181 = arith.constant 0 : index
    %c0_182 = arith.constant 0 : index
    %c0_183 = arith.constant 0 : index
    %548 = vector.load %arg8[%c0_181, %c0_182, %c0_183] : memref<1x1x256xf32, #tpu.memory_space<vmem>>, vector<1x1x256xf32>
    %549 = vector.shape_cast %548 : vector<1x1x256xf32> to vector<1x256xf32>
    %550 = vector.broadcast %549 : vector<1x256xf32> to vector<8x256xf32>
    %551 = arith.addf %547, %550 : vector<8x256xf32>
    %c3_184 = arith.constant 3 : index
    %c0_185 = arith.constant 0 : index
    %c0_186 = arith.constant 0 : index
    %552 = vector.load %arg9[%c3_184, %c0_185, %c0_186] : memref<8x8x256xf32, #tpu.memory_space<vmem>>, vector<1x8x256xf32>
    %553 = vector.shape_cast %552 : vector<1x8x256xf32> to vector<8x256xf32>
    %554 = vector.shape_cast %551 : vector<8x256xf32> to vector<1x8x256xf32>
    tpu.vector_store %arg9[%c3_184, %c0_185, %c0_186], %554 {strides = array<i32>} : memref<8x8x256xf32, #tpu.memory_space<vmem>>, vector<1x8x256xf32>,
    %555 = vector.shape_cast %434 : vector<8x1xi1> to vector<8x1xi1>
    %556 = vector.broadcast %555 : vector<8x1xi1> to vector<8x128xi1>
    %557 = arith.select %556, %404, %364 : vector<8x128xi1>, vector<8x128xf32>
    %558 = vector.shape_cast %436 : vector<8x1xi1> to vector<8x1xi1>
    %559 = vector.broadcast %558 : vector<8x1xi1> to vector<8x128xi1>
    %560 = arith.select %559, %432, %367 : vector<8x128xi1>, vector<8x128xf32>
    %561 = tpu.concatenate %557, %560 in 1 : vector<8x128xf32>, vector<8x128xf32> -> vector<8x256xf32>
    %c0_187 = arith.constant 0 : index
    %c0_188 = arith.constant 0 : index
    %562 = vector.load %arg5[%c0_187, %c0_188] : memref<256x768xf32, #tpu.memory_space<vmem>>, vector<256x768xf32>
    %cst_189 = arith.constant dense<0.000000e+00> : vector<8x768xf32>
    %563 = tpu.matmul %561, %562, %cst_189 {dimension_numbers = #tpu.dot_dimension_numbers<[1], [0], [0], [1], [0, 0, 1, 1], [], []>} : vector<8x256xf32>, vector<256x768xf32>, vector<8x768xf32> -> vector<8x768xf32>
    %c5_190 = arith.constant 5 : index
    %c0_191 = arith.constant 0 : index
    %c0_192 = arith.constant 0 : index
    %564 = vector.load %arg10[%c5_190, %c0_191, %c0_192] : memref<8x8x768xf32, #tpu.memory_space<vmem>>, vector<1x8x384xf32>
    %565 = vector.shape_cast %564 : vector<1x8x384xf32> to vector<8x384xf32>
    %c2_193 = arith.constant 2 : index
    %c0_194 = arith.constant 0 : index
    %c384_195 = arith.constant 384 : index
    %566 = vector.load %arg10[%c2_193, %c0_194, %c384_195] : memref<8x8x768xf32, #tpu.memory_space<vmem>>, vector<1x8x384xf32>
    %567 = vector.shape_cast %566 : vector<1x8x384xf32> to vector<8x384xf32>
    %c0_196 = arith.constant 0 : index
    %c0_197 = arith.constant 0 : index
    %568 = vector.load %arg6[%c0_196, %c0_197] : memref<1x256xf32, #tpu.memory_space<vmem>>, vector<1x128xf32>
    %c0_198 = arith.constant 0 : index
    %c128_199 = arith.constant 128 : index
    %569 = vector.load %arg6[%c0_198, %c128_199] : memref<1x256xf32, #tpu.memory_space<vmem>>, vector<1x128xf32>
    %570 = vector.extract_strided_slice %565 {offsets = [0, 0], sizes = [8, 128], strides = [1, 1]} : vector<8x384xf32> to vector<8x128xf32>
    %571 = vector.extract_strided_slice %563 {offsets = [0, 0], sizes = [8, 128], strides = [1, 1]} : vector<8x768xf32> to vector<8x128xf32>
    %572 = arith.addf %570, %571 : vector<8x128xf32>
    %573 = arith.negf %572 : vector<8x128xf32>
    %574 = math.exp %573 : vector<8x128xf32>
    %cst_200 = arith.constant 1.000000e+00 : f32
    %575 = vector.broadcast %cst_200 : f32 to vector<8x128xf32>
    %576 = arith.addf %575, %574 : vector<8x128xf32>
    %577 = arith.divf %575, %576 : vector<8x128xf32>
    %578 = vector.extract_strided_slice %565 {offsets = [0, 128], sizes = [8, 128], strides = [1, 1]} : vector<8x384xf32> to vector<8x128xf32>
    %579 = vector.extract_strided_slice %563 {offsets = [0, 128], sizes = [8, 128], strides = [1, 1]} : vector<8x768xf32> to vector<8x128xf32>
    %580 = arith.addf %578, %579 : vector<8x128xf32>
    %581 = arith.negf %580 : vector<8x128xf32>
    %582 = math.exp %581 : vector<8x128xf32>
    %cst_201 = arith.constant 1.000000e+00 : f32
    %583 = vector.broadcast %cst_201 : f32 to vector<8x128xf32>
    %584 = arith.addf %583, %582 : vector<8x128xf32>
    %585 = arith.divf %583, %584 : vector<8x128xf32>
    %586 = vector.extract_strided_slice %565 {offsets = [0, 256], sizes = [8, 128], strides = [1, 1]} : vector<8x384xf32> to vector<8x128xf32>
    %587 = vector.extract_strided_slice %563 {offsets = [0, 256], sizes = [8, 128], strides = [1, 1]} : vector<8x768xf32> to vector<8x128xf32>
    %588 = vector.broadcast %568 : vector<1x128xf32> to vector<8x128xf32>
    %589 = arith.addf %587, %588 : vector<8x128xf32>
    %590 = arith.mulf %577, %589 : vector<8x128xf32>
    %591 = arith.addf %586, %590 : vector<8x128xf32>
    %592 = math.tanh %591 : vector<8x128xf32>
    %cst_202 = arith.constant 1.000000e+00 : f32
    %593 = vector.broadcast %cst_202 : f32 to vector<8x128xf32>
    %594 = arith.subf %593, %585 : vector<8x128xf32>
    %595 = arith.mulf %594, %592 : vector<8x128xf32>
    %596 = arith.mulf %585, %557 : vector<8x128xf32>
    %597 = arith.addf %595, %596 : vector<8x128xf32>
    %598 = vector.extract_strided_slice %567 {offsets = [0, 0], sizes = [8, 128], strides = [1, 1]} : vector<8x384xf32> to vector<8x128xf32>
    %599 = vector.extract_strided_slice %563 {offsets = [0, 384], sizes = [8, 128], strides = [1, 1]} : vector<8x768xf32> to vector<8x128xf32>
    %600 = arith.addf %598, %599 : vector<8x128xf32>
    %601 = arith.negf %600 : vector<8x128xf32>
    %602 = math.exp %601 : vector<8x128xf32>
    %cst_203 = arith.constant 1.000000e+00 : f32
    %603 = vector.broadcast %cst_203 : f32 to vector<8x128xf32>
    %604 = arith.addf %603, %602 : vector<8x128xf32>
    %605 = arith.divf %603, %604 : vector<8x128xf32>
    %606 = vector.extract_strided_slice %567 {offsets = [0, 128], sizes = [8, 128], strides = [1, 1]} : vector<8x384xf32> to vector<8x128xf32>
    %607 = vector.extract_strided_slice %563 {offsets = [0, 512], sizes = [8, 128], strides = [1, 1]} : vector<8x768xf32> to vector<8x128xf32>
    %608 = arith.addf %606, %607 : vector<8x128xf32>
    %609 = arith.negf %608 : vector<8x128xf32>
    %610 = math.exp %609 : vector<8x128xf32>
    %cst_204 = arith.constant 1.000000e+00 : f32
    %611 = vector.broadcast %cst_204 : f32 to vector<8x128xf32>
    %612 = arith.addf %611, %610 : vector<8x128xf32>
    %613 = arith.divf %611, %612 : vector<8x128xf32>
    %614 = vector.extract_strided_slice %567 {offsets = [0, 256], sizes = [8, 128], strides = [1, 1]} : vector<8x384xf32> to vector<8x128xf32>
    %615 = vector.extract_strided_slice %563 {offsets = [0, 640], sizes = [8, 128], strides = [1, 1]} : vector<8x768xf32> to vector<8x128xf32>
    %616 = vector.broadcast %569 : vector<1x128xf32> to vector<8x128xf32>
    %617 = arith.addf %615, %616 : vector<8x128xf32>
    %618 = arith.mulf %605, %617 : vector<8x128xf32>
    %619 = arith.addf %614, %618 : vector<8x128xf32>
    %620 = math.tanh %619 : vector<8x128xf32>
    %cst_205 = arith.constant 1.000000e+00 : f32
    %621 = vector.broadcast %cst_205 : f32 to vector<8x128xf32>
    %622 = arith.subf %621, %613 : vector<8x128xf32>
    %623 = arith.mulf %622, %620 : vector<8x128xf32>
    %624 = arith.mulf %613, %560 : vector<8x128xf32>
    %625 = arith.addf %623, %624 : vector<8x128xf32>
    %c5_i32_206 = arith.constant 5 : i32
    %626 = vector.broadcast %c5_i32_206 : i32 to vector<8x1xi32>
    %627 = arith.cmpi sgt, %9, %626 : vector<8x1xi32>
    %c2_i32_207 = arith.constant 2 : i32
    %628 = vector.broadcast %c2_i32_207 : i32 to vector<8x1xi32>
    %629 = arith.cmpi sgt, %9, %628 : vector<8x1xi32>
    %cst_208 = arith.constant 0.000000e+00 : f32
    %630 = vector.shape_cast %627 : vector<8x1xi1> to vector<8x1xi1>
    %631 = vector.broadcast %630 : vector<8x1xi1> to vector<8x128xi1>
    %632 = vector.broadcast %cst_208 : f32 to vector<8x128xf32>
    %633 = arith.select %631, %597, %632 : vector<8x128xi1>, vector<8x128xf32>
    %c5_209 = arith.constant 5 : index
    %c0_210 = arith.constant 0 : index
    %c0_211 = arith.constant 0 : index
    %634 = vector.load %arg9[%c5_209, %c0_210, %c0_211] : memref<8x8x256xf32, #tpu.memory_space<vmem>>, vector<1x8x128xf32>
    %635 = vector.shape_cast %634 : vector<1x8x128xf32> to vector<8x128xf32>
    %636 = vector.shape_cast %633 : vector<8x128xf32> to vector<1x8x128xf32>
    tpu.vector_store %arg9[%c5_209, %c0_210, %c0_211], %636 {strides = array<i32>} : memref<8x8x256xf32, #tpu.memory_space<vmem>>, vector<1x8x128xf32>,
    %cst_212 = arith.constant 0.000000e+00 : f32
    %637 = vector.shape_cast %629 : vector<8x1xi1> to vector<8x1xi1>
    %638 = vector.broadcast %637 : vector<8x1xi1> to vector<8x128xi1>
    %639 = vector.broadcast %cst_212 : f32 to vector<8x128xf32>
    %640 = arith.select %638, %625, %639 : vector<8x128xi1>, vector<8x128xf32>
    %c2_213 = arith.constant 2 : index
    %c0_214 = arith.constant 0 : index
    %c128_215 = arith.constant 128 : index
    %641 = vector.load %arg9[%c2_213, %c0_214, %c128_215] : memref<8x8x256xf32, #tpu.memory_space<vmem>>, vector<1x8x128xf32>
    %642 = vector.shape_cast %641 : vector<1x8x128xf32> to vector<8x128xf32>
    %643 = vector.shape_cast %640 : vector<8x128xf32> to vector<1x8x128xf32>
    tpu.vector_store %arg9[%c2_213, %c0_214, %c128_215], %643 {strides = array<i32>} : memref<8x8x256xf32, #tpu.memory_space<vmem>>, vector<1x8x128xf32>,
    %c5_216 = arith.constant 5 : index
    %c0_217 = arith.constant 0 : index
    %c0_218 = arith.constant 0 : index
    %644 = vector.load %arg9[%c5_216, %c0_217, %c0_218] : memref<8x8x256xf32, #tpu.memory_space<vmem>>, vector<1x8x256xf32>
    %645 = vector.shape_cast %644 : vector<1x8x256xf32> to vector<8x256xf32>
    %646 = tpu.iota {dimensions = array<i32: 1>} : vector<1x256xi32>
    %c128_i32_219 = arith.constant 128 : i32
    %c0_i32_220 = arith.constant 0 : i32
    %647 = arith.cmpi eq, %c128_i32_219, %c0_i32_220 : i32
    %c1_i32_221 = arith.constant 1 : i32
    %648 = arith.select %647, %c1_i32_221, %c128_i32_219 : i32
    %649 = vector.broadcast %648 : i32 to vector<1x256xi32>
    %650 = arith.remsi %646, %649 : vector<1x256xi32>
    %c0_i32_222 = arith.constant 0 : i32
    %651 = vector.broadcast %c0_i32_222 : i32 to vector<1x256xi32>
    %652 = arith.cmpi ne, %650, %651 : vector<1x256xi32>
    %c0_i32_223 = arith.constant 0 : i32
    %653 = vector.broadcast %c0_i32_223 : i32 to vector<1x256xi32>
    %654 = arith.cmpi slt, %650, %653 : vector<1x256xi32>
    %c0_i32_224 = arith.constant 0 : i32
    %655 = arith.cmpi slt, %648, %c0_i32_224 : i32
    %656 = vector.broadcast %655 : i1 to vector<1x256xi1>
    %657 = vector.broadcast %656 : vector<1x256xi1> to vector<1x256xi1>
    %658 = arith.xori %654, %657 : vector<1x256xi1>
    %659 = arith.andi %658, %652 : vector<1x256xi1>
    %660 = vector.broadcast %648 : i32 to vector<1x256xi32>
    %661 = arith.addi %650, %660 : vector<1x256xi32>
    %662 = arith.select %659, %661, %650 : vector<1x256xi1>, vector<1x256xi32>
    %c16_i32_225 = arith.constant 16 : i32
    %663 = vector.broadcast %c16_i32_225 : i32 to vector<1x256xi32>
    %664 = arith.cmpi slt, %662, %663 : vector<1x256xi32>
    %665 = arith.extui %664 : vector<1x256xi1> to vector<1x256xi32>
    %666 = arith.sitofp %665 : vector<1x256xi32> to vector<1x256xf32>
    %cst_226 = arith.constant dense<0.000000e+00> : vector<8xf32>
    %667 = vector.multi_reduction <add>, %645, %cst_226 [1] : vector<8x256xf32> to vector<8xf32>
    %668 = vector.shape_cast %667 : vector<8xf32> to vector<8x1xf32>
    %cst_227 = arith.constant 3.125000e-02 : f32
    %669 = vector.broadcast %cst_227 : f32 to vector<8x1xf32>
    %670 = arith.mulf %668, %669 : vector<8x1xf32>
    %671 = vector.broadcast %670 : vector<8x1xf32> to vector<8x256xf32>
    %672 = arith.subf %645, %671 : vector<8x256xf32>
    %673 = vector.broadcast %666 : vector<1x256xf32> to vector<8x256xf32>
    %674 = arith.mulf %672, %673 : vector<8x256xf32>
    %675 = arith.mulf %674, %674 : vector<8x256xf32>
    %cst_228 = arith.constant dense<0.000000e+00> : vector<8xf32>
    %676 = vector.multi_reduction <add>, %675, %cst_228 [1] : vector<8x256xf32> to vector<8xf32>
    %677 = vector.shape_cast %676 : vector<8xf32> to vector<8x1xf32>
    %cst_229 = arith.constant 3.125000e-02 : f32
    %678 = vector.broadcast %cst_229 : f32 to vector<8x1xf32>
    %679 = arith.mulf %677, %678 : vector<8x1xf32>
    %cst_230 = arith.constant 9.99999974E-6 : f32
    %680 = vector.broadcast %cst_230 : f32 to vector<8x1xf32>
    %681 = arith.addf %679, %680 : vector<8x1xf32>
    %682 = math.rsqrt %681 : vector<8x1xf32>
    %683 = vector.broadcast %682 : vector<8x1xf32> to vector<8x256xf32>
    %684 = arith.mulf %674, %683 : vector<8x256xf32>
    %c0_231 = arith.constant 0 : index
    %c0_232 = arith.constant 0 : index
    %c0_233 = arith.constant 0 : index
    %685 = vector.load %arg7[%c0_231, %c0_232, %c0_233] : memref<1x1x256xf32, #tpu.memory_space<vmem>>, vector<1x1x256xf32>
    %686 = vector.shape_cast %685 : vector<1x1x256xf32> to vector<1x256xf32>
    %687 = vector.broadcast %686 : vector<1x256xf32> to vector<8x256xf32>
    %688 = arith.mulf %684, %687 : vector<8x256xf32>
    %c0_234 = arith.constant 0 : index
    %c0_235 = arith.constant 0 : index
    %c0_236 = arith.constant 0 : index
    %689 = vector.load %arg8[%c0_234, %c0_235, %c0_236] : memref<1x1x256xf32, #tpu.memory_space<vmem>>, vector<1x1x256xf32>
    %690 = vector.shape_cast %689 : vector<1x1x256xf32> to vector<1x256xf32>
    %691 = vector.broadcast %690 : vector<1x256xf32> to vector<8x256xf32>
    %692 = arith.addf %688, %691 : vector<8x256xf32>
    %c5_237 = arith.constant 5 : index
    %c0_238 = arith.constant 0 : index
    %c0_239 = arith.constant 0 : index
    %693 = vector.load %arg9[%c5_237, %c0_238, %c0_239] : memref<8x8x256xf32, #tpu.memory_space<vmem>>, vector<1x8x256xf32>
    %694 = vector.shape_cast %693 : vector<1x8x256xf32> to vector<8x256xf32>
    %695 = vector.shape_cast %692 : vector<8x256xf32> to vector<1x8x256xf32>
    tpu.vector_store %arg9[%c5_237, %c0_238, %c0_239], %695 {strides = array<i32>} : memref<8x8x256xf32, #tpu.memory_space<vmem>>, vector<1x8x256xf32>,
    %c2_240 = arith.constant 2 : index
    %c0_241 = arith.constant 0 : index
    %c0_242 = arith.constant 0 : index
    %696 = vector.load %arg9[%c2_240, %c0_241, %c0_242] : memref<8x8x256xf32, #tpu.memory_space<vmem>>, vector<1x8x256xf32>
    %697 = vector.shape_cast %696 : vector<1x8x256xf32> to vector<8x256xf32>
    %698 = tpu.iota {dimensions = array<i32: 1>} : vector<1x256xi32>
    %c128_i32_243 = arith.constant 128 : i32
    %c0_i32_244 = arith.constant 0 : i32
    %699 = arith.cmpi eq, %c128_i32_243, %c0_i32_244 : i32
    %c1_i32_245 = arith.constant 1 : i32
    %700 = arith.select %699, %c1_i32_245, %c128_i32_243 : i32
    %701 = vector.broadcast %700 : i32 to vector<1x256xi32>
    %702 = arith.remsi %698, %701 : vector<1x256xi32>
    %c0_i32_246 = arith.constant 0 : i32
    %703 = vector.broadcast %c0_i32_246 : i32 to vector<1x256xi32>
    %704 = arith.cmpi ne, %702, %703 : vector<1x256xi32>
    %c0_i32_247 = arith.constant 0 : i32
    %705 = vector.broadcast %c0_i32_247 : i32 to vector<1x256xi32>
    %706 = arith.cmpi slt, %702, %705 : vector<1x256xi32>
    %c0_i32_248 = arith.constant 0 : i32
    %707 = arith.cmpi slt, %700, %c0_i32_248 : i32
    %708 = vector.broadcast %707 : i1 to vector<1x256xi1>
    %709 = vector.broadcast %708 : vector<1x256xi1> to vector<1x256xi1>
    %710 = arith.xori %706, %709 : vector<1x256xi1>
    %711 = arith.andi %710, %704 : vector<1x256xi1>
    %712 = vector.broadcast %700 : i32 to vector<1x256xi32>
    %713 = arith.addi %702, %712 : vector<1x256xi32>
    %714 = arith.select %711, %713, %702 : vector<1x256xi1>, vector<1x256xi32>
    %c16_i32_249 = arith.constant 16 : i32
    %715 = vector.broadcast %c16_i32_249 : i32 to vector<1x256xi32>
    %716 = arith.cmpi slt, %714, %715 : vector<1x256xi32>
    %717 = arith.extui %716 : vector<1x256xi1> to vector<1x256xi32>
    %718 = arith.sitofp %717 : vector<1x256xi32> to vector<1x256xf32>
    %cst_250 = arith.constant dense<0.000000e+00> : vector<8xf32>
    %719 = vector.multi_reduction <add>, %697, %cst_250 [1] : vector<8x256xf32> to vector<8xf32>
    %720 = vector.shape_cast %719 : vector<8xf32> to vector<8x1xf32>
    %cst_251 = arith.constant 3.125000e-02 : f32
    %721 = vector.broadcast %cst_251 : f32 to vector<8x1xf32>
    %722 = arith.mulf %720, %721 : vector<8x1xf32>
    %723 = vector.broadcast %722 : vector<8x1xf32> to vector<8x256xf32>
    %724 = arith.subf %697, %723 : vector<8x256xf32>
    %725 = vector.broadcast %718 : vector<1x256xf32> to vector<8x256xf32>
    %726 = arith.mulf %724, %725 : vector<8x256xf32>
    %727 = arith.mulf %726, %726 : vector<8x256xf32>
    %cst_252 = arith.constant dense<0.000000e+00> : vector<8xf32>
    %728 = vector.multi_reduction <add>, %727, %cst_252 [1] : vector<8x256xf32> to vector<8xf32>
    %729 = vector.shape_cast %728 : vector<8xf32> to vector<8x1xf32>
    %cst_253 = arith.constant 3.125000e-02 : f32
    %730 = vector.broadcast %cst_253 : f32 to vector<8x1xf32>
    %731 = arith.mulf %729, %730 : vector<8x1xf32>
    %cst_254 = arith.constant 9.99999974E-6 : f32
    %732 = vector.broadcast %cst_254 : f32 to vector<8x1xf32>
    %733 = arith.addf %731, %732 : vector<8x1xf32>
    %734 = math.rsqrt %733 : vector<8x1xf32>
    %735 = vector.broadcast %734 : vector<8x1xf32> to vector<8x256xf32>
    %736 = arith.mulf %726, %735 : vector<8x256xf32>
    %c0_255 = arith.constant 0 : index
    %c0_256 = arith.constant 0 : index
    %c0_257 = arith.constant 0 : index
    %737 = vector.load %arg7[%c0_255, %c0_256, %c0_257] : memref<1x1x256xf32, #tpu.memory_space<vmem>>, vector<1x1x256xf32>
    %738 = vector.shape_cast %737 : vector<1x1x256xf32> to vector<1x256xf32>
    %739 = vector.broadcast %738 : vector<1x256xf32> to vector<8x256xf32>
    %740 = arith.mulf %736, %739 : vector<8x256xf32>
    %c0_258 = arith.constant 0 : index
    %c0_259 = arith.constant 0 : index
    %c0_260 = arith.constant 0 : index
    %741 = vector.load %arg8[%c0_258, %c0_259, %c0_260] : memref<1x1x256xf32, #tpu.memory_space<vmem>>, vector<1x1x256xf32>
    %742 = vector.shape_cast %741 : vector<1x1x256xf32> to vector<1x256xf32>
    %743 = vector.broadcast %742 : vector<1x256xf32> to vector<8x256xf32>
    %744 = arith.addf %740, %743 : vector<8x256xf32>
    %c2_261 = arith.constant 2 : index
    %c0_262 = arith.constant 0 : index
    %c0_263 = arith.constant 0 : index
    %745 = vector.load %arg9[%c2_261, %c0_262, %c0_263] : memref<8x8x256xf32, #tpu.memory_space<vmem>>, vector<1x8x256xf32>
    %746 = vector.shape_cast %745 : vector<1x8x256xf32> to vector<8x256xf32>
    %747 = vector.shape_cast %744 : vector<8x256xf32> to vector<1x8x256xf32>
    tpu.vector_store %arg9[%c2_261, %c0_262, %c0_263], %747 {strides = array<i32>} : memref<8x8x256xf32, #tpu.memory_space<vmem>>, vector<1x8x256xf32>,
    %748 = vector.shape_cast %627 : vector<8x1xi1> to vector<8x1xi1>
    %749 = vector.broadcast %748 : vector<8x1xi1> to vector<8x128xi1>
    %750 = arith.select %749, %597, %557 : vector<8x128xi1>, vector<8x128xf32>
    %751 = vector.shape_cast %629 : vector<8x1xi1> to vector<8x1xi1>
    %752 = vector.broadcast %751 : vector<8x1xi1> to vector<8x128xi1>
    %753 = arith.select %752, %625, %560 : vector<8x128xi1>, vector<8x128xf32>
    %754 = tpu.concatenate %750, %753 in 1 : vector<8x128xf32>, vector<8x128xf32> -> vector<8x256xf32>
    %c0_264 = arith.constant 0 : index
    %c0_265 = arith.constant 0 : index
    %755 = vector.load %arg5[%c0_264, %c0_265] : memref<256x768xf32, #tpu.memory_space<vmem>>, vector<256x768xf32>
    %cst_266 = arith.constant dense<0.000000e+00> : vector<8x768xf32>
    %756 = tpu.matmul %754, %755, %cst_266 {dimension_numbers = #tpu.dot_dimension_numbers<[1], [0], [0], [1], [0, 0, 1, 1], [], []>} : vector<8x256xf32>, vector<256x768xf32>, vector<8x768xf32> -> vector<8x768xf32>
    %c6_267 = arith.constant 6 : index
    %c0_268 = arith.constant 0 : index
    %c0_269 = arith.constant 0 : index
    %757 = vector.load %arg10[%c6_267, %c0_268, %c0_269] : memref<8x8x768xf32, #tpu.memory_space<vmem>>, vector<1x8x384xf32>
    %758 = vector.shape_cast %757 : vector<1x8x384xf32> to vector<8x384xf32>
    %c1_270 = arith.constant 1 : index
    %c0_271 = arith.constant 0 : index
    %c384_272 = arith.constant 384 : index
    %759 = vector.load %arg10[%c1_270, %c0_271, %c384_272] : memref<8x8x768xf32, #tpu.memory_space<vmem>>, vector<1x8x384xf32>
    %760 = vector.shape_cast %759 : vector<1x8x384xf32> to vector<8x384xf32>
    %c0_273 = arith.constant 0 : index
    %c0_274 = arith.constant 0 : index
    %761 = vector.load %arg6[%c0_273, %c0_274] : memref<1x256xf32, #tpu.memory_space<vmem>>, vector<1x128xf32>
    %c0_275 = arith.constant 0 : index
    %c128_276 = arith.constant 128 : index
    %762 = vector.load %arg6[%c0_275, %c128_276] : memref<1x256xf32, #tpu.memory_space<vmem>>, vector<1x128xf32>
    %763 = vector.extract_strided_slice %758 {offsets = [0, 0], sizes = [8, 128], strides = [1, 1]} : vector<8x384xf32> to vector<8x128xf32>
    %764 = vector.extract_strided_slice %756 {offsets = [0, 0], sizes = [8, 128], strides = [1, 1]} : vector<8x768xf32> to vector<8x128xf32>
    %765 = arith.addf %763, %764 : vector<8x128xf32>
    %766 = arith.negf %765 : vector<8x128xf32>
    %767 = math.exp %766 : vector<8x128xf32>
    %cst_277 = arith.constant 1.000000e+00 : f32
    %768 = vector.broadcast %cst_277 : f32 to vector<8x128xf32>
    %769 = arith.addf %768, %767 : vector<8x128xf32>
    %770 = arith.divf %768, %769 : vector<8x128xf32>
    %771 = vector.extract_strided_slice %758 {offsets = [0, 128], sizes = [8, 128], strides = [1, 1]} : vector<8x384xf32> to vector<8x128xf32>
    %772 = vector.extract_strided_slice %756 {offsets = [0, 128], sizes = [8, 128], strides = [1, 1]} : vector<8x768xf32> to vector<8x128xf32>
    %773 = arith.addf %771, %772 : vector<8x128xf32>
    %774 = arith.negf %773 : vector<8x128xf32>
    %775 = math.exp %774 : vector<8x128xf32>
    %cst_278 = arith.constant 1.000000e+00 : f32
    %776 = vector.broadcast %cst_278 : f32 to vector<8x128xf32>
    %777 = arith.addf %776, %775 : vector<8x128xf32>
    %778 = arith.divf %776, %777 : vector<8x128xf32>
    %779 = vector.extract_strided_slice %758 {offsets = [0, 256], sizes = [8, 128], strides = [1, 1]} : vector<8x384xf32> to vector<8x128xf32>
    %780 = vector.extract_strided_slice %756 {offsets = [0, 256], sizes = [8, 128], strides = [1, 1]} : vector<8x768xf32> to vector<8x128xf32>
    %781 = vector.broadcast %761 : vector<1x128xf32> to vector<8x128xf32>
    %782 = arith.addf %780, %781 : vector<8x128xf32>
    %783 = arith.mulf %770, %782 : vector<8x128xf32>
    %784 = arith.addf %779, %783 : vector<8x128xf32>
    %785 = math.tanh %784 : vector<8x128xf32>
    %cst_279 = arith.constant 1.000000e+00 : f32
    %786 = vector.broadcast %cst_279 : f32 to vector<8x128xf32>
    %787 = arith.subf %786, %778 : vector<8x128xf32>
    %788 = arith.mulf %787, %785 : vector<8x128xf32>
    %789 = arith.mulf %778, %750 : vector<8x128xf32>
    %790 = arith.addf %788, %789 : vector<8x128xf32>
    %791 = vector.extract_strided_slice %760 {offsets = [0, 0], sizes = [8, 128], strides = [1, 1]} : vector<8x384xf32> to vector<8x128xf32>
    %792 = vector.extract_strided_slice %756 {offsets = [0, 384], sizes = [8, 128], strides = [1, 1]} : vector<8x768xf32> to vector<8x128xf32>
    %793 = arith.addf %791, %792 : vector<8x128xf32>
    %794 = arith.negf %793 : vector<8x128xf32>
    %795 = math.exp %794 : vector<8x128xf32>
    %cst_280 = arith.constant 1.000000e+00 : f32
    %796 = vector.broadcast %cst_280 : f32 to vector<8x128xf32>
    %797 = arith.addf %796, %795 : vector<8x128xf32>
    %798 = arith.divf %796, %797 : vector<8x128xf32>
    %799 = vector.extract_strided_slice %760 {offsets = [0, 128], sizes = [8, 128], strides = [1, 1]} : vector<8x384xf32> to vector<8x128xf32>
    %800 = vector.extract_strided_slice %756 {offsets = [0, 512], sizes = [8, 128], strides = [1, 1]} : vector<8x768xf32> to vector<8x128xf32>
    %801 = arith.addf %799, %800 : vector<8x128xf32>
    %802 = arith.negf %801 : vector<8x128xf32>
    %803 = math.exp %802 : vector<8x128xf32>
    %cst_281 = arith.constant 1.000000e+00 : f32
    %804 = vector.broadcast %cst_281 : f32 to vector<8x128xf32>
    %805 = arith.addf %804, %803 : vector<8x128xf32>
    %806 = arith.divf %804, %805 : vector<8x128xf32>
    %807 = vector.extract_strided_slice %760 {offsets = [0, 256], sizes = [8, 128], strides = [1, 1]} : vector<8x384xf32> to vector<8x128xf32>
    %808 = vector.extract_strided_slice %756 {offsets = [0, 640], sizes = [8, 128], strides = [1, 1]} : vector<8x768xf32> to vector<8x128xf32>
    %809 = vector.broadcast %762 : vector<1x128xf32> to vector<8x128xf32>
    %810 = arith.addf %808, %809 : vector<8x128xf32>
    %811 = arith.mulf %798, %810 : vector<8x128xf32>
    %812 = arith.addf %807, %811 : vector<8x128xf32>
    %813 = math.tanh %812 : vector<8x128xf32>
    %cst_282 = arith.constant 1.000000e+00 : f32
    %814 = vector.broadcast %cst_282 : f32 to vector<8x128xf32>
    %815 = arith.subf %814, %806 : vector<8x128xf32>
    %816 = arith.mulf %815, %813 : vector<8x128xf32>
    %817 = arith.mulf %806, %753 : vector<8x128xf32>
    %818 = arith.addf %816, %817 : vector<8x128xf32>
    %c6_i32_283 = arith.constant 6 : i32
    %819 = vector.broadcast %c6_i32_283 : i32 to vector<8x1xi32>
    %820 = arith.cmpi sgt, %9, %819 : vector<8x1xi32>
    %c1_i32_284 = arith.constant 1 : i32
    %821 = vector.broadcast %c1_i32_284 : i32 to vector<8x1xi32>
    %822 = arith.cmpi sgt, %9, %821 : vector<8x1xi32>
    %cst_285 = arith.constant 0.000000e+00 : f32
    %823 = vector.shape_cast %820 : vector<8x1xi1> to vector<8x1xi1>
    %824 = vector.broadcast %823 : vector<8x1xi1> to vector<8x128xi1>
    %825 = vector.broadcast %cst_285 : f32 to vector<8x128xf32>
    %826 = arith.select %824, %790, %825 : vector<8x128xi1>, vector<8x128xf32>
    %c6_286 = arith.constant 6 : index
    %c0_287 = arith.constant 0 : index
    %c0_288 = arith.constant 0 : index
    %827 = vector.load %arg9[%c6_286, %c0_287, %c0_288] : memref<8x8x256xf32, #tpu.memory_space<vmem>>, vector<1x8x128xf32>
    %828 = vector.shape_cast %827 : vector<1x8x128xf32> to vector<8x128xf32>
    %829 = vector.shape_cast %826 : vector<8x128xf32> to vector<1x8x128xf32>
    tpu.vector_store %arg9[%c6_286, %c0_287, %c0_288], %829 {strides = array<i32>} : memref<8x8x256xf32, #tpu.memory_space<vmem>>, vector<1x8x128xf32>,
    %cst_289 = arith.constant 0.000000e+00 : f32
    %830 = vector.shape_cast %822 : vector<8x1xi1> to vector<8x1xi1>
    %831 = vector.broadcast %830 : vector<8x1xi1> to vector<8x128xi1>
    %832 = vector.broadcast %cst_289 : f32 to vector<8x128xf32>
    %833 = arith.select %831, %818, %832 : vector<8x128xi1>, vector<8x128xf32>
    %c1_290 = arith.constant 1 : index
    %c0_291 = arith.constant 0 : index
    %c128_292 = arith.constant 128 : index
    %834 = vector.load %arg9[%c1_290, %c0_291, %c128_292] : memref<8x8x256xf32, #tpu.memory_space<vmem>>, vector<1x8x128xf32>
    %835 = vector.shape_cast %834 : vector<1x8x128xf32> to vector<8x128xf32>
    %836 = vector.shape_cast %833 : vector<8x128xf32> to vector<1x8x128xf32>
    tpu.vector_store %arg9[%c1_290, %c0_291, %c128_292], %836 {strides = array<i32>} : memref<8x8x256xf32, #tpu.memory_space<vmem>>, vector<1x8x128xf32>,
    %c6_293 = arith.constant 6 : index
    %c0_294 = arith.constant 0 : index
    %c0_295 = arith.constant 0 : index
    %837 = vector.load %arg9[%c6_293, %c0_294, %c0_295] : memref<8x8x256xf32, #tpu.memory_space<vmem>>, vector<1x8x256xf32>
    %838 = vector.shape_cast %837 : vector<1x8x256xf32> to vector<8x256xf32>
    %839 = tpu.iota {dimensions = array<i32: 1>} : vector<1x256xi32>
    %c128_i32_296 = arith.constant 128 : i32
    %c0_i32_297 = arith.constant 0 : i32
    %840 = arith.cmpi eq, %c128_i32_296, %c0_i32_297 : i32
    %c1_i32_298 = arith.constant 1 : i32
    %841 = arith.select %840, %c1_i32_298, %c128_i32_296 : i32
    %842 = vector.broadcast %841 : i32 to vector<1x256xi32>
    %843 = arith.remsi %839, %842 : vector<1x256xi32>
    %c0_i32_299 = arith.constant 0 : i32
    %844 = vector.broadcast %c0_i32_299 : i32 to vector<1x256xi32>
    %845 = arith.cmpi ne, %843, %844 : vector<1x256xi32>
    %c0_i32_300 = arith.constant 0 : i32
    %846 = vector.broadcast %c0_i32_300 : i32 to vector<1x256xi32>
    %847 = arith.cmpi slt, %843, %846 : vector<1x256xi32>
    %c0_i32_301 = arith.constant 0 : i32
    %848 = arith.cmpi slt, %841, %c0_i32_301 : i32
    %849 = vector.broadcast %848 : i1 to vector<1x256xi1>
    %850 = vector.broadcast %849 : vector<1x256xi1> to vector<1x256xi1>
    %851 = arith.xori %847, %850 : vector<1x256xi1>
    %852 = arith.andi %851, %845 : vector<1x256xi1>
    %853 = vector.broadcast %841 : i32 to vector<1x256xi32>
    %854 = arith.addi %843, %853 : vector<1x256xi32>
    %855 = arith.select %852, %854, %843 : vector<1x256xi1>, vector<1x256xi32>
    %c16_i32_302 = arith.constant 16 : i32
    %856 = vector.broadcast %c16_i32_302 : i32 to vector<1x256xi32>
    %857 = arith.cmpi slt, %855, %856 : vector<1x256xi32>
    %858 = arith.extui %857 : vector<1x256xi1> to vector<1x256xi32>
    %859 = arith.sitofp %858 : vector<1x256xi32> to vector<1x256xf32>
    %cst_303 = arith.constant dense<0.000000e+00> : vector<8xf32>
    %860 = vector.multi_reduction <add>, %838, %cst_303 [1] : vector<8x256xf32> to vector<8xf32>
    %861 = vector.shape_cast %860 : vector<8xf32> to vector<8x1xf32>
    %cst_304 = arith.constant 3.125000e-02 : f32
    %862 = vector.broadcast %cst_304 : f32 to vector<8x1xf32>
    %863 = arith.mulf %861, %862 : vector<8x1xf32>
    %864 = vector.broadcast %863 : vector<8x1xf32> to vector<8x256xf32>
    %865 = arith.subf %838, %864 : vector<8x256xf32>
    %866 = vector.broadcast %859 : vector<1x256xf32> to vector<8x256xf32>
    %867 = arith.mulf %865, %866 : vector<8x256xf32>
    %868 = arith.mulf %867, %867 : vector<8x256xf32>
    %cst_305 = arith.constant dense<0.000000e+00> : vector<8xf32>
    %869 = vector.multi_reduction <add>, %868, %cst_305 [1] : vector<8x256xf32> to vector<8xf32>
    %870 = vector.shape_cast %869 : vector<8xf32> to vector<8x1xf32>
    %cst_306 = arith.constant 3.125000e-02 : f32
    %871 = vector.broadcast %cst_306 : f32 to vector<8x1xf32>
    %872 = arith.mulf %870, %871 : vector<8x1xf32>
    %cst_307 = arith.constant 9.99999974E-6 : f32
    %873 = vector.broadcast %cst_307 : f32 to vector<8x1xf32>
    %874 = arith.addf %872, %873 : vector<8x1xf32>
    %875 = math.rsqrt %874 : vector<8x1xf32>
    %876 = vector.broadcast %875 : vector<8x1xf32> to vector<8x256xf32>
    %877 = arith.mulf %867, %876 : vector<8x256xf32>
    %c0_308 = arith.constant 0 : index
    %c0_309 = arith.constant 0 : index
    %c0_310 = arith.constant 0 : index
    %878 = vector.load %arg7[%c0_308, %c0_309, %c0_310] : memref<1x1x256xf32, #tpu.memory_space<vmem>>, vector<1x1x256xf32>
    %879 = vector.shape_cast %878 : vector<1x1x256xf32> to vector<1x256xf32>
    %880 = vector.broadcast %879 : vector<1x256xf32> to vector<8x256xf32>
    %881 = arith.mulf %877, %880 : vector<8x256xf32>
    %c0_311 = arith.constant 0 : index
    %c0_312 = arith.constant 0 : index
    %c0_313 = arith.constant 0 : index
    %882 = vector.load %arg8[%c0_311, %c0_312, %c0_313] : memref<1x1x256xf32, #tpu.memory_space<vmem>>, vector<1x1x256xf32>
    %883 = vector.shape_cast %882 : vector<1x1x256xf32> to vector<1x256xf32>
    %884 = vector.broadcast %883 : vector<1x256xf32> to vector<8x256xf32>
    %885 = arith.addf %881, %884 : vector<8x256xf32>
    %c6_314 = arith.constant 6 : index
    %c0_315 = arith.constant 0 : index
    %c0_316 = arith.constant 0 : index
    %886 = vector.load %arg9[%c6_314, %c0_315, %c0_316] : memref<8x8x256xf32, #tpu.memory_space<vmem>>, vector<1x8x256xf32>
    %887 = vector.shape_cast %886 : vector<1x8x256xf32> to vector<8x256xf32>
    %888 = vector.shape_cast %885 : vector<8x256xf32> to vector<1x8x256xf32>
    tpu.vector_store %arg9[%c6_314, %c0_315, %c0_316], %888 {strides = array<i32>} : memref<8x8x256xf32, #tpu.memory_space<vmem>>, vector<1x8x256xf32>,
    %c1_317 = arith.constant 1 : index
    %c0_318 = arith.constant 0 : index
    %c0_319 = arith.constant 0 : index
    %889 = vector.load %arg9[%c1_317, %c0_318, %c0_319] : memref<8x8x256xf32, #tpu.memory_space<vmem>>, vector<1x8x256xf32>
    %890 = vector.shape_cast %889 : vector<1x8x256xf32> to vector<8x256xf32>
    %891 = tpu.iota {dimensions = array<i32: 1>} : vector<1x256xi32>
    %c128_i32_320 = arith.constant 128 : i32
    %c0_i32_321 = arith.constant 0 : i32
    %892 = arith.cmpi eq, %c128_i32_320, %c0_i32_321 : i32
    %c1_i32_322 = arith.constant 1 : i32
    %893 = arith.select %892, %c1_i32_322, %c128_i32_320 : i32
    %894 = vector.broadcast %893 : i32 to vector<1x256xi32>
    %895 = arith.remsi %891, %894 : vector<1x256xi32>
    %c0_i32_323 = arith.constant 0 : i32
    %896 = vector.broadcast %c0_i32_323 : i32 to vector<1x256xi32>
    %897 = arith.cmpi ne, %895, %896 : vector<1x256xi32>
    %c0_i32_324 = arith.constant 0 : i32
    %898 = vector.broadcast %c0_i32_324 : i32 to vector<1x256xi32>
    %899 = arith.cmpi slt, %895, %898 : vector<1x256xi32>
    %c0_i32_325 = arith.constant 0 : i32
    %900 = arith.cmpi slt, %893, %c0_i32_325 : i32
    %901 = vector.broadcast %900 : i1 to vector<1x256xi1>
    %902 = vector.broadcast %901 : vector<1x256xi1> to vector<1x256xi1>
    %903 = arith.xori %899, %902 : vector<1x256xi1>
    %904 = arith.andi %903, %897 : vector<1x256xi1>
    %905 = vector.broadcast %893 : i32 to vector<1x256xi32>
    %906 = arith.addi %895, %905 : vector<1x256xi32>
    %907 = arith.select %904, %906, %895 : vector<1x256xi1>, vector<1x256xi32>
    %c16_i32_326 = arith.constant 16 : i32
    %908 = vector.broadcast %c16_i32_326 : i32 to vector<1x256xi32>
    %909 = arith.cmpi slt, %907, %908 : vector<1x256xi32>
    %910 = arith.extui %909 : vector<1x256xi1> to vector<1x256xi32>
    %911 = arith.sitofp %910 : vector<1x256xi32> to vector<1x256xf32>
    %cst_327 = arith.constant dense<0.000000e+00> : vector<8xf32>
    %912 = vector.multi_reduction <add>, %890, %cst_327 [1] : vector<8x256xf32> to vector<8xf32>
    %913 = vector.shape_cast %912 : vector<8xf32> to vector<8x1xf32>
    %cst_328 = arith.constant 3.125000e-02 : f32
    %914 = vector.broadcast %cst_328 : f32 to vector<8x1xf32>
    %915 = arith.mulf %913, %914 : vector<8x1xf32>
    %916 = vector.broadcast %915 : vector<8x1xf32> to vector<8x256xf32>
    %917 = arith.subf %890, %916 : vector<8x256xf32>
    %918 = vector.broadcast %911 : vector<1x256xf32> to vector<8x256xf32>
    %919 = arith.mulf %917, %918 : vector<8x256xf32>
    %920 = arith.mulf %919, %919 : vector<8x256xf32>
    %cst_329 = arith.constant dense<0.000000e+00> : vector<8xf32>
    %921 = vector.multi_reduction <add>, %920, %cst_329 [1] : vector<8x256xf32> to vector<8xf32>
    %922 = vector.shape_cast %921 : vector<8xf32> to vector<8x1xf32>
    %cst_330 = arith.constant 3.125000e-02 : f32
    %923 = vector.broadcast %cst_330 : f32 to vector<8x1xf32>
    %924 = arith.mulf %922, %923 : vector<8x1xf32>
    %cst_331 = arith.constant 9.99999974E-6 : f32
    %925 = vector.broadcast %cst_331 : f32 to vector<8x1xf32>
    %926 = arith.addf %924, %925 : vector<8x1xf32>
    %927 = math.rsqrt %926 : vector<8x1xf32>
    %928 = vector.broadcast %927 : vector<8x1xf32> to vector<8x256xf32>
    %929 = arith.mulf %919, %928 : vector<8x256xf32>
    %c0_332 = arith.constant 0 : index
    %c0_333 = arith.constant 0 : index
    %c0_334 = arith.constant 0 : index
    %930 = vector.load %arg7[%c0_332, %c0_333, %c0_334] : memref<1x1x256xf32, #tpu.memory_space<vmem>>, vector<1x1x256xf32>
    %931 = vector.shape_cast %930 : vector<1x1x256xf32> to vector<1x256xf32>
    %932 = vector.broadcast %931 : vector<1x256xf32> to vector<8x256xf32>
    %933 = arith.mulf %929, %932 : vector<8x256xf32>
    %c0_335 = arith.constant 0 : index
    %c0_336 = arith.constant 0 : index
    %c0_337 = arith.constant 0 : index
    %934 = vector.load %arg8[%c0_335, %c0_336, %c0_337] : memref<1x1x256xf32, #tpu.memory_space<vmem>>, vector<1x1x256xf32>
    %935 = vector.shape_cast %934 : vector<1x1x256xf32> to vector<1x256xf32>
    %936 = vector.broadcast %935 : vector<1x256xf32> to vector<8x256xf32>
    %937 = arith.addf %933, %936 : vector<8x256xf32>
    %c1_338 = arith.constant 1 : index
    %c0_339 = arith.constant 0 : index
    %c0_340 = arith.constant 0 : index
    %938 = vector.load %arg9[%c1_338, %c0_339, %c0_340] : memref<8x8x256xf32, #tpu.memory_space<vmem>>, vector<1x8x256xf32>
    %939 = vector.shape_cast %938 : vector<1x8x256xf32> to vector<8x256xf32>
    %940 = vector.shape_cast %937 : vector<8x256xf32> to vector<1x8x256xf32>
    tpu.vector_store %arg9[%c1_338, %c0_339, %c0_340], %940 {strides = array<i32>} : memref<8x8x256xf32, #tpu.memory_space<vmem>>, vector<1x8x256xf32>,
    %941 = vector.shape_cast %820 : vector<8x1xi1> to vector<8x1xi1>
    %942 = vector.broadcast %941 : vector<8x1xi1> to vector<8x128xi1>
    %943 = arith.select %942, %790, %750 : vector<8x128xi1>, vector<8x128xf32>
    %944 = vector.shape_cast %822 : vector<8x1xi1> to vector<8x1xi1>
    %945 = vector.broadcast %944 : vector<8x1xi1> to vector<8x128xi1>
    %946 = arith.select %945, %818, %753 : vector<8x128xi1>, vector<8x128xf32>
    %947 = tpu.concatenate %943, %946 in 1 : vector<8x128xf32>, vector<8x128xf32> -> vector<8x256xf32>
    %c0_341 = arith.constant 0 : index
    %c0_342 = arith.constant 0 : index
    %948 = vector.load %arg5[%c0_341, %c0_342] : memref<256x768xf32, #tpu.memory_space<vmem>>, vector<256x768xf32>
    %cst_343 = arith.constant dense<0.000000e+00> : vector<8x768xf32>
    %949 = tpu.matmul %947, %948, %cst_343 {dimension_numbers = #tpu.dot_dimension_numbers<[1], [0], [0], [1], [0, 0, 1, 1], [], []>} : vector<8x256xf32>, vector<256x768xf32>, vector<8x768xf32> -> vector<8x768xf32>
    %c7_344 = arith.constant 7 : index
    %c0_345 = arith.constant 0 : index
    %c0_346 = arith.constant 0 : index
    %950 = vector.load %arg10[%c7_344, %c0_345, %c0_346] : memref<8x8x768xf32, #tpu.memory_space<vmem>>, vector<1x8x384xf32>
    %951 = vector.shape_cast %950 : vector<1x8x384xf32> to vector<8x384xf32>
    %c0_347 = arith.constant 0 : index
    %c0_348 = arith.constant 0 : index
    %c384_349 = arith.constant 384 : index
    %952 = vector.load %arg10[%c0_347, %c0_348, %c384_349] : memref<8x8x768xf32, #tpu.memory_space<vmem>>, vector<1x8x384xf32>
    %953 = vector.shape_cast %952 : vector<1x8x384xf32> to vector<8x384xf32>
    %c0_350 = arith.constant 0 : index
    %c0_351 = arith.constant 0 : index
    %954 = vector.load %arg6[%c0_350, %c0_351] : memref<1x256xf32, #tpu.memory_space<vmem>>, vector<1x128xf32>
    %c0_352 = arith.constant 0 : index
    %c128_353 = arith.constant 128 : index
    %955 = vector.load %arg6[%c0_352, %c128_353] : memref<1x256xf32, #tpu.memory_space<vmem>>, vector<1x128xf32>
    %956 = vector.extract_strided_slice %951 {offsets = [0, 0], sizes = [8, 128], strides = [1, 1]} : vector<8x384xf32> to vector<8x128xf32>
    %957 = vector.extract_strided_slice %949 {offsets = [0, 0], sizes = [8, 128], strides = [1, 1]} : vector<8x768xf32> to vector<8x128xf32>
    %958 = arith.addf %956, %957 : vector<8x128xf32>
    %959 = arith.negf %958 : vector<8x128xf32>
    %960 = math.exp %959 : vector<8x128xf32>
    %cst_354 = arith.constant 1.000000e+00 : f32
    %961 = vector.broadcast %cst_354 : f32 to vector<8x128xf32>
    %962 = arith.addf %961, %960 : vector<8x128xf32>
    %963 = arith.divf %961, %962 : vector<8x128xf32>
    %964 = vector.extract_strided_slice %951 {offsets = [0, 128], sizes = [8, 128], strides = [1, 1]} : vector<8x384xf32> to vector<8x128xf32>
    %965 = vector.extract_strided_slice %949 {offsets = [0, 128], sizes = [8, 128], strides = [1, 1]} : vector<8x768xf32> to vector<8x128xf32>
    %966 = arith.addf %964, %965 : vector<8x128xf32>
    %967 = arith.negf %966 : vector<8x128xf32>
    %968 = math.exp %967 : vector<8x128xf32>
    %cst_355 = arith.constant 1.000000e+00 : f32
    %969 = vector.broadcast %cst_355 : f32 to vector<8x128xf32>
    %970 = arith.addf %969, %968 : vector<8x128xf32>
    %971 = arith.divf %969, %970 : vector<8x128xf32>
    %972 = vector.extract_strided_slice %951 {offsets = [0, 256], sizes = [8, 128], strides = [1, 1]} : vector<8x384xf32> to vector<8x128xf32>
    %973 = vector.extract_strided_slice %949 {offsets = [0, 256], sizes = [8, 128], strides = [1, 1]} : vector<8x768xf32> to vector<8x128xf32>
    %974 = vector.broadcast %954 : vector<1x128xf32> to vector<8x128xf32>
    %975 = arith.addf %973, %974 : vector<8x128xf32>
    %976 = arith.mulf %963, %975 : vector<8x128xf32>
    %977 = arith.addf %972, %976 : vector<8x128xf32>
    %978 = math.tanh %977 : vector<8x128xf32>
    %cst_356 = arith.constant 1.000000e+00 : f32
    %979 = vector.broadcast %cst_356 : f32 to vector<8x128xf32>
    %980 = arith.subf %979, %971 : vector<8x128xf32>
    %981 = arith.mulf %980, %978 : vector<8x128xf32>
    %982 = arith.mulf %971, %943 : vector<8x128xf32>
    %983 = arith.addf %981, %982 : vector<8x128xf32>
    %984 = vector.extract_strided_slice %953 {offsets = [0, 0], sizes = [8, 128], strides = [1, 1]} : vector<8x384xf32> to vector<8x128xf32>
    %985 = vector.extract_strided_slice %949 {offsets = [0, 384], sizes = [8, 128], strides = [1, 1]} : vector<8x768xf32> to vector<8x128xf32>
    %986 = arith.addf %984, %985 : vector<8x128xf32>
    %987 = arith.negf %986 : vector<8x128xf32>
    %988 = math.exp %987 : vector<8x128xf32>
    %cst_357 = arith.constant 1.000000e+00 : f32
    %989 = vector.broadcast %cst_357 : f32 to vector<8x128xf32>
    %990 = arith.addf %989, %988 : vector<8x128xf32>
    %991 = arith.divf %989, %990 : vector<8x128xf32>
    %992 = vector.extract_strided_slice %953 {offsets = [0, 128], sizes = [8, 128], strides = [1, 1]} : vector<8x384xf32> to vector<8x128xf32>
    %993 = vector.extract_strided_slice %949 {offsets = [0, 512], sizes = [8, 128], strides = [1, 1]} : vector<8x768xf32> to vector<8x128xf32>
    %994 = arith.addf %992, %993 : vector<8x128xf32>
    %995 = arith.negf %994 : vector<8x128xf32>
    %996 = math.exp %995 : vector<8x128xf32>
    %cst_358 = arith.constant 1.000000e+00 : f32
    %997 = vector.broadcast %cst_358 : f32 to vector<8x128xf32>
    %998 = arith.addf %997, %996 : vector<8x128xf32>
    %999 = arith.divf %997, %998 : vector<8x128xf32>
    %1000 = vector.extract_strided_slice %953 {offsets = [0, 256], sizes = [8, 128], strides = [1, 1]} : vector<8x384xf32> to vector<8x128xf32>
    %1001 = vector.extract_strided_slice %949 {offsets = [0, 640], sizes = [8, 128], strides = [1, 1]} : vector<8x768xf32> to vector<8x128xf32>
    %1002 = vector.broadcast %955 : vector<1x128xf32> to vector<8x128xf32>
    %1003 = arith.addf %1001, %1002 : vector<8x128xf32>
    %1004 = arith.mulf %991, %1003 : vector<8x128xf32>
    %1005 = arith.addf %1000, %1004 : vector<8x128xf32>
    %1006 = math.tanh %1005 : vector<8x128xf32>
    %cst_359 = arith.constant 1.000000e+00 : f32
    %1007 = vector.broadcast %cst_359 : f32 to vector<8x128xf32>
    %1008 = arith.subf %1007, %999 : vector<8x128xf32>
    %1009 = arith.mulf %1008, %1006 : vector<8x128xf32>
    %1010 = arith.mulf %999, %946 : vector<8x128xf32>
    %1011 = arith.addf %1009, %1010 : vector<8x128xf32>
    %c7_i32_360 = arith.constant 7 : i32
    %1012 = vector.broadcast %c7_i32_360 : i32 to vector<8x1xi32>
    %1013 = arith.cmpi sgt, %9, %1012 : vector<8x1xi32>
    %c0_i32_361 = arith.constant 0 : i32
    %1014 = vector.broadcast %c0_i32_361 : i32 to vector<8x1xi32>
    %1015 = arith.cmpi sgt, %9, %1014 : vector<8x1xi32>
    %cst_362 = arith.constant 0.000000e+00 : f32
    %1016 = vector.shape_cast %1013 : vector<8x1xi1> to vector<8x1xi1>
    %1017 = vector.broadcast %1016 : vector<8x1xi1> to vector<8x128xi1>
    %1018 = vector.broadcast %cst_362 : f32 to vector<8x128xf32>
    %1019 = arith.select %1017, %983, %1018 : vector<8x128xi1>, vector<8x128xf32>
    %c7_363 = arith.constant 7 : index
    %c0_364 = arith.constant 0 : index
    %c0_365 = arith.constant 0 : index
    %1020 = vector.load %arg9[%c7_363, %c0_364, %c0_365] : memref<8x8x256xf32, #tpu.memory_space<vmem>>, vector<1x8x128xf32>
    %1021 = vector.shape_cast %1020 : vector<1x8x128xf32> to vector<8x128xf32>
    %1022 = vector.shape_cast %1019 : vector<8x128xf32> to vector<1x8x128xf32>
    tpu.vector_store %arg9[%c7_363, %c0_364, %c0_365], %1022 {strides = array<i32>} : memref<8x8x256xf32, #tpu.memory_space<vmem>>, vector<1x8x128xf32>,
    %cst_366 = arith.constant 0.000000e+00 : f32
    %1023 = vector.shape_cast %1015 : vector<8x1xi1> to vector<8x1xi1>
    %1024 = vector.broadcast %1023 : vector<8x1xi1> to vector<8x128xi1>
    %1025 = vector.broadcast %cst_366 : f32 to vector<8x128xf32>
    %1026 = arith.select %1024, %1011, %1025 : vector<8x128xi1>, vector<8x128xf32>
    %c0_367 = arith.constant 0 : index
    %c0_368 = arith.constant 0 : index
    %c128_369 = arith.constant 128 : index
    %1027 = vector.load %arg9[%c0_367, %c0_368, %c128_369] : memref<8x8x256xf32, #tpu.memory_space<vmem>>, vector<1x8x128xf32>
    %1028 = vector.shape_cast %1027 : vector<1x8x128xf32> to vector<8x128xf32>
    %1029 = vector.shape_cast %1026 : vector<8x128xf32> to vector<1x8x128xf32>
    tpu.vector_store %arg9[%c0_367, %c0_368, %c128_369], %1029 {strides = array<i32>} : memref<8x8x256xf32, #tpu.memory_space<vmem>>, vector<1x8x128xf32>,
    %c7_370 = arith.constant 7 : index
    %c0_371 = arith.constant 0 : index
    %c0_372 = arith.constant 0 : index
    %1030 = vector.load %arg9[%c7_370, %c0_371, %c0_372] : memref<8x8x256xf32, #tpu.memory_space<vmem>>, vector<1x8x256xf32>
    %1031 = vector.shape_cast %1030 : vector<1x8x256xf32> to vector<8x256xf32>
    %1032 = tpu.iota {dimensions = array<i32: 1>} : vector<1x256xi32>
    %c128_i32_373 = arith.constant 128 : i32
    %c0_i32_374 = arith.constant 0 : i32
    %1033 = arith.cmpi eq, %c128_i32_373, %c0_i32_374 : i32
    %c1_i32_375 = arith.constant 1 : i32
    %1034 = arith.select %1033, %c1_i32_375, %c128_i32_373 : i32
    %1035 = vector.broadcast %1034 : i32 to vector<1x256xi32>
    %1036 = arith.remsi %1032, %1035 : vector<1x256xi32>
    %c0_i32_376 = arith.constant 0 : i32
    %1037 = vector.broadcast %c0_i32_376 : i32 to vector<1x256xi32>
    %1038 = arith.cmpi ne, %1036, %1037 : vector<1x256xi32>
    %c0_i32_377 = arith.constant 0 : i32
    %1039 = vector.broadcast %c0_i32_377 : i32 to vector<1x256xi32>
    %1040 = arith.cmpi slt, %1036, %1039 : vector<1x256xi32>
    %c0_i32_378 = arith.constant 0 : i32
    %1041 = arith.cmpi slt, %1034, %c0_i32_378 : i32
    %1042 = vector.broadcast %1041 : i1 to vector<1x256xi1>
    %1043 = vector.broadcast %1042 : vector<1x256xi1> to vector<1x256xi1>
    %1044 = arith.xori %1040, %1043 : vector<1x256xi1>
    %1045 = arith.andi %1044, %1038 : vector<1x256xi1>
    %1046 = vector.broadcast %1034 : i32 to vector<1x256xi32>
    %1047 = arith.addi %1036, %1046 : vector<1x256xi32>
    %1048 = arith.select %1045, %1047, %1036 : vector<1x256xi1>, vector<1x256xi32>
    %c16_i32_379 = arith.constant 16 : i32
    %1049 = vector.broadcast %c16_i32_379 : i32 to vector<1x256xi32>
    %1050 = arith.cmpi slt, %1048, %1049 : vector<1x256xi32>
    %1051 = arith.extui %1050 : vector<1x256xi1> to vector<1x256xi32>
    %1052 = arith.sitofp %1051 : vector<1x256xi32> to vector<1x256xf32>
    %cst_380 = arith.constant dense<0.000000e+00> : vector<8xf32>
    %1053 = vector.multi_reduction <add>, %1031, %cst_380 [1] : vector<8x256xf32> to vector<8xf32>
    %1054 = vector.shape_cast %1053 : vector<8xf32> to vector<8x1xf32>
    %cst_381 = arith.constant 3.125000e-02 : f32
    %1055 = vector.broadcast %cst_381 : f32 to vector<8x1xf32>
    %1056 = arith.mulf %1054, %1055 : vector<8x1xf32>
    %1057 = vector.broadcast %1056 : vector<8x1xf32> to vector<8x256xf32>
    %1058 = arith.subf %1031, %1057 : vector<8x256xf32>
    %1059 = vector.broadcast %1052 : vector<1x256xf32> to vector<8x256xf32>
    %1060 = arith.mulf %1058, %1059 : vector<8x256xf32>
    %1061 = arith.mulf %1060, %1060 : vector<8x256xf32>
    %cst_382 = arith.constant dense<0.000000e+00> : vector<8xf32>
    %1062 = vector.multi_reduction <add>, %1061, %cst_382 [1] : vector<8x256xf32> to vector<8xf32>
    %1063 = vector.shape_cast %1062 : vector<8xf32> to vector<8x1xf32>
    %cst_383 = arith.constant 3.125000e-02 : f32
    %1064 = vector.broadcast %cst_383 : f32 to vector<8x1xf32>
    %1065 = arith.mulf %1063, %1064 : vector<8x1xf32>
    %cst_384 = arith.constant 9.99999974E-6 : f32
    %1066 = vector.broadcast %cst_384 : f32 to vector<8x1xf32>
    %1067 = arith.addf %1065, %1066 : vector<8x1xf32>
    %1068 = math.rsqrt %1067 : vector<8x1xf32>
    %1069 = vector.broadcast %1068 : vector<8x1xf32> to vector<8x256xf32>
    %1070 = arith.mulf %1060, %1069 : vector<8x256xf32>
    %c0_385 = arith.constant 0 : index
    %c0_386 = arith.constant 0 : index
    %c0_387 = arith.constant 0 : index
    %1071 = vector.load %arg7[%c0_385, %c0_386, %c0_387] : memref<1x1x256xf32, #tpu.memory_space<vmem>>, vector<1x1x256xf32>
    %1072 = vector.shape_cast %1071 : vector<1x1x256xf32> to vector<1x256xf32>
    %1073 = vector.broadcast %1072 : vector<1x256xf32> to vector<8x256xf32>
    %1074 = arith.mulf %1070, %1073 : vector<8x256xf32>
    %c0_388 = arith.constant 0 : index
    %c0_389 = arith.constant 0 : index
    %c0_390 = arith.constant 0 : index
    %1075 = vector.load %arg8[%c0_388, %c0_389, %c0_390] : memref<1x1x256xf32, #tpu.memory_space<vmem>>, vector<1x1x256xf32>
    %1076 = vector.shape_cast %1075 : vector<1x1x256xf32> to vector<1x256xf32>
    %1077 = vector.broadcast %1076 : vector<1x256xf32> to vector<8x256xf32>
    %1078 = arith.addf %1074, %1077 : vector<8x256xf32>
    %c7_391 = arith.constant 7 : index
    %c0_392 = arith.constant 0 : index
    %c0_393 = arith.constant 0 : index
    %1079 = vector.load %arg9[%c7_391, %c0_392, %c0_393] : memref<8x8x256xf32, #tpu.memory_space<vmem>>, vector<1x8x256xf32>
    %1080 = vector.shape_cast %1079 : vector<1x8x256xf32> to vector<8x256xf32>
    %1081 = vector.shape_cast %1078 : vector<8x256xf32> to vector<1x8x256xf32>
    tpu.vector_store %arg9[%c7_391, %c0_392, %c0_393], %1081 {strides = array<i32>} : memref<8x8x256xf32, #tpu.memory_space<vmem>>, vector<1x8x256xf32>,
    %c0_394 = arith.constant 0 : index
    %c0_395 = arith.constant 0 : index
    %c0_396 = arith.constant 0 : index
    %1082 = vector.load %arg9[%c0_394, %c0_395, %c0_396] : memref<8x8x256xf32, #tpu.memory_space<vmem>>, vector<1x8x256xf32>
    %1083 = vector.shape_cast %1082 : vector<1x8x256xf32> to vector<8x256xf32>
    %1084 = tpu.iota {dimensions = array<i32: 1>} : vector<1x256xi32>
    %c128_i32_397 = arith.constant 128 : i32
    %c0_i32_398 = arith.constant 0 : i32
    %1085 = arith.cmpi eq, %c128_i32_397, %c0_i32_398 : i32
    %c1_i32_399 = arith.constant 1 : i32
    %1086 = arith.select %1085, %c1_i32_399, %c128_i32_397 : i32
    %1087 = vector.broadcast %1086 : i32 to vector<1x256xi32>
    %1088 = arith.remsi %1084, %1087 : vector<1x256xi32>
    %c0_i32_400 = arith.constant 0 : i32
    %1089 = vector.broadcast %c0_i32_400 : i32 to vector<1x256xi32>
    %1090 = arith.cmpi ne, %1088, %1089 : vector<1x256xi32>
    %c0_i32_401 = arith.constant 0 : i32
    %1091 = vector.broadcast %c0_i32_401 : i32 to vector<1x256xi32>
    %1092 = arith.cmpi slt, %1088, %1091 : vector<1x256xi32>
    %c0_i32_402 = arith.constant 0 : i32
    %1093 = arith.cmpi slt, %1086, %c0_i32_402 : i32
    %1094 = vector.broadcast %1093 : i1 to vector<1x256xi1>
    %1095 = vector.broadcast %1094 : vector<1x256xi1> to vector<1x256xi1>
    %1096 = arith.xori %1092, %1095 : vector<1x256xi1>
    %1097 = arith.andi %1096, %1090 : vector<1x256xi1>
    %1098 = vector.broadcast %1086 : i32 to vector<1x256xi32>
    %1099 = arith.addi %1088, %1098 : vector<1x256xi32>
    %1100 = arith.select %1097, %1099, %1088 : vector<1x256xi1>, vector<1x256xi32>
    %c16_i32_403 = arith.constant 16 : i32
    %1101 = vector.broadcast %c16_i32_403 : i32 to vector<1x256xi32>
    %1102 = arith.cmpi slt, %1100, %1101 : vector<1x256xi32>
    %1103 = arith.extui %1102 : vector<1x256xi1> to vector<1x256xi32>
    %1104 = arith.sitofp %1103 : vector<1x256xi32> to vector<1x256xf32>
    %cst_404 = arith.constant dense<0.000000e+00> : vector<8xf32>
    %1105 = vector.multi_reduction <add>, %1083, %cst_404 [1] : vector<8x256xf32> to vector<8xf32>
    %1106 = vector.shape_cast %1105 : vector<8xf32> to vector<8x1xf32>
    %cst_405 = arith.constant 3.125000e-02 : f32
    %1107 = vector.broadcast %cst_405 : f32 to vector<8x1xf32>
    %1108 = arith.mulf %1106, %1107 : vector<8x1xf32>
    %1109 = vector.broadcast %1108 : vector<8x1xf32> to vector<8x256xf32>
    %1110 = arith.subf %1083, %1109 : vector<8x256xf32>
    %1111 = vector.broadcast %1104 : vector<1x256xf32> to vector<8x256xf32>
    %1112 = arith.mulf %1110, %1111 : vector<8x256xf32>
    %1113 = arith.mulf %1112, %1112 : vector<8x256xf32>
    %cst_406 = arith.constant dense<0.000000e+00> : vector<8xf32>
    %1114 = vector.multi_reduction <add>, %1113, %cst_406 [1] : vector<8x256xf32> to vector<8xf32>
    %1115 = vector.shape_cast %1114 : vector<8xf32> to vector<8x1xf32>
    %cst_407 = arith.constant 3.125000e-02 : f32
    %1116 = vector.broadcast %cst_407 : f32 to vector<8x1xf32>
    %1117 = arith.mulf %1115, %1116 : vector<8x1xf32>
    %cst_408 = arith.constant 9.99999974E-6 : f32
    %1118 = vector.broadcast %cst_408 : f32 to vector<8x1xf32>
    %1119 = arith.addf %1117, %1118 : vector<8x1xf32>
    %1120 = math.rsqrt %1119 : vector<8x1xf32>
    %1121 = vector.broadcast %1120 : vector<8x1xf32> to vector<8x256xf32>
    %1122 = arith.mulf %1112, %1121 : vector<8x256xf32>
    %c0_409 = arith.constant 0 : index
    %c0_410 = arith.constant 0 : index
    %c0_411 = arith.constant 0 : index
    %1123 = vector.load %arg7[%c0_409, %c0_410, %c0_411] : memref<1x1x256xf32, #tpu.memory_space<vmem>>, vector<1x1x256xf32>
    %1124 = vector.shape_cast %1123 : vector<1x1x256xf32> to vector<1x256xf32>
    %1125 = vector.broadcast %1124 : vector<1x256xf32> to vector<8x256xf32>
    %1126 = arith.mulf %1122, %1125 : vector<8x256xf32>
    %c0_412 = arith.constant 0 : index
    %c0_413 = arith.constant 0 : index
    %c0_414 = arith.constant 0 : index
    %1127 = vector.load %arg8[%c0_412, %c0_413, %c0_414] : memref<1x1x256xf32, #tpu.memory_space<vmem>>, vector<1x1x256xf32>
    %1128 = vector.shape_cast %1127 : vector<1x1x256xf32> to vector<1x256xf32>
    %1129 = vector.broadcast %1128 : vector<1x256xf32> to vector<8x256xf32>
    %1130 = arith.addf %1126, %1129 : vector<8x256xf32>
    %c0_415 = arith.constant 0 : index
    %c0_416 = arith.constant 0 : index
    %c0_417 = arith.constant 0 : index
    %1131 = vector.load %arg9[%c0_415, %c0_416, %c0_417] : memref<8x8x256xf32, #tpu.memory_space<vmem>>, vector<1x8x256xf32>
    %1132 = vector.shape_cast %1131 : vector<1x8x256xf32> to vector<8x256xf32>
    %1133 = vector.shape_cast %1130 : vector<8x256xf32> to vector<1x8x256xf32>
    tpu.vector_store %arg9[%c0_415, %c0_416, %c0_417], %1133 {strides = array<i32>} : memref<8x8x256xf32, #tpu.memory_space<vmem>>, vector<1x8x256xf32>,
    return
  }
  func.func @transform_0(%arg0: i32) -> (i32, i32) {
    %c0_i32 = arith.constant 0 : i32
    %c0_i32_0 = arith.constant 0 : i32
    return %arg0, %c0_i32 : i32, i32
  }
  func.func @transform_1(%arg0: i32) -> (i32, i32, i32) {
    %c0_i32 = arith.constant 0 : i32
    %c0_i32_0 = arith.constant 0 : i32
    %c0_i32_1 = arith.constant 0 : i32
    return %c0_i32, %arg0, %c0_i32_0 : i32, i32, i32
  }
  func.func @transform_2(%arg0: i32) -> (i32, i32) {
    %c0_i32 = arith.constant 0 : i32
    %c0_i32_0 = arith.constant 0 : i32
    %c0_i32_1 = arith.constant 0 : i32
    return %c0_i32, %c0_i32_0 : i32, i32
  }
  func.func @transform_3(%arg0: i32) -> (i32, i32) {
    %c0_i32 = arith.constant 0 : i32
    %c0_i32_0 = arith.constant 0 : i32
    %c0_i32_1 = arith.constant 0 : i32
    return %c0_i32, %c0_i32_0 : i32, i32
  }
  func.func @transform_4(%arg0: i32) -> (i32, i32) {
    %c0_i32 = arith.constant 0 : i32
    %c0_i32_0 = arith.constant 0 : i32
    %c0_i32_1 = arith.constant 0 : i32
    return %c0_i32, %c0_i32_0 : i32, i32
  }
  func.func @transform_5(%arg0: i32) -> (i32, i32) {
    %c0_i32 = arith.constant 0 : i32
    %c0_i32_0 = arith.constant 0 : i32
    %c0_i32_1 = arith.constant 0 : i32
    return %c0_i32, %c0_i32_0 : i32, i32
  }
  func.func @transform_6(%arg0: i32) -> (i32, i32, i32) {
    %c0_i32 = arith.constant 0 : i32
    %c0_i32_0 = arith.constant 0 : i32
    %c0_i32_1 = arith.constant 0 : i32
    %c0_i32_2 = arith.constant 0 : i32
    return %c0_i32, %c0_i32_0, %c0_i32_1 : i32, i32, i32
  }
  func.func @transform_7(%arg0: i32) -> (i32, i32, i32) {
    %c0_i32 = arith.constant 0 : i32
    %c0_i32_0 = arith.constant 0 : i32
    %c0_i32_1 = arith.constant 0 : i32
    %c0_i32_2 = arith.constant 0 : i32
    return %c0_i32, %c0_i32_0, %c0_i32_1 : i32, i32, i32
  }
  func.func @transform_8(%arg0: i32) -> (i32, i32, i32) {
    %c0_i32 = arith.constant 0 : i32
    %c0_i32_0 = arith.constant 0 : i32
    %c0_i32_1 = arith.constant 0 : i32
    return %c0_i32, %arg0, %c0_i32_0 : i32, i32, i32
  }
}

</mosaic_0001>

<llo_original>
// kernel: temporal_graph_encoder.1
$region0: #{temporal_graph_encoder.1}
  #allocation0 [shape = 'u32[]', space=smem, size = 0x4, offset = 0x4, fixed_abs, tag = 'smem constant byte address 0x4 - core index']
  #allocation1 [shape = 'u32[144,128]{1,0:T(1,128)}', space=vmem, size = 0x12000, scoped, tag = 'internal scratch']
  #allocation2 [shape = 'f32[8,8,768]{2,1,0:T(8,128)}', space=vmem, size = 0x30000, scoped, tag = 'scratch operand']
  %s0 = inlined_call_operand.vmem [shape: s32[8,1], index: 0, kind: input, shape index: {}]
  %s1 = inlined_call_operand.vmem [shape: f32[8,8,128], index: 1, kind: input, shape index: {}]
  %s2 = inlined_call_operand.vmem [shape: f32[128,768], index: 2, kind: input, shape index: {}]
  %s3 = inlined_call_operand.vmem [shape: f32[1,768], index: 3, kind: input, shape index: {}]
  %s4 = inlined_call_operand.vmem [shape: f32[256,768], index: 4, kind: input, shape index: {}]
  %s5 = inlined_call_operand.vmem [shape: f32[1,256], index: 5, kind: input, shape index: {}]
  %s6 = inlined_call_operand.vmem [shape: f32[1,1,256], index: 6, kind: input, shape index: {}]
  %s7 = inlined_call_operand.vmem [shape: f32[1,1,256], index: 7, kind: input, shape index: {}]
  %s8 = inlined_call_operand.vmem [shape: f32[8,8,256], index: 8, kind: output, shape index: {}]
  %s9 = sld [smem:[#allocation0]]
  $region42: #{temporal_graph_encoder.1} parent=0
    _
  %s11 = ssub.s32 1, %s9
  %s12 = scalar_select 0, %s11, %s9
  // Predicated region
  $region2: #{temporal_graph_encoder.1} parent=0 // pred_check
    _
  $region3: #{temporal_graph_encoder.1} parent=0 // pred_check_branch
    %14 = sbr.rel (0) target = $region5
  $region4: #{temporal_graph_encoder.1} parent=0 // pred_region
    _
  $region5: #{temporal_graph_encoder.1} parent=0 // pred_fallthru
    _
  // Predicated region
  $region6: #{temporal_graph_encoder.1} parent=0 // pred_check
    _
  $region7: #{temporal_graph_encoder.1} parent=0 // pred_check_branch
    %16 = sbr.rel (0) target = $region9
  $region8: #{temporal_graph_encoder.1} parent=0 // pred_region
    _
  $region9: #{temporal_graph_encoder.1} parent=0 // pred_fallthru
    _
  // Predicated region
  $region10: #{temporal_graph_encoder.1} parent=0 // pred_check
    _
  $region11: #{temporal_graph_encoder.1} parent=0 // pred_check_branch
    %18 = sbr.rel (0) target = $region13
  $region12: #{temporal_graph_encoder.1} parent=0 // pred_region
    _
  $region13: #{temporal_graph_encoder.1} parent=0 // pred_fallthru
    _
  // Predicated region
  $region14: #{temporal_graph_encoder.1} parent=0 // pred_check
    _
  $region15: #{temporal_graph_encoder.1} parent=0 // pred_check_branch
    %20 = sbr.rel (0) target = $region17
  $region16: #{temporal_graph_encoder.1} parent=0 // pred_region
    _
  $region17: #{temporal_graph_encoder.1} parent=0 // pred_fallthru
    _
  // Predicated region
  $region18: #{temporal_graph_encoder.1} parent=0 // pred_check
    _
  $region19: #{temporal_graph_encoder.1} parent=0 // pred_check_branch
    %22 = sbr.rel (0) target = $region21
  $region20: #{temporal_graph_encoder.1} parent=0 // pred_region
    _
  $region21: #{temporal_graph_encoder.1} parent=0 // pred_fallthru
    _
  // Predicated region
  $region22: #{temporal_graph_encoder.1} parent=0 // pred_check
    _
  $region23: #{temporal_graph_encoder.1} parent=0 // pred_check_branch
    %24 = sbr.rel (0) target = $region25
  $region24: #{temporal_graph_encoder.1} parent=0 // pred_region
    _
  $region25: #{temporal_graph_encoder.1} parent=0 // pred_fallthru
    _
  // Predicated region
  $region26: #{temporal_graph_encoder.1} parent=0 // pred_check
    _
  $region27: #{temporal_graph_encoder.1} parent=0 // pred_check_branch
    %26 = sbr.rel (0) target = $region29
  $region28: #{temporal_graph_encoder.1} parent=0 // pred_region
    _
  $region29: #{temporal_graph_encoder.1} parent=0 // pred_fallthru
    _
  // Predicated region
  $region30: #{temporal_graph_encoder.1} parent=0 // pred_check
    _
  $region31: #{temporal_graph_encoder.1} parent=0 // pred_check_branch
    %28 = sbr.rel (0) target = $region33
  $region32: #{temporal_graph_encoder.1} parent=0 // pred_region
    _
  $region33: #{temporal_graph_encoder.1} parent=0 // pred_fallthru
    _
  %v29 = vld [vmem:[%s1] sm:$0xff]
  %v30 = vld [vmem:[%s1 + $0x8] sm:$0xff]
  %v31 = vld [vmem:[%s1 + $0x10] sm:$0xff]
  %v32 = vld [vmem:[%s1 + $0x18] sm:$0xff]
  %v33 = vld [vmem:[%s1 + $0x20] sm:$0xff]
  %v34 = vld [vmem:[%s1 + $0x28] sm:$0xff]
  %v35 = vld [vmem:[%s1 + $0x30] sm:$0xff]
  %v36 = vld [vmem:[%s1 + $0x38] sm:$0xff]
  %v37 = vld [vmem:[%s2] sm:$0xff]
  %v38 = vld [vmem:[%s2 + $0x8] sm:$0xff]
  %v39 = vld [vmem:[%s2 + $0x10] sm:$0xff]
  %v40 = vld [vmem:[%s2 + $0x18] sm:$0xff]
  %v41 = vld [vmem:[%s2 + $0x20] sm:$0xff]
  %v42 = vld [vmem:[%s2 + $0x28] sm:$0xff]
  %v43 = vld [vmem:[%s2 + $0x30] sm:$0xff]
  %v44 = vld [vmem:[%s2 + $0x38] sm:$0xff]
  %v45 = vld [vmem:[%s2 + $0x40] sm:$0xff]
  %v46 = vld [vmem:[%s2 + $0x48] sm:$0xff]
  %v47 = vld [vmem:[%s2 + $0x50] sm:$0xff]
  %v48 = vld [vmem:[%s2 + $0x58] sm:$0xff]
  %v49 = vld [vmem:[%s2 + $0x60] sm:$0xff]
  %v50 = vld [vmem:[%s2 + $0x68] sm:$0xff]
  %v51 = vld [vmem:[%s2 + $0x70] sm:$0xff]
  %v52 = vld [vmem:[%s2 + $0x78] sm:$0xff]
  %v53 = vld [vmem:[%s2 + $0x80] sm:$0xff]
  %v54 = vld [vmem:[%s2 + $0x88] sm:$0xff]
  %v55 = vld [vmem:[%s2 + $0x90] sm:$0xff]
  %v56 = vld [vmem:[%s2 + $0x98] sm:$0xff]
  %v57 = vld [vmem:[%s2 + $0xa0] sm:$0xff]
  %v58 = vld [vmem:[%s2 + $0xa8] sm:$0xff]
  %v59 = vld [vmem:[%s2 + $0xb0] sm:$0xff]
  %v60 = vld [vmem:[%s2 + $0xb8] sm:$0xff]
  %v61 = vld [vmem:[%s2 + $0xc0] sm:$0xff]
  %v62 = vld [vmem:[%s2 + $0xc8] sm:$0xff]
  %v63 = vld [vmem:[%s2 + $0xd0] sm:$0xff]
  %v64 = vld [vmem:[%s2 + $0xd8] sm:$0xff]
  %v65 = vld [vmem:[%s2 + $0xe0] sm:$0xff]
  %v66 = vld [vmem:[%s2 + $0xe8] sm:$0xff]
  %v67 = vld [vmem:[%s2 + $0xf0] sm:$0xff]
  %v68 = vld [vmem:[%s2 + $0xf8] sm:$0xff]
  %v69 = vld [vmem:[%s2 + $0x100] sm:$0xff]
  %v70 = vld [vmem:[%s2 + $0x108] sm:$0xff]
  %v71 = vld [vmem:[%s2 + $0x110] sm:$0xff]
  %v72 = vld [vmem:[%s2 + $0x118] sm:$0xff]
  %v73 = vld [vmem:[%s2 + $0x120] sm:$0xff]
  %v74 = vld [vmem:[%s2 + $0x128] sm:$0xff]
  %v75 = vld [vmem:[%s2 + $0x130] sm:$0xff]
  %v76 = vld [vmem:[%s2 + $0x138] sm:$0xff]
  %v77 = vld [vmem:[%s2 + $0x140] sm:$0xff]
  %v78 = vld [vmem:[%s2 + $0x148] sm:$0xff]
  %v79 = vld [vmem:[%s2 + $0x150] sm:$0xff]
  %v80 = vld [vmem:[%s2 + $0x158] sm:$0xff]
  %v81 = vld [vmem:[%s2 + $0x160] sm:$0xff]
  %v82 = vld [vmem:[%s2 + $0x168] sm:$0xff]
  %v83 = vld [vmem:[%s2 + $0x170] sm:$0xff]
  %v84 = vld [vmem:[%s2 + $0x178] sm:$0xff]
  %v85 = vld [vmem:[%s2 + $0x180] sm:$0xff]
  %v86 = vld [vmem:[%s2 + $0x188] sm:$0xff]
  %v87 = vld [vmem:[%s2 + $0x190] sm:$0xff]
  %v88 = vld [vmem:[%s2 + $0x198] sm:$0xff]
  %v89 = vld [vmem:[%s2 + $0x1a0] sm:$0xff]
  %v90 = vld [vmem:[%s2 + $0x1a8] sm:$0xff]
  %v91 = vld [vmem:[%s2 + $0x1b0] sm:$0xff]
  %v92 = vld [vmem:[%s2 + $0x1b8] sm:$0xff]
  %v93 = vld [vmem:[%s2 + $0x1c0] sm:$0xff]
  %v94 = vld [vmem:[%s2 + $0x1c8] sm:$0xff]
  %v95 = vld [vmem:[%s2 + $0x1d0] sm:$0xff]
  %v96 = vld [vmem:[%s2 + $0x1d8] sm:$0xff]
  %v97 = vld [vmem:[%s2 + $0x1e0] sm:$0xff]
  %v98 = vld [vmem:[%s2 + $0x1e8] sm:$0xff]
  %v99 = vld [vmem:[%s2 + $0x1f0] sm:$0xff]
  %v100 = vld [vmem:[%s2 + $0x1f8] sm:$0xff]
  %v101 = vld [vmem:[%s2 + $0x200] sm:$0xff]
  %v102 = vld [vmem:[%s2 + $0x208] sm:$0xff]
  %v103 = vld [vmem:[%s2 + $0x210] sm:$0xff]
  %v104 = vld [vmem:[%s2 + $0x218] sm:$0xff]
  %v105 = vld [vmem:[%s2 + $0x220] sm:$0xff]
  %v106 = vld [vmem:[%s2 + $0x228] sm:$0xff]
  %v107 = vld [vmem:[%s2 + $0x230] sm:$0xff]
  %v108 = vld [vmem:[%s2 + $0x238] sm:$0xff]
  %v109 = vld [vmem:[%s2 + $0x240] sm:$0xff]
  %v110 = vld [vmem:[%s2 + $0x248] sm:$0xff]
  %v111 = vld [vmem:[%s2 + $0x250] sm:$0xff]
  %v112 = vld [vmem:[%s2 + $0x258] sm:$0xff]
  %v113 = vld [vmem:[%s2 + $0x260] sm:$0xff]
  %v114 = vld [vmem:[%s2 + $0x268] sm:$0xff]
  %v115 = vld [vmem:[%s2 + $0x270] sm:$0xff]
  %v116 = vld [vmem:[%s2 + $0x278] sm:$0xff]
  %v117 = vld [vmem:[%s2 + $0x280] sm:$0xff]
  %v118 = vld [vmem:[%s2 + $0x288] sm:$0xff]
  %v119 = vld [vmem:[%s2 + $0x290] sm:$0xff]
  %v120 = vld [vmem:[%s2 + $0x298] sm:$0xff]
  %v121 = vld [vmem:[%s2 + $0x2a0] sm:$0xff]
  %v122 = vld [vmem:[%s2 + $0x2a8] sm:$0xff]
  %v123 = vld [vmem:[%s2 + $0x2b0] sm:$0xff]
  %v124 = vld [vmem:[%s2 + $0x2b8] sm:$0xff]
  %v125 = vld [vmem:[%s2 + $0x2c0] sm:$0xff]
  %v126 = vld [vmem:[%s2 + $0x2c8] sm:$0xff]
  %v127 = vld [vmem:[%s2 + $0x2d0] sm:$0xff]
  %v128 = vld [vmem:[%s2 + $0x2d8] sm:$0xff]
  %v129 = vld [vmem:[%s2 + $0x2e0] sm:$0xff]
  %v130 = vld [vmem:[%s2 + $0x2e8] sm:$0xff]
  %v131 = vld [vmem:[%s2 + $0x2f0] sm:$0xff]
  %v132 = vld [vmem:[%s2 + $0x2f8] sm:$0xff]
  %v133 = vld [vmem:[%s3] sm:$0x3f]
  %v135 = vlaneseq
  %v136 = vshrl.u32 %v135, 7
  %v137 = vsub.s32 0, %v136
  %v138 = vrot.slane %v133, %v137
  %v139 = vlaneseq
  %v140 = vshrl.u32 %v139, 7
  %v141 = vsub.s32 1, %v140
  %v142 = vrot.slane %v133, %v141
  %v143 = vlaneseq
  %v144 = vshrl.u32 %v143, 7
  %v145 = vsub.s32 2, %v144
  %v146 = vrot.slane %v133, %v145
  %v147 = vlaneseq
  %v148 = vshrl.u32 %v147, 7
  %v149 = vsub.s32 3, %v148
  %v150 = vrot.slane %v133, %v149
  %v151 = vlaneseq
  %v152 = vshrl.u32 %v151, 7
  %v153 = vsub.s32 4, %v152
  %v154 = vrot.slane %v133, %v153
  %v155 = vlaneseq
  %v156 = vshrl.u32 %v155, 7
  %v157 = vsub.s32 5, %v156
  %v158 = vrot.slane %v133, %v157
  %165 = vmatprep.subr.mxu0 %v128
  %166 = vmatpush1.msra.mxu0 %v127
  %167 = vmatprep.subr.mxu0 %v122
  %168 = vmatpush1.msra.mxu0 %v121
  %169 = vmatprep.subr.mxu0 %v116
  %170 = vmatpush1.msra.mxu0 %v115
  %171 = vmatprep.subr.mxu0 %v110
  %172 = vmatpush1.msra.mxu0 %v109
  %173 = vmatprep.subr.mxu0 %v104
  %174 = vmatpush1.msra.mxu0 %v103
  %175 = vmatprep.subr.mxu0 %v98
  %176 = vmatpush1.msra.mxu0 %v97
  %177 = vmatprep.subr.mxu0 %v92
  %178 = vmatpush1.msra.mxu0 %v91
  %179 = vmatprep.subr.mxu0 %v86
  %180 = vmatpush1.msra.mxu0 %v85
  %181 = vmatprep.subr.mxu0 %v80
  %182 = vmatpush1.msra.mxu0 %v79
  %183 = vmatprep.subr.mxu0 %v74
  %184 = vmatpush1.msra.mxu0 %v73
  %185 = vmatprep.subr.mxu0 %v68
  %186 = vmatpush1.msra.mxu0 %v67
  %187 = vmatprep.subr.mxu0 %v62
  %188 = vmatpush1.msra.mxu0 %v61
  %189 = vmatprep.subr.mxu0 %v56
  %190 = vmatpush1.msra.mxu0 %v55
  %191 = vmatprep.subr.mxu0 %v50
  %192 = vmatpush1.msra.mxu0 %v49
  %193 = vmatprep.subr.mxu0 %v44
  %194 = vmatpush1.msra.mxu0 %v43
  %195 = vmatprep.subr.mxu0 %v38
  %196 = vmatpush1.msra.mxu0 %v37
  %197 = vmatprep.subr.mxu0 0.0
  %198 = vmatpush2.msra.mxu0 0.0
  %199 = vmatprep.subr.mxu0 0.0
  %200 = vmatpush2.msra.mxu0 0.0
  %201 = vmatprep.subr.mxu0 0.0
  %202 = vmatpush2.msra.mxu0 0.0
  %203 = vmatprep.subr.mxu0 0.0
  %204 = vmatpush2.msra.mxu0 0.0
  %205 = vmatprep.subr.mxu0 0.0
  %206 = vmatpush2.msra.mxu0 0.0
  %207 = vmatprep.subr.mxu0 0.0
  %208 = vmatpush2.msra.mxu0 0.0
  %209 = vmatprep.subr.mxu0 0.0
  %210 = vmatpush2.msra.mxu0 0.0
  %211 = vmatprep.subr.mxu0 0.0
  %212 = vmatpush2.msra.mxu0 0.0
  %213 = vmatprep.subr.mxu0 0.0
  %214 = vmatpush2.msra.mxu0 0.0
  %215 = vmatprep.subr.mxu0 0.0
  %216 = vmatpush2.msra.mxu0 0.0
  %217 = vmatprep.subr.mxu0 0.0
  %218 = vmatpush2.msra.mxu0 0.0
  %219 = vmatprep.subr.mxu0 0.0
  %220 = vmatpush2.msra.mxu0 0.0
  %221 = vmatprep.subr.mxu0 0.0
  %222 = vmatpush2.msra.mxu0 0.0
  %223 = vmatprep.subr.mxu0 0.0
  %224 = vmatpush2.msra.mxu0 0.0
  %225 = vmatprep.subr.mxu0 0.0
  %226 = vmatpush2.msra.mxu0 0.0
  %227 = vmatprep.subr.mxu0 0.0
  %228 = vmatpush2.msra.mxu0 0.0
  %229 = vmatprep.mubr.f32.mxu0 0.0
  %230 = vmatmul.mubr.f32.gmra.mxu0 %v29
  %v231 = vpop.f32.mrf.mxu0
  %v232 = vadd.f32 %v138, %v231
  %v233 = vpop.f32.mrf.mxu0
  %v234 = vadd.f32 %v142, %v233
  %235 = vmatprep.mubr.f32.mxu0 0.0
  %236 = vmatmul.mubr.f32.gmra.mxu0 %v30
  %v237 = vpop.f32.mrf.mxu0
  %v238 = vadd.f32 %v138, %v237
  %v239 = vpop.f32.mrf.mxu0
  %v240 = vadd.f32 %v142, %v239
  %241 = vmatprep.mubr.f32.mxu0 0.0
  %242 = vmatmul.mubr.f32.gmra.mxu0 %v31
  %v243 = vpop.f32.mrf.mxu0
  %v244 = vadd.f32 %v138, %v243
  %v245 = vpop.f32.mrf.mxu0
  %v246 = vadd.f32 %v142, %v245
  %247 = vmatprep.mubr.f32.mxu0 0.0
  %248 = vmatmul.mubr.f32.gmra.mxu0 %v32
  %v249 = vpop.f32.mrf.mxu0
  %v250 = vadd.f32 %v138, %v249
  %v251 = vpop.f32.mrf.mxu0
  %v252 = vadd.f32 %v142, %v251
  %253 = vmatprep.mubr.f32.mxu0 0.0
  %254 = vmatmul.mubr.f32.gmra.mxu0 %v33
  %v255 = vpop.f32.mrf.mxu0
  %v256 = vadd.f32 %v138, %v255
  %v257 = vpop.f32.mrf.mxu0
  %v258 = vadd.f32 %v142, %v257
  %259 = vmatprep.mubr.f32.mxu0 0.0
  %260 = vmatmul.mubr.f32.gmra.mxu0 %v34
  %v261 = vpop.f32.mrf.mxu0
  %v262 = vadd.f32 %v138, %v261
  %v263 = vpop.f32.mrf.mxu0
  %v264 = vadd.f32 %v142, %v263
  %265 = vmatprep.mubr.f32.mxu0 0.0
  %266 = vmatmul.mubr.f32.gmra.mxu0 %v35
  %v267 = vpop.f32.mrf.mxu0
  %v268 = vadd.f32 %v138, %v267
  %v269 = vpop.f32.mrf.mxu0
  %v270 = vadd.f32 %v142, %v269
  %271 = vmatprep.mubr.f32.mxu0 0.0
  %272 = vmatmul.mubr.f32.gmra.mxu0 %v36
  %v273 = vpop.f32.mrf.mxu0
  %v274 = vadd.f32 %v138, %v273
  %v275 = vpop.f32.mrf.mxu0
  %v276 = vadd.f32 %v142, %v275
  %277 = vdwg.mxu0
  %278 = vmatprep.subr.mxu0 %v130
  %279 = vmatpush1.msra.mxu0 %v129
  %280 = vmatprep.subr.mxu0 %v124
  %281 = vmatpush1.msra.mxu0 %v123
  %282 = vmatprep.subr.mxu0 %v118
  %283 = vmatpush1.msra.mxu0 %v117
  %284 = vmatprep.subr.mxu0 %v112
  %285 = vmatpush1.msra.mxu0 %v111
  %286 = vmatprep.subr.mxu0 %v106
  %287 = vmatpush1.msra.mxu0 %v105
  %288 = vmatprep.subr.mxu0 %v100
  %289 = vmatpush1.msra.mxu0 %v99
  %290 = vmatprep.subr.mxu0 %v94
  %291 = vmatpush1.msra.mxu0 %v93
  %292 = vmatprep.subr.mxu0 %v88
  %293 = vmatpush1.msra.mxu0 %v87
  %294 = vmatprep.subr.mxu0 %v82
  %295 = vmatpush1.msra.mxu0 %v81
  %296 = vmatprep.subr.mxu0 %v76
  %297 = vmatpush1.msra.mxu0 %v75
  %298 = vmatprep.subr.mxu0 %v70
  %299 = vmatpush1.msra.mxu0 %v69
  %300 = vmatprep.subr.mxu0 %v64
  %301 = vmatpush1.msra.mxu0 %v63
  %302 = vmatprep.subr.mxu0 %v58
  %303 = vmatpush1.msra.mxu0 %v57
  %304 = vmatprep.subr.mxu0 %v52
  %305 = vmatpush1.msra.mxu0 %v51
  %306 = vmatprep.subr.mxu0 %v46
  %307 = vmatpush1.msra.mxu0 %v45
  %308 = vmatprep.subr.mxu0 %v40
  %309 = vmatpush1.msra.mxu0 %v39
  %310 = vmatprep.subr.mxu0 0.0
  %311 = vmatpush2.msra.mxu0 0.0
  %312 = vmatprep.subr.mxu0 0.0
  %313 = vmatpush2.msra.mxu0 0.0
  %314 = vmatprep.subr.mxu0 0.0
  %315 = vmatpush2.msra.mxu0 0.0
  %316 = vmatprep.subr.mxu0 0.0
  %317 = vmatpush2.msra.mxu0 0.0
  %318 = vmatprep.subr.mxu0 0.0
  %319 = vmatpush2.msra.mxu0 0.0
  %320 = vmatprep.subr.mxu0 0.0
  %321 = vmatpush2.msra.mxu0 0.0
  %322 = vmatprep.subr.mxu0 0.0
  %323 = vmatpush2.msra.mxu0 0.0
  %324 = vmatprep.subr.mxu0 0.0
  %325 = vmatpush2.msra.mxu0 0.0
  %326 = vmatprep.subr.mxu0 0.0
  %327 = vmatpush2.msra.mxu0 0.0
  %328 = vmatprep.subr.mxu0 0.0
  %329 = vmatpush2.msra.mxu0 0.0
  %330 = vmatprep.subr.mxu0 0.0
  %331 = vmatpush2.msra.mxu0 0.0
  %332 = vmatprep.subr.mxu0 0.0
  %333 = vmatpush2.msra.mxu0 0.0
  %334 = vmatprep.subr.mxu0 0.0
  %335 = vmatpush2.msra.mxu0 0.0
  %336 = vmatprep.subr.mxu0 0.0
  %337 = vmatpush2.msra.mxu0 0.0
  %338 = vmatprep.subr.mxu0 0.0
  %339 = vmatpush2.msra.mxu0 0.0
  %340 = vmatprep.subr.mxu0 0.0
  %341 = vmatpush2.msra.mxu0 0.0
  %342 = vmatprep.mubr.f32.mxu0 0.0
  %343 = vmatmul.mubr.f32.gmra.mxu0 %v29
  %v344 = vpop.f32.mrf.mxu0
  %v345 = vadd.f32 %v146, %v344
  %v346 = vpop.f32.mrf.mxu0
  %v347 = vadd.f32 %v150, %v346
  %348 = vmatprep.mubr.f32.mxu0 0.0
  %349 = vmatmul.mubr.f32.gmra.mxu0 %v30
  %v350 = vpop.f32.mrf.mxu0
  %v351 = vadd.f32 %v146, %v350
  %v352 = vpop.f32.mrf.mxu0
  %v353 = vadd.f32 %v150, %v352
  %354 = vmatprep.mubr.f32.mxu0 0.0
  %355 = vmatmul.mubr.f32.gmra.mxu0 %v31
  %v356 = vpop.f32.mrf.mxu0
  %v357 = vadd.f32 %v146, %v356
  %v358 = vpop.f32.mrf.mxu0
  %v359 = vadd.f32 %v150, %v358
  %360 = vmatprep.mubr.f32.mxu0 0.0
  %361 = vmatmul.mubr.f32.gmra.mxu0 %v32
  %v362 = vpop.f32.mrf.mxu0
  %v363 = vadd.f32 %v146, %v362
  %v364 = vpop.f32.mrf.mxu0
  %v365 = vadd.f32 %v150, %v364
  %366 = vmatprep.mubr.f32.mxu0 0.0
  %367 = vmatmul.mubr.f32.gmra.mxu0 %v33
  %v368 = vpop.f32.mrf.mxu0
  %v369 = vadd.f32 %v146, %v368
  %v370 = vpop.f32.mrf.mxu0
  %v371 = vadd.f32 %v150, %v370
  %372 = vmatprep.mubr.f32.mxu0 0.0
  %373 = vmatmul.mubr.f32.gmra.mxu0 %v34
  %v374 = vpop.f32.mrf.mxu0
  %v375 = vadd.f32 %v146, %v374
  %v376 = vpop.f32.mrf.mxu0
  %v377 = vadd.f32 %v150, %v376
  %378 = vmatprep.mubr.f32.mxu0 0.0
  %379 = vmatmul.mubr.f32.gmra.mxu0 %v35
  %v380 = vpop.f32.mrf.mxu0
  %v381 = vadd.f32 %v146, %v380
  %v382 = vpop.f32.mrf.mxu0
  %v383 = vadd.f32 %v150, %v382
  %384 = vmatprep.mubr.f32.mxu0 0.0
  %385 = vmatmul.mubr.f32.gmra.mxu0 %v36
  %v386 = vpop.f32.mrf.mxu0
  %v387 = vadd.f32 %v146, %v386
  %v388 = vpop.f32.mrf.mxu0
  %v389 = vadd.f32 %v150, %v388
  %390 = vdwg.mxu0
  %391 = vmatprep.subr.mxu0 %v132
  %392 = vmatpush1.msra.mxu0 %v131
  %393 = vmatprep.subr.mxu0 %v126
  %394 = vmatpush1.msra.mxu0 %v125
  %395 = vmatprep.subr.mxu0 %v120
  %396 = vmatpush1.msra.mxu0 %v119
  %397 = vmatprep.subr.mxu0 %v114
  %398 = vmatpush1.msra.mxu0 %v113
  %399 = vmatprep.subr.mxu0 %v108
  %400 = vmatpush1.msra.mxu0 %v107
  %401 = vmatprep.subr.mxu0 %v102
  %402 = vmatpush1.msra.mxu0 %v101
  %403 = vmatprep.subr.mxu0 %v96
  %404 = vmatpush1.msra.mxu0 %v95
  %405 = vmatprep.subr.mxu0 %v90
  %406 = vmatpush1.msra.mxu0 %v89
  %407 = vmatprep.subr.mxu0 %v84
  %408 = vmatpush1.msra.mxu0 %v83
  %409 = vmatprep.subr.mxu0 %v78
  %410 = vmatpush1.msra.mxu0 %v77
  %411 = vmatprep.subr.mxu0 %v72
  %412 = vmatpush1.msra.mxu0 %v71
  %413 = vmatprep.subr.mxu0 %v66
  %414 = vmatpush1.msra.mxu0 %v65
  %415 = vmatprep.subr.mxu0 %v60
  %416 = vmatpush1.msra.mxu0 %v59
  %417 = vmatprep.subr.mxu0 %v54
  %418 = vmatpush1.msra.mxu0 %v53
  %419 = vmatprep.subr.mxu0 %v48
  %420 = vmatpush1.msra.mxu0 %v47
  %421 = vmatprep.subr.mxu0 %v42
  %422 = vmatpush1.msra.mxu0 %v41
  %423 = vmatprep.subr.mxu0 0.0
  %424 = vmatpush2.msra.mxu0 0.0
  %425 = vmatprep.subr.mxu0 0.0
  %426 = vmatpush2.msra.mxu0 0.0
  %427 = vmatprep.subr.mxu0 0.0
  %428 = vmatpush2.msra.mxu0 0.0
  %429 = vmatprep.subr.mxu0 0.0
  %430 = vmatpush2.msra.mxu0 0.0
  %431 = vmatprep.subr.mxu0 0.0
  %432 = vmatpush2.msra.mxu0 0.0
  %433 = vmatprep.subr.mxu0 0.0
  %434 = vmatpush2.msra.mxu0 0.0
  %435 = vmatprep.subr.mxu0 0.0
  %436 = vmatpush2.msra.mxu0 0.0
  %437 = vmatprep.subr.mxu0 0.0
  %438 = vmatpush2.msra.mxu0 0.0
  %439 = vmatprep.subr.mxu0 0.0
  %440 = vmatpush2.msra.mxu0 0.0
  %441 = vmatprep.subr.mxu0 0.0
  %442 = vmatpush2.msra.mxu0 0.0
  %443 = vmatprep.subr.mxu0 0.0
  %444 = vmatpush2.msra.mxu0 0.0
  %445 = vmatprep.subr.mxu0 0.0
  %446 = vmatpush2.msra.mxu0 0.0
  %447 = vmatprep.subr.mxu0 0.0
  %448 = vmatpush2.msra.mxu0 0.0
  %449 = vmatprep.subr.mxu0 0.0
  %450 = vmatpush2.msra.mxu0 0.0
  %451 = vmatprep.subr.mxu0 0.0
  %452 = vmatpush2.msra.mxu0 0.0
  %453 = vmatprep.subr.mxu0 0.0
  %454 = vmatpush2.msra.mxu0 0.0
  %455 = vmatprep.mubr.f32.mxu0 0.0
  %456 = vmatmul.mubr.f32.gmra.mxu0 %v29
  %v457 = vpop.f32.mrf.mxu0
  %v458 = vadd.f32 %v154, %v457
  %v459 = vpop.f32.mrf.mxu0
  %v460 = vadd.f32 %v158, %v459
  %461 = vmatprep.mubr.f32.mxu0 0.0
  %462 = vmatmul.mubr.f32.gmra.mxu0 %v30
  %v463 = vpop.f32.mrf.mxu0
  %v464 = vadd.f32 %v154, %v463
  %v465 = vpop.f32.mrf.mxu0
  %v466 = vadd.f32 %v158, %v465
  %467 = vmatprep.mubr.f32.mxu0 0.0
  %468 = vmatmul.mubr.f32.gmra.mxu0 %v31
  %v469 = vpop.f32.mrf.mxu0
  %v470 = vadd.f32 %v154, %v469
  %v471 = vpop.f32.mrf.mxu0
  %v472 = vadd.f32 %v158, %v471
  %473 = vmatprep.mubr.f32.mxu0 0.0
  %474 = vmatmul.mubr.f32.gmra.mxu0 %v32
  %v475 = vpop.f32.mrf.mxu0
  %v476 = vadd.f32 %v154, %v475
  %v477 = vpop.f32.mrf.mxu0
  %v478 = vadd.f32 %v158, %v477
  %479 = vmatprep.mubr.f32.mxu0 0.0
  %480 = vmatmul.mubr.f32.gmra.mxu0 %v33
  %v481 = vpop.f32.mrf.mxu0
  %v482 = vadd.f32 %v154, %v481
  %v483 = vpop.f32.mrf.mxu0
  %v484 = vadd.f32 %v158, %v483
  %485 = vmatprep.mubr.f32.mxu0 0.0
  %486 = vmatmul.mubr.f32.gmra.mxu0 %v34
  %v487 = vpop.f32.mrf.mxu0
  %v488 = vadd.f32 %v154, %v487
  %v489 = vpop.f32.mrf.mxu0
  %v490 = vadd.f32 %v158, %v489
  %491 = vmatprep.mubr.f32.mxu0 0.0
  %492 = vmatmul.mubr.f32.gmra.mxu0 %v35
  %v493 = vpop.f32.mrf.mxu0
  %v494 = vadd.f32 %v154, %v493
  %v495 = vpop.f32.mrf.mxu0
  %v496 = vadd.f32 %v158, %v495
  %497 = vmatprep.mubr.f32.mxu0 0.0
  %498 = vmatmul.mubr.f32.gmra.mxu0 %v36
  %v499 = vpop.f32.mrf.mxu0
  %v500 = vadd.f32 %v154, %v499
  %v501 = vpop.f32.mrf.mxu0
  %v502 = vadd.f32 %v158, %v501
  %503 = vdwg.mxu0
  %504 = vst [vmem:[#allocation2] sm:$0xff] %v232
  %505 = vst [vmem:[#allocation2 + $0x8] sm:$0xff] %v234
  %506 = vst [vmem:[#allocation2 + $0x10] sm:$0xff] %v345
  %507 = vst [vmem:[#allocation2 + $0x18] sm:$0xff] %v347
  %508 = vst [vmem:[#allocation2 + $0x20] sm:$0xff] %v458
  %509 = vst [vmem:[#allocation2 + $0x28] sm:$0xff] %v460
  %510 = vst [vmem:[#allocation2 + $0x30] sm:$0xff] %v238
  %511 = vst [vmem:[#allocation2 + $0x38] sm:$0xff] %v240
  %512 = vst [vmem:[#allocation2 + $0x40] sm:$0xff] %v351
  %513 = vst [vmem:[#allocation2 + $0x48] sm:$0xff] %v353
  %514 = vst [vmem:[#allocation2 + $0x50] sm:$0xff] %v464
  %515 = vst [vmem:[#allocation2 + $0x58] sm:$0xff] %v466
  %516 = vst [vmem:[#allocation2 + $0x60] sm:$0xff] %v244
  %517 = vst [vmem:[#allocation2 + $0x68] sm:$0xff] %v246
  %518 = vst [vmem:[#allocation2 + $0x70] sm:$0xff] %v357
  %519 = vst [vmem:[#allocation2 + $0x78] sm:$0xff] %v359
  %520 = vst [vmem:[#allocation2 + $0x80] sm:$0xff] %v470
  %521 = vst [vmem:[#allocation2 + $0x88] sm:$0xff] %v472
  %522 = vst [vmem:[#allocation2 + $0x90] sm:$0xff] %v250
  %523 = vst [vmem:[#allocation2 + $0x98] sm:$0xff] %v252
  %524 = vst [vmem:[#allocation2 + $0xa0] sm:$0xff] %v363
  %525 = vst [vmem:[#allocation2 + $0xa8] sm:$0xff] %v365
  %526 = vst [vmem:[#allocation2 + $0xb0] sm:$0xff] %v476
  %527 = vst [vmem:[#allocation2 + $0xb8] sm:$0xff] %v478
  %528 = vst [vmem:[#allocation2 + $0xc0] sm:$0xff] %v256
  %529 = vst [vmem:[#allocation2 + $0xc8] sm:$0xff] %v258
  %530 = vst [vmem:[#allocation2 + $0xd0] sm:$0xff] %v369
  %531 = vst [vmem:[#allocation2 + $0xd8] sm:$0xff] %v371
  %532 = vst [vmem:[#allocation2 + $0xe0] sm:$0xff] %v482
  %533 = vst [vmem:[#allocation2 + $0xe8] sm:$0xff] %v484
  %534 = vst [vmem:[#allocation2 + $0xf0] sm:$0xff] %v262
  %535 = vst [vmem:[#allocation2 + $0xf8] sm:$0xff] %v264
  %536 = vst [vmem:[#allocation2 + $0x100] sm:$0xff] %v375
  %537 = vst [vmem:[#allocation2 + $0x108] sm:$0xff] %v377
  %538 = vst [vmem:[#allocation2 + $0x110] sm:$0xff] %v488
  %539 = vst [vmem:[#allocation2 + $0x118] sm:$0xff] %v490
  %540 = vst [vmem:[#allocation2 + $0x120] sm:$0xff] %v268
  %541 = vst [vmem:[#allocation2 + $0x128] sm:$0xff] %v270
  %542 = vst [vmem:[#allocation2 + $0x130] sm:$0xff] %v381
  %543 = vst [vmem:[#allocation2 + $0x138] sm:$0xff] %v383
  %544 = vst [vmem:[#allocation2 + $0x140] sm:$0xff] %v494
  %545 = vst [vmem:[#allocation2 + $0x148] sm:$0xff] %v496
  %546 = vst [vmem:[#allocation2 + $0x150] sm:$0xff] %v274
  %547 = vst [vmem:[#allocation2 + $0x158] sm:$0xff] %v276
  %548 = vst [vmem:[#allocation2 + $0x160] sm:$0xff] %v387
  %549 = vst [vmem:[#allocation2 + $0x168] sm:$0xff] %v389
  %550 = vst [vmem:[#allocation2 + $0x170] sm:$0xff] %v500
  %551 = vst [vmem:[#allocation2 + $0x178] sm:$0xff] %v502
  %v552 = vld [vmem:[%s0] sm:$0xff]
  %v553 = vld [vmem:[%s4] sm:$0xff]
  %v554 = vld [vmem:[%s4 + $0x8] sm:$0xff]
  %v555 = vld [vmem:[%s4 + $0x10] sm:$0xff]
  %v556 = vld [vmem:[%s4 + $0x18] sm:$0xff]
  %v557 = vld [vmem:[%s4 + $0x20] sm:$0xff]
  %v558 = vld [vmem:[%s4 + $0x28] sm:$0xff]
  %v559 = vld [vmem:[%s4 + $0x30] sm:$0xff]
  %v560 = vld [vmem:[%s4 + $0x38] sm:$0xff]
  %v561 = vld [vmem:[%s4 + $0x40] sm:$0xff]
  %v562 = vld [vmem:[%s4 + $0x48] sm:$0xff]
  %v563 = vld [vmem:[%s4 + $0x50] sm:$0xff]
  %v564 = vld [vmem:[%s4 + $0x58] sm:$0xff]
  %v565 = vld [vmem:[%s4 + $0x60] sm:$0xff]
  %v566 = vld [vmem:[%s4 + $0x68] sm:$0xff]
  %v567 = vld [vmem:[%s4 + $0x70] sm:$0xff]
  %v568 = vld [vmem:[%s4 + $0x78] sm:$0xff]
  %v569 = vld [vmem:[%s4 + $0x80] sm:$0xff]
  %v570 = vld [vmem:[%s4 + $0x88] sm:$0xff]
  %v571 = vld [vmem:[%s4 + $0x90] sm:$0xff]
  %v572 = vld [vmem:[%s4 + $0x98] sm:$0xff]
  %v573 = vld [vmem:[%s4 + $0xa0] sm:$0xff]
  %v574 = vld [vmem:[%s4 + $0xa8] sm:$0xff]
  %v575 = vld [vmem:[%s4 + $0xb0] sm:$0xff]
  %v576 = vld [vmem:[%s4 + $0xb8] sm:$0xff]
  %v577 = vld [vmem:[%s4 + $0xc0] sm:$0xff]
  %v578 = vld [vmem:[%s4 + $0xc8] sm:$0xff]
  %v579 = vld [vmem:[%s4 + $0xd0] sm:$0xff]
  %v580 = vld [vmem:[%s4 + $0xd8] sm:$0xff]
  %v581 = vld [vmem:[%s4 + $0xe0] sm:$0xff]
  %v582 = vld [vmem:[%s4 + $0xe8] sm:$0xff]
  %v583 = vld [vmem:[%s4 + $0xf0] sm:$0xff]
  %v584 = vld [vmem:[%s4 + $0xf8] sm:$0xff]
  %v585 = vld [vmem:[%s4 + $0x100] sm:$0xff]
  %v586 = vld [vmem:[%s4 + $0x108] sm:$0xff]
  %v587 = vld [vmem:[%s4 + $0x110] sm:$0xff]
  %v588 = vld [vmem:[%s4 + $0x118] sm:$0xff]
  %v589 = vld [vmem:[%s4 + $0x120] sm:$0xff]
  %v590 = vld [vmem:[%s4 + $0x128] sm:$0xff]
  %v591 = vld [vmem:[%s4 + $0x130] sm:$0xff]
  %v592 = vld [vmem:[%s4 + $0x138] sm:$0xff]
  %v593 = vld [vmem:[%s4 + $0x140] sm:$0xff]
  %v594 = vld [vmem:[%s4 + $0x148] sm:$0xff]
  %v595 = vld [vmem:[%s4 + $0x150] sm:$0xff]
  %v596 = vld [vmem:[%s4 + $0x158] sm:$0xff]
  %v597 = vld [vmem:[%s4 + $0x160] sm:$0xff]
  %v598 = vld [vmem:[%s4 + $0x168] sm:$0xff]
  %v599 = vld [vmem:[%s4 + $0x170] sm:$0xff]
  %v600 = vld [vmem:[%s4 + $0x178] sm:$0xff]
  %v601 = vld [vmem:[%s4 + $0x180] sm:$0xff]
  %v602 = vld [vmem:[%s4 + $0x188] sm:$0xff]
  %v603 = vld [vmem:[%s4 + $0x190] sm:$0xff]
  %v604 = vld [vmem:[%s4 + $0x198] sm:$0xff]
  %v605 = vld [vmem:[%s4 + $0x1a0] sm:$0xff]
  %v606 = vld [vmem:[%s4 + $0x1a8] sm:$0xff]
  %v607 = vld [vmem:[%s4 + $0x1b0] sm:$0xff]
  %v608 = vld [vmem:[%s4 + $0x1b8] sm:$0xff]
  %v609 = vld [vmem:[%s4 + $0x1c0] sm:$0xff]
  %v610 = vld [vmem:[%s4 + $0x1c8] sm:$0xff]
  %v611 = vld [vmem:[%s4 + $0x1d0] sm:$0xff]
  %v612 = vld [vmem:[%s4 + $0x1d8] sm:$0xff]
  %v613 = vld [vmem:[%s4 + $0x1e0] sm:$0xff]
  %v614 = vld [vmem:[%s4 + $0x1e8] sm:$0xff]
  %v615 = vld [vmem:[%s4 + $0x1f0] sm:$0xff]
  %v616 = vld [vmem:[%s4 + $0x1f8] sm:$0xff]
  %v617 = vld [vmem:[%s4 + $0x200] sm:$0xff]
  %v618 = vld [vmem:[%s4 + $0x208] sm:$0xff]
  %v619 = vld [vmem:[%s4 + $0x210] sm:$0xff]
  %v620 = vld [vmem:[%s4 + $0x218] sm:$0xff]
  %v621 = vld [vmem:[%s4 + $0x220] sm:$0xff]
  %v622 = vld [vmem:[%s4 + $0x228] sm:$0xff]
  %v623 = vld [vmem:[%s4 + $0x230] sm:$0xff]
  %v624 = vld [vmem:[%s4 + $0x238] sm:$0xff]
  %v625 = vld [vmem:[%s4 + $0x240] sm:$0xff]
  %v626 = vld [vmem:[%s4 + $0x248] sm:$0xff]
  %v627 = vld [vmem:[%s4 + $0x250] sm:$0xff]
  %v628 = vld [vmem:[%s4 + $0x258] sm:$0xff]
  %v629 = vld [vmem:[%s4 + $0x260] sm:$0xff]
  %v630 = vld [vmem:[%s4 + $0x268] sm:$0xff]
  %v631 = vld [vmem:[%s4 + $0x270] sm:$0xff]
  %v632 = vld [vmem:[%s4 + $0x278] sm:$0xff]
  %v633 = vld [vmem:[%s4 + $0x280] sm:$0xff]
  %v634 = vld [vmem:[%s4 + $0x288] sm:$0xff]
  %v635 = vld [vmem:[%s4 + $0x290] sm:$0xff]
  %v636 = vld [vmem:[%s4 + $0x298] sm:$0xff]
  %v637 = vld [vmem:[%s4 + $0x2a0] sm:$0xff]
  %v638 = vld [vmem:[%s4 + $0x2a8] sm:$0xff]
  %v639 = vld [vmem:[%s4 + $0x2b0] sm:$0xff]
  %v640 = vld [vmem:[%s4 + $0x2b8] sm:$0xff]
  %v641 = vld [vmem:[%s4 + $0x2c0] sm:$0xff]
  %v642 = vld [vmem:[%s4 + $0x2c8] sm:$0xff]
  %v643 = vld [vmem:[%s4 + $0x2d0] sm:$0xff]
  %v644 = vld [vmem:[%s4 + $0x2d8] sm:$0xff]
  %v645 = vld [vmem:[%s4 + $0x2e0] sm:$0xff]
  %v646 = vld [vmem:[%s4 + $0x2e8] sm:$0xff]
  %v647 = vld [vmem:[%s4 + $0x2f0] sm:$0xff]
  %v648 = vld [vmem:[%s4 + $0x2f8] sm:$0xff]
  %v649 = vld [vmem:[%s4 + $0x300] sm:$0xff]
  %v650 = vld [vmem:[%s4 + $0x308] sm:$0xff]
  %v651 = vld [vmem:[%s4 + $0x310] sm:$0xff]
  %v652 = vld [vmem:[%s4 + $0x318] sm:$0xff]
  %v653 = vld [vmem:[%s4 + $0x320] sm:$0xff]
  %v654 = vld [vmem:[%s4 + $0x328] sm:$0xff]
  %v655 = vld [vmem:[%s4 + $0x330] sm:$0xff]
  %v656 = vld [vmem:[%s4 + $0x338] sm:$0xff]
  %v657 = vld [vmem:[%s4 + $0x340] sm:$0xff]
  %v658 = vld [vmem:[%s4 + $0x348] sm:$0xff]
  %v659 = vld [vmem:[%s4 + $0x350] sm:$0xff]
  %v660 = vld [vmem:[%s4 + $0x358] sm:$0xff]
  %v661 = vld [vmem:[%s4 + $0x360] sm:$0xff]
  %v662 = vld [vmem:[%s4 + $0x368] sm:$0xff]
  %v663 = vld [vmem:[%s4 + $0x370] sm:$0xff]
  %v664 = vld [vmem:[%s4 + $0x378] sm:$0xff]
  %v665 = vld [vmem:[%s4 + $0x380] sm:$0xff]
  %v666 = vld [vmem:[%s4 + $0x388] sm:$0xff]
  %v667 = vld [vmem:[%s4 + $0x390] sm:$0xff]
  %v668 = vld [vmem:[%s4 + $0x398] sm:$0xff]
  %v669 = vld [vmem:[%s4 + $0x3a0] sm:$0xff]
  %v670 = vld [vmem:[%s4 + $0x3a8] sm:$0xff]
  %v671 = vld [vmem:[%s4 + $0x3b0] sm:$0xff]
  %v672 = vld [vmem:[%s4 + $0x3b8] sm:$0xff]
  %v673 = vld [vmem:[%s4 + $0x3c0] sm:$0xff]
  %v674 = vld [vmem:[%s4 + $0x3c8] sm:$0xff]
  %v675 = vld [vmem:[%s4 + $0x3d0] sm:$0xff]
  %v676 = vld [vmem:[%s4 + $0x3d8] sm:$0xff]
  %v677 = vld [vmem:[%s4 + $0x3e0] sm:$0xff]
  %v678 = vld [vmem:[%s4 + $0x3e8] sm:$0xff]
  %v679 = vld [vmem:[%s4 + $0x3f0] sm:$0xff]
  %v680 = vld [vmem:[%s4 + $0x3f8] sm:$0xff]
  %v681 = vld [vmem:[%s4 + $0x400] sm:$0xff]
  %v682 = vld [vmem:[%s4 + $0x408] sm:$0xff]
  %v683 = vld [vmem:[%s4 + $0x410] sm:$0xff]
  %v684 = vld [vmem:[%s4 + $0x418] sm:$0xff]
  %v685 = vld [vmem:[%s4 + $0x420] sm:$0xff]
  %v686 = vld [vmem:[%s4 + $0x428] sm:$0xff]
  %v687 = vld [vmem:[%s4 + $0x430] sm:$0xff]
  %v688 = vld [vmem:[%s4 + $0x438] sm:$0xff]
  %v689 = vld [vmem:[%s4 + $0x440] sm:$0xff]
  %v690 = vld [vmem:[%s4 + $0x448] sm:$0xff]
  %v691 = vld [vmem:[%s4 + $0x450] sm:$0xff]
  %v692 = vld [vmem:[%s4 + $0x458] sm:$0xff]
  %v693 = vld [vmem:[%s4 + $0x460] sm:$0xff]
  %v694 = vld [vmem:[%s4 + $0x468] sm:$0xff]
  %v695 = vld [vmem:[%s4 + $0x470] sm:$0xff]
  %v696 = vld [vmem:[%s4 + $0x478] sm:$0xff]
  %v697 = vld [vmem:[%s4 + $0x480] sm:$0xff]
  %v698 = vld [vmem:[%s4 + $0x488] sm:$0xff]
  %v699 = vld [vmem:[%s4 + $0x490] sm:$0xff]
  %v700 = vld [vmem:[%s4 + $0x498] sm:$0xff]
  %v701 = vld [vmem:[%s4 + $0x4a0] sm:$0xff]
  %v702 = vld [vmem:[%s4 + $0x4a8] sm:$0xff]
  %v703 = vld [vmem:[%s4 + $0x4b0] sm:$0xff]
  %v704 = vld [vmem:[%s4 + $0x4b8] sm:$0xff]
  %v705 = vld [vmem:[%s4 + $0x4c0] sm:$0xff]
  %v706 = vld [vmem:[%s4 + $0x4c8] sm:$0xff]
  %v707 = vld [vmem:[%s4 + $0x4d0] sm:$0xff]
  %v708 = vld [vmem:[%s4 + $0x4d8] sm:$0xff]
  %v709 = vld [vmem:[%s4 + $0x4e0] sm:$0xff]
  %v710 = vld [vmem:[%s4 + $0x4e8] sm:$0xff]
  %v711 = vld [vmem:[%s4 + $0x4f0] sm:$0xff]
  %v712 = vld [vmem:[%s4 + $0x4f8] sm:$0xff]
  %v713 = vld [vmem:[%s4 + $0x500] sm:$0xff]
  %v714 = vld [vmem:[%s4 + $0x508] sm:$0xff]
  %v715 = vld [vmem:[%s4 + $0x510] sm:$0xff]
  %v716 = vld [vmem:[%s4 + $0x518] sm:$0xff]
  %v717 = vld [vmem:[%s4 + $0x520] sm:$0xff]
  %v718 = vld [vmem:[%s4 + $0x528] sm:$0xff]
  %v719 = vld [vmem:[%s4 + $0x530] sm:$0xff]
  %v720 = vld [vmem:[%s4 + $0x538] sm:$0xff]
  %v721 = vld [vmem:[%s4 + $0x540] sm:$0xff]
  %v722 = vld [vmem:[%s4 + $0x548] sm:$0xff]
  %v723 = vld [vmem:[%s4 + $0x550] sm:$0xff]
  %v724 = vld [vmem:[%s4 + $0x558] sm:$0xff]
  %v725 = vld [vmem:[%s4 + $0x560] sm:$0xff]
  %v726 = vld [vmem:[%s4 + $0x568] sm:$0xff]
  %v727 = vld [vmem:[%s4 + $0x570] sm:$0xff]
  %v728 = vld [vmem:[%s4 + $0x578] sm:$0xff]
  %v729 = vld [vmem:[%s4 + $0x580] sm:$0xff]
  %v730 = vld [vmem:[%s4 + $0x588] sm:$0xff]
  %v731 = vld [vmem:[%s4 + $0x590] sm:$0xff]
  %v732 = vld [vmem:[%s4 + $0x598] sm:$0xff]
  %v733 = vld [vmem:[%s4 + $0x5a0] sm:$0xff]
  %v734 = vld [vmem:[%s4 + $0x5a8] sm:$0xff]
  %v735 = vld [vmem:[%s4 + $0x5b0] sm:$0xff]
  %v736 = vld [vmem:[%s4 + $0x5b8] sm:$0xff]
  %v737 = vld [vmem:[%s4 + $0x5c0] sm:$0xff]
  %v738 = vld [vmem:[%s4 + $0x5c8] sm:$0xff]
  %v739 = vld [vmem:[%s4 + $0x5d0] sm:$0xff]
  %v740 = vld [vmem:[%s4 + $0x5d8] sm:$0xff]
  %v741 = vld [vmem:[%s4 + $0x5e0] sm:$0xff]
  %v742 = vld [vmem:[%s4 + $0x5e8] sm:$0xff]
  %v743 = vld [vmem:[%s4 + $0x5f0] sm:$0xff]
  %v744 = vld [vmem:[%s4 + $0x5f8] sm:$0xff]
  %745 = vmatprep.subr.mxu0 %v644
  %746 = vmatpush1.msra.mxu0 %v643
  %747 = vmatprep.subr.mxu0 %v638
  %748 = vmatpush1.msra.mxu0 %v637
  %749 = vmatprep.subr.mxu0 %v632
  %750 = vmatpush1.msra.mxu0 %v631
  %751 = vmatprep.subr.mxu0 %v626
  %752 = vmatpush1.msra.mxu0 %v625
  %753 = vmatprep.subr.mxu0 %v620
  %754 = vmatpush1.msra.mxu0 %v619
  %755 = vmatprep.subr.mxu0 %v614
  %756 = vmatpush1.msra.mxu0 %v613
  %757 = vmatprep.subr.mxu0 %v608
  %758 = vmatpush1.msra.mxu0 %v607
  %759 = vmatprep.subr.mxu0 %v602
  %760 = vmatpush1.msra.mxu0 %v601
  %761 = vmatprep.subr.mxu0 %v596
  %762 = vmatpush1.msra.mxu0 %v595
  %763 = vmatprep.subr.mxu0 %v590
  %764 = vmatpush1.msra.mxu0 %v589
  %765 = vmatprep.subr.mxu0 %v584
  %766 = vmatpush1.msra.mxu0 %v583
  %767 = vmatprep.subr.mxu0 %v578
  %768 = vmatpush1.msra.mxu0 %v577
  %769 = vmatprep.subr.mxu0 %v572
  %770 = vmatpush1.msra.mxu0 %v571
  %771 = vmatprep.subr.mxu0 %v566
  %772 = vmatpush1.msra.mxu0 %v565
  %773 = vmatprep.subr.mxu0 %v560
  %774 = vmatpush1.msra.mxu0 %v559
  %775 = vmatprep.subr.mxu0 %v554
  %776 = vmatpush1.msra.mxu0 %v553
  %777 = vmatprep.subr.mxu0 %v740
  %778 = vmatpush2.msra.mxu0 %v739
  %779 = vmatprep.subr.mxu0 %v734
  %780 = vmatpush2.msra.mxu0 %v733
  %781 = vmatprep.subr.mxu0 %v728
  %782 = vmatpush2.msra.mxu0 %v727
  %783 = vmatprep.subr.mxu0 %v722
  %784 = vmatpush2.msra.mxu0 %v721
  %785 = vmatprep.subr.mxu0 %v716
  %786 = vmatpush2.msra.mxu0 %v715
  %787 = vmatprep.subr.mxu0 %v710
  %788 = vmatpush2.msra.mxu0 %v709
  %789 = vmatprep.subr.mxu0 %v704
  %790 = vmatpush2.msra.mxu0 %v703
  %791 = vmatprep.subr.mxu0 %v698
  %792 = vmatpush2.msra.mxu0 %v697
  %793 = vmatprep.subr.mxu0 %v692
  %794 = vmatpush2.msra.mxu0 %v691
  %795 = vmatprep.subr.mxu0 %v686
  %796 = vmatpush2.msra.mxu0 %v685
  %797 = vmatprep.subr.mxu0 %v680
  %798 = vmatpush2.msra.mxu0 %v679
  %799 = vmatprep.subr.mxu0 %v674
  %800 = vmatpush2.msra.mxu0 %v673
  %801 = vmatprep.subr.mxu0 %v668
  %802 = vmatpush2.msra.mxu0 %v667
  %803 = vmatprep.subr.mxu0 %v662
  %804 = vmatpush2.msra.mxu0 %v661
  %805 = vmatprep.subr.mxu0 %v656
  %806 = vmatpush2.msra.mxu0 %v655
  %807 = vmatprep.subr.mxu0 %v650
  %808 = vmatpush2.msra.mxu0 %v649
  %809 = vmatprep.mubr.f32.mxu0 0.0
  %810 = vmatmul.mubr.f32.gmra.mxu0 0.0
  %v811 = vpop.f32.mrf.mxu0
  %v812 = vadd.f32 0.0, %v811
  %v813 = vpop.f32.mrf.mxu0
  %v814 = vadd.f32 0.0, %v813
  %815 = vdwg.mxu0
  %816 = vmatprep.subr.mxu0 %v646
  %817 = vmatpush1.msra.mxu0 %v645
  %818 = vmatprep.subr.mxu0 %v640
  %819 = vmatpush1.msra.mxu0 %v639
  %820 = vmatprep.subr.mxu0 %v634
  %821 = vmatpush1.msra.mxu0 %v633
  %822 = vmatprep.subr.mxu0 %v628
  %823 = vmatpush1.msra.mxu0 %v627
  %824 = vmatprep.subr.mxu0 %v622
  %825 = vmatpush1.msra.mxu0 %v621
  %826 = vmatprep.subr.mxu0 %v616
  %827 = vmatpush1.msra.mxu0 %v615
  %828 = vmatprep.subr.mxu0 %v610
  %829 = vmatpush1.msra.mxu0 %v609
  %830 = vmatprep.subr.mxu0 %v604
  %831 = vmatpush1.msra.mxu0 %v603
  %832 = vmatprep.subr.mxu0 %v598
  %833 = vmatpush1.msra.mxu0 %v597
  %834 = vmatprep.subr.mxu0 %v592
  %835 = vmatpush1.msra.mxu0 %v591
  %836 = vmatprep.subr.mxu0 %v586
  %837 = vmatpush1.msra.mxu0 %v585
  %838 = vmatprep.subr.mxu0 %v580
  %839 = vmatpush1.msra.mxu0 %v579
  %840 = vmatprep.subr.mxu0 %v574
  %841 = vmatpush1.msra.mxu0 %v573
  %842 = vmatprep.subr.mxu0 %v568
  %843 = vmatpush1.msra.mxu0 %v567
  %844 = vmatprep.subr.mxu0 %v562
  %845 = vmatpush1.msra.mxu0 %v561
  %846 = vmatprep.subr.mxu0 %v556
  %847 = vmatpush1.msra.mxu0 %v555
  %848 = vmatprep.subr.mxu0 %v742
  %849 = vmatpush2.msra.mxu0 %v741
  %850 = vmatprep.subr.mxu0 %v736
  %851 = vmatpush2.msra.mxu0 %v735
  %852 = vmatprep.subr.mxu0 %v730
  %853 = vmatpush2.msra.mxu0 %v729
  %854 = vmatprep.subr.mxu0 %v724
  %855 = vmatpush2.msra.mxu0 %v723
  %856 = vmatprep.subr.mxu0 %v718
  %857 = vmatpush2.msra.mxu0 %v717
  %858 = vmatprep.subr.mxu0 %v712
  %859 = vmatpush2.msra.mxu0 %v711
  %860 = vmatprep.subr.mxu0 %v706
  %861 = vmatpush2.msra.mxu0 %v705
  %862 = vmatprep.subr.mxu0 %v700
  %863 = vmatpush2.msra.mxu0 %v699
  %864 = vmatprep.subr.mxu0 %v694
  %865 = vmatpush2.msra.mxu0 %v693
  %866 = vmatprep.subr.mxu0 %v688
  %867 = vmatpush2.msra.mxu0 %v687
  %868 = vmatprep.subr.mxu0 %v682
  %869 = vmatpush2.msra.mxu0 %v681
  %870 = vmatprep.subr.mxu0 %v676
  %871 = vmatpush2.msra.mxu0 %v675
  %872 = vmatprep.subr.mxu0 %v670
  %873 = vmatpush2.msra.mxu0 %v669
  %874 = vmatprep.subr.mxu0 %v664
  %875 = vmatpush2.msra.mxu0 %v663
  %876 = vmatprep.subr.mxu0 %v658
  %877 = vmatpush2.msra.mxu0 %v657
  %878 = vmatprep.subr.mxu0 %v652
  %879 = vmatpush2.msra.mxu0 %v651
  %880 = vmatprep.mubr.f32.mxu0 0.0
  %881 = vmatmul.mubr.f32.gmra.mxu0 0.0
  %v882 = vpop.f32.mrf.mxu0
  %v883 = vadd.f32 0.0, %v882
  %v884 = vpop.f32.mrf.mxu0
  %v885 = vadd.f32 0.0, %v884
  %886 = vdwg.mxu0
  %887 = vmatprep.subr.mxu0 %v648
  %888 = vmatpush1.msra.mxu0 %v647
  %889 = vmatprep.subr.mxu0 %v642
  %890 = vmatpush1.msra.mxu0 %v641
  %891 = vmatprep.subr.mxu0 %v636
  %892 = vmatpush1.msra.mxu0 %v635
  %893 = vmatprep.subr.mxu0 %v630
  %894 = vmatpush1.msra.mxu0 %v629
  %895 = vmatprep.subr.mxu0 %v624
  %896 = vmatpush1.msra.mxu0 %v623
  %897 = vmatprep.subr.mxu0 %v618
  %898 = vmatpush1.msra.mxu0 %v617
  %899 = vmatprep.subr.mxu0 %v612
  %900 = vmatpush1.msra.mxu0 %v611
  %901 = vmatprep.subr.mxu0 %v606
  %902 = vmatpush1.msra.mxu0 %v605
  %903 = vmatprep.subr.mxu0 %v600
  %904 = vmatpush1.msra.mxu0 %v599
  %905 = vmatprep.subr.mxu0 %v594
  %906 = vmatpush1.msra.mxu0 %v593
  %907 = vmatprep.subr.mxu0 %v588
  %908 = vmatpush1.msra.mxu0 %v587
  %909 = vmatprep.subr.mxu0 %v582
  %910 = vmatpush1.msra.mxu0 %v581
  %911 = vmatprep.subr.mxu0 %v576
  %912 = vmatpush1.msra.mxu0 %v575
  %913 = vmatprep.subr.mxu0 %v570
  %914 = vmatpush1.msra.mxu0 %v569
  %915 = vmatprep.subr.mxu0 %v564
  %916 = vmatpush1.msra.mxu0 %v563
  %917 = vmatprep.subr.mxu0 %v558
  %918 = vmatpush1.msra.mxu0 %v557
  %919 = vmatprep.subr.mxu0 %v744
  %920 = vmatpush2.msra.mxu0 %v743
  %921 = vmatprep.subr.mxu0 %v738
  %922 = vmatpush2.msra.mxu0 %v737
  %923 = vmatprep.subr.mxu0 %v732
  %924 = vmatpush2.msra.mxu0 %v731
  %925 = vmatprep.subr.mxu0 %v726
  %926 = vmatpush2.msra.mxu0 %v725
  %927 = vmatprep.subr.mxu0 %v720
  %928 = vmatpush2.msra.mxu0 %v719
  %929 = vmatprep.subr.mxu0 %v714
  %930 = vmatpush2.msra.mxu0 %v713
  %931 = vmatprep.subr.mxu0 %v708
  %932 = vmatpush2.msra.mxu0 %v707
  %933 = vmatprep.subr.mxu0 %v702
  %934 = vmatpush2.msra.mxu0 %v701
  %935 = vmatprep.subr.mxu0 %v696
  %936 = vmatpush2.msra.mxu0 %v695
  %937 = vmatprep.subr.mxu0 %v690
  %938 = vmatpush2.msra.mxu0 %v689
  %939 = vmatprep.subr.mxu0 %v684
  %940 = vmatpush2.msra.mxu0 %v683
  %941 = vmatprep.subr.mxu0 %v678
  %942 = vmatpush2.msra.mxu0 %v677
  %943 = vmatprep.subr.mxu0 %v672
  %944 = vmatpush2.msra.mxu0 %v671
  %945 = vmatprep.subr.mxu0 %v666
  %946 = vmatpush2.msra.mxu0 %v665
  %947 = vmatprep.subr.mxu0 %v660
  %948 = vmatpush2.msra.mxu0 %v659
  %949 = vmatprep.subr.mxu0 %v654
  %950 = vmatpush2.msra.mxu0 %v653
  %951 = vmatprep.mubr.f32.mxu0 0.0
  %952 = vmatmul.mubr.f32.gmra.mxu0 0.0
  %v953 = vpop.f32.mrf.mxu0
  %v954 = vadd.f32 0.0, %v953
  %v955 = vpop.f32.mrf.mxu0
  %v956 = vadd.f32 0.0, %v955
  %957 = vdwg.mxu0
  %v958 = vld [vmem:[#allocation2] sm:$0xff]
  %v959 = vld [vmem:[#allocation2 + $0x8] sm:$0xff]
  %v960 = vld [vmem:[#allocation2 + $0x10] sm:$0xff]
  %s961 = scalar_lea.vmem [#allocation2], 336
  %v962 = vld [vmem:[%s961 + $0x18] sm:$0xff]
  %v963 = vld [vmem:[%s961 + $0x20] sm:$0xff]
  %v964 = vld [vmem:[%s961 + $0x28] sm:$0xff]
  %v965 = vld [vmem:[%s5] sm:$0x1]
  %v966 = vld [vmem:[%s5 + $0x1] sm:$0x1]
  %v967 = vadd.f32 %v958, %v812
  %v968 = vxor.u32 %v967, 2147483648
  %v969 = vmul.f32 %v968, 1.442695
  %v970 = vpow.pop %v969
  %v971 = vadd.f32 %v970, 1.0
  %v972 = vrcp.pop %v971
  %v973 = vmul.f32 1.0, %v972
  %v974 = vadd.f32 %v959, %v814
  %v975 = vxor.u32 %v974, 2147483648
  %v976 = vmul.f32 %v975, 1.442695
  %v977 = vpow.pop %v976
  %v978 = vadd.f32 %v977, 1.0
  %v979 = vrcp.pop %v978
  %v980 = vmul.f32 1.0, %v979
  %v982 = vlaneseq
  %v983 = vshrl.u32 %v982, 7
  %v984 = vsub.s32 0, %v983
  %v985 = vrot.slane %v965, %v984
  %v987 = vadd.f32 %v883, %v985
  %v988 = vmul.f32 %v973, %v987
  %v989 = vadd.f32 %v960, %v988
  %v990 = vtanh.pop %v989
  %v991 = vsub.f32 1.0, %v980
  %v992 = vmul.f32 %v991, %v990
  %v993 = vmul.f32 %v980, 0.0
  %v994 = vadd.f32 %v992, %v993
  %v995 = vadd.f32 %v962, %v885
  %v996 = vxor.u32 %v995, 2147483648
  %v997 = vmul.f32 %v996, 1.442695
  %v998 = vpow.pop %v997
  %v999 = vadd.f32 %v998, 1.0
  %v1000 = vrcp.pop %v999
  %v1001 = vmul.f32 1.0, %v1000
  %v1002 = vadd.f32 %v963, %v954
  %v1003 = vxor.u32 %v1002, 2147483648
  %v1004 = vmul.f32 %v1003, 1.442695
  %v1005 = vpow.pop %v1004
  %v1006 = vadd.f32 %v1005, 1.0
  %v1007 = vrcp.pop %v1006
  %v1008 = vmul.f32 1.0, %v1007
  %v1010 = vlaneseq
  %v1011 = vshrl.u32 %v1010, 7
  %v1012 = vsub.s32 0, %v1011
  %v1013 = vrot.slane %v966, %v1012
  %v1015 = vadd.f32 %v956, %v1013
  %v1016 = vmul.f32 %v1001, %v1015
  %v1017 = vadd.f32 %v964, %v1016
  %v1018 = vtanh.pop %v1017
  %v1019 = vsub.f32 1.0, %v1008
  %v1020 = vmul.f32 %v1019, %v1018
  %v1021 = vmul.f32 %v1008, 0.0
  %v1022 = vadd.f32 %v1020, %v1021
  %vm1023 = vcmp.gt.s32.totalorder %v552, 0
  %vm1024 = vcmp.gt.s32.totalorder %v552, 7
  %v1025 = vsel %vm1023, 1, 0
  %1026 = vset.pattern.permute.xlu0 0
  %1027 = vperm.xlu0 %1026, %v1025
  %v1028 = vpop.permute.xlu0 %1027
  %vm1029 = vcmp.eq.s32.totalorder %v1028, 1
  %v1030 = vsel %vm1029, %v994, 0.0
  %1031 = vst [vmem:[%s8] sm:$0xff] %v1030
  %v1032 = vsel %vm1024, 1, 0
  %1033 = vset.pattern.permute.xlu0 0
  %1034 = vperm.xlu0 %1033, %v1032
  %v1035 = vpop.permute.xlu0 %1034
  %vm1036 = vcmp.eq.s32.totalorder %v1035, 1
  %v1037 = vsel %vm1036, %v1022, 0.0
  %s1038 = scalar_lea.vmem %s8, 112
  %1039 = vst [vmem:[%s1038 + $0x8] sm:$0xff] %v1037
  %v1040 = vld [vmem:[%s4] sm:$0xff]
  %v1041 = vld [vmem:[%s4 + $0x8] sm:$0xff]
  %v1042 = vld [vmem:[%s4 + $0x10] sm:$0xff]
  %v1043 = vld [vmem:[%s4 + $0x18] sm:$0xff]
  %v1044 = vld [vmem:[%s4 + $0x20] sm:$0xff]
  %v1045 = vld [vmem:[%s4 + $0x28] sm:$0xff]
  %v1046 = vld [vmem:[%s4 + $0x30] sm:$0xff]
  %v1047 = vld [vmem:[%s4 + $0x38] sm:$0xff]
  %v1048 = vld [vmem:[%s4 + $0x40] sm:$0xff]
  %v1049 = vld [vmem:[%s4 + $0x48] sm:$0xff]
  %v1050 = vld [vmem:[%s4 + $0x50] sm:$0xff]
  %v1051 = vld [vmem:[%s4 + $0x58] sm:$0xff]
  %v1052 = vld [vmem:[%s4 + $0x60] sm:$0xff]
  %v1053 = vld [vmem:[%s4 + $0x68] sm:$0xff]
  %v1054 = vld [vmem:[%s4 + $0x70] sm:$0xff]
  %v1055 = vld [vmem:[%s4 + $0x78] sm:$0xff]
  %v1056 = vld [vmem:[%s4 + $0x80] sm:$0xff]
  %v1057 = vld [vmem:[%s4 + $0x88] sm:$0xff]
  %v1058 = vld [vmem:[%s4 + $0x90] sm:$0xff]
  %v1059 = vld [vmem:[%s4 + $0x98] sm:$0xff]
  %v1060 = vld [vmem:[%s4 + $0xa0] sm:$0xff]
  %v1061 = vld [vmem:[%s4 + $0xa8] sm:$0xff]
  %v1062 = vld [vmem:[%s4 + $0xb0] sm:$0xff]
  %v1063 = vld [vmem:[%s4 + $0xb8] sm:$0xff]
  %v1064 = vld [vmem:[%s4 + $0xc0] sm:$0xff]
  %v1065 = vld [vmem:[%s4 + $0xc8] sm:$0xff]
  %v1066 = vld [vmem:[%s4 + $0xd0] sm:$0xff]
  %v1067 = vld [vmem:[%s4 + $0xd8] sm:$0xff]
  %v1068 = vld [vmem:[%s4 + $0xe0] sm:$0xff]
  %v1069 = vld [vmem:[%s4 + $0xe8] sm:$0xff]
  %v1070 = vld [vmem:[%s4 + $0xf0] sm:$0xff]
  %v1071 = vld [vmem:[%s4 + $0xf8] sm:$0xff]
  %v1072 = vld [vmem:[%s4 + $0x100] sm:$0xff]
  %v1073 = vld [vmem:[%s4 + $0x108] sm:$0xff]
  %v1074 = vld [vmem:[%s4 + $0x110] sm:$0xff]
  %v1075 = vld [vmem:[%s4 + $0x118] sm:$0xff]
  %v1076 = vld [vmem:[%s4 + $0x120] sm:$0xff]
  %v1077 = vld [vmem:[%s4 + $0x128] sm:$0xff]
  %v1078 = vld [vmem:[%s4 + $0x130] sm:$0xff]
  %v1079 = vld [vmem:[%s4 + $0x138] sm:$0xff]
  %v1080 = vld [vmem:[%s4 + $0x140] sm:$0xff]
  %v1081 = vld [vmem:[%s4 + $0x148] sm:$0xff]
  %v1082 = vld [vmem:[%s4 + $0x150] sm:$0xff]
  %v1083 = vld [vmem:[%s4 + $0x158] sm:$0xff]
  %v1084 = vld [vmem:[%s4 + $0x160] sm:$0xff]
  %v1085 = vld [vmem:[%s4 + $0x168] sm:$0xff]
  %v1086 = vld [vmem:[%s4 + $0x170] sm:$0xff]
  %v1087 = vld [vmem:[%s4 + $0x178] sm:$0xff]
  %v1088 = vld [vmem:[%s4 + $0x180] sm:$0xff]
  %v1089 = vld [vmem:[%s4 + $0x188] sm:$0xff]
  %v1090 = vld [vmem:[%s4 + $0x190] sm:$0xff]
  %v1091 = vld [vmem:[%s4 + $0x198] sm:$0xff]
  %v1092 = vld [vmem:[%s4 + $0x1a0] sm:$0xff]
  %v1093 = vld [vmem:[%s4 + $0x1a8] sm:$0xff]
  %v1094 = vld [vmem:[%s4 + $0x1b0] sm:$0xff]
  %v1095 = vld [vmem:[%s4 + $0x1b8] sm:$0xff]
  %v1096 = vld [vmem:[%s4 + $0x1c0] sm:$0xff]
  %v1097 = vld [vmem:[%s4 + $0x1c8] sm:$0xff]
  %v1098 = vld [vmem:[%s4 + $0x1d0] sm:$0xff]
  %v1099 = vld [vmem:[%s4 + $0x1d8] sm:$0xff]
  %v1100 = vld [vmem:[%s4 + $0x1e0] sm:$0xff]
  %v1101 = vld [vmem:[%s4 + $0x1e8] sm:$0xff]
  %v1102 = vld [vmem:[%s4 + $0x1f0] sm:$0xff]
  %v1103 = vld [vmem:[%s4 + $0x1f8] sm:$0xff]
  %v1104 = vld [vmem:[%s4 + $0x200] sm:$0xff]
  %v1105 = vld [vmem:[%s4 + $0x208] sm:$0xff]
  %v1106 = vld [vmem:[%s4 + $0x210] sm:$0xff]
  %v1107 = vld [vmem:[%s4 + $0x218] sm:$0xff]
  %v1108 = vld [vmem:[%s4 + $0x220] sm:$0xff]
  %v1109 = vld [vmem:[%s4 + $0x228] sm:$0xff]
  %v1110 = vld [vmem:[%s4 + $0x230] sm:$0xff]
  %v1111 = vld [vmem:[%s4 + $0x238] sm:$0xff]
  %v1112 = vld [vmem:[%s4 + $0x240] sm:$0xff]
  %v1113 = vld [vmem:[%s4 + $0x248] sm:$0xff]
  %v1114 = vld [vmem:[%s4 + $0x250] sm:$0xff]
  %v1115 = vld [vmem:[%s4 + $0x258] sm:$0xff]
  %v1116 = vld [vmem:[%s4 + $0x260] sm:$0xff]
  %v1117 = vld [vmem:[%s4 + $0x268] sm:$0xff]
  %v1118 = vld [vmem:[%s4 + $0x270] sm:$0xff]
  %v1119 = vld [vmem:[%s4 + $0x278] sm:$0xff]
  %v1120 = vld [vmem:[%s4 + $0x280] sm:$0xff]
  %v1121 = vld [vmem:[%s4 + $0x288] sm:$0xff]
  %v1122 = vld [vmem:[%s4 + $0x290] sm:$0xff]
  %v1123 = vld [vmem:[%s4 + $0x298] sm:$0xff]
  %v1124 = vld [vmem:[%s4 + $0x2a0] sm:$0xff]
  %v1125 = vld [vmem:[%s4 + $0x2a8] sm:$0xff]
  %v1126 = vld [vmem:[%s4 + $0x2b0] sm:$0xff]
  %v1127 = vld [vmem:[%s4 + $0x2b8] sm:$0xff]
  %v1128 = vld [vmem:[%s4 + $0x2c0] sm:$0xff]
  %v1129 = vld [vmem:[%s4 + $0x2c8] sm:$0xff]
  %v1130 = vld [vmem:[%s4 + $0x2d0] sm:$0xff]
  %v1131 = vld [vmem:[%s4 + $0x2d8] sm:$0xff]
  %v1132 = vld [vmem:[%s4 + $0x2e0] sm:$0xff]
  %v1133 = vld [vmem:[%s4 + $0x2e8] sm:$0xff]
  %v1134 = vld [vmem:[%s4 + $0x2f0] sm:$0xff]
  %v1135 = vld [vmem:[%s4 + $0x2f8] sm:$0xff]
  %v1136 = vld [vmem:[%s4 + $0x300] sm:$0xff]
  %v1137 = vld [vmem:[%s4 + $0x308] sm:$0xff]
  %v1138 = vld [vmem:[%s4 + $0x310] sm:$0xff]
  %v1139 = vld [vmem:[%s4 + $0x318] sm:$0xff]
  %v1140 = vld [vmem:[%s4 + $0x320] sm:$0xff]
  %v1141 = vld [vmem:[%s4 + $0x328] sm:$0xff]
  %v1142 = vld [vmem:[%s4 + $0x330] sm:$0xff]
  %v1143 = vld [vmem:[%s4 + $0x338] sm:$0xff]
  %v1144 = vld [vmem:[%s4 + $0x340] sm:$0xff]
  %v1145 = vld [vmem:[%s4 + $0x348] sm:$0xff]
  %v1146 = vld [vmem:[%s4 + $0x350] sm:$0xff]
  %v1147 = vld [vmem:[%s4 + $0x358] sm:$0xff]
  %v1148 = vld [vmem:[%s4 + $0x360] sm:$0xff]
  %v1149 = vld [vmem:[%s4 + $0x368] sm:$0xff]
  %v1150 = vld [vmem:[%s4 + $0x370] sm:$0xff]
  %v1151 = vld [vmem:[%s4 + $0x378] sm:$0xff]
  %v1152 = vld [vmem:[%s4 + $0x380] sm:$0xff]
  %v1153 = vld [vmem:[%s4 + $0x388] sm:$0xff]
  %v1154 = vld [vmem:[%s4 + $0x390] sm:$0xff]
  %v1155 = vld [vmem:[%s4 + $0x398] sm:$0xff]
  %v1156 = vld [vmem:[%s4 + $0x3a0] sm:$0xff]
  %v1157 = vld [vmem:[%s4 + $0x3a8] sm:$0xff]
  %v1158 = vld [vmem:[%s4 + $0x3b0] sm:$0xff]
  %v1159 = vld [vmem:[%s4 + $0x3b8] sm:$0xff]
  %v1160 = vld [vmem:[%s4 + $0x3c0] sm:$0xff]
  %v1161 = vld [vmem:[%s4 + $0x3c8] sm:$0xff]
  %v1162 = vld [vmem:[%s4 + $0x3d0] sm:$0xff]
  %v1163 = vld [vmem:[%s4 + $0x3d8] sm:$0xff]
  %v1164 = vld [vmem:[%s4 + $0x3e0] sm:$0xff]
  %v1165 = vld [vmem:[%s4 + $0x3e8] sm:$0xff]
  %v1166 = vld [vmem:[%s4 + $0x3f0] sm:$0xff]
  %v1167 = vld [vmem:[%s4 + $0x3f8] sm:$0xff]
  %v1168 = vld [vmem:[%s4 + $0x400] sm:$0xff]
  %v1169 = vld [vmem:[%s4 + $0x408] sm:$0xff]
  %v1170 = vld [vmem:[%s4 + $0x410] sm:$0xff]
  %v1171 = vld [vmem:[%s4 + $0x418] sm:$0xff]
  %v1172 = vld [vmem:[%s4 + $0x420] sm:$0xff]
  %v1173 = vld [vmem:[%s4 + $0x428] sm:$0xff]
  %v1174 = vld [vmem:[%s4 + $0x430] sm:$0xff]
  %v1175 = vld [vmem:[%s4 + $0x438] sm:$0xff]
  %v1176 = vld [vmem:[%s4 + $0x440] sm:$0xff]
  %v1177 = vld [vmem:[%s4 + $0x448] sm:$0xff]
  %v1178 = vld [vmem:[%s4 + $0x450] sm:$0xff]
  %v1179 = vld [vmem:[%s4 + $0x458] sm:$0xff]
  %v1180 = vld [vmem:[%s4 + $0x460] sm:$0xff]
  %v1181 = vld [vmem:[%s4 + $0x468] sm:$0xff]
  %v1182 = vld [vmem:[%s4 + $0x470] sm:$0xff]
  %v1183 = vld [vmem:[%s4 + $0x478] sm:$0xff]
  %v1184 = vld [vmem:[%s4 + $0x480] sm:$0xff]
  %v1185 = vld [vmem:[%s4 + $0x488] sm:$0xff]
  %v1186 = vld [vmem:[%s4 + $0x490] sm:$0xff]
  %v1187 = vld [vmem:[%s4 + $0x498] sm:$0xff]
  %v1188 = vld [vmem:[%s4 + $0x4a0] sm:$0xff]
  %v1189 = vld [vmem:[%s4 + $0x4a8] sm:$0xff]
  %v1190 = vld [vmem:[%s4 + $0x4b0] sm:$0xff]
  %v1191 = vld [vmem:[%s4 + $0x4b8] sm:$0xff]
  %v1192 = vld [vmem:[%s4 + $0x4c0] sm:$0xff]
  %v1193 = vld [vmem:[%s4 + $0x4c8] sm:$0xff]
  %v1194 = vld [vmem:[%s4 + $0x4d0] sm:$0xff]
  %v1195 = vld [vmem:[%s4 + $0x4d8] sm:$0xff]
  %v1196 = vld [vmem:[%s4 + $0x4e0] sm:$0xff]
  %v1197 = vld [vmem:[%s4 + $0x4e8] sm:$0xff]
  %v1198 = vld [vmem:[%s4 + $0x4f0] sm:$0xff]
  %v1199 = vld [vmem:[%s4 + $0x4f8] sm:$0xff]
  %v1200 = vld [vmem:[%s4 + $0x500] sm:$0xff]
  %v1201 = vld [vmem:[%s4 + $0x508] sm:$0xff]
  %v1202 = vld [vmem:[%s4 + $0x510] sm:$0xff]
  %v1203 = vld [vmem:[%s4 + $0x518] sm:$0xff]
  %v1204 = vld [vmem:[%s4 + $0x520] sm:$0xff]
  %v1205 = vld [vmem:[%s4 + $0x528] sm:$0xff]
  %v1206 = vld [vmem:[%s4 + $0x530] sm:$0xff]
  %v1207 = vld [vmem:[%s4 + $0x538] sm:$0xff]
  %v1208 = vld [vmem:[%s4 + $0x540] sm:$0xff]
  %v1209 = vld [vmem:[%s4 + $0x548] sm:$0xff]
  %v1210 = vld [vmem:[%s4 + $0x550] sm:$0xff]
  %v1211 = vld [vmem:[%s4 + $0x558] sm:$0xff]
  %v1212 = vld [vmem:[%s4 + $0x560] sm:$0xff]
  %v1213 = vld [vmem:[%s4 + $0x568] sm:$0xff]
  %v1214 = vld [vmem:[%s4 + $0x570] sm:$0xff]
  %v1215 = vld [vmem:[%s4 + $0x578] sm:$0xff]
  %v1216 = vld [vmem:[%s4 + $0x580] sm:$0xff]
  %v1217 = vld [vmem:[%s4 + $0x588] sm:$0xff]
  %v1218 = vld [vmem:[%s4 + $0x590] sm:$0xff]
  %v1219 = vld [vmem:[%s4 + $0x598] sm:$0xff]
  %v1220 = vld [vmem:[%s4 + $0x5a0] sm:$0xff]
  %v1221 = vld [vmem:[%s4 + $0x5a8] sm:$0xff]
  %v1222 = vld [vmem:[%s4 + $0x5b0] sm:$0xff]
  %v1223 = vld [vmem:[%s4 + $0x5b8] sm:$0xff]
  %v1224 = vld [vmem:[%s4 + $0x5c0] sm:$0xff]
  %v1225 = vld [vmem:[%s4 + $0x5c8] sm:$0xff]
  %v1226 = vld [vmem:[%s4 + $0x5d0] sm:$0xff]
  %v1227 = vld [vmem:[%s4 + $0x5d8] sm:$0xff]
  %v1228 = vld [vmem:[%s4 + $0x5e0] sm:$0xff]
  %v1229 = vld [vmem:[%s4 + $0x5e8] sm:$0xff]
  %v1230 = vld [vmem:[%s4 + $0x5f0] sm:$0xff]
  %v1231 = vld [vmem:[%s4 + $0x5f8] sm:$0xff]
  %1232 = vmatprep.subr.mxu0 %v1131
  %1233 = vmatpush1.msra.mxu0 %v1130
  %1234 = vmatprep.subr.mxu0 %v1125
  %1235 = vmatpush1.msra.mxu0 %v1124
  %1236 = vmatprep.subr.mxu0 %v1119
  %1237 = vmatpush1.msra.mxu0 %v1118
  %1238 = vmatprep.subr.mxu0 %v1113
  %1239 = vmatpush1.msra.mxu0 %v1112
  %1240 = vmatprep.subr.mxu0 %v1107
  %1241 = vmatpush1.msra.mxu0 %v1106
  %1242 = vmatprep.subr.mxu0 %v1101
  %1243 = vmatpush1.msra.mxu0 %v1100
  %1244 = vmatprep.subr.mxu0 %v1095
  %1245 = vmatpush1.msra.mxu0 %v1094
  %1246 = vmatprep.subr.mxu0 %v1089
  %1247 = vmatpush1.msra.mxu0 %v1088
  %1248 = vmatprep.subr.mxu0 %v1083
  %1249 = vmatpush1.msra.mxu0 %v1082
  %1250 = vmatprep.subr.mxu0 %v1077
  %1251 = vmatpush1.msra.mxu0 %v1076
  %1252 = vmatprep.subr.mxu0 %v1071
  %1253 = vmatpush1.msra.mxu0 %v1070
  %1254 = vmatprep.subr.mxu0 %v1065
  %1255 = vmatpush1.msra.mxu0 %v1064
  %1256 = vmatprep.subr.mxu0 %v1059
  %1257 = vmatpush1.msra.mxu0 %v1058
  %1258 = vmatprep.subr.mxu0 %v1053
  %1259 = vmatpush1.msra.mxu0 %v1052
  %1260 = vmatprep.subr.mxu0 %v1047
  %1261 = vmatpush1.msra.mxu0 %v1046
  %1262 = vmatprep.subr.mxu0 %v1041
  %1263 = vmatpush1.msra.mxu0 %v1040
  %1264 = vmatprep.subr.mxu0 %v1227
  %1265 = vmatpush2.msra.mxu0 %v1226
  %1266 = vmatprep.subr.mxu0 %v1221
  %1267 = vmatpush2.msra.mxu0 %v1220
  %1268 = vmatprep.subr.mxu0 %v1215
  %1269 = vmatpush2.msra.mxu0 %v1214
  %1270 = vmatprep.subr.mxu0 %v1209
  %1271 = vmatpush2.msra.mxu0 %v1208
  %1272 = vmatprep.subr.mxu0 %v1203
  %1273 = vmatpush2.msra.mxu0 %v1202
  %1274 = vmatprep.subr.mxu0 %v1197
  %1275 = vmatpush2.msra.mxu0 %v1196
  %1276 = vmatprep.subr.mxu0 %v1191
  %1277 = vmatpush2.msra.mxu0 %v1190
  %1278 = vmatprep.subr.mxu0 %v1185
  %1279 = vmatpush2.msra.mxu0 %v1184
  %1280 = vmatprep.subr.mxu0 %v1179
  %1281 = vmatpush2.msra.mxu0 %v1178
  %1282 = vmatprep.subr.mxu0 %v1173
  %1283 = vmatpush2.msra.mxu0 %v1172
  %1284 = vmatprep.subr.mxu0 %v1167
  %1285 = vmatpush2.msra.mxu0 %v1166
  %1286 = vmatprep.subr.mxu0 %v1161
  %1287 = vmatpush2.msra.mxu0 %v1160
  %1288 = vmatprep.subr.mxu0 %v1155
  %1289 = vmatpush2.msra.mxu0 %v1154
  %1290 = vmatprep.subr.mxu0 %v1149
  %1291 = vmatpush2.msra.mxu0 %v1148
  %1292 = vmatprep.subr.mxu0 %v1143
  %1293 = vmatpush2.msra.mxu0 %v1142
  %1294 = vmatprep.subr.mxu0 %v1137
  %1295 = vmatpush2.msra.mxu0 %v1136
  %1296 = vmatprep.mubr.f32.mxu0 %v1037
  %1297 = vmatmul.mubr.f32.gmra.mxu0 %v1030
  %v1298 = vpop.f32.mrf.mxu0
  %v1299 = vadd.f32 0.0, %v1298
  %v1300 = vpop.f32.mrf.mxu0
  %v1301 = vadd.f32 0.0, %v1300
  %1302 = vdwg.mxu0
  %1303 = vmatprep.subr.mxu0 %v1133
  %1304 = vmatpush1.msra.mxu0 %v1132
  %1305 = vmatprep.subr.mxu0 %v1127
  %1306 = vmatpush1.msra.mxu0 %v1126
  %1307 = vmatprep.subr.mxu0 %v1121
  %1308 = vmatpush1.msra.mxu0 %v1120
  %1309 = vmatprep.subr.mxu0 %v1115
  %1310 = vmatpush1.msra.mxu0 %v1114
  %1311 = vmatprep.subr.mxu0 %v1109
  %1312 = vmatpush1.msra.mxu0 %v1108
  %1313 = vmatprep.subr.mxu0 %v1103
  %1314 = vmatpush1.msra.mxu0 %v1102
  %1315 = vmatprep.subr.mxu0 %v1097
  %1316 = vmatpush1.msra.mxu0 %v1096
  %1317 = vmatprep.subr.mxu0 %v1091
  %1318 = vmatpush1.msra.mxu0 %v1090
  %1319 = vmatprep.subr.mxu0 %v1085
  %1320 = vmatpush1.msra.mxu0 %v1084
  %1321 = vmatprep.subr.mxu0 %v1079
  %1322 = vmatpush1.msra.mxu0 %v1078
  %1323 = vmatprep.subr.mxu0 %v1073
  %1324 = vmatpush1.msra.mxu0 %v1072
  %1325 = vmatprep.subr.mxu0 %v1067
  %1326 = vmatpush1.msra.mxu0 %v1066
  %1327 = vmatprep.subr.mxu0 %v1061
  %1328 = vmatpush1.msra.mxu0 %v1060
  %1329 = vmatprep.subr.mxu0 %v1055
  %1330 = vmatpush1.msra.mxu0 %v1054
  %1331 = vmatprep.subr.mxu0 %v1049
  %1332 = vmatpush1.msra.mxu0 %v1048
  %1333 = vmatprep.subr.mxu0 %v1043
  %1334 = vmatpush1.msra.mxu0 %v1042
  %1335 = vmatprep.subr.mxu0 %v1229
  %1336 = vmatpush2.msra.mxu0 %v1228
  %1337 = vmatprep.subr.mxu0 %v1223
  %1338 = vmatpush2.msra.mxu0 %v1222
  %1339 = vmatprep.subr.mxu0 %v1217
  %1340 = vmatpush2.msra.mxu0 %v1216
  %1341 = vmatprep.subr.mxu0 %v1211
  %1342 = vmatpush2.msra.mxu0 %v1210
  %1343 = vmatprep.subr.mxu0 %v1205
  %1344 = vmatpush2.msra.mxu0 %v1204
  %1345 = vmatprep.subr.mxu0 %v1199
  %1346 = vmatpush2.msra.mxu0 %v1198
  %1347 = vmatprep.subr.mxu0 %v1193
  %1348 = vmatpush2.msra.mxu0 %v1192
  %1349 = vmatprep.subr.mxu0 %v1187
  %1350 = vmatpush2.msra.mxu0 %v1186
  %1351 = vmatprep.subr.mxu0 %v1181
  %1352 = vmatpush2.msra.mxu0 %v1180
  %1353 = vmatprep.subr.mxu0 %v1175
  %1354 = vmatpush2.msra.mxu0 %v1174
  %1355 = vmatprep.subr.mxu0 %v1169
  %1356 = vmatpush2.msra.mxu0 %v1168
  %1357 = vmatprep.subr.mxu0 %v1163
  %1358 = vmatpush2.msra.mxu0 %v1162
  %1359 = vmatprep.subr.mxu0 %v1157
  %1360 = vmatpush2.msra.mxu0 %v1156
  %1361 = vmatprep.subr.mxu0 %v1151
  %1362 = vmatpush2.msra.mxu0 %v1150
  %1363 = vmatprep.subr.mxu0 %v1145
  %1364 = vmatpush2.msra.mxu0 %v1144
  %1365 = vmatprep.subr.mxu0 %v1139
  %1366 = vmatpush2.msra.mxu0 %v1138
  %1367 = vmatprep.mubr.f32.mxu0 %v1037
  %1368 = vmatmul.mubr.f32.gmra.mxu0 %v1030
  %v1369 = vpop.f32.mrf.mxu0
  %v1370 = vadd.f32 0.0, %v1369
  %v1371 = vpop.f32.mrf.mxu0
  %v1372 = vadd.f32 0.0, %v1371
  %1373 = vdwg.mxu0
  %1374 = vmatprep.subr.mxu0 %v1135
  %1375 = vmatpush1.msra.mxu0 %v1134
  %1376 = vmatprep.subr.mxu0 %v1129
  %1377 = vmatpush1.msra.mxu0 %v1128
  %1378 = vmatprep.subr.mxu0 %v1123
  %1379 = vmatpush1.msra.mxu0 %v1122
  %1380 = vmatprep.subr.mxu0 %v1117
  %1381 = vmatpush1.msra.mxu0 %v1116
  %1382 = vmatprep.subr.mxu0 %v1111
  %1383 = vmatpush1.msra.mxu0 %v1110
  %1384 = vmatprep.subr.mxu0 %v1105
  %1385 = vmatpush1.msra.mxu0 %v1104
  %1386 = vmatprep.subr.mxu0 %v1099
  %1387 = vmatpush1.msra.mxu0 %v1098
  %1388 = vmatprep.subr.mxu0 %v1093
  %1389 = vmatpush1.msra.mxu0 %v1092
  %1390 = vmatprep.subr.mxu0 %v1087
  %1391 = vmatpush1.msra.mxu0 %v1086
  %1392 = vmatprep.subr.mxu0 %v1081
  %1393 = vmatpush1.msra.mxu0 %v1080
  %1394 = vmatprep.subr.mxu0 %v1075
  %1395 = vmatpush1.msra.mxu0 %v1074
  %1396 = vmatprep.subr.mxu0 %v1069
  %1397 = vmatpush1.msra.mxu0 %v1068
  %1398 = vmatprep.subr.mxu0 %v1063
  %1399 = vmatpush1.msra.mxu0 %v1062
  %1400 = vmatprep.subr.mxu0 %v1057
  %1401 = vmatpush1.msra.mxu0 %v1056
  %1402 = vmatprep.subr.mxu0 %v1051
  %1403 = vmatpush1.msra.mxu0 %v1050
  %1404 = vmatprep.subr.mxu0 %v1045
  %1405 = vmatpush1.msra.mxu0 %v1044
  %1406 = vmatprep.subr.mxu0 %v1231
  %1407 = vmatpush2.msra.mxu0 %v1230
  %1408 = vmatprep.subr.mxu0 %v1225
  %1409 = vmatpush2.msra.mxu0 %v1224
  %1410 = vmatprep.subr.mxu0 %v1219
  %1411 = vmatpush2.msra.mxu0 %v1218
  %1412 = vmatprep.subr.mxu0 %v1213
  %1413 = vmatpush2.msra.mxu0 %v1212
  %1414 = vmatprep.subr.mxu0 %v1207
  %1415 = vmatpush2.msra.mxu0 %v1206
  %1416 = vmatprep.subr.mxu0 %v1201
  %1417 = vmatpush2.msra.mxu0 %v1200
  %1418 = vmatprep.subr.mxu0 %v1195
  %1419 = vmatpush2.msra.mxu0 %v1194
  %1420 = vmatprep.subr.mxu0 %v1189
  %1421 = vmatpush2.msra.mxu0 %v1188
  %1422 = vmatprep.subr.mxu0 %v1183
  %1423 = vmatpush2.msra.mxu0 %v1182
  %1424 = vmatprep.subr.mxu0 %v1177
  %1425 = vmatpush2.msra.mxu0 %v1176
  %1426 = vmatprep.subr.mxu0 %v1171
  %1427 = vmatpush2.msra.mxu0 %v1170
  %1428 = vmatprep.subr.mxu0 %v1165
  %1429 = vmatpush2.msra.mxu0 %v1164
  %1430 = vmatprep.subr.mxu0 %v1159
  %1431 = vmatpush2.msra.mxu0 %v1158
  %1432 = vmatprep.subr.mxu0 %v1153
  %1433 = vmatpush2.msra.mxu0 %v1152
  %1434 = vmatprep.subr.mxu0 %v1147
  %1435 = vmatpush2.msra.mxu0 %v1146
  %1436 = vmatprep.subr.mxu0 %v1141
  %1437 = vmatpush2.msra.mxu0 %v1140
  %1438 = vmatprep.mubr.f32.mxu0 %v1037
  %1439 = vmatmul.mubr.f32.gmra.mxu0 %v1030
  %v1440 = vpop.f32.mrf.mxu0
  %v1441 = vadd.f32 0.0, %v1440
  %v1442 = vpop.f32.mrf.mxu0
  %v1443 = vadd.f32 0.0, %v1442
  %1444 = vdwg.mxu0
  %s1445 = scalar_lea.vmem [#allocation2], 48
  %v1446 = vld [vmem:[%s1445] sm:$0xff]
  %v1447 = vld [vmem:[%s1445 + $0x8] sm:$0xff]
  %v1448 = vld [vmem:[%s1445 + $0x10] sm:$0xff]
  %s1449 = scalar_lea.vmem [#allocation2], 288
  %v1450 = vld [vmem:[%s1449 + $0x18] sm:$0xff]
  %v1451 = vld [vmem:[%s1449 + $0x20] sm:$0xff]
  %v1452 = vld [vmem:[%s1449 + $0x28] sm:$0xff]
  %v1453 = vld [vmem:[%s5] sm:$0x1]
  %v1454 = vld [vmem:[%s5 + $0x1] sm:$0x1]
  %v1455 = vadd.f32 %v1446, %v1299
  %v1456 = vxor.u32 %v1455, 2147483648
  %v1457 = vmul.f32 %v1456, 1.442695
  %v1458 = vpow.pop %v1457
  %v1459 = vadd.f32 %v1458, 1.0
  %v1460 = vrcp.pop %v1459
  %v1461 = vmul.f32 1.0, %v1460
  %v1462 = vadd.f32 %v1447, %v1301
  %v1463 = vxor.u32 %v1462, 2147483648
  %v1464 = vmul.f32 %v1463, 1.442695
  %v1465 = vpow.pop %v1464
  %v1466 = vadd.f32 %v1465, 1.0
  %v1467 = vrcp.pop %v1466
  %v1468 = vmul.f32 1.0, %v1467
  %v1470 = vlaneseq
  %v1471 = vshrl.u32 %v1470, 7
  %v1472 = vsub.s32 0, %v1471
  %v1473 = vrot.slane %v1453, %v1472
  %v1475 = vadd.f32 %v1370, %v1473
  %v1476 = vmul.f32 %v1461, %v1475
  %v1477 = vadd.f32 %v1448, %v1476
  %v1478 = vtanh.pop %v1477
  %v1479 = vsub.f32 1.0, %v1468
  %v1480 = vmul.f32 %v1479, %v1478
  %v1481 = vmul.f32 %v1468, %v1030
  %v1482 = vadd.f32 %v1480, %v1481
  %v1483 = vadd.f32 %v1450, %v1372
  %v1484 = vxor.u32 %v1483, 2147483648
  %v1485 = vmul.f32 %v1484, 1.442695
  %v1486 = vpow.pop %v1485
  %v1487 = vadd.f32 %v1486, 1.0
  %v1488 = vrcp.pop %v1487
  %v1489 = vmul.f32 1.0, %v1488
  %v1490 = vadd.f32 %v1451, %v1441
  %v1491 = vxor.u32 %v1490, 2147483648
  %v1492 = vmul.f32 %v1491, 1.442695
  %v1493 = vpow.pop %v1492
  %v1494 = vadd.f32 %v1493, 1.0
  %v1495 = vrcp.pop %v1494
  %v1496 = vmul.f32 1.0, %v1495
  %v1498 = vlaneseq
  %v1499 = vshrl.u32 %v1498, 7
  %v1500 = vsub.s32 0, %v1499
  %v1501 = vrot.slane %v1454, %v1500
  %v1503 = vadd.f32 %v1443, %v1501
  %v1504 = vmul.f32 %v1489, %v1503
  %v1505 = vadd.f32 %v1452, %v1504
  %v1506 = vtanh.pop %v1505
  %v1507 = vsub.f32 1.0, %v1496
  %v1508 = vmul.f32 %v1507, %v1506
  %v1509 = vmul.f32 %v1496, %v1037
  %v1510 = vadd.f32 %v1508, %v1509
  %vm1511 = vcmp.gt.s32.totalorder %v552, 1
  %vm1512 = vcmp.gt.s32.totalorder %v552, 6
  %v1513 = vsel %vm1511, 1, 0
  %1514 = vset.pattern.permute.xlu0 0
  %1515 = vperm.xlu0 %1514, %v1513
  %v1516 = vpop.permute.xlu0 %1515
  %vm1517 = vcmp.eq.s32.totalorder %v1516, 1
  %v1518 = vsel %vm1517, %v1482, 0.0
  %s1519 = scalar_lea.vmem %s8, 16
  %1520 = vst [vmem:[%s1519] sm:$0xff] %v1518
  %v1521 = vsel %vm1512, 1, 0
  %1522 = vset.pattern.permute.xlu0 0
  %1523 = vperm.xlu0 %1522, %v1521
  %v1524 = vpop.permute.xlu0 %1523
  %vm1525 = vcmp.eq.s32.totalorder %v1524, 1
  %v1526 = vsel %vm1525, %v1510, 0.0
  %s1527 = scalar_lea.vmem %s8, 96
  %1528 = vst [vmem:[%s1527 + $0x8] sm:$0xff] %v1526
  %v1529 = vsel %vm1517, %v1482, %v1030
  %v1530 = vsel %vm1525, %v1510, %v1037
  %v1531 = vld [vmem:[%s4] sm:$0xff]
  %v1532 = vld [vmem:[%s4 + $0x8] sm:$0xff]
  %v1533 = vld [vmem:[%s4 + $0x10] sm:$0xff]
  %v1534 = vld [vmem:[%s4 + $0x18] sm:$0xff]
  %v1535 = vld [vmem:[%s4 + $0x20] sm:$0xff]
  %v1536 = vld [vmem:[%s4 + $0x28] sm:$0xff]
  %v1537 = vld [vmem:[%s4 + $0x30] sm:$0xff]
  %v1538 = vld [vmem:[%s4 + $0x38] sm:$0xff]
  %v1539 = vld [vmem:[%s4 + $0x40] sm:$0xff]
  %v1540 = vld [vmem:[%s4 + $0x48] sm:$0xff]
  %v1541 = vld [vmem:[%s4 + $0x50] sm:$0xff]
  %v1542 = vld [vmem:[%s4 + $0x58] sm:$0xff]
  %v1543 = vld [vmem:[%s4 + $0x60] sm:$0xff]
  %v1544 = vld [vmem:[%s4 + $0x68] sm:$0xff]
  %v1545 = vld [vmem:[%s4 + $0x70] sm:$0xff]
  %v1546 = vld [vmem:[%s4 + $0x78] sm:$0xff]
  %v1547 = vld [vmem:[%s4 + $0x80] sm:$0xff]
  %v1548 = vld [vmem:[%s4 + $0x88] sm:$0xff]
  %v1549 = vld [vmem:[%s4 + $0x90] sm:$0xff]
  %v1550 = vld [vmem:[%s4 + $0x98] sm:$0xff]
  %v1551 = vld [vmem:[%s4 + $0xa0] sm:$0xff]
  %v1552 = vld [vmem:[%s4 + $0xa8] sm:$0xff]
  %v1553 = vld [vmem:[%s4 + $0xb0] sm:$0xff]
  %v1554 = vld [vmem:[%s4 + $0xb8] sm:$0xff]
  %v1555 = vld [vmem:[%s4 + $0xc0] sm:$0xff]
  %v1556 = vld [vmem:[%s4 + $0xc8] sm:$0xff]
  %v1557 = vld [vmem:[%s4 + $0xd0] sm:$0xff]
  %v1558 = vld [vmem:[%s4 + $0xd8] sm:$0xff]
  %v1559 = vld [vmem:[%s4 + $0xe0] sm:$0xff]
  %v1560 = vld [vmem:[%s4 + $0xe8] sm:$0xff]
  %v1561 = vld [vmem:[%s4 + $0xf0] sm:$0xff]
  %v1562 = vld [vmem:[%s4 + $0xf8] sm:$0xff]
  %v1563 = vld [vmem:[%s4 + $0x100] sm:$0xff]
  %v1564 = vld [vmem:[%s4 + $0x108] sm:$0xff]
  %v1565 = vld [vmem:[%s4 + $0x110] sm:$0xff]
  %v1566 = vld [vmem:[%s4 + $0x118] sm:$0xff]
  %v1567 = vld [vmem:[%s4 + $0x120] sm:$0xff]
  %v1568 = vld [vmem:[%s4 + $0x128] sm:$0xff]
  %v1569 = vld [vmem:[%s4 + $0x130] sm:$0xff]
  %v1570 = vld [vmem:[%s4 + $0x138] sm:$0xff]
  %v1571 = vld [vmem:[%s4 + $0x140] sm:$0xff]
  %v1572 = vld [vmem:[%s4 + $0x148] sm:$0xff]
  %v1573 = vld [vmem:[%s4 + $0x150] sm:$0xff]
  %v1574 = vld [vmem:[%s4 + $0x158] sm:$0xff]
  %v1575 = vld [vmem:[%s4 + $0x160] sm:$0xff]
  %v1576 = vld [vmem:[%s4 + $0x168] sm:$0xff]
  %v1577 = vld [vmem:[%s4 + $0x170] sm:$0xff]
  %v1578 = vld [vmem:[%s4 + $0x178] sm:$0xff]
  %v1579 = vld [vmem:[%s4 + $0x180] sm:$0xff]
  %v1580 = vld [vmem:[%s4 + $0x188] sm:$0xff]
  %v1581 = vld [vmem:[%s4 + $0x190] sm:$0xff]
  %v1582 = vld [vmem:[%s4 + $0x198] sm:$0xff]
  %v1583 = vld [vmem:[%s4 + $0x1a0] sm:$0xff]
  %v1584 = vld [vmem:[%s4 + $0x1a8] sm:$0xff]
  %v1585 = vld [vmem:[%s4 + $0x1b0] sm:$0xff]
  %v1586 = vld [vmem:[%s4 + $0x1b8] sm:$0xff]
  %v1587 = vld [vmem:[%s4 + $0x1c0] sm:$0xff]
  %v1588 = vld [vmem:[%s4 + $0x1c8] sm:$0xff]
  %v1589 = vld [vmem:[%s4 + $0x1d0] sm:$0xff]
  %v1590 = vld [vmem:[%s4 + $0x1d8] sm:$0xff]
  %v1591 = vld [vmem:[%s4 + $0x1e0] sm:$0xff]
  %v1592 = vld [vmem:[%s4 + $0x1e8] sm:$0xff]
  %v1593 = vld [vmem:[%s4 + $0x1f0] sm:$0xff]
  %v1594 = vld [vmem:[%s4 + $0x1f8] sm:$0xff]
  %v1595 = vld [vmem:[%s4 + $0x200] sm:$0xff]
  %v1596 = vld [vmem:[%s4 + $0x208] sm:$0xff]
  %v1597 = vld [vmem:[%s4 + $0x210] sm:$0xff]
  %v1598 = vld [vmem:[%s4 + $0x218] sm:$0xff]
  %v1599 = vld [vmem:[%s4 + $0x220] sm:$0xff]
  %v1600 = vld [vmem:[%s4 + $0x228] sm:$0xff]
  %v1601 = vld [vmem:[%s4 + $0x230] sm:$0xff]
  %v1602 = vld [vmem:[%s4 + $0x238] sm:$0xff]
  %v1603 = vld [vmem:[%s4 + $0x240] sm:$0xff]
  %v1604 = vld [vmem:[%s4 + $0x248] sm:$0xff]
  %v1605 = vld [vmem:[%s4 + $0x250] sm:$0xff]
  %v1606 = vld [vmem:[%s4 + $0x258] sm:$0xff]
  %v1607 = vld [vmem:[%s4 + $0x260] sm:$0xff]
  %v1608 = vld [vmem:[%s4 + $0x268] sm:$0xff]
  %v1609 = vld [vmem:[%s4 + $0x270] sm:$0xff]
  %v1610 = vld [vmem:[%s4 + $0x278] sm:$0xff]
  %v1611 = vld [vmem:[%s4 + $0x280] sm:$0xff]
  %v1612 = vld [vmem:[%s4 + $0x288] sm:$0xff]
  %v1613 = vld [vmem:[%s4 + $0x290] sm:$0xff]
  %v1614 = vld [vmem:[%s4 + $0x298] sm:$0xff]
  %v1615 = vld [vmem:[%s4 + $0x2a0] sm:$0xff]
  %v1616 = vld [vmem:[%s4 + $0x2a8] sm:$0xff]
  %v1617 = vld [vmem:[%s4 + $0x2b0] sm:$0xff]
  %v1618 = vld [vmem:[%s4 + $0x2b8] sm:$0xff]
  %v1619 = vld [vmem:[%s4 + $0x2c0] sm:$0xff]
  %v1620 = vld [vmem:[%s4 + $0x2c8] sm:$0xff]
  %v1621 = vld [vmem:[%s4 + $0x2d0] sm:$0xff]
  %v1622 = vld [vmem:[%s4 + $0x2d8] sm:$0xff]
  %v1623 = vld [vmem:[%s4 + $0x2e0] sm:$0xff]
  %v1624 = vld [vmem:[%s4 + $0x2e8] sm:$0xff]
  %v1625 = vld [vmem:[%s4 + $0x2f0] sm:$0xff]
  %v1626 = vld [vmem:[%s4 + $0x2f8] sm:$0xff]
  %v1627 = vld [vmem:[%s4 + $0x300] sm:$0xff]
  %v1628 = vld [vmem:[%s4 + $0x308] sm:$0xff]
  %v1629 = vld [vmem:[%s4 + $0x310] sm:$0xff]
  %v1630 = vld [vmem:[%s4 + $0x318] sm:$0xff]
  %v1631 = vld [vmem:[%s4 + $0x320] sm:$0xff]
  %v1632 = vld [vmem:[%s4 + $0x328] sm:$0xff]
  %v1633 = vld [vmem:[%s4 + $0x330] sm:$0xff]
  %v1634 = vld [vmem:[%s4 + $0x338] sm:$0xff]
  %v1635 = vld [vmem:[%s4 + $0x340] sm:$0xff]
  %v1636 = vld [vmem:[%s4 + $0x348] sm:$0xff]
  %v1637 = vld [vmem:[%s4 + $0x350] sm:$0xff]
  %v1638 = vld [vmem:[%s4 + $0x358] sm:$0xff]
  %v1639 = vld [vmem:[%s4 + $0x360] sm:$0xff]
  %v1640 = vld [vmem:[%s4 + $0x368] sm:$0xff]
  %v1641 = vld [vmem:[%s4 + $0x370] sm:$0xff]
  %v1642 = vld [vmem:[%s4 + $0x378] sm:$0xff]
  %v1643 = vld [vmem:[%s4 + $0x380] sm:$0xff]
  %v1644 = vld [vmem:[%s4 + $0x388] sm:$0xff]
  %v1645 = vld [vmem:[%s4 + $0x390] sm:$0xff]
  %v1646 = vld [vmem:[%s4 + $0x398] sm:$0xff]
  %v1647 = vld [vmem:[%s4 + $0x3a0] sm:$0xff]
  %v1648 = vld [vmem:[%s4 + $0x3a8] sm:$0xff]
  %v1649 = vld [vmem:[%s4 + $0x3b0] sm:$0xff]
  %v1650 = vld [vmem:[%s4 + $0x3b8] sm:$0xff]
  %v1651 = vld [vmem:[%s4 + $0x3c0] sm:$0xff]
  %v1652 = vld [vmem:[%s4 + $0x3c8] sm:$0xff]
  %v1653 = vld [vmem:[%s4 + $0x3d0] sm:$0xff]
  %v1654 = vld [vmem:[%s4 + $0x3d8] sm:$0xff]
  %v1655 = vld [vmem:[%s4 + $0x3e0] sm:$0xff]
  %v1656 = vld [vmem:[%s4 + $0x3e8] sm:$0xff]
  %v1657 = vld [vmem:[%s4 + $0x3f0] sm:$0xff]
  %v1658 = vld [vmem:[%s4 + $0x3f8] sm:$0xff]
  %v1659 = vld [vmem:[%s4 + $0x400] sm:$0xff]
  %v1660 = vld [vmem:[%s4 + $0x408] sm:$0xff]
  %v1661 = vld [vmem:[%s4 + $0x410] sm:$0xff]
  %v1662 = vld [vmem:[%s4 + $0x418] sm:$0xff]
  %v1663 = vld [vmem:[%s4 + $0x420] sm:$0xff]
  %v1664 = vld [vmem:[%s4 + $0x428] sm:$0xff]
  %v1665 = vld [vmem:[%s4 + $0x430] sm:$0xff]
  %v1666 = vld [vmem:[%s4 + $0x438] sm:$0xff]
  %v1667 = vld [vmem:[%s4 + $0x440] sm:$0xff]
  %v1668 = vld [vmem:[%s4 + $0x448] sm:$0xff]
  %v1669 = vld [vmem:[%s4 + $0x450] sm:$0xff]
  %v1670 = vld [vmem:[%s4 + $0x458] sm:$0xff]
  %v1671 = vld [vmem:[%s4 + $0x460] sm:$0xff]
  %v1672 = vld [vmem:[%s4 + $0x468] sm:$0xff]
  %v1673 = vld [vmem:[%s4 + $0x470] sm:$0xff]
  %v1674 = vld [vmem:[%s4 + $0x478] sm:$0xff]
  %v1675 = vld [vmem:[%s4 + $0x480] sm:$0xff]
  %v1676 = vld [vmem:[%s4 + $0x488] sm:$0xff]
  %v1677 = vld [vmem:[%s4 + $0x490] sm:$0xff]
  %v1678 = vld [vmem:[%s4 + $0x498] sm:$0xff]
  %v1679 = vld [vmem:[%s4 + $0x4a0] sm:$0xff]
  %v1680 = vld [vmem:[%s4 + $0x4a8] sm:$0xff]
  %v1681 = vld [vmem:[%s4 + $0x4b0] sm:$0xff]
  %v1682 = vld [vmem:[%s4 + $0x4b8] sm:$0xff]
  %v1683 = vld [vmem:[%s4 + $0x4c0] sm:$0xff]
  %v1684 = vld [vmem:[%s4 + $0x4c8] sm:$0xff]
  %v1685 = vld [vmem:[%s4 + $0x4d0] sm:$0xff]
  %v1686 = vld [vmem:[%s4 + $0x4d8] sm:$0xff]
  %v1687 = vld [vmem:[%s4 + $0x4e0] sm:$0xff]
  %v1688 = vld [vmem:[%s4 + $0x4e8] sm:$0xff]
  %v1689 = vld [vmem:[%s4 + $0x4f0] sm:$0xff]
  %v1690 = vld [vmem:[%s4 + $0x4f8] sm:$0xff]
  %v1691 = vld [vmem:[%s4 + $0x500] sm:$0xff]
  %v1692 = vld [vmem:[%s4 + $0x508] sm:$0xff]
  %v1693 = vld [vmem:[%s4 + $0x510] sm:$0xff]
  %v1694 = vld [vmem:[%s4 + $0x518] sm:$0xff]
  %v1695 = vld [vmem:[%s4 + $0x520] sm:$0xff]
  %v1696 = vld [vmem:[%s4 + $0x528] sm:$0xff]
  %v1697 = vld [vmem:[%s4 + $0x530] sm:$0xff]
  %v1698 = vld [vmem:[%s4 + $0x538] sm:$0xff]
  %v1699 = vld [vmem:[%s4 + $0x540] sm:$0xff]
  %v1700 = vld [vmem:[%s4 + $0x548] sm:$0xff]
  %v1701 = vld [vmem:[%s4 + $0x550] sm:$0xff]
  %v1702 = vld [vmem:[%s4 + $0x558] sm:$0xff]
  %v1703 = vld [vmem:[%s4 + $0x560] sm:$0xff]
  %v1704 = vld [vmem:[%s4 + $0x568] sm:$0xff]
  %v1705 = vld [vmem:[%s4 + $0x570] sm:$0xff]
  %v1706 = vld [vmem:[%s4 + $0x578] sm:$0xff]
  %v1707 = vld [vmem:[%s4 + $0x580] sm:$0xff]
  %v1708 = vld [vmem:[%s4 + $0x588] sm:$0xff]
  %v1709 = vld [vmem:[%s4 + $0x590] sm:$0xff]
  %v1710 = vld [vmem:[%s4 + $0x598] sm:$0xff]
  %v1711 = vld [vmem:[%s4 + $0x5a0] sm:$0xff]
  %v1712 = vld [vmem:[%s4 + $0x5a8] sm:$0xff]
  %v1713 = vld [vmem:[%s4 + $0x5b0] sm:$0xff]
  %v1714 = vld [vmem:[%s4 + $0x5b8] sm:$0xff]
  %v1715 = vld [vmem:[%s4 + $0x5c0] sm:$0xff]
  %v1716 = vld [vmem:[%s4 + $0x5c8] sm:$0xff]
  %v1717 = vld [vmem:[%s4 + $0x5d0] sm:$0xff]
  %v1718 = vld [vmem:[%s4 + $0x5d8] sm:$0xff]
  %v1719 = vld [vmem:[%s4 + $0x5e0] sm:$0xff]
  %v1720 = vld [vmem:[%s4 + $0x5e8] sm:$0xff]
  %v1721 = vld [vmem:[%s4 + $0x5f0] sm:$0xff]
  %v1722 = vld [vmem:[%s4 + $0x5f8] sm:$0xff]
  %1723 = vmatprep.subr.mxu0 %v1622
  %1724 = vmatpush1.msra.mxu0 %v1621
  %1725 = vmatprep.subr.mxu0 %v1616
  %1726 = vmatpush1.msra.mxu0 %v1615
  %1727 = vmatprep.subr.mxu0 %v1610
  %1728 = vmatpush1.msra.mxu0 %v1609
  %1729 = vmatprep.subr.mxu0 %v1604
  %1730 = vmatpush1.msra.mxu0 %v1603
  %1731 = vmatprep.subr.mxu0 %v1598
  %1732 = vmatpush1.msra.mxu0 %v1597
  %1733 = vmatprep.subr.mxu0 %v1592
  %1734 = vmatpush1.msra.mxu0 %v1591
  %1735 = vmatprep.subr.mxu0 %v1586
  %1736 = vmatpush1.msra.mxu0 %v1585
  %1737 = vmatprep.subr.mxu0 %v1580
  %1738 = vmatpush1.msra.mxu0 %v1579
  %1739 = vmatprep.subr.mxu0 %v1574
  %1740 = vmatpush1.msra.mxu0 %v1573
  %1741 = vmatprep.subr.mxu0 %v1568
  %1742 = vmatpush1.msra.mxu0 %v1567
  %1743 = vmatprep.subr.mxu0 %v1562
  %1744 = vmatpush1.msra.mxu0 %v1561
  %1745 = vmatprep.subr.mxu0 %v1556
  %1746 = vmatpush1.msra.mxu0 %v1555
  %1747 = vmatprep.subr.mxu0 %v1550
  %1748 = vmatpush1.msra.mxu0 %v1549
  %1749 = vmatprep.subr.mxu0 %v1544
  %1750 = vmatpush1.msra.mxu0 %v1543
  %1751 = vmatprep.subr.mxu0 %v1538
  %1752 = vmatpush1.msra.mxu0 %v1537
  %1753 = vmatprep.subr.mxu0 %v1532
  %1754 = vmatpush1.msra.mxu0 %v1531
  %1755 = vmatprep.subr.mxu0 %v1718
  %1756 = vmatpush2.msra.mxu0 %v1717
  %1757 = vmatprep.subr.mxu0 %v1712
  %1758 = vmatpush2.msra.mxu0 %v1711
  %1759 = vmatprep.subr.mxu0 %v1706
  %1760 = vmatpush2.msra.mxu0 %v1705
  %1761 = vmatprep.subr.mxu0 %v1700
  %1762 = vmatpush2.msra.mxu0 %v1699
  %1763 = vmatprep.subr.mxu0 %v1694
  %1764 = vmatpush2.msra.mxu0 %v1693
  %1765 = vmatprep.subr.mxu0 %v1688
  %1766 = vmatpush2.msra.mxu0 %v1687
  %1767 = vmatprep.subr.mxu0 %v1682
  %1768 = vmatpush2.msra.mxu0 %v1681
  %1769 = vmatprep.subr.mxu0 %v1676
  %1770 = vmatpush2.msra.mxu0 %v1675
  %1771 = vmatprep.subr.mxu0 %v1670
  %1772 = vmatpush2.msra.mxu0 %v1669
  %1773 = vmatprep.subr.mxu0 %v1664
  %1774 = vmatpush2.msra.mxu0 %v1663
  %1775 = vmatprep.subr.mxu0 %v1658
  %1776 = vmatpush2.msra.mxu0 %v1657
  %1777 = vmatprep.subr.mxu0 %v1652
  %1778 = vmatpush2.msra.mxu0 %v1651
  %1779 = vmatprep.subr.mxu0 %v1646
  %1780 = vmatpush2.msra.mxu0 %v1645
  %1781 = vmatprep.subr.mxu0 %v1640
  %1782 = vmatpush2.msra.mxu0 %v1639
  %1783 = vmatprep.subr.mxu0 %v1634
  %1784 = vmatpush2.msra.mxu0 %v1633
  %1785 = vmatprep.subr.mxu0 %v1628
  %1786 = vmatpush2.msra.mxu0 %v1627
  %1787 = vmatprep.mubr.f32.mxu0 %v1530
  %1788 = vmatmul.mubr.f32.gmra.mxu0 %v1529
  %v1789 = vpop.f32.mrf.mxu0
  %v1790 = vadd.f32 0.0, %v1789
  %v1791 = vpop.f32.mrf.mxu0
  %v1792 = vadd.f32 0.0, %v1791
  %1793 = vdwg.mxu0
  %1794 = vmatprep.subr.mxu0 %v1624
  %1795 = vmatpush1.msra.mxu0 %v1623
  %1796 = vmatprep.subr.mxu0 %v1618
  %1797 = vmatpush1.msra.mxu0 %v1617
  %1798 = vmatprep.subr.mxu0 %v1612
  %1799 = vmatpush1.msra.mxu0 %v1611
  %1800 = vmatprep.subr.mxu0 %v1606
  %1801 = vmatpush1.msra.mxu0 %v1605
  %1802 = vmatprep.subr.mxu0 %v1600
  %1803 = vmatpush1.msra.mxu0 %v1599
  %1804 = vmatprep.subr.mxu0 %v1594
  %1805 = vmatpush1.msra.mxu0 %v1593
  %1806 = vmatprep.subr.mxu0 %v1588
  %1807 = vmatpush1.msra.mxu0 %v1587
  %1808 = vmatprep.subr.mxu0 %v1582
  %1809 = vmatpush1.msra.mxu0 %v1581
  %1810 = vmatprep.subr.mxu0 %v1576
  %1811 = vmatpush1.msra.mxu0 %v1575
  %1812 = vmatprep.subr.mxu0 %v1570
  %1813 = vmatpush1.msra.mxu0 %v1569
  %1814 = vmatprep.subr.mxu0 %v1564
  %1815 = vmatpush1.msra.mxu0 %v1563
  %1816 = vmatprep.subr.mxu0 %v1558
  %1817 = vmatpush1.msra.mxu0 %v1557
  %1818 = vmatprep.subr.mxu0 %v1552
  %1819 = vmatpush1.msra.mxu0 %v1551
  %1820 = vmatprep.subr.mxu0 %v1546
  %1821 = vmatpush1.msra.mxu0 %v1545
  %1822 = vmatprep.subr.mxu0 %v1540
  %1823 = vmatpush1.msra.mxu0 %v1539
  %1824 = vmatprep.subr.mxu0 %v1534
  %1825 = vmatpush1.msra.mxu0 %v1533
  %1826 = vmatprep.subr.mxu0 %v1720
  %1827 = vmatpush2.msra.mxu0 %v1719
  %1828 = vmatprep.subr.mxu0 %v1714
  %1829 = vmatpush2.msra.mxu0 %v1713
  %1830 = vmatprep.subr.mxu0 %v1708
  %1831 = vmatpush2.msra.mxu0 %v1707
  %1832 = vmatprep.subr.mxu0 %v1702
  %1833 = vmatpush2.msra.mxu0 %v1701
  %1834 = vmatprep.subr.mxu0 %v1696
  %1835 = vmatpush2.msra.mxu0 %v1695
  %1836 = vmatprep.subr.mxu0 %v1690
  %1837 = vmatpush2.msra.mxu0 %v1689
  %1838 = vmatprep.subr.mxu0 %v1684
  %1839 = vmatpush2.msra.mxu0 %v1683
  %1840 = vmatprep.subr.mxu0 %v1678
  %1841 = vmatpush2.msra.mxu0 %v1677
  %1842 = vmatprep.subr.mxu0 %v1672
  %1843 = vmatpush2.msra.mxu0 %v1671
  %1844 = vmatprep.subr.mxu0 %v1666
  %1845 = vmatpush2.msra.mxu0 %v1665
  %1846 = vmatprep.subr.mxu0 %v1660
  %1847 = vmatpush2.msra.mxu0 %v1659
  %1848 = vmatprep.subr.mxu0 %v1654
  %1849 = vmatpush2.msra.mxu0 %v1653
  %1850 = vmatprep.subr.mxu0 %v1648
  %1851 = vmatpush2.msra.mxu0 %v1647
  %1852 = vmatprep.subr.mxu0 %v1642
  %1853 = vmatpush2.msra.mxu0 %v1641
  %1854 = vmatprep.subr.mxu0 %v1636
  %1855 = vmatpush2.msra.mxu0 %v1635
  %1856 = vmatprep.subr.mxu0 %v1630
  %1857 = vmatpush2.msra.mxu0 %v1629
  %1858 = vmatprep.mubr.f32.mxu0 %v1530
  %1859 = vmatmul.mubr.f32.gmra.mxu0 %v1529
  %v1860 = vpop.f32.mrf.mxu0
  %v1861 = vadd.f32 0.0, %v1860
  %v1862 = vpop.f32.mrf.mxu0
  %v1863 = vadd.f32 0.0, %v1862
  %1864 = vdwg.mxu0
  %1865 = vmatprep.subr.mxu0 %v1626
  %1866 = vmatpush1.msra.mxu0 %v1625
  %1867 = vmatprep.subr.mxu0 %v1620
  %1868 = vmatpush1.msra.mxu0 %v1619
  %1869 = vmatprep.subr.mxu0 %v1614
  %1870 = vmatpush1.msra.mxu0 %v1613
  %1871 = vmatprep.subr.mxu0 %v1608
  %1872 = vmatpush1.msra.mxu0 %v1607
  %1873 = vmatprep.subr.mxu0 %v1602
  %1874 = vmatpush1.msra.mxu0 %v1601
  %1875 = vmatprep.subr.mxu0 %v1596
  %1876 = vmatpush1.msra.mxu0 %v1595
  %1877 = vmatprep.subr.mxu0 %v1590
  %1878 = vmatpush1.msra.mxu0 %v1589
  %1879 = vmatprep.subr.mxu0 %v1584
  %1880 = vmatpush1.msra.mxu0 %v1583
  %1881 = vmatprep.subr.mxu0 %v1578
  %1882 = vmatpush1.msra.mxu0 %v1577
  %1883 = vmatprep.subr.mxu0 %v1572
  %1884 = vmatpush1.msra.mxu0 %v1571
  %1885 = vmatprep.subr.mxu0 %v1566
  %1886 = vmatpush1.msra.mxu0 %v1565
  %1887 = vmatprep.subr.mxu0 %v1560
  %1888 = vmatpush1.msra.mxu0 %v1559
  %1889 = vmatprep.subr.mxu0 %v1554
  %1890 = vmatpush1.msra.mxu0 %v1553
  %1891 = vmatprep.subr.mxu0 %v1548
  %1892 = vmatpush1.msra.mxu0 %v1547
  %1893 = vmatprep.subr.mxu0 %v1542
  %1894 = vmatpush1.msra.mxu0 %v1541
  %1895 = vmatprep.subr.mxu0 %v1536
  %1896 = vmatpush1.msra.mxu0 %v1535
  %1897 = vmatprep.subr.mxu0 %v1722
  %1898 = vmatpush2.msra.mxu0 %v1721
  %1899 = vmatprep.subr.mxu0 %v1716
  %1900 = vmatpush2.msra.mxu0 %v1715
  %1901 = vmatprep.subr.mxu0 %v1710
  %1902 = vmatpush2.msra.mxu0 %v1709
  %1903 = vmatprep.subr.mxu0 %v1704
  %1904 = vmatpush2.msra.mxu0 %v1703
  %1905 = vmatprep.subr.mxu0 %v1698
  %1906 = vmatpush2.msra.mxu0 %v1697
  %1907 = vmatprep.subr.mxu0 %v1692
  %1908 = vmatpush2.msra.mxu0 %v1691
  %1909 = vmatprep.subr.mxu0 %v1686
  %1910 = vmatpush2.msra.mxu0 %v1685
  %1911 = vmatprep.subr.mxu0 %v1680
  %1912 = vmatpush2.msra.mxu0 %v1679
  %1913 = vmatprep.subr.mxu0 %v1674
  %1914 = vmatpush2.msra.mxu0 %v1673
  %1915 = vmatprep.subr.mxu0 %v1668
  %1916 = vmatpush2.msra.mxu0 %v1667
  %1917 = vmatprep.subr.mxu0 %v1662
  %1918 = vmatpush2.msra.mxu0 %v1661
  %1919 = vmatprep.subr.mxu0 %v1656
  %1920 = vmatpush2.msra.mxu0 %v1655
  %1921 = vmatprep.subr.mxu0 %v1650
  %1922 = vmatpush2.msra.mxu0 %v1649
  %1923 = vmatprep.subr.mxu0 %v1644
  %1924 = vmatpush2.msra.mxu0 %v1643
  %1925 = vmatprep.subr.mxu0 %v1638
  %1926 = vmatpush2.msra.mxu0 %v1637
  %1927 = vmatprep.subr.mxu0 %v1632
  %1928 = vmatpush2.msra.mxu0 %v1631
  %1929 = vmatprep.mubr.f32.mxu0 %v1530
  %1930 = vmatmul.mubr.f32.gmra.mxu0 %v1529
  %v1931 = vpop.f32.mrf.mxu0
  %v1932 = vadd.f32 0.0, %v1931
  %v1933 = vpop.f32.mrf.mxu0
  %v1934 = vadd.f32 0.0, %v1933
  %1935 = vdwg.mxu0
  %s1936 = scalar_lea.vmem [#allocation2], 96
  %v1937 = vld [vmem:[%s1936] sm:$0xff]
  %v1938 = vld [vmem:[%s1936 + $0x8] sm:$0xff]
  %v1939 = vld [vmem:[%s1936 + $0x10] sm:$0xff]
  %s1940 = scalar_lea.vmem [#allocation2], 240
  %v1941 = vld [vmem:[%s1940 + $0x18] sm:$0xff]
  %v1942 = vld [vmem:[%s1940 + $0x20] sm:$0xff]
  %v1943 = vld [vmem:[%s1940 + $0x28] sm:$0xff]
  %v1944 = vld [vmem:[%s5] sm:$0x1]
  %v1945 = vld [vmem:[%s5 + $0x1] sm:$0x1]
  %v1946 = vadd.f32 %v1937, %v1790
  %v1947 = vxor.u32 %v1946, 2147483648
  %v1948 = vmul.f32 %v1947, 1.442695
  %v1949 = vpow.pop %v1948
  %v1950 = vadd.f32 %v1949, 1.0
  %v1951 = vrcp.pop %v1950
  %v1952 = vmul.f32 1.0, %v1951
  %v1953 = vadd.f32 %v1938, %v1792
  %v1954 = vxor.u32 %v1953, 2147483648
  %v1955 = vmul.f32 %v1954, 1.442695
  %v1956 = vpow.pop %v1955
  %v1957 = vadd.f32 %v1956, 1.0
  %v1958 = vrcp.pop %v1957
  %v1959 = vmul.f32 1.0, %v1958
  %v1961 = vlaneseq
  %v1962 = vshrl.u32 %v1961, 7
  %v1963 = vsub.s32 0, %v1962
  %v1964 = vrot.slane %v1944, %v1963
  %v1966 = vadd.f32 %v1861, %v1964
  %v1967 = vmul.f32 %v1952, %v1966
  %v1968 = vadd.f32 %v1939, %v1967
  %v1969 = vtanh.pop %v1968
  %v1970 = vsub.f32 1.0, %v1959
  %v1971 = vmul.f32 %v1970, %v1969
  %v1972 = vmul.f32 %v1959, %v1529
  %v1973 = vadd.f32 %v1971, %v1972
  %v1974 = vadd.f32 %v1941, %v1863
  %v1975 = vxor.u32 %v1974, 2147483648
  %v1976 = vmul.f32 %v1975, 1.442695
  %v1977 = vpow.pop %v1976
  %v1978 = vadd.f32 %v1977, 1.0
  %v1979 = vrcp.pop %v1978
  %v1980 = vmul.f32 1.0, %v1979
  %v1981 = vadd.f32 %v1942, %v1932
  %v1982 = vxor.u32 %v1981, 2147483648
  %v1983 = vmul.f32 %v1982, 1.442695
  %v1984 = vpow.pop %v1983
  %v1985 = vadd.f32 %v1984, 1.0
  %v1986 = vrcp.pop %v1985
  %v1987 = vmul.f32 1.0, %v1986
  %v1989 = vlaneseq
  %v1990 = vshrl.u32 %v1989, 7
  %v1991 = vsub.s32 0, %v1990
  %v1992 = vrot.slane %v1945, %v1991
  %v1994 = vadd.f32 %v1934, %v1992
  %v1995 = vmul.f32 %v1980, %v1994
  %v1996 = vadd.f32 %v1943, %v1995
  %v1997 = vtanh.pop %v1996
  %v1998 = vsub.f32 1.0, %v1987
  %v1999 = vmul.f32 %v1998, %v1997
  %v2000 = vmul.f32 %v1987, %v1530
  %v2001 = vadd.f32 %v1999, %v2000
  %vm2002 = vcmp.gt.s32.totalorder %v552, 2
  %vm2003 = vcmp.gt.s32.totalorder %v552, 5
  %v2004 = vsel %vm2002, 1, 0
  %2005 = vset.pattern.permute.xlu0 0
  %2006 = vperm.xlu0 %2005, %v2004
  %v2007 = vpop.permute.xlu0 %2006
  %vm2008 = vcmp.eq.s32.totalorder %v2007, 1
  %v2009 = vsel %vm2008, %v1973, 0.0
  %s2010 = scalar_lea.vmem %s8, 32
  %2011 = vst [vmem:[%s2010] sm:$0xff] %v2009
  %v2012 = vsel %vm2003, 1, 0
  %2013 = vset.pattern.permute.xlu0 0
  %2014 = vperm.xlu0 %2013, %v2012
  %v2015 = vpop.permute.xlu0 %2014
  %vm2016 = vcmp.eq.s32.totalorder %v2015, 1
  %v2017 = vsel %vm2016, %v2001, 0.0
  %s2018 = scalar_lea.vmem %s8, 80
  %2019 = vst [vmem:[%s2018 + $0x8] sm:$0xff] %v2017
  %v2020 = vsel %vm2008, %v1973, %v1529
  %v2021 = vsel %vm2016, %v2001, %v1530
  %v2022 = vld [vmem:[%s4] sm:$0xff]
  %v2023 = vld [vmem:[%s4 + $0x8] sm:$0xff]
  %v2024 = vld [vmem:[%s4 + $0x10] sm:$0xff]
  %v2025 = vld [vmem:[%s4 + $0x18] sm:$0xff]
  %v2026 = vld [vmem:[%s4 + $0x20] sm:$0xff]
  %v2027 = vld [vmem:[%s4 + $0x28] sm:$0xff]
  %v2028 = vld [vmem:[%s4 + $0x30] sm:$0xff]
  %v2029 = vld [vmem:[%s4 + $0x38] sm:$0xff]
  %v2030 = vld [vmem:[%s4 + $0x40] sm:$0xff]
  %v2031 = vld [vmem:[%s4 + $0x48] sm:$0xff]
  %v2032 = vld [vmem:[%s4 + $0x50] sm:$0xff]
  %v2033 = vld [vmem:[%s4 + $0x58] sm:$0xff]
  %v2034 = vld [vmem:[%s4 + $0x60] sm:$0xff]
  %v2035 = vld [vmem:[%s4 + $0x68] sm:$0xff]
  %v2036 = vld [vmem:[%s4 + $0x70] sm:$0xff]
  %v2037 = vld [vmem:[%s4 + $0x78] sm:$0xff]
  %v2038 = vld [vmem:[%s4 + $0x80] sm:$0xff]
  %v2039 = vld [vmem:[%s4 + $0x88] sm:$0xff]
  %v2040 = vld [vmem:[%s4 + $0x90] sm:$0xff]
  %v2041 = vld [vmem:[%s4 + $0x98] sm:$0xff]
  %v2042 = vld [vmem:[%s4 + $0xa0] sm:$0xff]
  %v2043 = vld [vmem:[%s4 + $0xa8] sm:$0xff]
  %v2044 = vld [vmem:[%s4 + $0xb0] sm:$0xff]
  %v2045 = vld [vmem:[%s4 + $0xb8] sm:$0xff]
  %v2046 = vld [vmem:[%s4 + $0xc0] sm:$0xff]
  %v2047 = vld [vmem:[%s4 + $0xc8] sm:$0xff]
  %v2048 = vld [vmem:[%s4 + $0xd0] sm:$0xff]
  %v2049 = vld [vmem:[%s4 + $0xd8] sm:$0xff]
  %v2050 = vld [vmem:[%s4 + $0xe0] sm:$0xff]
  %v2051 = vld [vmem:[%s4 + $0xe8] sm:$0xff]
  %v2052 = vld [vmem:[%s4 + $0xf0] sm:$0xff]
  %v2053 = vld [vmem:[%s4 + $0xf8] sm:$0xff]
  %v2054 = vld [vmem:[%s4 + $0x100] sm:$0xff]
  %v2055 = vld [vmem:[%s4 + $0x108] sm:$0xff]
  %v2056 = vld [vmem:[%s4 + $0x110] sm:$0xff]
  %v2057 = vld [vmem:[%s4 + $0x118] sm:$0xff]
  %v2058 = vld [vmem:[%s4 + $0x120] sm:$0xff]
  %v2059 = vld [vmem:[%s4 + $0x128] sm:$0xff]
  %v2060 = vld [vmem:[%s4 + $0x130] sm:$0xff]
  %v2061 = vld [vmem:[%s4 + $0x138] sm:$0xff]
  %v2062 = vld [vmem:[%s4 + $0x140] sm:$0xff]
  %v2063 = vld [vmem:[%s4 + $0x148] sm:$0xff]
  %v2064 = vld [vmem:[%s4 + $0x150] sm:$0xff]
  %v2065 = vld [vmem:[%s4 + $0x158] sm:$0xff]
  %v2066 = vld [vmem:[%s4 + $0x160] sm:$0xff]
  %v2067 = vld [vmem:[%s4 + $0x168] sm:$0xff]
  %v2068 = vld [vmem:[%s4 + $0x170] sm:$0xff]
  %v2069 = vld [vmem:[%s4 + $0x178] sm:$0xff]
  %v2070 = vld [vmem:[%s4 + $0x180] sm:$0xff]
  %v2071 = vld [vmem:[%s4 + $0x188] sm:$0xff]
  %v2072 = vld [vmem:[%s4 + $0x190] sm:$0xff]
  %v2073 = vld [vmem:[%s4 + $0x198] sm:$0xff]
  %v2074 = vld [vmem:[%s4 + $0x1a0] sm:$0xff]
  %v2075 = vld [vmem:[%s4 + $0x1a8] sm:$0xff]
  %v2076 = vld [vmem:[%s4 + $0x1b0] sm:$0xff]
  %v2077 = vld [vmem:[%s4 + $0x1b8] sm:$0xff]
  %v2078 = vld [vmem:[%s4 + $0x1c0] sm:$0xff]
  %v2079 = vld [vmem:[%s4 + $0x1c8] sm:$0xff]
  %v2080 = vld [vmem:[%s4 + $0x1d0] sm:$0xff]
  %v2081 = vld [vmem:[%s4 + $0x1d8] sm:$0xff]
  %v2082 = vld [vmem:[%s4 + $0x1e0] sm:$0xff]
  %v2083 = vld [vmem:[%s4 + $0x1e8] sm:$0xff]
  %v2084 = vld [vmem:[%s4 + $0x1f0] sm:$0xff]
  %v2085 = vld [vmem:[%s4 + $0x1f8] sm:$0xff]
  %v2086 = vld [vmem:[%s4 + $0x200] sm:$0xff]
  %v2087 = vld [vmem:[%s4 + $0x208] sm:$0xff]
  %v2088 = vld [vmem:[%s4 + $0x210] sm:$0xff]
  %v2089 = vld [vmem:[%s4 + $0x218] sm:$0xff]
  %v2090 = vld [vmem:[%s4 + $0x220] sm:$0xff]
  %v2091 = vld [vmem:[%s4 + $0x228] sm:$0xff]
  %v2092 = vld [vmem:[%s4 + $0x230] sm:$0xff]
  %v2093 = vld [vmem:[%s4 + $0x238] sm:$0xff]
  %v2094 = vld [vmem:[%s4 + $0x240] sm:$0xff]
  %v2095 = vld [vmem:[%s4 + $0x248] sm:$0xff]
  %v2096 = vld [vmem:[%s4 + $0x250] sm:$0xff]
  %v2097 = vld [vmem:[%s4 + $0x258] sm:$0xff]
  %v2098 = vld [vmem:[%s4 + $0x260] sm:$0xff]
  %v2099 = vld [vmem:[%s4 + $0x268] sm:$0xff]
  %v2100 = vld [vmem:[%s4 + $0x270] sm:$0xff]
  %v2101 = vld [vmem:[%s4 + $0x278] sm:$0xff]
  %v2102 = vld [vmem:[%s4 + $0x280] sm:$0xff]
  %v2103 = vld [vmem:[%s4 + $0x288] sm:$0xff]
  %v2104 = vld [vmem:[%s4 + $0x290] sm:$0xff]
  %v2105 = vld [vmem:[%s4 + $0x298] sm:$0xff]
  %v2106 = vld [vmem:[%s4 + $0x2a0] sm:$0xff]
  %v2107 = vld [vmem:[%s4 + $0x2a8] sm:$0xff]
  %v2108 = vld [vmem:[%s4 + $0x2b0] sm:$0xff]
  %v2109 = vld [vmem:[%s4 + $0x2b8] sm:$0xff]
  %v2110 = vld [vmem:[%s4 + $0x2c0] sm:$0xff]
  %v2111 = vld [vmem:[%s4 + $0x2c8] sm:$0xff]
  %v2112 = vld [vmem:[%s4 + $0x2d0] sm:$0xff]
  %v2113 = vld [vmem:[%s4 + $0x2d8] sm:$0xff]
  %v2114 = vld [vmem:[%s4 + $0x2e0] sm:$0xff]
  %v2115 = vld [vmem:[%s4 + $0x2e8] sm:$0xff]
  %v2116 = vld [vmem:[%s4 + $0x2f0] sm:$0xff]
  %v2117 = vld [vmem:[%s4 + $0x2f8] sm:$0xff]
  %v2118 = vld [vmem:[%s4 + $0x300] sm:$0xff]
  %v2119 = vld [vmem:[%s4 + $0x308] sm:$0xff]
  %v2120 = vld [vmem:[%s4 + $0x310] sm:$0xff]
  %v2121 = vld [vmem:[%s4 + $0x318] sm:$0xff]
  %v2122 = vld [vmem:[%s4 + $0x320] sm:$0xff]
  %v2123 = vld [vmem:[%s4 + $0x328] sm:$0xff]
  %v2124 = vld [vmem:[%s4 + $0x330] sm:$0xff]
  %v2125 = vld [vmem:[%s4 + $0x338] sm:$0xff]
  %v2126 = vld [vmem:[%s4 + $0x340] sm:$0xff]
  %v2127 = vld [vmem:[%s4 + $0x348] sm:$0xff]
  %v2128 = vld [vmem:[%s4 + $0x350] sm:$0xff]
  %v2129 = vld [vmem:[%s4 + $0x358] sm:$0xff]
  %v2130 = vld [vmem:[%s4 + $0x360] sm:$0xff]
  %v2131 = vld [vmem:[%s4 + $0x368] sm:$0xff]
  %v2132 = vld [vmem:[%s4 + $0x370] sm:$0xff]
  %v2133 = vld [vmem:[%s4 + $0x378] sm:$0xff]
  %v2134 = vld [vmem:[%s4 + $0x380] sm:$0xff]
  %v2135 = vld [vmem:[%s4 + $0x388] sm:$0xff]
  %v2136 = vld [vmem:[%s4 + $0x390] sm:$0xff]
  %v2137 = vld [vmem:[%s4 + $0x398] sm:$0xff]
  %v2138 = vld [vmem:[%s4 + $0x3a0] sm:$0xff]
  %v2139 = vld [vmem:[%s4 + $0x3a8] sm:$0xff]
  %v2140 = vld [vmem:[%s4 + $0x3b0] sm:$0xff]
  %v2141 = vld [vmem:[%s4 + $0x3b8] sm:$0xff]
  %v2142 = vld [vmem:[%s4 + $0x3c0] sm:$0xff]
  %v2143 = vld [vmem:[%s4 + $0x3c8] sm:$0xff]
  %v2144 = vld [vmem:[%s4 + $0x3d0] sm:$0xff]
  %v2145 = vld [vmem:[%s4 + $0x3d8] sm:$0xff]
  %v2146 = vld [vmem:[%s4 + $0x3e0] sm:$0xff]
  %v2147 = vld [vmem:[%s4 + $0x3e8] sm:$0xff]
  %v2148 = vld [vmem:[%s4 + $0x3f0] sm:$0xff]
  %v2149 = vld [vmem:[%s4 + $0x3f8] sm:$0xff]
  %v2150 = vld [vmem:[%s4 + $0x400] sm:$0xff]
  %v2151 = vld [vmem:[%s4 + $0x408] sm:$0xff]
  %v2152 = vld [vmem:[%s4 + $0x410] sm:$0xff]
  %v2153 = vld [vmem:[%s4 + $0x418] sm:$0xff]
  %v2154 = vld [vmem:[%s4 + $0x420] sm:$0xff]
  %v2155 = vld [vmem:[%s4 + $0x428] sm:$0xff]
  %v2156 = vld [vmem:[%s4 + $0x430] sm:$0xff]
  %v2157 = vld [vmem:[%s4 + $0x438] sm:$0xff]
  %v2158 = vld [vmem:[%s4 + $0x440] sm:$0xff]
  %v2159 = vld [vmem:[%s4 + $0x448] sm:$0xff]
  %v2160 = vld [vmem:[%s4 + $0x450] sm:$0xff]
  %v2161 = vld [vmem:[%s4 + $0x458] sm:$0xff]
  %v2162 = vld [vmem:[%s4 + $0x460] sm:$0xff]
  %v2163 = vld [vmem:[%s4 + $0x468] sm:$0xff]
  %v2164 = vld [vmem:[%s4 + $0x470] sm:$0xff]
  %v2165 = vld [vmem:[%s4 + $0x478] sm:$0xff]
  %v2166 = vld [vmem:[%s4 + $0x480] sm:$0xff]
  %v2167 = vld [vmem:[%s4 + $0x488] sm:$0xff]
  %v2168 = vld [vmem:[%s4 + $0x490] sm:$0xff]
  %v2169 = vld [vmem:[%s4 + $0x498] sm:$0xff]
  %v2170 = vld [vmem:[%s4 + $0x4a0] sm:$0xff]
  %v2171 = vld [vmem:[%s4 + $0x4a8] sm:$0xff]
  %v2172 = vld [vmem:[%s4 + $0x4b0] sm:$0xff]
  %v2173 = vld [vmem:[%s4 + $0x4b8] sm:$0xff]
  %v2174 = vld [vmem:[%s4 + $0x4c0] sm:$0xff]
  %v2175 = vld [vmem:[%s4 + $0x4c8] sm:$0xff]
  %v2176 = vld [vmem:[%s4 + $0x4d0] sm:$0xff]
  %v2177 = vld [vmem:[%s4 + $0x4d8] sm:$0xff]
  %v2178 = vld [vmem:[%s4 + $0x4e0] sm:$0xff]
  %v2179 = vld [vmem:[%s4 + $0x4e8] sm:$0xff]
  %v2180 = vld [vmem:[%s4 + $0x4f0] sm:$0xff]
  %v2181 = vld [vmem:[%s4 + $0x4f8] sm:$0xff]
  %v2182 = vld [vmem:[%s4 + $0x500] sm:$0xff]
  %v2183 = vld [vmem:[%s4 + $0x508] sm:$0xff]
  %v2184 = vld [vmem:[%s4 + $0x510] sm:$0xff]
  %v2185 = vld [vmem:[%s4 + $0x518] sm:$0xff]
  %v2186 = vld [vmem:[%s4 + $0x520] sm:$0xff]
  %v2187 = vld [vmem:[%s4 + $0x528] sm:$0xff]
  %v2188 = vld [vmem:[%s4 + $0x530] sm:$0xff]
  %v2189 = vld [vmem:[%s4 + $0x538] sm:$0xff]
  %v2190 = vld [vmem:[%s4 + $0x540] sm:$0xff]
  %v2191 = vld [vmem:[%s4 + $0x548] sm:$0xff]
  %v2192 = vld [vmem:[%s4 + $0x550] sm:$0xff]
  %v2193 = vld [vmem:[%s4 + $0x558] sm:$0xff]
  %v2194 = vld [vmem:[%s4 + $0x560] sm:$0xff]
  %v2195 = vld [vmem:[%s4 + $0x568] sm:$0xff]
  %v2196 = vld [vmem:[%s4 + $0x570] sm:$0xff]
  %v2197 = vld [vmem:[%s4 + $0x578] sm:$0xff]
  %v2198 = vld [vmem:[%s4 + $0x580] sm:$0xff]
  %v2199 = vld [vmem:[%s4 + $0x588] sm:$0xff]
  %v2200 = vld [vmem:[%s4 + $0x590] sm:$0xff]
  %v2201 = vld [vmem:[%s4 + $0x598] sm:$0xff]
  %v2202 = vld [vmem:[%s4 + $0x5a0] sm:$0xff]
  %v2203 = vld [vmem:[%s4 + $0x5a8] sm:$0xff]
  %v2204 = vld [vmem:[%s4 + $0x5b0] sm:$0xff]
  %v2205 = vld [vmem:[%s4 + $0x5b8] sm:$0xff]
  %v2206 = vld [vmem:[%s4 + $0x5c0] sm:$0xff]
  %v2207 = vld [vmem:[%s4 + $0x5c8] sm:$0xff]
  %v2208 = vld [vmem:[%s4 + $0x5d0] sm:$0xff]
  %v2209 = vld [vmem:[%s4 + $0x5d8] sm:$0xff]
  %v2210 = vld [vmem:[%s4 + $0x5e0] sm:$0xff]
  %v2211 = vld [vmem:[%s4 + $0x5e8] sm:$0xff]
  %v2212 = vld [vmem:[%s4 + $0x5f0] sm:$0xff]
  %v2213 = vld [vmem:[%s4 + $0x5f8] sm:$0xff]
  %2214 = vmatprep.subr.mxu0 %v2113
  %2215 = vmatpush1.msra.mxu0 %v2112
  %2216 = vmatprep.subr.mxu0 %v2107
  %2217 = vmatpush1.msra.mxu0 %v2106
  %2218 = vmatprep.subr.mxu0 %v2101
  %2219 = vmatpush1.msra.mxu0 %v2100
  %2220 = vmatprep.subr.mxu0 %v2095
  %2221 = vmatpush1.msra.mxu0 %v2094
  %2222 = vmatprep.subr.mxu0 %v2089
  %2223 = vmatpush1.msra.mxu0 %v2088
  %2224 = vmatprep.subr.mxu0 %v2083
  %2225 = vmatpush1.msra.mxu0 %v2082
  %2226 = vmatprep.subr.mxu0 %v2077
  %2227 = vmatpush1.msra.mxu0 %v2076
  %2228 = vmatprep.subr.mxu0 %v2071
  %2229 = vmatpush1.msra.mxu0 %v2070
  %2230 = vmatprep.subr.mxu0 %v2065
  %2231 = vmatpush1.msra.mxu0 %v2064
  %2232 = vmatprep.subr.mxu0 %v2059
  %2233 = vmatpush1.msra.mxu0 %v2058
  %2234 = vmatprep.subr.mxu0 %v2053
  %2235 = vmatpush1.msra.mxu0 %v2052
  %2236 = vmatprep.subr.mxu0 %v2047
  %2237 = vmatpush1.msra.mxu0 %v2046
  %2238 = vmatprep.subr.mxu0 %v2041
  %2239 = vmatpush1.msra.mxu0 %v2040
  %2240 = vmatprep.subr.mxu0 %v2035
  %2241 = vmatpush1.msra.mxu0 %v2034
  %2242 = vmatprep.subr.mxu0 %v2029
  %2243 = vmatpush1.msra.mxu0 %v2028
  %2244 = vmatprep.subr.mxu0 %v2023
  %2245 = vmatpush1.msra.mxu0 %v2022
  %2246 = vmatprep.subr.mxu0 %v2209
  %2247 = vmatpush2.msra.mxu0 %v2208
  %2248 = vmatprep.subr.mxu0 %v2203
  %2249 = vmatpush2.msra.mxu0 %v2202
  %2250 = vmatprep.subr.mxu0 %v2197
  %2251 = vmatpush2.msra.mxu0 %v2196
  %2252 = vmatprep.subr.mxu0 %v2191
  %2253 = vmatpush2.msra.mxu0 %v2190
  %2254 = vmatprep.subr.mxu0 %v2185
  %2255 = vmatpush2.msra.mxu0 %v2184
  %2256 = vmatprep.subr.mxu0 %v2179
  %2257 = vmatpush2.msra.mxu0 %v2178
  %2258 = vmatprep.subr.mxu0 %v2173
  %2259 = vmatpush2.msra.mxu0 %v2172
  %2260 = vmatprep.subr.mxu0 %v2167
  %2261 = vmatpush2.msra.mxu0 %v2166
  %2262 = vmatprep.subr.mxu0 %v2161
  %2263 = vmatpush2.msra.mxu0 %v2160
  %2264 = vmatprep.subr.mxu0 %v2155
  %2265 = vmatpush2.msra.mxu0 %v2154
  %2266 = vmatprep.subr.mxu0 %v2149
  %2267 = vmatpush2.msra.mxu0 %v2148
  %2268 = vmatprep.subr.mxu0 %v2143
  %2269 = vmatpush2.msra.mxu0 %v2142
  %2270 = vmatprep.subr.mxu0 %v2137
  %2271 = vmatpush2.msra.mxu0 %v2136
  %2272 = vmatprep.subr.mxu0 %v2131
  %2273 = vmatpush2.msra.mxu0 %v2130
  %2274 = vmatprep.subr.mxu0 %v2125
  %2275 = vmatpush2.msra.mxu0 %v2124
  %2276 = vmatprep.subr.mxu0 %v2119
  %2277 = vmatpush2.msra.mxu0 %v2118
  %2278 = vmatprep.mubr.f32.mxu0 %v2021
  %2279 = vmatmul.mubr.f32.gmra.mxu0 %v2020
  %v2280 = vpop.f32.mrf.mxu0
  %v2281 = vadd.f32 0.0, %v2280
  %v2282 = vpop.f32.mrf.mxu0
  %v2283 = vadd.f32 0.0, %v2282
  %2284 = vdwg.mxu0
  %2285 = vmatprep.subr.mxu0 %v2115
  %2286 = vmatpush1.msra.mxu0 %v2114
  %2287 = vmatprep.subr.mxu0 %v2109
  %2288 = vmatpush1.msra.mxu0 %v2108
  %2289 = vmatprep.subr.mxu0 %v2103
  %2290 = vmatpush1.msra.mxu0 %v2102
  %2291 = vmatprep.subr.mxu0 %v2097
  %2292 = vmatpush1.msra.mxu0 %v2096
  %2293 = vmatprep.subr.mxu0 %v2091
  %2294 = vmatpush1.msra.mxu0 %v2090
  %2295 = vmatprep.subr.mxu0 %v2085
  %2296 = vmatpush1.msra.mxu0 %v2084
  %2297 = vmatprep.subr.mxu0 %v2079
  %2298 = vmatpush1.msra.mxu0 %v2078
  %2299 = vmatprep.subr.mxu0 %v2073
  %2300 = vmatpush1.msra.mxu0 %v2072
  %2301 = vmatprep.subr.mxu0 %v2067
  %2302 = vmatpush1.msra.mxu0 %v2066
  %2303 = vmatprep.subr.mxu0 %v2061
  %2304 = vmatpush1.msra.mxu0 %v2060
  %2305 = vmatprep.subr.mxu0 %v2055
  %2306 = vmatpush1.msra.mxu0 %v2054
  %2307 = vmatprep.subr.mxu0 %v2049
  %2308 = vmatpush1.msra.mxu0 %v2048
  %2309 = vmatprep.subr.mxu0 %v2043
  %2310 = vmatpush1.msra.mxu0 %v2042
  %2311 = vmatprep.subr.mxu0 %v2037
  %2312 = vmatpush1.msra.mxu0 %v2036
  %2313 = vmatprep.subr.mxu0 %v2031
  %2314 = vmatpush1.msra.mxu0 %v2030
  %2315 = vmatprep.subr.mxu0 %v2025
  %2316 = vmatpush1.msra.mxu0 %v2024
  %2317 = vmatprep.subr.mxu0 %v2211
  %2318 = vmatpush2.msra.mxu0 %v2210
  %2319 = vmatprep.subr.mxu0 %v2205
  %2320 = vmatpush2.msra.mxu0 %v2204
  %2321 = vmatprep.subr.mxu0 %v2199
  %2322 = vmatpush2.msra.mxu0 %v2198
  %2323 = vmatprep.subr.mxu0 %v2193
  %2324 = vmatpush2.msra.mxu0 %v2192
  %2325 = vmatprep.subr.mxu0 %v2187
  %2326 = vmatpush2.msra.mxu0 %v2186
  %2327 = vmatprep.subr.mxu0 %v2181
  %2328 = vmatpush2.msra.mxu0 %v2180
  %2329 = vmatprep.subr.mxu0 %v2175
  %2330 = vmatpush2.msra.mxu0 %v2174
  %2331 = vmatprep.subr.mxu0 %v2169
  %2332 = vmatpush2.msra.mxu0 %v2168
  %2333 = vmatprep.subr.mxu0 %v2163
  %2334 = vmatpush2.msra.mxu0 %v2162
  %2335 = vmatprep.subr.mxu0 %v2157
  %2336 = vmatpush2.msra.mxu0 %v2156
  %2337 = vmatprep.subr.mxu0 %v2151
  %2338 = vmatpush2.msra.mxu0 %v2150
  %2339 = vmatprep.subr.mxu0 %v2145
  %2340 = vmatpush2.msra.mxu0 %v2144
  %2341 = vmatprep.subr.mxu0 %v2139
  %2342 = vmatpush2.msra.mxu0 %v2138
  %2343 = vmatprep.subr.mxu0 %v2133
  %2344 = vmatpush2.msra.mxu0 %v2132
  %2345 = vmatprep.subr.mxu0 %v2127
  %2346 = vmatpush2.msra.mxu0 %v2126
  %2347 = vmatprep.subr.mxu0 %v2121
  %2348 = vmatpush2.msra.mxu0 %v2120
  %2349 = vmatprep.mubr.f32.mxu0 %v2021
  %2350 = vmatmul.mubr.f32.gmra.mxu0 %v2020
  %v2351 = vpop.f32.mrf.mxu0
  %v2352 = vadd.f32 0.0, %v2351
  %v2353 = vpop.f32.mrf.mxu0
  %v2354 = vadd.f32 0.0, %v2353
  %2355 = vdwg.mxu0
  %2356 = vmatprep.subr.mxu0 %v2117
  %2357 = vmatpush1.msra.mxu0 %v2116
  %2358 = vmatprep.subr.mxu0 %v2111
  %2359 = vmatpush1.msra.mxu0 %v2110
  %2360 = vmatprep.subr.mxu0 %v2105
  %2361 = vmatpush1.msra.mxu0 %v2104
  %2362 = vmatprep.subr.mxu0 %v2099
  %2363 = vmatpush1.msra.mxu0 %v2098
  %2364 = vmatprep.subr.mxu0 %v2093
  %2365 = vmatpush1.msra.mxu0 %v2092
  %2366 = vmatprep.subr.mxu0 %v2087
  %2367 = vmatpush1.msra.mxu0 %v2086
  %2368 = vmatprep.subr.mxu0 %v2081
  %2369 = vmatpush1.msra.mxu0 %v2080
  %2370 = vmatprep.subr.mxu0 %v2075
  %2371 = vmatpush1.msra.mxu0 %v2074
  %2372 = vmatprep.subr.mxu0 %v2069
  %2373 = vmatpush1.msra.mxu0 %v2068
  %2374 = vmatprep.subr.mxu0 %v2063
  %2375 = vmatpush1.msra.mxu0 %v2062
  %2376 = vmatprep.subr.mxu0 %v2057
  %2377 = vmatpush1.msra.mxu0 %v2056
  %2378 = vmatprep.subr.mxu0 %v2051
  %2379 = vmatpush1.msra.mxu0 %v2050
  %2380 = vmatprep.subr.mxu0 %v2045
  %2381 = vmatpush1.msra.mxu0 %v2044
  %2382 = vmatprep.subr.mxu0 %v2039
  %2383 = vmatpush1.msra.mxu0 %v2038
  %2384 = vmatprep.subr.mxu0 %v2033
  %2385 = vmatpush1.msra.mxu0 %v2032
  %2386 = vmatprep.subr.mxu0 %v2027
  %2387 = vmatpush1.msra.mxu0 %v2026
  %2388 = vmatprep.subr.mxu0 %v2213
  %2389 = vmatpush2.msra.mxu0 %v2212
  %2390 = vmatprep.subr.mxu0 %v2207
  %2391 = vmatpush2.msra.mxu0 %v2206
  %2392 = vmatprep.subr.mxu0 %v2201
  %2393 = vmatpush2.msra.mxu0 %v2200
  %2394 = vmatprep.subr.mxu0 %v2195
  %2395 = vmatpush2.msra.mxu0 %v2194
  %2396 = vmatprep.subr.mxu0 %v2189
  %2397 = vmatpush2.msra.mxu0 %v2188
  %2398 = vmatprep.subr.mxu0 %v2183
  %2399 = vmatpush2.msra.mxu0 %v2182
  %2400 = vmatprep.subr.mxu0 %v2177
  %2401 = vmatpush2.msra.mxu0 %v2176
  %2402 = vmatprep.subr.mxu0 %v2171
  %2403 = vmatpush2.msra.mxu0 %v2170
  %2404 = vmatprep.subr.mxu0 %v2165
  %2405 = vmatpush2.msra.mxu0 %v2164
  %2406 = vmatprep.subr.mxu0 %v2159
  %2407 = vmatpush2.msra.mxu0 %v2158
  %2408 = vmatprep.subr.mxu0 %v2153
  %2409 = vmatpush2.msra.mxu0 %v2152
  %2410 = vmatprep.subr.mxu0 %v2147
  %2411 = vmatpush2.msra.mxu0 %v2146
  %2412 = vmatprep.subr.mxu0 %v2141
  %2413 = vmatpush2.msra.mxu0 %v2140
  %2414 = vmatprep.subr.mxu0 %v2135
  %2415 = vmatpush2.msra.mxu0 %v2134
  %2416 = vmatprep.subr.mxu0 %v2129
  %2417 = vmatpush2.msra.mxu0 %v2128
  %2418 = vmatprep.subr.mxu0 %v2123
  %2419 = vmatpush2.msra.mxu0 %v2122
  %2420 = vmatprep.mubr.f32.mxu0 %v2021
  %2421 = vmatmul.mubr.f32.gmra.mxu0 %v2020
  %v2422 = vpop.f32.mrf.mxu0
  %v2423 = vadd.f32 0.0, %v2422
  %v2424 = vpop.f32.mrf.mxu0
  %v2425 = vadd.f32 0.0, %v2424
  %2426 = vdwg.mxu0
  %s2427 = scalar_lea.vmem [#allocation2], 144
  %v2428 = vld [vmem:[%s2427] sm:$0xff]
  %v2429 = vld [vmem:[%s2427 + $0x8] sm:$0xff]
  %v2430 = vld [vmem:[%s2427 + $0x10] sm:$0xff]
  %s2431 = scalar_lea.vmem [#allocation2], 192
  %v2432 = vld [vmem:[%s2431 + $0x18] sm:$0xff]
  %v2433 = vld [vmem:[%s2431 + $0x20] sm:$0xff]
  %v2434 = vld [vmem:[%s2431 + $0x28] sm:$0xff]
  %v2435 = vld [vmem:[%s5] sm:$0x1]
  %v2436 = vld [vmem:[%s5 + $0x1] sm:$0x1]
  %v2437 = vadd.f32 %v2428, %v2281
  %v2438 = vxor.u32 %v2437, 2147483648
  %v2439 = vmul.f32 %v2438, 1.442695
  %v2440 = vpow.pop %v2439
  %v2441 = vadd.f32 %v2440, 1.0
  %v2442 = vrcp.pop %v2441
  %v2443 = vmul.f32 1.0, %v2442
  %v2444 = vadd.f32 %v2429, %v2283
  %v2445 = vxor.u32 %v2444, 2147483648
  %v2446 = vmul.f32 %v2445, 1.442695
  %v2447 = vpow.pop %v2446
  %v2448 = vadd.f32 %v2447, 1.0
  %v2449 = vrcp.pop %v2448
  %v2450 = vmul.f32 1.0, %v2449
  %v2452 = vlaneseq
  %v2453 = vshrl.u32 %v2452, 7
  %v2454 = vsub.s32 0, %v2453
  %v2455 = vrot.slane %v2435, %v2454
  %v2457 = vadd.f32 %v2352, %v2455
  %v2458 = vmul.f32 %v2443, %v2457
  %v2459 = vadd.f32 %v2430, %v2458
  %v2460 = vtanh.pop %v2459
  %v2461 = vsub.f32 1.0, %v2450
  %v2462 = vmul.f32 %v2461, %v2460
  %v2463 = vmul.f32 %v2450, %v2020
  %v2464 = vadd.f32 %v2462, %v2463
  %v2465 = vadd.f32 %v2432, %v2354
  %v2466 = vxor.u32 %v2465, 2147483648
  %v2467 = vmul.f32 %v2466, 1.442695
  %v2468 = vpow.pop %v2467
  %v2469 = vadd.f32 %v2468, 1.0
  %v2470 = vrcp.pop %v2469
  %v2471 = vmul.f32 1.0, %v2470
  %v2472 = vadd.f32 %v2433, %v2423
  %v2473 = vxor.u32 %v2472, 2147483648
  %v2474 = vmul.f32 %v2473, 1.442695
  %v2475 = vpow.pop %v2474
  %v2476 = vadd.f32 %v2475, 1.0
  %v2477 = vrcp.pop %v2476
  %v2478 = vmul.f32 1.0, %v2477
  %v2480 = vlaneseq
  %v2481 = vshrl.u32 %v2480, 7
  %v2482 = vsub.s32 0, %v2481
  %v2483 = vrot.slane %v2436, %v2482
  %v2485 = vadd.f32 %v2425, %v2483
  %v2486 = vmul.f32 %v2471, %v2485
  %v2487 = vadd.f32 %v2434, %v2486
  %v2488 = vtanh.pop %v2487
  %v2489 = vsub.f32 1.0, %v2478
  %v2490 = vmul.f32 %v2489, %v2488
  %v2491 = vmul.f32 %v2478, %v2021
  %v2492 = vadd.f32 %v2490, %v2491
  %vm2493 = vcmp.gt.s32.totalorder %v552, 3
  %vm2494 = vcmp.gt.s32.totalorder %v552, 4
  %v2495 = vsel %vm2493, 1, 0
  %2496 = vset.pattern.permute.xlu0 0
  %2497 = vperm.xlu0 %2496, %v2495
  %v2498 = vpop.permute.xlu0 %2497
  %vm2499 = vcmp.eq.s32.totalorder %v2498, 1
  %v2500 = vsel %vm2499, %v2464, 0.0
  %s2501 = scalar_lea.vmem %s8, 48
  %2502 = vst [vmem:[%s2501] sm:$0xff] %v2500
  %v2503 = vsel %vm2494, 1, 0
  %2504 = vset.pattern.permute.xlu0 0
  %2505 = vperm.xlu0 %2504, %v2503
  %v2506 = vpop.permute.xlu0 %2505
  %vm2507 = vcmp.eq.s32.totalorder %v2506, 1
  %v2508 = vsel %vm2507, %v2492, 0.0
  %s2509 = scalar_lea.vmem %s8, 64
  %2510 = vst [vmem:[%s2509 + $0x8] sm:$0xff] %v2508
  %v2511 = vsel %vm2499, %v2464, %v2020
  %v2512 = vsel %vm2507, %v2492, %v2021
  %v2513 = vld [vmem:[%s4] sm:$0xff]
  %v2514 = vld [vmem:[%s4 + $0x8] sm:$0xff]
  %v2515 = vld [vmem:[%s4 + $0x10] sm:$0xff]
  %v2516 = vld [vmem:[%s4 + $0x18] sm:$0xff]
  %v2517 = vld [vmem:[%s4 + $0x20] sm:$0xff]
  %v2518 = vld [vmem:[%s4 + $0x28] sm:$0xff]
  %v2519 = vld [vmem:[%s4 + $0x30] sm:$0xff]
  %v2520 = vld [vmem:[%s4 + $0x38] sm:$0xff]
  %v2521 = vld [vmem:[%s4 + $0x40] sm:$0xff]
  %v2522 = vld [vmem:[%s4 + $0x48] sm:$0xff]
  %v2523 = vld [vmem:[%s4 + $0x50] sm:$0xff]
  %v2524 = vld [vmem:[%s4 + $0x58] sm:$0xff]
  %v2525 = vld [vmem:[%s4 + $0x60] sm:$0xff]
  %v2526 = vld [vmem:[%s4 + $0x68] sm:$0xff]
  %v2527 = vld [vmem:[%s4 + $0x70] sm:$0xff]
  %v2528 = vld [vmem:[%s4 + $0x78] sm:$0xff]
  %v2529 = vld [vmem:[%s4 + $0x80] sm:$0xff]
  %v2530 = vld [vmem:[%s4 + $0x88] sm:$0xff]
  %v2531 = vld [vmem:[%s4 + $0x90] sm:$0xff]
  %v2532 = vld [vmem:[%s4 + $0x98] sm:$0xff]
  %v2533 = vld [vmem:[%s4 + $0xa0] sm:$0xff]
  %v2534 = vld [vmem:[%s4 + $0xa8] sm:$0xff]
  %v2535 = vld [vmem:[%s4 + $0xb0] sm:$0xff]
  %v2536 = vld [vmem:[%s4 + $0xb8] sm:$0xff]
  %v2537 = vld [vmem:[%s4 + $0xc0] sm:$0xff]
  %v2538 = vld [vmem:[%s4 + $0xc8] sm:$0xff]
  %v2539 = vld [vmem:[%s4 + $0xd0] sm:$0xff]
  %v2540 = vld [vmem:[%s4 + $0xd8] sm:$0xff]
  %v2541 = vld [vmem:[%s4 + $0xe0] sm:$0xff]
  %v2542 = vld [vmem:[%s4 + $0xe8] sm:$0xff]
  %v2543 = vld [vmem:[%s4 + $0xf0] sm:$0xff]
  %v2544 = vld [vmem:[%s4 + $0xf8] sm:$0xff]
  %v2545 = vld [vmem:[%s4 + $0x100] sm:$0xff]
  %v2546 = vld [vmem:[%s4 + $0x108] sm:$0xff]
  %v2547 = vld [vmem:[%s4 + $0x110] sm:$0xff]
  %v2548 = vld [vmem:[%s4 + $0x118] sm:$0xff]
  %v2549 = vld [vmem:[%s4 + $0x120] sm:$0xff]
  %v2550 = vld [vmem:[%s4 + $0x128] sm:$0xff]
  %v2551 = vld [vmem:[%s4 + $0x130] sm:$0xff]
  %v2552 = vld [vmem:[%s4 + $0x138] sm:$0xff]
  %v2553 = vld [vmem:[%s4 + $0x140] sm:$0xff]
  %v2554 = vld [vmem:[%s4 + $0x148] sm:$0xff]
  %v2555 = vld [vmem:[%s4 + $0x150] sm:$0xff]
  %v2556 = vld [vmem:[%s4 + $0x158] sm:$0xff]
  %v2557 = vld [vmem:[%s4 + $0x160] sm:$0xff]
  %v2558 = vld [vmem:[%s4 + $0x168] sm:$0xff]
  %v2559 = vld [vmem:[%s4 + $0x170] sm:$0xff]
  %v2560 = vld [vmem:[%s4 + $0x178] sm:$0xff]
  %v2561 = vld [vmem:[%s4 + $0x180] sm:$0xff]
  %v2562 = vld [vmem:[%s4 + $0x188] sm:$0xff]
  %v2563 = vld [vmem:[%s4 + $0x190] sm:$0xff]
  %v2564 = vld [vmem:[%s4 + $0x198] sm:$0xff]
  %v2565 = vld [vmem:[%s4 + $0x1a0] sm:$0xff]
  %v2566 = vld [vmem:[%s4 + $0x1a8] sm:$0xff]
  %v2567 = vld [vmem:[%s4 + $0x1b0] sm:$0xff]
  %v2568 = vld [vmem:[%s4 + $0x1b8] sm:$0xff]
  %v2569 = vld [vmem:[%s4 + $0x1c0] sm:$0xff]
  %v2570 = vld [vmem:[%s4 + $0x1c8] sm:$0xff]
  %v2571 = vld [vmem:[%s4 + $0x1d0] sm:$0xff]
  %v2572 = vld [vmem:[%s4 + $0x1d8] sm:$0xff]
  %v2573 = vld [vmem:[%s4 + $0x1e0] sm:$0xff]
  %v2574 = vld [vmem:[%s4 + $0x1e8] sm:$0xff]
  %v2575 = vld [vmem:[%s4 + $0x1f0] sm:$0xff]
  %v2576 = vld [vmem:[%s4 + $0x1f8] sm:$0xff]
  %v2577 = vld [vmem:[%s4 + $0x200] sm:$0xff]
  %v2578 = vld [vmem:[%s4 + $0x208] sm:$0xff]
  %v2579 = vld [vmem:[%s4 + $0x210] sm:$0xff]
  %v2580 = vld [vmem:[%s4 + $0x218] sm:$0xff]
  %v2581 = vld [vmem:[%s4 + $0x220] sm:$0xff]
  %v2582 = vld [vmem:[%s4 + $0x228] sm:$0xff]
  %v2583 = vld [vmem:[%s4 + $0x230] sm:$0xff]
  %v2584 = vld [vmem:[%s4 + $0x238] sm:$0xff]
  %v2585 = vld [vmem:[%s4 + $0x240] sm:$0xff]
  %v2586 = vld [vmem:[%s4 + $0x248] sm:$0xff]
  %v2587 = vld [vmem:[%s4 + $0x250] sm:$0xff]
  %v2588 = vld [vmem:[%s4 + $0x258] sm:$0xff]
  %v2589 = vld [vmem:[%s4 + $0x260] sm:$0xff]
  %v2590 = vld [vmem:[%s4 + $0x268] sm:$0xff]
  %v2591 = vld [vmem:[%s4 + $0x270] sm:$0xff]
  %v2592 = vld [vmem:[%s4 + $0x278] sm:$0xff]
  %v2593 = vld [vmem:[%s4 + $0x280] sm:$0xff]
  %v2594 = vld [vmem:[%s4 + $0x288] sm:$0xff]
  %v2595 = vld [vmem:[%s4 + $0x290] sm:$0xff]
  %v2596 = vld [vmem:[%s4 + $0x298] sm:$0xff]
  %v2597 = vld [vmem:[%s4 + $0x2a0] sm:$0xff]
  %v2598 = vld [vmem:[%s4 + $0x2a8] sm:$0xff]
  %v2599 = vld [vmem:[%s4 + $0x2b0] sm:$0xff]
  %v2600 = vld [vmem:[%s4 + $0x2b8] sm:$0xff]
  %v2601 = vld [vmem:[%s4 + $0x2c0] sm:$0xff]
  %v2602 = vld [vmem:[%s4 + $0x2c8] sm:$0xff]
  %v2603 = vld [vmem:[%s4 + $0x2d0] sm:$0xff]
  %v2604 = vld [vmem:[%s4 + $0x2d8] sm:$0xff]
  %v2605 = vld [vmem:[%s4 + $0x2e0] sm:$0xff]
  %v2606 = vld [vmem:[%s4 + $0x2e8] sm:$0xff]
  %v2607 = vld [vmem:[%s4 + $0x2f0] sm:$0xff]
  %v2608 = vld [vmem:[%s4 + $0x2f8] sm:$0xff]
  %v2609 = vld [vmem:[%s4 + $0x300] sm:$0xff]
  %v2610 = vld [vmem:[%s4 + $0x308] sm:$0xff]
  %v2611 = vld [vmem:[%s4 + $0x310] sm:$0xff]
  %v2612 = vld [vmem:[%s4 + $0x318] sm:$0xff]
  %v2613 = vld [vmem:[%s4 + $0x320] sm:$0xff]
  %v2614 = vld [vmem:[%s4 + $0x328] sm:$0xff]
  %v2615 = vld [vmem:[%s4 + $0x330] sm:$0xff]
  %v2616 = vld [vmem:[%s4 + $0x338] sm:$0xff]
  %v2617 = vld [vmem:[%s4 + $0x340] sm:$0xff]
  %v2618 = vld [vmem:[%s4 + $0x348] sm:$0xff]
  %v2619 = vld [vmem:[%s4 + $0x350] sm:$0xff]
  %v2620 = vld [vmem:[%s4 + $0x358] sm:$0xff]
  %v2621 = vld [vmem:[%s4 + $0x360] sm:$0xff]
  %v2622 = vld [vmem:[%s4 + $0x368] sm:$0xff]
  %v2623 = vld [vmem:[%s4 + $0x370] sm:$0xff]
  %v2624 = vld [vmem:[%s4 + $0x378] sm:$0xff]
  %v2625 = vld [vmem:[%s4 + $0x380] sm:$0xff]
  %v2626 = vld [vmem:[%s4 + $0x388] sm:$0xff]
  %v2627 = vld [vmem:[%s4 + $0x390] sm:$0xff]
  %v2628 = vld [vmem:[%s4 + $0x398] sm:$0xff]
  %v2629 = vld [vmem:[%s4 + $0x3a0] sm:$0xff]
  %v2630 = vld [vmem:[%s4 + $0x3a8] sm:$0xff]
  %v2631 = vld [vmem:[%s4 + $0x3b0] sm:$0xff]
  %v2632 = vld [vmem:[%s4 + $0x3b8] sm:$0xff]
  %v2633 = vld [vmem:[%s4 + $0x3c0] sm:$0xff]
  %v2634 = vld [vmem:[%s4 + $0x3c8] sm:$0xff]
  %v2635 = vld [vmem:[%s4 + $0x3d0] sm:$0xff]
  %v2636 = vld [vmem:[%s4 + $0x3d8] sm:$0xff]
  %v2637 = vld [vmem:[%s4 + $0x3e0] sm:$0xff]
  %v2638 = vld [vmem:[%s4 + $0x3e8] sm:$0xff]
  %v2639 = vld [vmem:[%s4 + $0x3f0] sm:$0xff]
  %v2640 = vld [vmem:[%s4 + $0x3f8] sm:$0xff]
  %v2641 = vld [vmem:[%s4 + $0x400] sm:$0xff]
  %v2642 = vld [vmem:[%s4 + $0x408] sm:$0xff]
  %v2643 = vld [vmem:[%s4 + $0x410] sm:$0xff]
  %v2644 = vld [vmem:[%s4 + $0x418] sm:$0xff]
  %v2645 = vld [vmem:[%s4 + $0x420] sm:$0xff]
  %v2646 = vld [vmem:[%s4 + $0x428] sm:$0xff]
  %v2647 = vld [vmem:[%s4 + $0x430] sm:$0xff]
  %v2648 = vld [vmem:[%s4 + $0x438] sm:$0xff]
  %v2649 = vld [vmem:[%s4 + $0x440] sm:$0xff]
  %v2650 = vld [vmem:[%s4 + $0x448] sm:$0xff]
  %v2651 = vld [vmem:[%s4 + $0x450] sm:$0xff]
  %v2652 = vld [vmem:[%s4 + $0x458] sm:$0xff]
  %v2653 = vld [vmem:[%s4 + $0x460] sm:$0xff]
  %v2654 = vld [vmem:[%s4 + $0x468] sm:$0xff]
  %v2655 = vld [vmem:[%s4 + $0x470] sm:$0xff]
  %v2656 = vld [vmem:[%s4 + $0x478] sm:$0xff]
  %v2657 = vld [vmem:[%s4 + $0x480] sm:$0xff]
  %v2658 = vld [vmem:[%s4 + $0x488] sm:$0xff]
  %v2659 = vld [vmem:[%s4 + $0x490] sm:$0xff]
  %v2660 = vld [vmem:[%s4 + $0x498] sm:$0xff]
  %v2661 = vld [vmem:[%s4 + $0x4a0] sm:$0xff]
  %v2662 = vld [vmem:[%s4 + $0x4a8] sm:$0xff]
  %v2663 = vld [vmem:[%s4 + $0x4b0] sm:$0xff]
  %v2664 = vld [vmem:[%s4 + $0x4b8] sm:$0xff]
  %v2665 = vld [vmem:[%s4 + $0x4c0] sm:$0xff]
  %v2666 = vld [vmem:[%s4 + $0x4c8] sm:$0xff]
  %v2667 = vld [vmem:[%s4 + $0x4d0] sm:$0xff]
  %v2668 = vld [vmem:[%s4 + $0x4d8] sm:$0xff]
  %v2669 = vld [vmem:[%s4 + $0x4e0] sm:$0xff]
  %v2670 = vld [vmem:[%s4 + $0x4e8] sm:$0xff]
  %v2671 = vld [vmem:[%s4 + $0x4f0] sm:$0xff]
  %v2672 = vld [vmem:[%s4 + $0x4f8] sm:$0xff]
  %v2673 = vld [vmem:[%s4 + $0x500] sm:$0xff]
  %v2674 = vld [vmem:[%s4 + $0x508] sm:$0xff]
  %v2675 = vld [vmem:[%s4 + $0x510] sm:$0xff]
  %v2676 = vld [vmem:[%s4 + $0x518] sm:$0xff]
  %v2677 = vld [vmem:[%s4 + $0x520] sm:$0xff]
  %v2678 = vld [vmem:[%s4 + $0x528] sm:$0xff]
  %v2679 = vld [vmem:[%s4 + $0x530] sm:$0xff]
  %v2680 = vld [vmem:[%s4 + $0x538] sm:$0xff]
  %v2681 = vld [vmem:[%s4 + $0x540] sm:$0xff]
  %v2682 = vld [vmem:[%s4 + $0x548] sm:$0xff]
  %v2683 = vld [vmem:[%s4 + $0x550] sm:$0xff]
  %v2684 = vld [vmem:[%s4 + $0x558] sm:$0xff]
  %v2685 = vld [vmem:[%s4 + $0x560] sm:$0xff]
  %v2686 = vld [vmem:[%s4 + $0x568] sm:$0xff]
  %v2687 = vld [vmem:[%s4 + $0x570] sm:$0xff]
  %v2688 = vld [vmem:[%s4 + $0x578] sm:$0xff]
  %v2689 = vld [vmem:[%s4 + $0x580] sm:$0xff]
  %v2690 = vld [vmem:[%s4 + $0x588] sm:$0xff]
  %v2691 = vld [vmem:[%s4 + $0x590] sm:$0xff]
  %v2692 = vld [vmem:[%s4 + $0x598] sm:$0xff]
  %v2693 = vld [vmem:[%s4 + $0x5a0] sm:$0xff]
  %v2694 = vld [vmem:[%s4 + $0x5a8] sm:$0xff]
  %v2695 = vld [vmem:[%s4 + $0x5b0] sm:$0xff]
  %v2696 = vld [vmem:[%s4 + $0x5b8] sm:$0xff]
  %v2697 = vld [vmem:[%s4 + $0x5c0] sm:$0xff]
  %v2698 = vld [vmem:[%s4 + $0x5c8] sm:$0xff]
  %v2699 = vld [vmem:[%s4 + $0x5d0] sm:$0xff]
  %v2700 = vld [vmem:[%s4 + $0x5d8] sm:$0xff]
  %v2701 = vld [vmem:[%s4 + $0x5e0] sm:$0xff]
  %v2702 = vld [vmem:[%s4 + $0x5e8] sm:$0xff]
  %v2703 = vld [vmem:[%s4 + $0x5f0] sm:$0xff]
  %v2704 = vld [vmem:[%s4 + $0x5f8] sm:$0xff]
  %2705 = vmatprep.subr.mxu0 %v2604
  %2706 = vmatpush1.msra.mxu0 %v2603
  %2707 = vmatprep.subr.mxu0 %v2598
  %2708 = vmatpush1.msra.mxu0 %v2597
  %2709 = vmatprep.subr.mxu0 %v2592
  %2710 = vmatpush1.msra.mxu0 %v2591
  %2711 = vmatprep.subr.mxu0 %v2586
  %2712 = vmatpush1.msra.mxu0 %v2585
  %2713 = vmatprep.subr.mxu0 %v2580
  %2714 = vmatpush1.msra.mxu0 %v2579
  %2715 = vmatprep.subr.mxu0 %v2574
  %2716 = vmatpush1.msra.mxu0 %v2573
  %2717 = vmatprep.subr.mxu0 %v2568
  %2718 = vmatpush1.msra.mxu0 %v2567
  %2719 = vmatprep.subr.mxu0 %v2562
  %2720 = vmatpush1.msra.mxu0 %v2561
  %2721 = vmatprep.subr.mxu0 %v2556
  %2722 = vmatpush1.msra.mxu0 %v2555
  %2723 = vmatprep.subr.mxu0 %v2550
  %2724 = vmatpush1.msra.mxu0 %v2549
  %2725 = vmatprep.subr.mxu0 %v2544
  %2726 = vmatpush1.msra.mxu0 %v2543
  %2727 = vmatprep.subr.mxu0 %v2538
  %2728 = vmatpush1.msra.mxu0 %v2537
  %2729 = vmatprep.subr.mxu0 %v2532
  %2730 = vmatpush1.msra.mxu0 %v2531
  %2731 = vmatprep.subr.mxu0 %v2526
  %2732 = vmatpush1.msra.mxu0 %v2525
  %2733 = vmatprep.subr.mxu0 %v2520
  %2734 = vmatpush1.msra.mxu0 %v2519
  %2735 = vmatprep.subr.mxu0 %v2514
  %2736 = vmatpush1.msra.mxu0 %v2513
  %2737 = vmatprep.subr.mxu0 %v2700
  %2738 = vmatpush2.msra.mxu0 %v2699
  %2739 = vmatprep.subr.mxu0 %v2694
  %2740 = vmatpush2.msra.mxu0 %v2693
  %2741 = vmatprep.subr.mxu0 %v2688
  %2742 = vmatpush2.msra.mxu0 %v2687
  %2743 = vmatprep.subr.mxu0 %v2682
  %2744 = vmatpush2.msra.mxu0 %v2681
  %2745 = vmatprep.subr.mxu0 %v2676
  %2746 = vmatpush2.msra.mxu0 %v2675
  %2747 = vmatprep.subr.mxu0 %v2670
  %2748 = vmatpush2.msra.mxu0 %v2669
  %2749 = vmatprep.subr.mxu0 %v2664
  %2750 = vmatpush2.msra.mxu0 %v2663
  %2751 = vmatprep.subr.mxu0 %v2658
  %2752 = vmatpush2.msra.mxu0 %v2657
  %2753 = vmatprep.subr.mxu0 %v2652
  %2754 = vmatpush2.msra.mxu0 %v2651
  %2755 = vmatprep.subr.mxu0 %v2646
  %2756 = vmatpush2.msra.mxu0 %v2645
  %2757 = vmatprep.subr.mxu0 %v2640
  %2758 = vmatpush2.msra.mxu0 %v2639
  %2759 = vmatprep.subr.mxu0 %v2634
  %2760 = vmatpush2.msra.mxu0 %v2633
  %2761 = vmatprep.subr.mxu0 %v2628
  %2762 = vmatpush2.msra.mxu0 %v2627
  %2763 = vmatprep.subr.mxu0 %v2622
  %2764 = vmatpush2.msra.mxu0 %v2621
  %2765 = vmatprep.subr.mxu0 %v2616
  %2766 = vmatpush2.msra.mxu0 %v2615
  %2767 = vmatprep.subr.mxu0 %v2610
  %2768 = vmatpush2.msra.mxu0 %v2609
  %2769 = vmatprep.mubr.f32.mxu0 %v2512
  %2770 = vmatmul.mubr.f32.gmra.mxu0 %v2511
  %v2771 = vpop.f32.mrf.mxu0
  %v2772 = vadd.f32 0.0, %v2771
  %v2773 = vpop.f32.mrf.mxu0
  %v2774 = vadd.f32 0.0, %v2773
  %2775 = vdwg.mxu0
  %2776 = vmatprep.subr.mxu0 %v2606
  %2777 = vmatpush1.msra.mxu0 %v2605
  %2778 = vmatprep.subr.mxu0 %v2600
  %2779 = vmatpush1.msra.mxu0 %v2599
  %2780 = vmatprep.subr.mxu0 %v2594
  %2781 = vmatpush1.msra.mxu0 %v2593
  %2782 = vmatprep.subr.mxu0 %v2588
  %2783 = vmatpush1.msra.mxu0 %v2587
  %2784 = vmatprep.subr.mxu0 %v2582
  %2785 = vmatpush1.msra.mxu0 %v2581
  %2786 = vmatprep.subr.mxu0 %v2576
  %2787 = vmatpush1.msra.mxu0 %v2575
  %2788 = vmatprep.subr.mxu0 %v2570
  %2789 = vmatpush1.msra.mxu0 %v2569
  %2790 = vmatprep.subr.mxu0 %v2564
  %2791 = vmatpush1.msra.mxu0 %v2563
  %2792 = vmatprep.subr.mxu0 %v2558
  %2793 = vmatpush1.msra.mxu0 %v2557
  %2794 = vmatprep.subr.mxu0 %v2552
  %2795 = vmatpush1.msra.mxu0 %v2551
  %2796 = vmatprep.subr.mxu0 %v2546
  %2797 = vmatpush1.msra.mxu0 %v2545
  %2798 = vmatprep.subr.mxu0 %v2540
  %2799 = vmatpush1.msra.mxu0 %v2539
  %2800 = vmatprep.subr.mxu0 %v2534
  %2801 = vmatpush1.msra.mxu0 %v2533
  %2802 = vmatprep.subr.mxu0 %v2528
  %2803 = vmatpush1.msra.mxu0 %v2527
  %2804 = vmatprep.subr.mxu0 %v2522
  %2805 = vmatpush1.msra.mxu0 %v2521
  %2806 = vmatprep.subr.mxu0 %v2516
  %2807 = vmatpush1.msra.mxu0 %v2515
  %2808 = vmatprep.subr.mxu0 %v2702
  %2809 = vmatpush2.msra.mxu0 %v2701
  %2810 = vmatprep.subr.mxu0 %v2696
  %2811 = vmatpush2.msra.mxu0 %v2695
  %2812 = vmatprep.subr.mxu0 %v2690
  %2813 = vmatpush2.msra.mxu0 %v2689
  %2814 = vmatprep.subr.mxu0 %v2684
  %2815 = vmatpush2.msra.mxu0 %v2683
  %2816 = vmatprep.subr.mxu0 %v2678
  %2817 = vmatpush2.msra.mxu0 %v2677
  %2818 = vmatprep.subr.mxu0 %v2672
  %2819 = vmatpush2.msra.mxu0 %v2671
  %2820 = vmatprep.subr.mxu0 %v2666
  %2821 = vmatpush2.msra.mxu0 %v2665
  %2822 = vmatprep.subr.mxu0 %v2660
  %2823 = vmatpush2.msra.mxu0 %v2659
  %2824 = vmatprep.subr.mxu0 %v2654
  %2825 = vmatpush2.msra.mxu0 %v2653
  %2826 = vmatprep.subr.mxu0 %v2648
  %2827 = vmatpush2.msra.mxu0 %v2647
  %2828 = vmatprep.subr.mxu0 %v2642
  %2829 = vmatpush2.msra.mxu0 %v2641
  %2830 = vmatprep.subr.mxu0 %v2636
  %2831 = vmatpush2.msra.mxu0 %v2635
  %2832 = vmatprep.subr.mxu0 %v2630
  %2833 = vmatpush2.msra.mxu0 %v2629
  %2834 = vmatprep.subr.mxu0 %v2624
  %2835 = vmatpush2.msra.mxu0 %v2623
  %2836 = vmatprep.subr.mxu0 %v2618
  %2837 = vmatpush2.msra.mxu0 %v2617
  %2838 = vmatprep.subr.mxu0 %v2612
  %2839 = vmatpush2.msra.mxu0 %v2611
  %2840 = vmatprep.mubr.f32.mxu0 %v2512
  %2841 = vmatmul.mubr.f32.gmra.mxu0 %v2511
  %v2842 = vpop.f32.mrf.mxu0
  %v2843 = vadd.f32 0.0, %v2842
  %v2844 = vpop.f32.mrf.mxu0
  %v2845 = vadd.f32 0.0, %v2844
  %2846 = vdwg.mxu0
  %2847 = vmatprep.subr.mxu0 %v2608
  %2848 = vmatpush1.msra.mxu0 %v2607
  %2849 = vmatprep.subr.mxu0 %v2602
  %2850 = vmatpush1.msra.mxu0 %v2601
  %2851 = vmatprep.subr.mxu0 %v2596
  %2852 = vmatpush1.msra.mxu0 %v2595
  %2853 = vmatprep.subr.mxu0 %v2590
  %2854 = vmatpush1.msra.mxu0 %v2589
  %2855 = vmatprep.subr.mxu0 %v2584
  %2856 = vmatpush1.msra.mxu0 %v2583
  %2857 = vmatprep.subr.mxu0 %v2578
  %2858 = vmatpush1.msra.mxu0 %v2577
  %2859 = vmatprep.subr.mxu0 %v2572
  %2860 = vmatpush1.msra.mxu0 %v2571
  %2861 = vmatprep.subr.mxu0 %v2566
  %2862 = vmatpush1.msra.mxu0 %v2565
  %2863 = vmatprep.subr.mxu0 %v2560
  %2864 = vmatpush1.msra.mxu0 %v2559
  %2865 = vmatprep.subr.mxu0 %v2554
  %2866 = vmatpush1.msra.mxu0 %v2553
  %2867 = vmatprep.subr.mxu0 %v2548
  %2868 = vmatpush1.msra.mxu0 %v2547
  %2869 = vmatprep.subr.mxu0 %v2542
  %2870 = vmatpush1.msra.mxu0 %v2541
  %2871 = vmatprep.subr.mxu0 %v2536
  %2872 = vmatpush1.msra.mxu0 %v2535
  %2873 = vmatprep.subr.mxu0 %v2530
  %2874 = vmatpush1.msra.mxu0 %v2529
  %2875 = vmatprep.subr.mxu0 %v2524
  %2876 = vmatpush1.msra.mxu0 %v2523
  %2877 = vmatprep.subr.mxu0 %v2518
  %2878 = vmatpush1.msra.mxu0 %v2517
  %2879 = vmatprep.subr.mxu0 %v2704
  %2880 = vmatpush2.msra.mxu0 %v2703
  %2881 = vmatprep.subr.mxu0 %v2698
  %2882 = vmatpush2.msra.mxu0 %v2697
  %2883 = vmatprep.subr.mxu0 %v2692
  %2884 = vmatpush2.msra.mxu0 %v2691
  %2885 = vmatprep.subr.mxu0 %v2686
  %2886 = vmatpush2.msra.mxu0 %v2685
  %2887 = vmatprep.subr.mxu0 %v2680
  %2888 = vmatpush2.msra.mxu0 %v2679
  %2889 = vmatprep.subr.mxu0 %v2674
  %2890 = vmatpush2.msra.mxu0 %v2673
  %2891 = vmatprep.subr.mxu0 %v2668
  %2892 = vmatpush2.msra.mxu0 %v2667
  %2893 = vmatprep.subr.mxu0 %v2662
  %2894 = vmatpush2.msra.mxu0 %v2661
  %2895 = vmatprep.subr.mxu0 %v2656
  %2896 = vmatpush2.msra.mxu0 %v2655
  %2897 = vmatprep.subr.mxu0 %v2650
  %2898 = vmatpush2.msra.mxu0 %v2649
  %2899 = vmatprep.subr.mxu0 %v2644
  %2900 = vmatpush2.msra.mxu0 %v2643
  %2901 = vmatprep.subr.mxu0 %v2638
  %2902 = vmatpush2.msra.mxu0 %v2637
  %2903 = vmatprep.subr.mxu0 %v2632
  %2904 = vmatpush2.msra.mxu0 %v2631
  %2905 = vmatprep.subr.mxu0 %v2626
  %2906 = vmatpush2.msra.mxu0 %v2625
  %2907 = vmatprep.subr.mxu0 %v2620
  %2908 = vmatpush2.msra.mxu0 %v2619
  %2909 = vmatprep.subr.mxu0 %v2614
  %2910 = vmatpush2.msra.mxu0 %v2613
  %2911 = vmatprep.mubr.f32.mxu0 %v2512
  %2912 = vmatmul.mubr.f32.gmra.mxu0 %v2511
  %v2913 = vpop.f32.mrf.mxu0
  %v2914 = vadd.f32 0.0, %v2913
  %v2915 = vpop.f32.mrf.mxu0
  %v2916 = vadd.f32 0.0, %v2915
  %2917 = vdwg.mxu0
  %v2918 = vld [vmem:[%s2431] sm:$0xff]
  %v2919 = vld [vmem:[%s2431 + $0x8] sm:$0xff]
  %v2920 = vld [vmem:[%s2431 + $0x10] sm:$0xff]
  %v2921 = vld [vmem:[%s2427 + $0x18] sm:$0xff]
  %v2922 = vld [vmem:[%s2427 + $0x20] sm:$0xff]
  %v2923 = vld [vmem:[%s2427 + $0x28] sm:$0xff]
  %v2924 = vld [vmem:[%s5] sm:$0x1]
  %v2925 = vld [vmem:[%s5 + $0x1] sm:$0x1]
  %v2926 = vadd.f32 %v2918, %v2772
  %v2927 = vxor.u32 %v2926, 2147483648
  %v2928 = vmul.f32 %v2927, 1.442695
  %v2929 = vpow.pop %v2928
  %v2930 = vadd.f32 %v2929, 1.0
  %v2931 = vrcp.pop %v2930
  %v2932 = vmul.f32 1.0, %v2931
  %v2933 = vadd.f32 %v2919, %v2774
  %v2934 = vxor.u32 %v2933, 2147483648
  %v2935 = vmul.f32 %v2934, 1.442695
  %v2936 = vpow.pop %v2935
  %v2937 = vadd.f32 %v2936, 1.0
  %v2938 = vrcp.pop %v2937
  %v2939 = vmul.f32 1.0, %v2938
  %v2941 = vlaneseq
  %v2942 = vshrl.u32 %v2941, 7
  %v2943 = vsub.s32 0, %v2942
  %v2944 = vrot.slane %v2924, %v2943
  %v2946 = vadd.f32 %v2843, %v2944
  %v2947 = vmul.f32 %v2932, %v2946
  %v2948 = vadd.f32 %v2920, %v2947
  %v2949 = vtanh.pop %v2948
  %v2950 = vsub.f32 1.0, %v2939
  %v2951 = vmul.f32 %v2950, %v2949
  %v2952 = vmul.f32 %v2939, %v2511
  %v2953 = vadd.f32 %v2951, %v2952
  %v2954 = vadd.f32 %v2921, %v2845
  %v2955 = vxor.u32 %v2954, 2147483648
  %v2956 = vmul.f32 %v2955, 1.442695
  %v2957 = vpow.pop %v2956
  %v2958 = vadd.f32 %v2957, 1.0
  %v2959 = vrcp.pop %v2958
  %v2960 = vmul.f32 1.0, %v2959
  %v2961 = vadd.f32 %v2922, %v2914
  %v2962 = vxor.u32 %v2961, 2147483648
  %v2963 = vmul.f32 %v2962, 1.442695
  %v2964 = vpow.pop %v2963
  %v2965 = vadd.f32 %v2964, 1.0
  %v2966 = vrcp.pop %v2965
  %v2967 = vmul.f32 1.0, %v2966
  %v2969 = vlaneseq
  %v2970 = vshrl.u32 %v2969, 7
  %v2971 = vsub.s32 0, %v2970
  %v2972 = vrot.slane %v2925, %v2971
  %v2974 = vadd.f32 %v2916, %v2972
  %v2975 = vmul.f32 %v2960, %v2974
  %v2976 = vadd.f32 %v2923, %v2975
  %v2977 = vtanh.pop %v2976
  %v2978 = vsub.f32 1.0, %v2967
  %v2979 = vmul.f32 %v2978, %v2977
  %v2980 = vmul.f32 %v2967, %v2512
  %v2981 = vadd.f32 %v2979, %v2980
  %v2982 = vsel %vm2507, %v2953, 0.0
  %2983 = vst [vmem:[%s2509] sm:$0xff] %v2982
  %v2984 = vsel %vm2499, %v2981, 0.0
  %2985 = vst [vmem:[%s2501 + $0x8] sm:$0xff] %v2984
  %v2986 = vld [vmem:[%s2509] sm:$0xff]
  %v2987 = vld [vmem:[%s2509 + $0x8] sm:$0xff]
  %v2988 = vlaneseq
  %v2989 = vand.u32 %v2988, 127
  %v2990 = vadd.s32 %v2989, 128
  %vm2991 = vcmp.lt.s32.totalorder %v2989, 0
  %v2992 = vsub.s32 0, %v2989
  %v2993 = vsel %vm2991, %v2992, %v2989
  %v2994 = vshrl.u32 %v2993, 7
  %v2995 = vand.u32 %v2993, 127
  %v2996 = vsub.s32 0, %v2995
  %v2997 = vsel %vm2991, %v2996, %v2995
  %vm2998 = vcmp.lt.s32.totalorder %v2990, 0
  %v2999 = vsub.s32 0, %v2990
  %v3000 = vsel %vm2998, %v2999, %v2990
  %v3001 = vshrl.u32 %v3000, 7
  %v3002 = vand.u32 %v3000, 127
  %v3003 = vsub.s32 0, %v3002
  %v3004 = vsel %vm2998, %v3003, %v3002
  %vm3005 = vcmp.ne.s32.totalorder %v2997, 0
  %vm3006 = vcmp.ne.s32.totalorder %v3004, 0
  %vm3007 = vcmp.lt.s32.totalorder %v2997, 0
  %vm3008 = vcmp.lt.s32.totalorder %v3004, 0
  %vm3009 = vmand %vm3007, %vm3005
  %vm3010 = vmand %vm3008, %vm3006
  %v3011 = vadd.s32 %v2997, 128
  %v3012 = vadd.s32 %v3004, 128
  %v3013 = vsel %vm3009, %v3011, %v2997
  %v3014 = vsel %vm3010, %v3012, %v3004
  %vm3015 = vcmp.lt.s32.totalorder %v3013, 16
  %vm3016 = vcmp.lt.s32.totalorder %v3014, 16
  %v3017 = vsel %vm3015, 1, 0
  %v3018 = vsel %vm3016, 1, 0
  %v3019 = vcvt.s32.f32 %v3017
  %v3020 = vcvt.s32.f32 %v3018
  %v3021 = vadd.f32 %v2986, %v2987
  %3022 = vadd.xlane.f32.xlu0 %v3021
  %v3023 = vpop.xlane.xlu0 %3022
  %v3024 = vmul.f32 %v3023, 0.03125
  %v3025 = vsub.f32 %v2986, %v3024
  %v3026 = vsub.f32 %v2987, %v3024
  %v3027 = vmul.f32 %v3025, %v3019
  %v3028 = vmul.f32 %v3026, %v3020
  %v3029 = vmul.f32 %v3027, %v3027
  %v3030 = vmul.f32 %v3028, %v3028
  %v3031 = vadd.f32 %v3029, %v3030
  %3032 = vadd.xlane.f32.xlu0 %v3031
  %v3033 = vpop.xlane.xlu0 %3032
  %v3034 = vmul.f32 %v3033, 0.03125
  %v3035 = vadd.f32 %v3034, 1e-05
  %v3036 = vrsqrt.pop %v3035
  %v3037 = vmul.f32 %v3027, %v3036
  %v3038 = vmul.f32 %v3028, %v3036
  %v3039 = vld [vmem:[%s6] sm:$0x3]
  %v3041 = vlaneseq
  %v3042 = vshrl.u32 %v3041, 7
  %v3043 = vsub.s32 0, %v3042
  %v3044 = vrot.slane %v3039, %v3043
  %v3045 = vlaneseq
  %v3046 = vshrl.u32 %v3045, 7
  %v3047 = vsub.s32 1, %v3046
  %v3048 = vrot.slane %v3039, %v3047
  %v3051 = vmul.f32 %v3037, %v3044
  %v3052 = vmul.f32 %v3038, %v3048
  %v3053 = vld [vmem:[%s7] sm:$0x3]
  %v3055 = vlaneseq
  %v3056 = vshrl.u32 %v3055, 7
  %v3057 = vsub.s32 0, %v3056
  %v3058 = vrot.slane %v3053, %v3057
  %v3059 = vlaneseq
  %v3060 = vshrl.u32 %v3059, 7
  %v3061 = vsub.s32 1, %v3060
  %v3062 = vrot.slane %v3053, %v3061
  %v3065 = vadd.f32 %v3051, %v3058
  %v3066 = vadd.f32 %v3052, %v3062
  %3067 = vst [vmem:[%s2509] sm:$0xff] %v3065
  %3068 = vst [vmem:[%s2509 + $0x8] sm:$0xff] %v3066
  %v3069 = vld [vmem:[%s2501] sm:$0xff]
  %v3070 = vld [vmem:[%s2501 + $0x8] sm:$0xff]
  %v3071 = vadd.f32 %v3069, %v3070
  %3072 = vadd.xlane.f32.xlu0 %v3071
  %v3073 = vpop.xlane.xlu0 %3072
  %v3074 = vmul.f32 %v3073, 0.03125
  %v3075 = vsub.f32 %v3069, %v3074
  %v3076 = vsub.f32 %v3070, %v3074
  %v3077 = vmul.f32 %v3075, %v3019
  %v3078 = vmul.f32 %v3076, %v3020
  %v3079 = vmul.f32 %v3077, %v3077
  %v3080 = vmul.f32 %v3078, %v3078
  %v3081 = vadd.f32 %v3079, %v3080
  %3082 = vadd.xlane.f32.xlu0 %v3081
  %v3083 = vpop.xlane.xlu0 %3082
  %v3084 = vmul.f32 %v3083, 0.03125
  %v3085 = vadd.f32 %v3084, 1e-05
  %v3086 = vrsqrt.pop %v3085
  %v3087 = vmul.f32 %v3077, %v3086
  %v3088 = vmul.f32 %v3078, %v3086
  %v3089 = vld [vmem:[%s6] sm:$0x3]
  %v3091 = vlaneseq
  %v3092 = vshrl.u32 %v3091, 7
  %v3093 = vsub.s32 0, %v3092
  %v3094 = vrot.slane %v3089, %v3093
  %v3095 = vlaneseq
  %v3096 = vshrl.u32 %v3095, 7
  %v3097 = vsub.s32 1, %v3096
  %v3098 = vrot.slane %v3089, %v3097
  %v3101 = vmul.f32 %v3087, %v3094
  %v3102 = vmul.f32 %v3088, %v3098
  %v3103 = vld [vmem:[%s7] sm:$0x3]
  %v3105 = vlaneseq
  %v3106 = vshrl.u32 %v3105, 7
  %v3107 = vsub.s32 0, %v3106
  %v3108 = vrot.slane %v3103, %v3107
  %v3109 = vlaneseq
  %v3110 = vshrl.u32 %v3109, 7
  %v3111 = vsub.s32 1, %v3110
  %v3112 = vrot.slane %v3103, %v3111
  %v3115 = vadd.f32 %v3101, %v3108
  %v3116 = vadd.f32 %v3102, %v3112
  %3117 = vst [vmem:[%s2501] sm:$0xff] %v3115
  %3118 = vst [vmem:[%s2501 + $0x8] sm:$0xff] %v3116
  %v3119 = vsel %vm2507, %v2953, %v2511
  %v3120 = vsel %vm2499, %v2981, %v2512
  %v3121 = vld [vmem:[%s4] sm:$0xff]
  %v3122 = vld [vmem:[%s4 + $0x8] sm:$0xff]
  %v3123 = vld [vmem:[%s4 + $0x10] sm:$0xff]
  %v3124 = vld [vmem:[%s4 + $0x18] sm:$0xff]
  %v3125 = vld [vmem:[%s4 + $0x20] sm:$0xff]
  %v3126 = vld [vmem:[%s4 + $0x28] sm:$0xff]
  %v3127 = vld [vmem:[%s4 + $0x30] sm:$0xff]
  %v3128 = vld [vmem:[%s4 + $0x38] sm:$0xff]
  %v3129 = vld [vmem:[%s4 + $0x40] sm:$0xff]
  %v3130 = vld [vmem:[%s4 + $0x48] sm:$0xff]
  %v3131 = vld [vmem:[%s4 + $0x50] sm:$0xff]
  %v3132 = vld [vmem:[%s4 + $0x58] sm:$0xff]
  %v3133 = vld [vmem:[%s4 + $0x60] sm:$0xff]
  %v3134 = vld [vmem:[%s4 + $0x68] sm:$0xff]
  %v3135 = vld [vmem:[%s4 + $0x70] sm:$0xff]
  %v3136 = vld [vmem:[%s4 + $0x78] sm:$0xff]
  %v3137 = vld [vmem:[%s4 + $0x80] sm:$0xff]
  %v3138 = vld [vmem:[%s4 + $0x88] sm:$0xff]
  %v3139 = vld [vmem:[%s4 + $0x90] sm:$0xff]
  %v3140 = vld [vmem:[%s4 + $0x98] sm:$0xff]
  %v3141 = vld [vmem:[%s4 + $0xa0] sm:$0xff]
  %v3142 = vld [vmem:[%s4 + $0xa8] sm:$0xff]
  %v3143 = vld [vmem:[%s4 + $0xb0] sm:$0xff]
  %v3144 = vld [vmem:[%s4 + $0xb8] sm:$0xff]
  %v3145 = vld [vmem:[%s4 + $0xc0] sm:$0xff]
  %v3146 = vld [vmem:[%s4 + $0xc8] sm:$0xff]
  %v3147 = vld [vmem:[%s4 + $0xd0] sm:$0xff]
  %v3148 = vld [vmem:[%s4 + $0xd8] sm:$0xff]
  %v3149 = vld [vmem:[%s4 + $0xe0] sm:$0xff]
  %v3150 = vld [vmem:[%s4 + $0xe8] sm:$0xff]
  %v3151 = vld [vmem:[%s4 + $0xf0] sm:$0xff]
  %v3152 = vld [vmem:[%s4 + $0xf8] sm:$0xff]
  %v3153 = vld [vmem:[%s4 + $0x100] sm:$0xff]
  %v3154 = vld [vmem:[%s4 + $0x108] sm:$0xff]
  %v3155 = vld [vmem:[%s4 + $0x110] sm:$0xff]
  %v3156 = vld [vmem:[%s4 + $0x118] sm:$0xff]
  %v3157 = vld [vmem:[%s4 + $0x120] sm:$0xff]
  %v3158 = vld [vmem:[%s4 + $0x128] sm:$0xff]
  %v3159 = vld [vmem:[%s4 + $0x130] sm:$0xff]
  %v3160 = vld [vmem:[%s4 + $0x138] sm:$0xff]
  %v3161 = vld [vmem:[%s4 + $0x140] sm:$0xff]
  %v3162 = vld [vmem:[%s4 + $0x148] sm:$0xff]
  %v3163 = vld [vmem:[%s4 + $0x150] sm:$0xff]
  %v3164 = vld [vmem:[%s4 + $0x158] sm:$0xff]
  %v3165 = vld [vmem:[%s4 + $0x160] sm:$0xff]
  %v3166 = vld [vmem:[%s4 + $0x168] sm:$0xff]
  %v3167 = vld [vmem:[%s4 + $0x170] sm:$0xff]
  %v3168 = vld [vmem:[%s4 + $0x178] sm:$0xff]
  %v3169 = vld [vmem:[%s4 + $0x180] sm:$0xff]
  %v3170 = vld [vmem:[%s4 + $0x188] sm:$0xff]
  %v3171 = vld [vmem:[%s4 + $0x190] sm:$0xff]
  %v3172 = vld [vmem:[%s4 + $0x198] sm:$0xff]
  %v3173 = vld [vmem:[%s4 + $0x1a0] sm:$0xff]
  %v3174 = vld [vmem:[%s4 + $0x1a8] sm:$0xff]
  %v3175 = vld [vmem:[%s4 + $0x1b0] sm:$0xff]
  %v3176 = vld [vmem:[%s4 + $0x1b8] sm:$0xff]
  %v3177 = vld [vmem:[%s4 + $0x1c0] sm:$0xff]
  %v3178 = vld [vmem:[%s4 + $0x1c8] sm:$0xff]
  %v3179 = vld [vmem:[%s4 + $0x1d0] sm:$0xff]
  %v3180 = vld [vmem:[%s4 + $0x1d8] sm:$0xff]
  %v3181 = vld [vmem:[%s4 + $0x1e0] sm:$0xff]
  %v3182 = vld [vmem:[%s4 + $0x1e8] sm:$0xff]
  %v3183 = vld [vmem:[%s4 + $0x1f0] sm:$0xff]
  %v3184 = vld [vmem:[%s4 + $0x1f8] sm:$0xff]
  %v3185 = vld [vmem:[%s4 + $0x200] sm:$0xff]
  %v3186 = vld [vmem:[%s4 + $0x208] sm:$0xff]
  %v3187 = vld [vmem:[%s4 + $0x210] sm:$0xff]
  %v3188 = vld [vmem:[%s4 + $0x218] sm:$0xff]
  %v3189 = vld [vmem:[%s4 + $0x220] sm:$0xff]
  %v3190 = vld [vmem:[%s4 + $0x228] sm:$0xff]
  %v3191 = vld [vmem:[%s4 + $0x230] sm:$0xff]
  %v3192 = vld [vmem:[%s4 + $0x238] sm:$0xff]
  %v3193 = vld [vmem:[%s4 + $0x240] sm:$0xff]
  %v3194 = vld [vmem:[%s4 + $0x248] sm:$0xff]
  %v3195 = vld [vmem:[%s4 + $0x250] sm:$0xff]
  %v3196 = vld [vmem:[%s4 + $0x258] sm:$0xff]
  %v3197 = vld [vmem:[%s4 + $0x260] sm:$0xff]
  %v3198 = vld [vmem:[%s4 + $0x268] sm:$0xff]
  %v3199 = vld [vmem:[%s4 + $0x270] sm:$0xff]
  %v3200 = vld [vmem:[%s4 + $0x278] sm:$0xff]
  %v3201 = vld [vmem:[%s4 + $0x280] sm:$0xff]
  %v3202 = vld [vmem:[%s4 + $0x288] sm:$0xff]
  %v3203 = vld [vmem:[%s4 + $0x290] sm:$0xff]
  %v3204 = vld [vmem:[%s4 + $0x298] sm:$0xff]
  %v3205 = vld [vmem:[%s4 + $0x2a0] sm:$0xff]
  %v3206 = vld [vmem:[%s4 + $0x2a8] sm:$0xff]
  %v3207 = vld [vmem:[%s4 + $0x2b0] sm:$0xff]
  %v3208 = vld [vmem:[%s4 + $0x2b8] sm:$0xff]
  %v3209 = vld [vmem:[%s4 + $0x2c0] sm:$0xff]
  %v3210 = vld [vmem:[%s4 + $0x2c8] sm:$0xff]
  %v3211 = vld [vmem:[%s4 + $0x2d0] sm:$0xff]
  %v3212 = vld [vmem:[%s4 + $0x2d8] sm:$0xff]
  %v3213 = vld [vmem:[%s4 + $0x2e0] sm:$0xff]
  %v3214 = vld [vmem:[%s4 + $0x2e8] sm:$0xff]
  %v3215 = vld [vmem:[%s4 + $0x2f0] sm:$0xff]
  %v3216 = vld [vmem:[%s4 + $0x2f8] sm:$0xff]
  %v3217 = vld [vmem:[%s4 + $0x300] sm:$0xff]
  %v3218 = vld [vmem:[%s4 + $0x308] sm:$0xff]
  %v3219 = vld [vmem:[%s4 + $0x310] sm:$0xff]
  %v3220 = vld [vmem:[%s4 + $0x318] sm:$0xff]
  %v3221 = vld [vmem:[%s4 + $0x320] sm:$0xff]
  %v3222 = vld [vmem:[%s4 + $0x328] sm:$0xff]
  %v3223 = vld [vmem:[%s4 + $0x330] sm:$0xff]
  %v3224 = vld [vmem:[%s4 + $0x338] sm:$0xff]
  %v3225 = vld [vmem:[%s4 + $0x340] sm:$0xff]
  %v3226 = vld [vmem:[%s4 + $0x348] sm:$0xff]
  %v3227 = vld [vmem:[%s4 + $0x350] sm:$0xff]
  %v3228 = vld [vmem:[%s4 + $0x358] sm:$0xff]
  %v3229 = vld [vmem:[%s4 + $0x360] sm:$0xff]
  %v3230 = vld [vmem:[%s4 + $0x368] sm:$0xff]
  %v3231 = vld [vmem:[%s4 + $0x370] sm:$0xff]
  %v3232 = vld [vmem:[%s4 + $0x378] sm:$0xff]
  %v3233 = vld [vmem:[%s4 + $0x380] sm:$0xff]
  %v3234 = vld [vmem:[%s4 + $0x388] sm:$0xff]
  %v3235 = vld [vmem:[%s4 + $0x390] sm:$0xff]
  %v3236 = vld [vmem:[%s4 + $0x398] sm:$0xff]
  %v3237 = vld [vmem:[%s4 + $0x3a0] sm:$0xff]
  %v3238 = vld [vmem:[%s4 + $0x3a8] sm:$0xff]
  %v3239 = vld [vmem:[%s4 + $0x3b0] sm:$0xff]
  %v3240 = vld [vmem:[%s4 + $0x3b8] sm:$0xff]
  %v3241 = vld [vmem:[%s4 + $0x3c0] sm:$0xff]
  %v3242 = vld [vmem:[%s4 + $0x3c8] sm:$0xff]
  %v3243 = vld [vmem:[%s4 + $0x3d0] sm:$0xff]
  %v3244 = vld [vmem:[%s4 + $0x3d8] sm:$0xff]
  %v3245 = vld [vmem:[%s4 + $0x3e0] sm:$0xff]
  %v3246 = vld [vmem:[%s4 + $0x3e8] sm:$0xff]
  %v3247 = vld [vmem:[%s4 + $0x3f0] sm:$0xff]
  %v3248 = vld [vmem:[%s4 + $0x3f8] sm:$0xff]
  %v3249 = vld [vmem:[%s4 + $0x400] sm:$0xff]
  %v3250 = vld [vmem:[%s4 + $0x408] sm:$0xff]
  %v3251 = vld [vmem:[%s4 + $0x410] sm:$0xff]
  %v3252 = vld [vmem:[%s4 + $0x418] sm:$0xff]
  %v3253 = vld [vmem:[%s4 + $0x420] sm:$0xff]
  %v3254 = vld [vmem:[%s4 + $0x428] sm:$0xff]
  %v3255 = vld [vmem:[%s4 + $0x430] sm:$0xff]
  %v3256 = vld [vmem:[%s4 + $0x438] sm:$0xff]
  %v3257 = vld [vmem:[%s4 + $0x440] sm:$0xff]
  %v3258 = vld [vmem:[%s4 + $0x448] sm:$0xff]
  %v3259 = vld [vmem:[%s4 + $0x450] sm:$0xff]
  %v3260 = vld [vmem:[%s4 + $0x458] sm:$0xff]
  %v3261 = vld [vmem:[%s4 + $0x460] sm:$0xff]
  %v3262 = vld [vmem:[%s4 + $0x468] sm:$0xff]
  %v3263 = vld [vmem:[%s4 + $0x470] sm:$0xff]
  %v3264 = vld [vmem:[%s4 + $0x478] sm:$0xff]
  %v3265 = vld [vmem:[%s4 + $0x480] sm:$0xff]
  %v3266 = vld [vmem:[%s4 + $0x488] sm:$0xff]
  %v3267 = vld [vmem:[%s4 + $0x490] sm:$0xff]
  %v3268 = vld [vmem:[%s4 + $0x498] sm:$0xff]
  %v3269 = vld [vmem:[%s4 + $0x4a0] sm:$0xff]
  %v3270 = vld [vmem:[%s4 + $0x4a8] sm:$0xff]
  %v3271 = vld [vmem:[%s4 + $0x4b0] sm:$0xff]
  %v3272 = vld [vmem:[%s4 + $0x4b8] sm:$0xff]
  %v3273 = vld [vmem:[%s4 + $0x4c0] sm:$0xff]
  %v3274 = vld [vmem:[%s4 + $0x4c8] sm:$0xff]
  %v3275 = vld [vmem:[%s4 + $0x4d0] sm:$0xff]
  %v3276 = vld [vmem:[%s4 + $0x4d8] sm:$0xff]
  %v3277 = vld [vmem:[%s4 + $0x4e0] sm:$0xff]
  %v3278 = vld [vmem:[%s4 + $0x4e8] sm:$0xff]
  %v3279 = vld [vmem:[%s4 + $0x4f0] sm:$0xff]
  %v3280 = vld [vmem:[%s4 + $0x4f8] sm:$0xff]
  %v3281 = vld [vmem:[%s4 + $0x500] sm:$0xff]
  %v3282 = vld [vmem:[%s4 + $0x508] sm:$0xff]
  %v3283 = vld [vmem:[%s4 + $0x510] sm:$0xff]
  %v3284 = vld [vmem:[%s4 + $0x518] sm:$0xff]
  %v3285 = vld [vmem:[%s4 + $0x520] sm:$0xff]
  %v3286 = vld [vmem:[%s4 + $0x528] sm:$0xff]
  %v3287 = vld [vmem:[%s4 + $0x530] sm:$0xff]
  %v3288 = vld [vmem:[%s4 + $0x538] sm:$0xff]
  %v3289 = vld [vmem:[%s4 + $0x540] sm:$0xff]
  %v3290 = vld [vmem:[%s4 + $0x548] sm:$0xff]
  %v3291 = vld [vmem:[%s4 + $0x550] sm:$0xff]
  %v3292 = vld [vmem:[%s4 + $0x558] sm:$0xff]
  %v3293 = vld [vmem:[%s4 + $0x560] sm:$0xff]
  %v3294 = vld [vmem:[%s4 + $0x568] sm:$0xff]
  %v3295 = vld [vmem:[%s4 + $0x570] sm:$0xff]
  %v3296 = vld [vmem:[%s4 + $0x578] sm:$0xff]
  %v3297 = vld [vmem:[%s4 + $0x580] sm:$0xff]
  %v3298 = vld [vmem:[%s4 + $0x588] sm:$0xff]
  %v3299 = vld [vmem:[%s4 + $0x590] sm:$0xff]
  %v3300 = vld [vmem:[%s4 + $0x598] sm:$0xff]
  %v3301 = vld [vmem:[%s4 + $0x5a0] sm:$0xff]
  %v3302 = vld [vmem:[%s4 + $0x5a8] sm:$0xff]
  %v3303 = vld [vmem:[%s4 + $0x5b0] sm:$0xff]
  %v3304 = vld [vmem:[%s4 + $0x5b8] sm:$0xff]
  %v3305 = vld [vmem:[%s4 + $0x5c0] sm:$0xff]
  %v3306 = vld [vmem:[%s4 + $0x5c8] sm:$0xff]
  %v3307 = vld [vmem:[%s4 + $0x5d0] sm:$0xff]
  %v3308 = vld [vmem:[%s4 + $0x5d8] sm:$0xff]
  %v3309 = vld [vmem:[%s4 + $0x5e0] sm:$0xff]
  %v3310 = vld [vmem:[%s4 + $0x5e8] sm:$0xff]
  %v3311 = vld [vmem:[%s4 + $0x5f0] sm:$0xff]
  %v3312 = vld [vmem:[%s4 + $0x5f8] sm:$0xff]
  %3313 = vmatprep.subr.mxu0 %v3212
  %3314 = vmatpush1.msra.mxu0 %v3211
  %3315 = vmatprep.subr.mxu0 %v3206
  %3316 = vmatpush1.msra.mxu0 %v3205
  %3317 = vmatprep.subr.mxu0 %v3200
  %3318 = vmatpush1.msra.mxu0 %v3199
  %3319 = vmatprep.subr.mxu0 %v3194
  %3320 = vmatpush1.msra.mxu0 %v3193
  %3321 = vmatprep.subr.mxu0 %v3188
  %3322 = vmatpush1.msra.mxu0 %v3187
  %3323 = vmatprep.subr.mxu0 %v3182
  %3324 = vmatpush1.msra.mxu0 %v3181
  %3325 = vmatprep.subr.mxu0 %v3176
  %3326 = vmatpush1.msra.mxu0 %v3175
  %3327 = vmatprep.subr.mxu0 %v3170
  %3328 = vmatpush1.msra.mxu0 %v3169
  %3329 = vmatprep.subr.mxu0 %v3164
  %3330 = vmatpush1.msra.mxu0 %v3163
  %3331 = vmatprep.subr.mxu0 %v3158
  %3332 = vmatpush1.msra.mxu0 %v3157
  %3333 = vmatprep.subr.mxu0 %v3152
  %3334 = vmatpush1.msra.mxu0 %v3151
  %3335 = vmatprep.subr.mxu0 %v3146
  %3336 = vmatpush1.msra.mxu0 %v3145
  %3337 = vmatprep.subr.mxu0 %v3140
  %3338 = vmatpush1.msra.mxu0 %v3139
  %3339 = vmatprep.subr.mxu0 %v3134
  %3340 = vmatpush1.msra.mxu0 %v3133
  %3341 = vmatprep.subr.mxu0 %v3128
  %3342 = vmatpush1.msra.mxu0 %v3127
  %3343 = vmatprep.subr.mxu0 %v3122
  %3344 = vmatpush1.msra.mxu0 %v3121
  %3345 = vmatprep.subr.mxu0 %v3308
  %3346 = vmatpush2.msra.mxu0 %v3307
  %3347 = vmatprep.subr.mxu0 %v3302
  %3348 = vmatpush2.msra.mxu0 %v3301
  %3349 = vmatprep.subr.mxu0 %v3296
  %3350 = vmatpush2.msra.mxu0 %v3295
  %3351 = vmatprep.subr.mxu0 %v3290
  %3352 = vmatpush2.msra.mxu0 %v3289
  %3353 = vmatprep.subr.mxu0 %v3284
  %3354 = vmatpush2.msra.mxu0 %v3283
  %3355 = vmatprep.subr.mxu0 %v3278
  %3356 = vmatpush2.msra.mxu0 %v3277
  %3357 = vmatprep.subr.mxu0 %v3272
  %3358 = vmatpush2.msra.mxu0 %v3271
  %3359 = vmatprep.subr.mxu0 %v3266
  %3360 = vmatpush2.msra.mxu0 %v3265
  %3361 = vmatprep.subr.mxu0 %v3260
  %3362 = vmatpush2.msra.mxu0 %v3259
  %3363 = vmatprep.subr.mxu0 %v3254
  %3364 = vmatpush2.msra.mxu0 %v3253
  %3365 = vmatprep.subr.mxu0 %v3248
  %3366 = vmatpush2.msra.mxu0 %v3247
  %3367 = vmatprep.subr.mxu0 %v3242
  %3368 = vmatpush2.msra.mxu0 %v3241
  %3369 = vmatprep.subr.mxu0 %v3236
  %3370 = vmatpush2.msra.mxu0 %v3235
  %3371 = vmatprep.subr.mxu0 %v3230
  %3372 = vmatpush2.msra.mxu0 %v3229
  %3373 = vmatprep.subr.mxu0 %v3224
  %3374 = vmatpush2.msra.mxu0 %v3223
  %3375 = vmatprep.subr.mxu0 %v3218
  %3376 = vmatpush2.msra.mxu0 %v3217
  %3377 = vmatprep.mubr.f32.mxu0 %v3120
  %3378 = vmatmul.mubr.f32.gmra.mxu0 %v3119
  %v3379 = vpop.f32.mrf.mxu0
  %v3380 = vadd.f32 0.0, %v3379
  %v3381 = vpop.f32.mrf.mxu0
  %v3382 = vadd.f32 0.0, %v3381
  %3383 = vdwg.mxu0
  %3384 = vmatprep.subr.mxu0 %v3214
  %3385 = vmatpush1.msra.mxu0 %v3213
  %3386 = vmatprep.subr.mxu0 %v3208
  %3387 = vmatpush1.msra.mxu0 %v3207
  %3388 = vmatprep.subr.mxu0 %v3202
  %3389 = vmatpush1.msra.mxu0 %v3201
  %3390 = vmatprep.subr.mxu0 %v3196
  %3391 = vmatpush1.msra.mxu0 %v3195
  %3392 = vmatprep.subr.mxu0 %v3190
  %3393 = vmatpush1.msra.mxu0 %v3189
  %3394 = vmatprep.subr.mxu0 %v3184
  %3395 = vmatpush1.msra.mxu0 %v3183
  %3396 = vmatprep.subr.mxu0 %v3178
  %3397 = vmatpush1.msra.mxu0 %v3177
  %3398 = vmatprep.subr.mxu0 %v3172
  %3399 = vmatpush1.msra.mxu0 %v3171
  %3400 = vmatprep.subr.mxu0 %v3166
  %3401 = vmatpush1.msra.mxu0 %v3165
  %3402 = vmatprep.subr.mxu0 %v3160
  %3403 = vmatpush1.msra.mxu0 %v3159
  %3404 = vmatprep.subr.mxu0 %v3154
  %3405 = vmatpush1.msra.mxu0 %v3153
  %3406 = vmatprep.subr.mxu0 %v3148
  %3407 = vmatpush1.msra.mxu0 %v3147
  %3408 = vmatprep.subr.mxu0 %v3142
  %3409 = vmatpush1.msra.mxu0 %v3141
  %3410 = vmatprep.subr.mxu0 %v3136
  %3411 = vmatpush1.msra.mxu0 %v3135
  %3412 = vmatprep.subr.mxu0 %v3130
  %3413 = vmatpush1.msra.mxu0 %v3129
  %3414 = vmatprep.subr.mxu0 %v3124
  %3415 = vmatpush1.msra.mxu0 %v3123
  %3416 = vmatprep.subr.mxu0 %v3310
  %3417 = vmatpush2.msra.mxu0 %v3309
  %3418 = vmatprep.subr.mxu0 %v3304
  %3419 = vmatpush2.msra.mxu0 %v3303
  %3420 = vmatprep.subr.mxu0 %v3298
  %3421 = vmatpush2.msra.mxu0 %v3297
  %3422 = vmatprep.subr.mxu0 %v3292
  %3423 = vmatpush2.msra.mxu0 %v3291
  %3424 = vmatprep.subr.mxu0 %v3286
  %3425 = vmatpush2.msra.mxu0 %v3285
  %3426 = vmatprep.subr.mxu0 %v3280
  %3427 = vmatpush2.msra.mxu0 %v3279
  %3428 = vmatprep.subr.mxu0 %v3274
  %3429 = vmatpush2.msra.mxu0 %v3273
  %3430 = vmatprep.subr.mxu0 %v3268
  %3431 = vmatpush2.msra.mxu0 %v3267
  %3432 = vmatprep.subr.mxu0 %v3262
  %3433 = vmatpush2.msra.mxu0 %v3261
  %3434 = vmatprep.subr.mxu0 %v3256
  %3435 = vmatpush2.msra.mxu0 %v3255
  %3436 = vmatprep.subr.mxu0 %v3250
  %3437 = vmatpush2.msra.mxu0 %v3249
  %3438 = vmatprep.subr.mxu0 %v3244
  %3439 = vmatpush2.msra.mxu0 %v3243
  %3440 = vmatprep.subr.mxu0 %v3238
  %3441 = vmatpush2.msra.mxu0 %v3237
  %3442 = vmatprep.subr.mxu0 %v3232
  %3443 = vmatpush2.msra.mxu0 %v3231
  %3444 = vmatprep.subr.mxu0 %v3226
  %3445 = vmatpush2.msra.mxu0 %v3225
  %3446 = vmatprep.subr.mxu0 %v3220
  %3447 = vmatpush2.msra.mxu0 %v3219
  %3448 = vmatprep.mubr.f32.mxu0 %v3120
  %3449 = vmatmul.mubr.f32.gmra.mxu0 %v3119
  %v3450 = vpop.f32.mrf.mxu0
  %v3451 = vadd.f32 0.0, %v3450
  %v3452 = vpop.f32.mrf.mxu0
  %v3453 = vadd.f32 0.0, %v3452
  %3454 = vdwg.mxu0
  %3455 = vmatprep.subr.mxu0 %v3216
  %3456 = vmatpush1.msra.mxu0 %v3215
  %3457 = vmatprep.subr.mxu0 %v3210
  %3458 = vmatpush1.msra.mxu0 %v3209
  %3459 = vmatprep.subr.mxu0 %v3204
  %3460 = vmatpush1.msra.mxu0 %v3203
  %3461 = vmatprep.subr.mxu0 %v3198
  %3462 = vmatpush1.msra.mxu0 %v3197
  %3463 = vmatprep.subr.mxu0 %v3192
  %3464 = vmatpush1.msra.mxu0 %v3191
  %3465 = vmatprep.subr.mxu0 %v3186
  %3466 = vmatpush1.msra.mxu0 %v3185
  %3467 = vmatprep.subr.mxu0 %v3180
  %3468 = vmatpush1.msra.mxu0 %v3179
  %3469 = vmatprep.subr.mxu0 %v3174
  %3470 = vmatpush1.msra.mxu0 %v3173
  %3471 = vmatprep.subr.mxu0 %v3168
  %3472 = vmatpush1.msra.mxu0 %v3167
  %3473 = vmatprep.subr.mxu0 %v3162
  %3474 = vmatpush1.msra.mxu0 %v3161
  %3475 = vmatprep.subr.mxu0 %v3156
  %3476 = vmatpush1.msra.mxu0 %v3155
  %3477 = vmatprep.subr.mxu0 %v3150
  %3478 = vmatpush1.msra.mxu0 %v3149
  %3479 = vmatprep.subr.mxu0 %v3144
  %3480 = vmatpush1.msra.mxu0 %v3143
  %3481 = vmatprep.subr.mxu0 %v3138
  %3482 = vmatpush1.msra.mxu0 %v3137
  %3483 = vmatprep.subr.mxu0 %v3132
  %3484 = vmatpush1.msra.mxu0 %v3131
  %3485 = vmatprep.subr.mxu0 %v3126
  %3486 = vmatpush1.msra.mxu0 %v3125
  %3487 = vmatprep.subr.mxu0 %v3312
  %3488 = vmatpush2.msra.mxu0 %v3311
  %3489 = vmatprep.subr.mxu0 %v3306
  %3490 = vmatpush2.msra.mxu0 %v3305
  %3491 = vmatprep.subr.mxu0 %v3300
  %3492 = vmatpush2.msra.mxu0 %v3299
  %3493 = vmatprep.subr.mxu0 %v3294
  %3494 = vmatpush2.msra.mxu0 %v3293
  %3495 = vmatprep.subr.mxu0 %v3288
  %3496 = vmatpush2.msra.mxu0 %v3287
  %3497 = vmatprep.subr.mxu0 %v3282
  %3498 = vmatpush2.msra.mxu0 %v3281
  %3499 = vmatprep.subr.mxu0 %v3276
  %3500 = vmatpush2.msra.mxu0 %v3275
  %3501 = vmatprep.subr.mxu0 %v3270
  %3502 = vmatpush2.msra.mxu0 %v3269
  %3503 = vmatprep.subr.mxu0 %v3264
  %3504 = vmatpush2.msra.mxu0 %v3263
  %3505 = vmatprep.subr.mxu0 %v3258
  %3506 = vmatpush2.msra.mxu0 %v3257
  %3507 = vmatprep.subr.mxu0 %v3252
  %3508 = vmatpush2.msra.mxu0 %v3251
  %3509 = vmatprep.subr.mxu0 %v3246
  %3510 = vmatpush2.msra.mxu0 %v3245
  %3511 = vmatprep.subr.mxu0 %v3240
  %3512 = vmatpush2.msra.mxu0 %v3239
  %3513 = vmatprep.subr.mxu0 %v3234
  %3514 = vmatpush2.msra.mxu0 %v3233
  %3515 = vmatprep.subr.mxu0 %v3228
  %3516 = vmatpush2.msra.mxu0 %v3227
  %3517 = vmatprep.subr.mxu0 %v3222
  %3518 = vmatpush2.msra.mxu0 %v3221
  %3519 = vmatprep.mubr.f32.mxu0 %v3120
  %3520 = vmatmul.mubr.f32.gmra.mxu0 %v3119
  %v3521 = vpop.f32.mrf.mxu0
  %v3522 = vadd.f32 0.0, %v3521
  %v3523 = vpop.f32.mrf.mxu0
  %v3524 = vadd.f32 0.0, %v3523
  %3525 = vdwg.mxu0
  %v3526 = vld [vmem:[%s1940] sm:$0xff]
  %v3527 = vld [vmem:[%s1940 + $0x8] sm:$0xff]
  %v3528 = vld [vmem:[%s1940 + $0x10] sm:$0xff]
  %v3529 = vld [vmem:[%s1936 + $0x18] sm:$0xff]
  %v3530 = vld [vmem:[%s1936 + $0x20] sm:$0xff]
  %v3531 = vld [vmem:[%s1936 + $0x28] sm:$0xff]
  %v3532 = vld [vmem:[%s5] sm:$0x1]
  %v3533 = vld [vmem:[%s5 + $0x1] sm:$0x1]
  %v3534 = vadd.f32 %v3526, %v3380
  %v3535 = vxor.u32 %v3534, 2147483648
  %v3536 = vmul.f32 %v3535, 1.442695
  %v3537 = vpow.pop %v3536
  %v3538 = vadd.f32 %v3537, 1.0
  %v3539 = vrcp.pop %v3538
  %v3540 = vmul.f32 1.0, %v3539
  %v3541 = vadd.f32 %v3527, %v3382
  %v3542 = vxor.u32 %v3541, 2147483648
  %v3543 = vmul.f32 %v3542, 1.442695
  %v3544 = vpow.pop %v3543
  %v3545 = vadd.f32 %v3544, 1.0
  %v3546 = vrcp.pop %v3545
  %v3547 = vmul.f32 1.0, %v3546
  %v3549 = vlaneseq
  %v3550 = vshrl.u32 %v3549, 7
  %v3551 = vsub.s32 0, %v3550
  %v3552 = vrot.slane %v3532, %v3551
  %v3554 = vadd.f32 %v3451, %v3552
  %v3555 = vmul.f32 %v3540, %v3554
  %v3556 = vadd.f32 %v3528, %v3555
  %v3557 = vtanh.pop %v3556
  %v3558 = vsub.f32 1.0, %v3547
  %v3559 = vmul.f32 %v3558, %v3557
  %v3560 = vmul.f32 %v3547, %v3119
  %v3561 = vadd.f32 %v3559, %v3560
  %v3562 = vadd.f32 %v3529, %v3453
  %v3563 = vxor.u32 %v3562, 2147483648
  %v3564 = vmul.f32 %v3563, 1.442695
  %v3565 = vpow.pop %v3564
  %v3566 = vadd.f32 %v3565, 1.0
  %v3567 = vrcp.pop %v3566
  %v3568 = vmul.f32 1.0, %v3567
  %v3569 = vadd.f32 %v3530, %v3522
  %v3570 = vxor.u32 %v3569, 2147483648
  %v3571 = vmul.f32 %v3570, 1.442695
  %v3572 = vpow.pop %v3571
  %v3573 = vadd.f32 %v3572, 1.0
  %v3574 = vrcp.pop %v3573
  %v3575 = vmul.f32 1.0, %v3574
  %v3577 = vlaneseq
  %v3578 = vshrl.u32 %v3577, 7
  %v3579 = vsub.s32 0, %v3578
  %v3580 = vrot.slane %v3533, %v3579
  %v3582 = vadd.f32 %v3524, %v3580
  %v3583 = vmul.f32 %v3568, %v3582
  %v3584 = vadd.f32 %v3531, %v3583
  %v3585 = vtanh.pop %v3584
  %v3586 = vsub.f32 1.0, %v3575
  %v3587 = vmul.f32 %v3586, %v3585
  %v3588 = vmul.f32 %v3575, %v3120
  %v3589 = vadd.f32 %v3587, %v3588
  %v3590 = vsel %vm2016, %v3561, 0.0
  %3591 = vst [vmem:[%s2018] sm:$0xff] %v3590
  %v3592 = vsel %vm2008, %v3589, 0.0
  %3593 = vst [vmem:[%s2010 + $0x8] sm:$0xff] %v3592
  %v3594 = vld [vmem:[%s2018] sm:$0xff]
  %v3595 = vld [vmem:[%s2018 + $0x8] sm:$0xff]
  %v3596 = vadd.f32 %v3594, %v3595
  %3597 = vadd.xlane.f32.xlu0 %v3596
  %v3598 = vpop.xlane.xlu0 %3597
  %v3599 = vmul.f32 %v3598, 0.03125
  %v3600 = vsub.f32 %v3594, %v3599
  %v3601 = vsub.f32 %v3595, %v3599
  %v3602 = vmul.f32 %v3600, %v3019
  %v3603 = vmul.f32 %v3601, %v3020
  %v3604 = vmul.f32 %v3602, %v3602
  %v3605 = vmul.f32 %v3603, %v3603
  %v3606 = vadd.f32 %v3604, %v3605
  %3607 = vadd.xlane.f32.xlu0 %v3606
  %v3608 = vpop.xlane.xlu0 %3607
  %v3609 = vmul.f32 %v3608, 0.03125
  %v3610 = vadd.f32 %v3609, 1e-05
  %v3611 = vrsqrt.pop %v3610
  %v3612 = vmul.f32 %v3602, %v3611
  %v3613 = vmul.f32 %v3603, %v3611
  %v3614 = vld [vmem:[%s6] sm:$0x3]
  %v3616 = vlaneseq
  %v3617 = vshrl.u32 %v3616, 7
  %v3618 = vsub.s32 0, %v3617
  %v3619 = vrot.slane %v3614, %v3618
  %v3620 = vlaneseq
  %v3621 = vshrl.u32 %v3620, 7
  %v3622 = vsub.s32 1, %v3621
  %v3623 = vrot.slane %v3614, %v3622
  %v3626 = vmul.f32 %v3612, %v3619
  %v3627 = vmul.f32 %v3613, %v3623
  %v3628 = vld [vmem:[%s7] sm:$0x3]
  %v3630 = vlaneseq
  %v3631 = vshrl.u32 %v3630, 7
  %v3632 = vsub.s32 0, %v3631
  %v3633 = vrot.slane %v3628, %v3632
  %v3634 = vlaneseq
  %v3635 = vshrl.u32 %v3634, 7
  %v3636 = vsub.s32 1, %v3635
  %v3637 = vrot.slane %v3628, %v3636
  %v3640 = vadd.f32 %v3626, %v3633
  %v3641 = vadd.f32 %v3627, %v3637
  %3642 = vst [vmem:[%s2018] sm:$0xff] %v3640
  %3643 = vst [vmem:[%s2018 + $0x8] sm:$0xff] %v3641
  %v3644 = vld [vmem:[%s2010] sm:$0xff]
  %v3645 = vld [vmem:[%s2010 + $0x8] sm:$0xff]
  %v3646 = vadd.f32 %v3644, %v3645
  %3647 = vadd.xlane.f32.xlu0 %v3646
  %v3648 = vpop.xlane.xlu0 %3647
  %v3649 = vmul.f32 %v3648, 0.03125
  %v3650 = vsub.f32 %v3644, %v3649
  %v3651 = vsub.f32 %v3645, %v3649
  %v3652 = vmul.f32 %v3650, %v3019
  %v3653 = vmul.f32 %v3651, %v3020
  %v3654 = vmul.f32 %v3652, %v3652
  %v3655 = vmul.f32 %v3653, %v3653
  %v3656 = vadd.f32 %v3654, %v3655
  %3657 = vadd.xlane.f32.xlu0 %v3656
  %v3658 = vpop.xlane.xlu0 %3657
  %v3659 = vmul.f32 %v3658, 0.03125
  %v3660 = vadd.f32 %v3659, 1e-05
  %v3661 = vrsqrt.pop %v3660
  %v3662 = vmul.f32 %v3652, %v3661
  %v3663 = vmul.f32 %v3653, %v3661
  %v3664 = vld [vmem:[%s6] sm:$0x3]
  %v3666 = vlaneseq
  %v3667 = vshrl.u32 %v3666, 7
  %v3668 = vsub.s32 0, %v3667
  %v3669 = vrot.slane %v3664, %v3668
  %v3670 = vlaneseq
  %v3671 = vshrl.u32 %v3670, 7
  %v3672 = vsub.s32 1, %v3671
  %v3673 = vrot.slane %v3664, %v3672
  %v3676 = vmul.f32 %v3662, %v3669
  %v3677 = vmul.f32 %v3663, %v3673
  %v3678 = vld [vmem:[%s7] sm:$0x3]
  %v3680 = vlaneseq
  %v3681 = vshrl.u32 %v3680, 7
  %v3682 = vsub.s32 0, %v3681
  %v3683 = vrot.slane %v3678, %v3682
  %v3684 = vlaneseq
  %v3685 = vshrl.u32 %v3684, 7
  %v3686 = vsub.s32 1, %v3685
  %v3687 = vrot.slane %v3678, %v3686
  %v3690 = vadd.f32 %v3676, %v3683
  %v3691 = vadd.f32 %v3677, %v3687
  %3692 = vst [vmem:[%s2010] sm:$0xff] %v3690
  %3693 = vst [vmem:[%s2010 + $0x8] sm:$0xff] %v3691
  %v3694 = vsel %vm2016, %v3561, %v3119
  %v3695 = vsel %vm2008, %v3589, %v3120
  %v3696 = vld [vmem:[%s4] sm:$0xff]
  %v3697 = vld [vmem:[%s4 + $0x8] sm:$0xff]
  %v3698 = vld [vmem:[%s4 + $0x10] sm:$0xff]
  %v3699 = vld [vmem:[%s4 + $0x18] sm:$0xff]
  %v3700 = vld [vmem:[%s4 + $0x20] sm:$0xff]
  %v3701 = vld [vmem:[%s4 + $0x28] sm:$0xff]
  %v3702 = vld [vmem:[%s4 + $0x30] sm:$0xff]
  %v3703 = vld [vmem:[%s4 + $0x38] sm:$0xff]
  %v3704 = vld [vmem:[%s4 + $0x40] sm:$0xff]
  %v3705 = vld [vmem:[%s4 + $0x48] sm:$0xff]
  %v3706 = vld [vmem:[%s4 + $0x50] sm:$0xff]
  %v3707 = vld [vmem:[%s4 + $0x58] sm:$0xff]
  %v3708 = vld [vmem:[%s4 + $0x60] sm:$0xff]
  %v3709 = vld [vmem:[%s4 + $0x68] sm:$0xff]
  %v3710 = vld [vmem:[%s4 + $0x70] sm:$0xff]
  %v3711 = vld [vmem:[%s4 + $0x78] sm:$0xff]
  %v3712 = vld [vmem:[%s4 + $0x80] sm:$0xff]
  %v3713 = vld [vmem:[%s4 + $0x88] sm:$0xff]
  %v3714 = vld [vmem:[%s4 + $0x90] sm:$0xff]
  %v3715 = vld [vmem:[%s4 + $0x98] sm:$0xff]
  %v3716 = vld [vmem:[%s4 + $0xa0] sm:$0xff]
  %v3717 = vld [vmem:[%s4 + $0xa8] sm:$0xff]
  %v3718 = vld [vmem:[%s4 + $0xb0] sm:$0xff]
  %v3719 = vld [vmem:[%s4 + $0xb8] sm:$0xff]
  %v3720 = vld [vmem:[%s4 + $0xc0] sm:$0xff]
  %v3721 = vld [vmem:[%s4 + $0xc8] sm:$0xff]
  %v3722 = vld [vmem:[%s4 + $0xd0] sm:$0xff]
  %v3723 = vld [vmem:[%s4 + $0xd8] sm:$0xff]
  %v3724 = vld [vmem:[%s4 + $0xe0] sm:$0xff]
  %v3725 = vld [vmem:[%s4 + $0xe8] sm:$0xff]
  %v3726 = vld [vmem:[%s4 + $0xf0] sm:$0xff]
  %v3727 = vld [vmem:[%s4 + $0xf8] sm:$0xff]
  %v3728 = vld [vmem:[%s4 + $0x100] sm:$0xff]
  %v3729 = vld [vmem:[%s4 + $0x108] sm:$0xff]
  %v3730 = vld [vmem:[%s4 + $0x110] sm:$0xff]
  %v3731 = vld [vmem:[%s4 + $0x118] sm:$0xff]
  %v3732 = vld [vmem:[%s4 + $0x120] sm:$0xff]
  %v3733 = vld [vmem:[%s4 + $0x128] sm:$0xff]
  %v3734 = vld [vmem:[%s4 + $0x130] sm:$0xff]
  %v3735 = vld [vmem:[%s4 + $0x138] sm:$0xff]
  %v3736 = vld [vmem:[%s4 + $0x140] sm:$0xff]
  %v3737 = vld [vmem:[%s4 + $0x148] sm:$0xff]
  %v3738 = vld [vmem:[%s4 + $0x150] sm:$0xff]
  %v3739 = vld [vmem:[%s4 + $0x158] sm:$0xff]
  %v3740 = vld [vmem:[%s4 + $0x160] sm:$0xff]
  %v3741 = vld [vmem:[%s4 + $0x168] sm:$0xff]
  %v3742 = vld [vmem:[%s4 + $0x170] sm:$0xff]
  %v3743 = vld [vmem:[%s4 + $0x178] sm:$0xff]
  %v3744 = vld [vmem:[%s4 + $0x180] sm:$0xff]
  %v3745 = vld [vmem:[%s4 + $0x188] sm:$0xff]
  %v3746 = vld [vmem:[%s4 + $0x190] sm:$0xff]
  %v3747 = vld [vmem:[%s4 + $0x198] sm:$0xff]
  %v3748 = vld [vmem:[%s4 + $0x1a0] sm:$0xff]
  %v3749 = vld [vmem:[%s4 + $0x1a8] sm:$0xff]
  %v3750 = vld [vmem:[%s4 + $0x1b0] sm:$0xff]
  %v3751 = vld [vmem:[%s4 + $0x1b8] sm:$0xff]
  %v3752 = vld [vmem:[%s4 + $0x1c0] sm:$0xff]
  %v3753 = vld [vmem:[%s4 + $0x1c8] sm:$0xff]
  %v3754 = vld [vmem:[%s4 + $0x1d0] sm:$0xff]
  %v3755 = vld [vmem:[%s4 + $0x1d8] sm:$0xff]
  %v3756 = vld [vmem:[%s4 + $0x1e0] sm:$0xff]
  %v3757 = vld [vmem:[%s4 + $0x1e8] sm:$0xff]
  %v3758 = vld [vmem:[%s4 + $0x1f0] sm:$0xff]
  %v3759 = vld [vmem:[%s4 + $0x1f8] sm:$0xff]
  %v3760 = vld [vmem:[%s4 + $0x200] sm:$0xff]
  %v3761 = vld [vmem:[%s4 + $0x208] sm:$0xff]
  %v3762 = vld [vmem:[%s4 + $0x210] sm:$0xff]
  %v3763 = vld [vmem:[%s4 + $0x218] sm:$0xff]
  %v3764 = vld [vmem:[%s4 + $0x220] sm:$0xff]
  %v3765 = vld [vmem:[%s4 + $0x228] sm:$0xff]
  %v3766 = vld [vmem:[%s4 + $0x230] sm:$0xff]
  %v3767 = vld [vmem:[%s4 + $0x238] sm:$0xff]
  %v3768 = vld [vmem:[%s4 + $0x240] sm:$0xff]
  %v3769 = vld [vmem:[%s4 + $0x248] sm:$0xff]
  %v3770 = vld [vmem:[%s4 + $0x250] sm:$0xff]
  %v3771 = vld [vmem:[%s4 + $0x258] sm:$0xff]
  %v3772 = vld [vmem:[%s4 + $0x260] sm:$0xff]
  %v3773 = vld [vmem:[%s4 + $0x268] sm:$0xff]
  %v3774 = vld [vmem:[%s4 + $0x270] sm:$0xff]
  %v3775 = vld [vmem:[%s4 + $0x278] sm:$0xff]
  %v3776 = vld [vmem:[%s4 + $0x280] sm:$0xff]
  %v3777 = vld [vmem:[%s4 + $0x288] sm:$0xff]
  %v3778 = vld [vmem:[%s4 + $0x290] sm:$0xff]
  %v3779 = vld [vmem:[%s4 + $0x298] sm:$0xff]
  %v3780 = vld [vmem:[%s4 + $0x2a0] sm:$0xff]
  %v3781 = vld [vmem:[%s4 + $0x2a8] sm:$0xff]
  %v3782 = vld [vmem:[%s4 + $0x2b0] sm:$0xff]
  %v3783 = vld [vmem:[%s4 + $0x2b8] sm:$0xff]
  %v3784 = vld [vmem:[%s4 + $0x2c0] sm:$0xff]
  %v3785 = vld [vmem:[%s4 + $0x2c8] sm:$0xff]
  %v3786 = vld [vmem:[%s4 + $0x2d0] sm:$0xff]
  %v3787 = vld [vmem:[%s4 + $0x2d8] sm:$0xff]
  %v3788 = vld [vmem:[%s4 + $0x2e0] sm:$0xff]
  %v3789 = vld [vmem:[%s4 + $0x2e8] sm:$0xff]
  %v3790 = vld [vmem:[%s4 + $0x2f0] sm:$0xff]
  %v3791 = vld [vmem:[%s4 + $0x2f8] sm:$0xff]
  %v3792 = vld [vmem:[%s4 + $0x300] sm:$0xff]
  %v3793 = vld [vmem:[%s4 + $0x308] sm:$0xff]
  %v3794 = vld [vmem:[%s4 + $0x310] sm:$0xff]
  %v3795 = vld [vmem:[%s4 + $0x318] sm:$0xff]
  %v3796 = vld [vmem:[%s4 + $0x320] sm:$0xff]
  %v3797 = vld [vmem:[%s4 + $0x328] sm:$0xff]
  %v3798 = vld [vmem:[%s4 + $0x330] sm:$0xff]
  %v3799 = vld [vmem:[%s4 + $0x338] sm:$0xff]
  %v3800 = vld [vmem:[%s4 + $0x340] sm:$0xff]
  %v3801 = vld [vmem:[%s4 + $0x348] sm:$0xff]
  %v3802 = vld [vmem:[%s4 + $0x350] sm:$0xff]
  %v3803 = vld [vmem:[%s4 + $0x358] sm:$0xff]
  %v3804 = vld [vmem:[%s4 + $0x360] sm:$0xff]
  %v3805 = vld [vmem:[%s4 + $0x368] sm:$0xff]
  %v3806 = vld [vmem:[%s4 + $0x370] sm:$0xff]
  %v3807 = vld [vmem:[%s4 + $0x378] sm:$0xff]
  %v3808 = vld [vmem:[%s4 + $0x380] sm:$0xff]
  %v3809 = vld [vmem:[%s4 + $0x388] sm:$0xff]
  %v3810 = vld [vmem:[%s4 + $0x390] sm:$0xff]
  %v3811 = vld [vmem:[%s4 + $0x398] sm:$0xff]
  %v3812 = vld [vmem:[%s4 + $0x3a0] sm:$0xff]
  %v3813 = vld [vmem:[%s4 + $0x3a8] sm:$0xff]
  %v3814 = vld [vmem:[%s4 + $0x3b0] sm:$0xff]
  %v3815 = vld [vmem:[%s4 + $0x3b8] sm:$0xff]
  %v3816 = vld [vmem:[%s4 + $0x3c0] sm:$0xff]
  %v3817 = vld [vmem:[%s4 + $0x3c8] sm:$0xff]
  %v3818 = vld [vmem:[%s4 + $0x3d0] sm:$0xff]
  %v3819 = vld [vmem:[%s4 + $0x3d8] sm:$0xff]
  %v3820 = vld [vmem:[%s4 + $0x3e0] sm:$0xff]
  %v3821 = vld [vmem:[%s4 + $0x3e8] sm:$0xff]
  %v3822 = vld [vmem:[%s4 + $0x3f0] sm:$0xff]
  %v3823 = vld [vmem:[%s4 + $0x3f8] sm:$0xff]
  %v3824 = vld [vmem:[%s4 + $0x400] sm:$0xff]
  %v3825 = vld [vmem:[%s4 + $0x408] sm:$0xff]
  %v3826 = vld [vmem:[%s4 + $0x410] sm:$0xff]
  %v3827 = vld [vmem:[%s4 + $0x418] sm:$0xff]
  %v3828 = vld [vmem:[%s4 + $0x420] sm:$0xff]
  %v3829 = vld [vmem:[%s4 + $0x428] sm:$0xff]
  %v3830 = vld [vmem:[%s4 + $0x430] sm:$0xff]
  %v3831 = vld [vmem:[%s4 + $0x438] sm:$0xff]
  %v3832 = vld [vmem:[%s4 + $0x440] sm:$0xff]
  %v3833 = vld [vmem:[%s4 + $0x448] sm:$0xff]
  %v3834 = vld [vmem:[%s4 + $0x450] sm:$0xff]
  %v3835 = vld [vmem:[%s4 + $0x458] sm:$0xff]
  %v3836 = vld [vmem:[%s4 + $0x460] sm:$0xff]
  %v3837 = vld [vmem:[%s4 + $0x468] sm:$0xff]
  %v3838 = vld [vmem:[%s4 + $0x470] sm:$0xff]
  %v3839 = vld [vmem:[%s4 + $0x478] sm:$0xff]
  %v3840 = vld [vmem:[%s4 + $0x480] sm:$0xff]
  %v3841 = vld [vmem:[%s4 + $0x488] sm:$0xff]
  %v3842 = vld [vmem:[%s4 + $0x490] sm:$0xff]
  %v3843 = vld [vmem:[%s4 + $0x498] sm:$0xff]
  %v3844 = vld [vmem:[%s4 + $0x4a0] sm:$0xff]
  %v3845 = vld [vmem:[%s4 + $0x4a8] sm:$0xff]
  %v3846 = vld [vmem:[%s4 + $0x4b0] sm:$0xff]
  %v3847 = vld [vmem:[%s4 + $0x4b8] sm:$0xff]
  %v3848 = vld [vmem:[%s4 + $0x4c0] sm:$0xff]
  %v3849 = vld [vmem:[%s4 + $0x4c8] sm:$0xff]
  %v3850 = vld [vmem:[%s4 + $0x4d0] sm:$0xff]
  %v3851 = vld [vmem:[%s4 + $0x4d8] sm:$0xff]
  %v3852 = vld [vmem:[%s4 + $0x4e0] sm:$0xff]
  %v3853 = vld [vmem:[%s4 + $0x4e8] sm:$0xff]
  %v3854 = vld [vmem:[%s4 + $0x4f0] sm:$0xff]
  %v3855 = vld [vmem:[%s4 + $0x4f8] sm:$0xff]
  %v3856 = vld [vmem:[%s4 + $0x500] sm:$0xff]
  %v3857 = vld [vmem:[%s4 + $0x508] sm:$0xff]
  %v3858 = vld [vmem:[%s4 + $0x510] sm:$0xff]
  %v3859 = vld [vmem:[%s4 + $0x518] sm:$0xff]
  %v3860 = vld [vmem:[%s4 + $0x520] sm:$0xff]
  %v3861 = vld [vmem:[%s4 + $0x528] sm:$0xff]
  %v3862 = vld [vmem:[%s4 + $0x530] sm:$0xff]
  %v3863 = vld [vmem:[%s4 + $0x538] sm:$0xff]
  %v3864 = vld [vmem:[%s4 + $0x540] sm:$0xff]
  %v3865 = vld [vmem:[%s4 + $0x548] sm:$0xff]
  %v3866 = vld [vmem:[%s4 + $0x550] sm:$0xff]
  %v3867 = vld [vmem:[%s4 + $0x558] sm:$0xff]
  %v3868 = vld [vmem:[%s4 + $0x560] sm:$0xff]
  %v3869 = vld [vmem:[%s4 + $0x568] sm:$0xff]
  %v3870 = vld [vmem:[%s4 + $0x570] sm:$0xff]
  %v3871 = vld [vmem:[%s4 + $0x578] sm:$0xff]
  %v3872 = vld [vmem:[%s4 + $0x580] sm:$0xff]
  %v3873 = vld [vmem:[%s4 + $0x588] sm:$0xff]
  %v3874 = vld [vmem:[%s4 + $0x590] sm:$0xff]
  %v3875 = vld [vmem:[%s4 + $0x598] sm:$0xff]
  %v3876 = vld [vmem:[%s4 + $0x5a0] sm:$0xff]
  %v3877 = vld [vmem:[%s4 + $0x5a8] sm:$0xff]
  %v3878 = vld [vmem:[%s4 + $0x5b0] sm:$0xff]
  %v3879 = vld [vmem:[%s4 + $0x5b8] sm:$0xff]
  %v3880 = vld [vmem:[%s4 + $0x5c0] sm:$0xff]
  %v3881 = vld [vmem:[%s4 + $0x5c8] sm:$0xff]
  %v3882 = vld [vmem:[%s4 + $0x5d0] sm:$0xff]
  %v3883 = vld [vmem:[%s4 + $0x5d8] sm:$0xff]
  %v3884 = vld [vmem:[%s4 + $0x5e0] sm:$0xff]
  %v3885 = vld [vmem:[%s4 + $0x5e8] sm:$0xff]
  %v3886 = vld [vmem:[%s4 + $0x5f0] sm:$0xff]
  %v3887 = vld [vmem:[%s4 + $0x5f8] sm:$0xff]
  %3888 = vmatprep.subr.mxu0 %v3787
  %3889 = vmatpush1.msra.mxu0 %v3786
  %3890 = vmatprep.subr.mxu0 %v3781
  %3891 = vmatpush1.msra.mxu0 %v3780
  %3892 = vmatprep.subr.mxu0 %v3775
  %3893 = vmatpush1.msra.mxu0 %v3774
  %3894 = vmatprep.subr.mxu0 %v3769
  %3895 = vmatpush1.msra.mxu0 %v3768
  %3896 = vmatprep.subr.mxu0 %v3763
  %3897 = vmatpush1.msra.mxu0 %v3762
  %3898 = vmatprep.subr.mxu0 %v3757
  %3899 = vmatpush1.msra.mxu0 %v3756
  %3900 = vmatprep.subr.mxu0 %v3751
  %3901 = vmatpush1.msra.mxu0 %v3750
  %3902 = vmatprep.subr.mxu0 %v3745
  %3903 = vmatpush1.msra.mxu0 %v3744
  %3904 = vmatprep.subr.mxu0 %v3739
  %3905 = vmatpush1.msra.mxu0 %v3738
  %3906 = vmatprep.subr.mxu0 %v3733
  %3907 = vmatpush1.msra.mxu0 %v3732
  %3908 = vmatprep.subr.mxu0 %v3727
  %3909 = vmatpush1.msra.mxu0 %v3726
  %3910 = vmatprep.subr.mxu0 %v3721
  %3911 = vmatpush1.msra.mxu0 %v3720
  %3912 = vmatprep.subr.mxu0 %v3715
  %3913 = vmatpush1.msra.mxu0 %v3714
  %3914 = vmatprep.subr.mxu0 %v3709
  %3915 = vmatpush1.msra.mxu0 %v3708
  %3916 = vmatprep.subr.mxu0 %v3703
  %3917 = vmatpush1.msra.mxu0 %v3702
  %3918 = vmatprep.subr.mxu0 %v3697
  %3919 = vmatpush1.msra.mxu0 %v3696
  %3920 = vmatprep.subr.mxu0 %v3883
  %3921 = vmatpush2.msra.mxu0 %v3882
  %3922 = vmatprep.subr.mxu0 %v3877
  %3923 = vmatpush2.msra.mxu0 %v3876
  %3924 = vmatprep.subr.mxu0 %v3871
  %3925 = vmatpush2.msra.mxu0 %v3870
  %3926 = vmatprep.subr.mxu0 %v3865
  %3927 = vmatpush2.msra.mxu0 %v3864
  %3928 = vmatprep.subr.mxu0 %v3859
  %3929 = vmatpush2.msra.mxu0 %v3858
  %3930 = vmatprep.subr.mxu0 %v3853
  %3931 = vmatpush2.msra.mxu0 %v3852
  %3932 = vmatprep.subr.mxu0 %v3847
  %3933 = vmatpush2.msra.mxu0 %v3846
  %3934 = vmatprep.subr.mxu0 %v3841
  %3935 = vmatpush2.msra.mxu0 %v3840
  %3936 = vmatprep.subr.mxu0 %v3835
  %3937 = vmatpush2.msra.mxu0 %v3834
  %3938 = vmatprep.subr.mxu0 %v3829
  %3939 = vmatpush2.msra.mxu0 %v3828
  %3940 = vmatprep.subr.mxu0 %v3823
  %3941 = vmatpush2.msra.mxu0 %v3822
  %3942 = vmatprep.subr.mxu0 %v3817
  %3943 = vmatpush2.msra.mxu0 %v3816
  %3944 = vmatprep.subr.mxu0 %v3811
  %3945 = vmatpush2.msra.mxu0 %v3810
  %3946 = vmatprep.subr.mxu0 %v3805
  %3947 = vmatpush2.msra.mxu0 %v3804
  %3948 = vmatprep.subr.mxu0 %v3799
  %3949 = vmatpush2.msra.mxu0 %v3798
  %3950 = vmatprep.subr.mxu0 %v3793
  %3951 = vmatpush2.msra.mxu0 %v3792
  %3952 = vmatprep.mubr.f32.mxu0 %v3695
  %3953 = vmatmul.mubr.f32.gmra.mxu0 %v3694
  %v3954 = vpop.f32.mrf.mxu0
  %v3955 = vadd.f32 0.0, %v3954
  %v3956 = vpop.f32.mrf.mxu0
  %v3957 = vadd.f32 0.0, %v3956
  %3958 = vdwg.mxu0
  %3959 = vmatprep.subr.mxu0 %v3789
  %3960 = vmatpush1.msra.mxu0 %v3788
  %3961 = vmatprep.subr.mxu0 %v3783
  %3962 = vmatpush1.msra.mxu0 %v3782
  %3963 = vmatprep.subr.mxu0 %v3777
  %3964 = vmatpush1.msra.mxu0 %v3776
  %3965 = vmatprep.subr.mxu0 %v3771
  %3966 = vmatpush1.msra.mxu0 %v3770
  %3967 = vmatprep.subr.mxu0 %v3765
  %3968 = vmatpush1.msra.mxu0 %v3764
  %3969 = vmatprep.subr.mxu0 %v3759
  %3970 = vmatpush1.msra.mxu0 %v3758
  %3971 = vmatprep.subr.mxu0 %v3753
  %3972 = vmatpush1.msra.mxu0 %v3752
  %3973 = vmatprep.subr.mxu0 %v3747
  %3974 = vmatpush1.msra.mxu0 %v3746
  %3975 = vmatprep.subr.mxu0 %v3741
  %3976 = vmatpush1.msra.mxu0 %v3740
  %3977 = vmatprep.subr.mxu0 %v3735
  %3978 = vmatpush1.msra.mxu0 %v3734
  %3979 = vmatprep.subr.mxu0 %v3729
  %3980 = vmatpush1.msra.mxu0 %v3728
  %3981 = vmatprep.subr.mxu0 %v3723
  %3982 = vmatpush1.msra.mxu0 %v3722
  %3983 = vmatprep.subr.mxu0 %v3717
  %3984 = vmatpush1.msra.mxu0 %v3716
  %3985 = vmatprep.subr.mxu0 %v3711
  %3986 = vmatpush1.msra.mxu0 %v3710
  %3987 = vmatprep.subr.mxu0 %v3705
  %3988 = vmatpush1.msra.mxu0 %v3704
  %3989 = vmatprep.subr.mxu0 %v3699
  %3990 = vmatpush1.msra.mxu0 %v3698
  %3991 = vmatprep.subr.mxu0 %v3885
  %3992 = vmatpush2.msra.mxu0 %v3884
  %3993 = vmatprep.subr.mxu0 %v3879
  %3994 = vmatpush2.msra.mxu0 %v3878
  %3995 = vmatprep.subr.mxu0 %v3873
  %3996 = vmatpush2.msra.mxu0 %v3872
  %3997 = vmatprep.subr.mxu0 %v3867
  %3998 = vmatpush2.msra.mxu0 %v3866
  %3999 = vmatprep.subr.mxu0 %v3861
  %4000 = vmatpush2.msra.mxu0 %v3860
  %4001 = vmatprep.subr.mxu0 %v3855
  %4002 = vmatpush2.msra.mxu0 %v3854
  %4003 = vmatprep.subr.mxu0 %v3849
  %4004 = vmatpush2.msra.mxu0 %v3848
  %4005 = vmatprep.subr.mxu0 %v3843
  %4006 = vmatpush2.msra.mxu0 %v3842
  %4007 = vmatprep.subr.mxu0 %v3837
  %4008 = vmatpush2.msra.mxu0 %v3836
  %4009 = vmatprep.subr.mxu0 %v3831
  %4010 = vmatpush2.msra.mxu0 %v3830
  %4011 = vmatprep.subr.mxu0 %v3825
  %4012 = vmatpush2.msra.mxu0 %v3824
  %4013 = vmatprep.subr.mxu0 %v3819
  %4014 = vmatpush2.msra.mxu0 %v3818
  %4015 = vmatprep.subr.mxu0 %v3813
  %4016 = vmatpush2.msra.mxu0 %v3812
  %4017 = vmatprep.subr.mxu0 %v3807
  %4018 = vmatpush2.msra.mxu0 %v3806
  %4019 = vmatprep.subr.mxu0 %v3801
  %4020 = vmatpush2.msra.mxu0 %v3800
  %4021 = vmatprep.subr.mxu0 %v3795
  %4022 = vmatpush2.msra.mxu0 %v3794
  %4023 = vmatprep.mubr.f32.mxu0 %v3695
  %4024 = vmatmul.mubr.f32.gmra.mxu0 %v3694
  %v4025 = vpop.f32.mrf.mxu0
  %v4026 = vadd.f32 0.0, %v4025
  %v4027 = vpop.f32.mrf.mxu0
  %v4028 = vadd.f32 0.0, %v4027
  %4029 = vdwg.mxu0
  %4030 = vmatprep.subr.mxu0 %v3791
  %4031 = vmatpush1.msra.mxu0 %v3790
  %4032 = vmatprep.subr.mxu0 %v3785
  %4033 = vmatpush1.msra.mxu0 %v3784
  %4034 = vmatprep.subr.mxu0 %v3779
  %4035 = vmatpush1.msra.mxu0 %v3778
  %4036 = vmatprep.subr.mxu0 %v3773
  %4037 = vmatpush1.msra.mxu0 %v3772
  %4038 = vmatprep.subr.mxu0 %v3767
  %4039 = vmatpush1.msra.mxu0 %v3766
  %4040 = vmatprep.subr.mxu0 %v3761
  %4041 = vmatpush1.msra.mxu0 %v3760
  %4042 = vmatprep.subr.mxu0 %v3755
  %4043 = vmatpush1.msra.mxu0 %v3754
  %4044 = vmatprep.subr.mxu0 %v3749
  %4045 = vmatpush1.msra.mxu0 %v3748
  %4046 = vmatprep.subr.mxu0 %v3743
  %4047 = vmatpush1.msra.mxu0 %v3742
  %4048 = vmatprep.subr.mxu0 %v3737
  %4049 = vmatpush1.msra.mxu0 %v3736
  %4050 = vmatprep.subr.mxu0 %v3731
  %4051 = vmatpush1.msra.mxu0 %v3730
  %4052 = vmatprep.subr.mxu0 %v3725
  %4053 = vmatpush1.msra.mxu0 %v3724
  %4054 = vmatprep.subr.mxu0 %v3719
  %4055 = vmatpush1.msra.mxu0 %v3718
  %4056 = vmatprep.subr.mxu0 %v3713
  %4057 = vmatpush1.msra.mxu0 %v3712
  %4058 = vmatprep.subr.mxu0 %v3707
  %4059 = vmatpush1.msra.mxu0 %v3706
  %4060 = vmatprep.subr.mxu0 %v3701
  %4061 = vmatpush1.msra.mxu0 %v3700
  %4062 = vmatprep.subr.mxu0 %v3887
  %4063 = vmatpush2.msra.mxu0 %v3886
  %4064 = vmatprep.subr.mxu0 %v3881
  %4065 = vmatpush2.msra.mxu0 %v3880
  %4066 = vmatprep.subr.mxu0 %v3875
  %4067 = vmatpush2.msra.mxu0 %v3874
  %4068 = vmatprep.subr.mxu0 %v3869
  %4069 = vmatpush2.msra.mxu0 %v3868
  %4070 = vmatprep.subr.mxu0 %v3863
  %4071 = vmatpush2.msra.mxu0 %v3862
  %4072 = vmatprep.subr.mxu0 %v3857
  %4073 = vmatpush2.msra.mxu0 %v3856
  %4074 = vmatprep.subr.mxu0 %v3851
  %4075 = vmatpush2.msra.mxu0 %v3850
  %4076 = vmatprep.subr.mxu0 %v3845
  %4077 = vmatpush2.msra.mxu0 %v3844
  %4078 = vmatprep.subr.mxu0 %v3839
  %4079 = vmatpush2.msra.mxu0 %v3838
  %4080 = vmatprep.subr.mxu0 %v3833
  %4081 = vmatpush2.msra.mxu0 %v3832
  %4082 = vmatprep.subr.mxu0 %v3827
  %4083 = vmatpush2.msra.mxu0 %v3826
  %4084 = vmatprep.subr.mxu0 %v3821
  %4085 = vmatpush2.msra.mxu0 %v3820
  %4086 = vmatprep.subr.mxu0 %v3815
  %4087 = vmatpush2.msra.mxu0 %v3814
  %4088 = vmatprep.subr.mxu0 %v3809
  %4089 = vmatpush2.msra.mxu0 %v3808
  %4090 = vmatprep.subr.mxu0 %v3803
  %4091 = vmatpush2.msra.mxu0 %v3802
  %4092 = vmatprep.subr.mxu0 %v3797
  %4093 = vmatpush2.msra.mxu0 %v3796
  %4094 = vmatprep.mubr.f32.mxu0 %v3695
  %4095 = vmatmul.mubr.f32.gmra.mxu0 %v3694
  %v4096 = vpop.f32.mrf.mxu0
  %v4097 = vadd.f32 0.0, %v4096
  %v4098 = vpop.f32.mrf.mxu0
  %v4099 = vadd.f32 0.0, %v4098
  %4100 = vdwg.mxu0
  %v4101 = vld [vmem:[%s1449] sm:$0xff]
  %v4102 = vld [vmem:[%s1449 + $0x8] sm:$0xff]
  %v4103 = vld [vmem:[%s1449 + $0x10] sm:$0xff]
  %v4104 = vld [vmem:[%s1445 + $0x18] sm:$0xff]
  %v4105 = vld [vmem:[%s1445 + $0x20] sm:$0xff]
  %v4106 = vld [vmem:[%s1445 + $0x28] sm:$0xff]
  %v4107 = vld [vmem:[%s5] sm:$0x1]
  %v4108 = vld [vmem:[%s5 + $0x1] sm:$0x1]
  %v4109 = vadd.f32 %v4101, %v3955
  %v4110 = vxor.u32 %v4109, 2147483648
  %v4111 = vmul.f32 %v4110, 1.442695
  %v4112 = vpow.pop %v4111
  %v4113 = vadd.f32 %v4112, 1.0
  %v4114 = vrcp.pop %v4113
  %v4115 = vmul.f32 1.0, %v4114
  %v4116 = vadd.f32 %v4102, %v3957
  %v4117 = vxor.u32 %v4116, 2147483648
  %v4118 = vmul.f32 %v4117, 1.442695
  %v4119 = vpow.pop %v4118
  %v4120 = vadd.f32 %v4119, 1.0
  %v4121 = vrcp.pop %v4120
  %v4122 = vmul.f32 1.0, %v4121
  %v4124 = vlaneseq
  %v4125 = vshrl.u32 %v4124, 7
  %v4126 = vsub.s32 0, %v4125
  %v4127 = vrot.slane %v4107, %v4126
  %v4129 = vadd.f32 %v4026, %v4127
  %v4130 = vmul.f32 %v4115, %v4129
  %v4131 = vadd.f32 %v4103, %v4130
  %v4132 = vtanh.pop %v4131
  %v4133 = vsub.f32 1.0, %v4122
  %v4134 = vmul.f32 %v4133, %v4132
  %v4135 = vmul.f32 %v4122, %v3694
  %v4136 = vadd.f32 %v4134, %v4135
  %v4137 = vadd.f32 %v4104, %v4028
  %v4138 = vxor.u32 %v4137, 2147483648
  %v4139 = vmul.f32 %v4138, 1.442695
  %v4140 = vpow.pop %v4139
  %v4141 = vadd.f32 %v4140, 1.0
  %v4142 = vrcp.pop %v4141
  %v4143 = vmul.f32 1.0, %v4142
  %v4144 = vadd.f32 %v4105, %v4097
  %v4145 = vxor.u32 %v4144, 2147483648
  %v4146 = vmul.f32 %v4145, 1.442695
  %v4147 = vpow.pop %v4146
  %v4148 = vadd.f32 %v4147, 1.0
  %v4149 = vrcp.pop %v4148
  %v4150 = vmul.f32 1.0, %v4149
  %v4152 = vlaneseq
  %v4153 = vshrl.u32 %v4152, 7
  %v4154 = vsub.s32 0, %v4153
  %v4155 = vrot.slane %v4108, %v4154
  %v4157 = vadd.f32 %v4099, %v4155
  %v4158 = vmul.f32 %v4143, %v4157
  %v4159 = vadd.f32 %v4106, %v4158
  %v4160 = vtanh.pop %v4159
  %v4161 = vsub.f32 1.0, %v4150
  %v4162 = vmul.f32 %v4161, %v4160
  %v4163 = vmul.f32 %v4150, %v3695
  %v4164 = vadd.f32 %v4162, %v4163
  %v4165 = vsel %vm1525, %v4136, 0.0
  %4166 = vst [vmem:[%s1527] sm:$0xff] %v4165
  %v4167 = vsel %vm1517, %v4164, 0.0
  %4168 = vst [vmem:[%s1519 + $0x8] sm:$0xff] %v4167
  %v4169 = vld [vmem:[%s1527] sm:$0xff]
  %v4170 = vld [vmem:[%s1527 + $0x8] sm:$0xff]
  %v4171 = vadd.f32 %v4169, %v4170
  %4172 = vadd.xlane.f32.xlu0 %v4171
  %v4173 = vpop.xlane.xlu0 %4172
  %v4174 = vmul.f32 %v4173, 0.03125
  %v4175 = vsub.f32 %v4169, %v4174
  %v4176 = vsub.f32 %v4170, %v4174
  %v4177 = vmul.f32 %v4175, %v3019
  %v4178 = vmul.f32 %v4176, %v3020
  %v4179 = vmul.f32 %v4177, %v4177
  %v4180 = vmul.f32 %v4178, %v4178
  %v4181 = vadd.f32 %v4179, %v4180
  %4182 = vadd.xlane.f32.xlu0 %v4181
  %v4183 = vpop.xlane.xlu0 %4182
  %v4184 = vmul.f32 %v4183, 0.03125
  %v4185 = vadd.f32 %v4184, 1e-05
  %v4186 = vrsqrt.pop %v4185
  %v4187 = vmul.f32 %v4177, %v4186
  %v4188 = vmul.f32 %v4178, %v4186
  %v4189 = vld [vmem:[%s6] sm:$0x3]
  %v4191 = vlaneseq
  %v4192 = vshrl.u32 %v4191, 7
  %v4193 = vsub.s32 0, %v4192
  %v4194 = vrot.slane %v4189, %v4193
  %v4195 = vlaneseq
  %v4196 = vshrl.u32 %v4195, 7
  %v4197 = vsub.s32 1, %v4196
  %v4198 = vrot.slane %v4189, %v4197
  %v4201 = vmul.f32 %v4187, %v4194
  %v4202 = vmul.f32 %v4188, %v4198
  %v4203 = vld [vmem:[%s7] sm:$0x3]
  %v4205 = vlaneseq
  %v4206 = vshrl.u32 %v4205, 7
  %v4207 = vsub.s32 0, %v4206
  %v4208 = vrot.slane %v4203, %v4207
  %v4209 = vlaneseq
  %v4210 = vshrl.u32 %v4209, 7
  %v4211 = vsub.s32 1, %v4210
  %v4212 = vrot.slane %v4203, %v4211
  %v4215 = vadd.f32 %v4201, %v4208
  %v4216 = vadd.f32 %v4202, %v4212
  %4217 = vst [vmem:[%s1527] sm:$0xff] %v4215
  %4218 = vst [vmem:[%s1527 + $0x8] sm:$0xff] %v4216
  %v4219 = vld [vmem:[%s1519] sm:$0xff]
  %v4220 = vld [vmem:[%s1519 + $0x8] sm:$0xff]
  %v4221 = vadd.f32 %v4219, %v4220
  %4222 = vadd.xlane.f32.xlu0 %v4221
  %v4223 = vpop.xlane.xlu0 %4222
  %v4224 = vmul.f32 %v4223, 0.03125
  %v4225 = vsub.f32 %v4219, %v4224
  %v4226 = vsub.f32 %v4220, %v4224
  %v4227 = vmul.f32 %v4225, %v3019
  %v4228 = vmul.f32 %v4226, %v3020
  %v4229 = vmul.f32 %v4227, %v4227
  %v4230 = vmul.f32 %v4228, %v4228
  %v4231 = vadd.f32 %v4229, %v4230
  %4232 = vadd.xlane.f32.xlu0 %v4231
  %v4233 = vpop.xlane.xlu0 %4232
  %v4234 = vmul.f32 %v4233, 0.03125
  %v4235 = vadd.f32 %v4234, 1e-05
  %v4236 = vrsqrt.pop %v4235
  %v4237 = vmul.f32 %v4227, %v4236
  %v4238 = vmul.f32 %v4228, %v4236
  %v4239 = vld [vmem:[%s6] sm:$0x3]
  %v4241 = vlaneseq
  %v4242 = vshrl.u32 %v4241, 7
  %v4243 = vsub.s32 0, %v4242
  %v4244 = vrot.slane %v4239, %v4243
  %v4245 = vlaneseq
  %v4246 = vshrl.u32 %v4245, 7
  %v4247 = vsub.s32 1, %v4246
  %v4248 = vrot.slane %v4239, %v4247
  %v4251 = vmul.f32 %v4237, %v4244
  %v4252 = vmul.f32 %v4238, %v4248
  %v4253 = vld [vmem:[%s7] sm:$0x3]
  %v4255 = vlaneseq
  %v4256 = vshrl.u32 %v4255, 7
  %v4257 = vsub.s32 0, %v4256
  %v4258 = vrot.slane %v4253, %v4257
  %v4259 = vlaneseq
  %v4260 = vshrl.u32 %v4259, 7
  %v4261 = vsub.s32 1, %v4260
  %v4262 = vrot.slane %v4253, %v4261
  %v4265 = vadd.f32 %v4251, %v4258
  %v4266 = vadd.f32 %v4252, %v4262
  %4267 = vst [vmem:[%s1519] sm:$0xff] %v4265
  %4268 = vst [vmem:[%s1519 + $0x8] sm:$0xff] %v4266
  %v4269 = vsel %vm1525, %v4136, %v3694
  %v4270 = vsel %vm1517, %v4164, %v3695
  %v4271 = vld [vmem:[%s4] sm:$0xff]
  %v4272 = vld [vmem:[%s4 + $0x8] sm:$0xff]
  %v4273 = vld [vmem:[%s4 + $0x10] sm:$0xff]
  %v4274 = vld [vmem:[%s4 + $0x18] sm:$0xff]
  %v4275 = vld [vmem:[%s4 + $0x20] sm:$0xff]
  %v4276 = vld [vmem:[%s4 + $0x28] sm:$0xff]
  %v4277 = vld [vmem:[%s4 + $0x30] sm:$0xff]
  %v4278 = vld [vmem:[%s4 + $0x38] sm:$0xff]
  %v4279 = vld [vmem:[%s4 + $0x40] sm:$0xff]
  %v4280 = vld [vmem:[%s4 + $0x48] sm:$0xff]
  %v4281 = vld [vmem:[%s4 + $0x50] sm:$0xff]
  %v4282 = vld [vmem:[%s4 + $0x58] sm:$0xff]
  %v4283 = vld [vmem:[%s4 + $0x60] sm:$0xff]
  %v4284 = vld [vmem:[%s4 + $0x68] sm:$0xff]
  %v4285 = vld [vmem:[%s4 + $0x70] sm:$0xff]
  %v4286 = vld [vmem:[%s4 + $0x78] sm:$0xff]
  %v4287 = vld [vmem:[%s4 + $0x80] sm:$0xff]
  %v4288 = vld [vmem:[%s4 + $0x88] sm:$0xff]
  %v4289 = vld [vmem:[%s4 + $0x90] sm:$0xff]
  %v4290 = vld [vmem:[%s4 + $0x98] sm:$0xff]
  %v4291 = vld [vmem:[%s4 + $0xa0] sm:$0xff]
  %v4292 = vld [vmem:[%s4 + $0xa8] sm:$0xff]
  %v4293 = vld [vmem:[%s4 + $0xb0] sm:$0xff]
  %v4294 = vld [vmem:[%s4 + $0xb8] sm:$0xff]
  %v4295 = vld [vmem:[%s4 + $0xc0] sm:$0xff]
  %v4296 = vld [vmem:[%s4 + $0xc8] sm:$0xff]
  %v4297 = vld [vmem:[%s4 + $0xd0] sm:$0xff]
  %v4298 = vld [vmem:[%s4 + $0xd8] sm:$0xff]
  %v4299 = vld [vmem:[%s4 + $0xe0] sm:$0xff]
  %v4300 = vld [vmem:[%s4 + $0xe8] sm:$0xff]
  %v4301 = vld [vmem:[%s4 + $0xf0] sm:$0xff]
  %v4302 = vld [vmem:[%s4 + $0xf8] sm:$0xff]
  %v4303 = vld [vmem:[%s4 + $0x100] sm:$0xff]
  %v4304 = vld [vmem:[%s4 + $0x108] sm:$0xff]
  %v4305 = vld [vmem:[%s4 + $0x110] sm:$0xff]
  %v4306 = vld [vmem:[%s4 + $0x118] sm:$0xff]
  %v4307 = vld [vmem:[%s4 + $0x120] sm:$0xff]
  %v4308 = vld [vmem:[%s4 + $0x128] sm:$0xff]
  %v4309 = vld [vmem:[%s4 + $0x130] sm:$0xff]
  %v4310 = vld [vmem:[%s4 + $0x138] sm:$0xff]
  %v4311 = vld [vmem:[%s4 + $0x140] sm:$0xff]
  %v4312 = vld [vmem:[%s4 + $0x148] sm:$0xff]
  %v4313 = vld [vmem:[%s4 + $0x150] sm:$0xff]
  %v4314 = vld [vmem:[%s4 + $0x158] sm:$0xff]
  %v4315 = vld [vmem:[%s4 + $0x160] sm:$0xff]
  %v4316 = vld [vmem:[%s4 + $0x168] sm:$0xff]
  %v4317 = vld [vmem:[%s4 + $0x170] sm:$0xff]
  %v4318 = vld [vmem:[%s4 + $0x178] sm:$0xff]
  %v4319 = vld [vmem:[%s4 + $0x180] sm:$0xff]
  %v4320 = vld [vmem:[%s4 + $0x188] sm:$0xff]
  %v4321 = vld [vmem:[%s4 + $0x190] sm:$0xff]
  %v4322 = vld [vmem:[%s4 + $0x198] sm:$0xff]
  %v4323 = vld [vmem:[%s4 + $0x1a0] sm:$0xff]
  %v4324 = vld [vmem:[%s4 + $0x1a8] sm:$0xff]
  %v4325 = vld [vmem:[%s4 + $0x1b0] sm:$0xff]
  %v4326 = vld [vmem:[%s4 + $0x1b8] sm:$0xff]
  %v4327 = vld [vmem:[%s4 + $0x1c0] sm:$0xff]
  %v4328 = vld [vmem:[%s4 + $0x1c8] sm:$0xff]
  %v4329 = vld [vmem:[%s4 + $0x1d0] sm:$0xff]
  %v4330 = vld [vmem:[%s4 + $0x1d8] sm:$0xff]
  %v4331 = vld [vmem:[%s4 + $0x1e0] sm:$0xff]
  %v4332 = vld [vmem:[%s4 + $0x1e8] sm:$0xff]
  %v4333 = vld [vmem:[%s4 + $0x1f0] sm:$0xff]
  %v4334 = vld [vmem:[%s4 + $0x1f8] sm:$0xff]
  %v4335 = vld [vmem:[%s4 + $0x200] sm:$0xff]
  %v4336 = vld [vmem:[%s4 + $0x208] sm:$0xff]
  %v4337 = vld [vmem:[%s4 + $0x210] sm:$0xff]
  %v4338 = vld [vmem:[%s4 + $0x218] sm:$0xff]
  %v4339 = vld [vmem:[%s4 + $0x220] sm:$0xff]
  %v4340 = vld [vmem:[%s4 + $0x228] sm:$0xff]
  %v4341 = vld [vmem:[%s4 + $0x230] sm:$0xff]
  %v4342 = vld [vmem:[%s4 + $0x238] sm:$0xff]
  %v4343 = vld [vmem:[%s4 + $0x240] sm:$0xff]
  %v4344 = vld [vmem:[%s4 + $0x248] sm:$0xff]
  %v4345 = vld [vmem:[%s4 + $0x250] sm:$0xff]
  %v4346 = vld [vmem:[%s4 + $0x258] sm:$0xff]
  %v4347 = vld [vmem:[%s4 + $0x260] sm:$0xff]
  %v4348 = vld [vmem:[%s4 + $0x268] sm:$0xff]
  %v4349 = vld [vmem:[%s4 + $0x270] sm:$0xff]
  %v4350 = vld [vmem:[%s4 + $0x278] sm:$0xff]
  %v4351 = vld [vmem:[%s4 + $0x280] sm:$0xff]
  %v4352 = vld [vmem:[%s4 + $0x288] sm:$0xff]
  %v4353 = vld [vmem:[%s4 + $0x290] sm:$0xff]
  %v4354 = vld [vmem:[%s4 + $0x298] sm:$0xff]
  %v4355 = vld [vmem:[%s4 + $0x2a0] sm:$0xff]
  %v4356 = vld [vmem:[%s4 + $0x2a8] sm:$0xff]
  %v4357 = vld [vmem:[%s4 + $0x2b0] sm:$0xff]
  %v4358 = vld [vmem:[%s4 + $0x2b8] sm:$0xff]
  %v4359 = vld [vmem:[%s4 + $0x2c0] sm:$0xff]
  %v4360 = vld [vmem:[%s4 + $0x2c8] sm:$0xff]
  %v4361 = vld [vmem:[%s4 + $0x2d0] sm:$0xff]
  %v4362 = vld [vmem:[%s4 + $0x2d8] sm:$0xff]
  %v4363 = vld [vmem:[%s4 + $0x2e0] sm:$0xff]
  %v4364 = vld [vmem:[%s4 + $0x2e8] sm:$0xff]
  %v4365 = vld [vmem:[%s4 + $0x2f0] sm:$0xff]
  %v4366 = vld [vmem:[%s4 + $0x2f8] sm:$0xff]
  %v4367 = vld [vmem:[%s4 + $0x300] sm:$0xff]
  %v4368 = vld [vmem:[%s4 + $0x308] sm:$0xff]
  %v4369 = vld [vmem:[%s4 + $0x310] sm:$0xff]
  %v4370 = vld [vmem:[%s4 + $0x318] sm:$0xff]
  %v4371 = vld [vmem:[%s4 + $0x320] sm:$0xff]
  %v4372 = vld [vmem:[%s4 + $0x328] sm:$0xff]
  %v4373 = vld [vmem:[%s4 + $0x330] sm:$0xff]
  %v4374 = vld [vmem:[%s4 + $0x338] sm:$0xff]
  %v4375 = vld [vmem:[%s4 + $0x340] sm:$0xff]
  %v4376 = vld [vmem:[%s4 + $0x348] sm:$0xff]
  %v4377 = vld [vmem:[%s4 + $0x350] sm:$0xff]
  %v4378 = vld [vmem:[%s4 + $0x358] sm:$0xff]
  %v4379 = vld [vmem:[%s4 + $0x360] sm:$0xff]
  %v4380 = vld [vmem:[%s4 + $0x368] sm:$0xff]
  %v4381 = vld [vmem:[%s4 + $0x370] sm:$0xff]
  %v4382 = vld [vmem:[%s4 + $0x378] sm:$0xff]
  %v4383 = vld [vmem:[%s4 + $0x380] sm:$0xff]
  %v4384 = vld [vmem:[%s4 + $0x388] sm:$0xff]
  %v4385 = vld [vmem:[%s4 + $0x390] sm:$0xff]
  %v4386 = vld [vmem:[%s4 + $0x398] sm:$0xff]
  %v4387 = vld [vmem:[%s4 + $0x3a0] sm:$0xff]
  %v4388 = vld [vmem:[%s4 + $0x3a8] sm:$0xff]
  %v4389 = vld [vmem:[%s4 + $0x3b0] sm:$0xff]
  %v4390 = vld [vmem:[%s4 + $0x3b8] sm:$0xff]
  %v4391 = vld [vmem:[%s4 + $0x3c0] sm:$0xff]
  %v4392 = vld [vmem:[%s4 + $0x3c8] sm:$0xff]
  %v4393 = vld [vmem:[%s4 + $0x3d0] sm:$0xff]
  %v4394 = vld [vmem:[%s4 + $0x3d8] sm:$0xff]
  %v4395 = vld [vmem:[%s4 + $0x3e0] sm:$0xff]
  %v4396 = vld [vmem:[%s4 + $0x3e8] sm:$0xff]
  %v4397 = vld [vmem:[%s4 + $0x3f0] sm:$0xff]
  %v4398 = vld [vmem:[%s4 + $0x3f8] sm:$0xff]
  %v4399 = vld [vmem:[%s4 + $0x400] sm:$0xff]
  %v4400 = vld [vmem:[%s4 + $0x408] sm:$0xff]
  %v4401 = vld [vmem:[%s4 + $0x410] sm:$0xff]
  %v4402 = vld [vmem:[%s4 + $0x418] sm:$0xff]
  %v4403 = vld [vmem:[%s4 + $0x420] sm:$0xff]
  %v4404 = vld [vmem:[%s4 + $0x428] sm:$0xff]
  %v4405 = vld [vmem:[%s4 + $0x430] sm:$0xff]
  %v4406 = vld [vmem:[%s4 + $0x438] sm:$0xff]
  %v4407 = vld [vmem:[%s4 + $0x440] sm:$0xff]
  %v4408 = vld [vmem:[%s4 + $0x448] sm:$0xff]
  %v4409 = vld [vmem:[%s4 + $0x450] sm:$0xff]
  %v4410 = vld [vmem:[%s4 + $0x458] sm:$0xff]
  %v4411 = vld [vmem:[%s4 + $0x460] sm:$0xff]
  %v4412 = vld [vmem:[%s4 + $0x468] sm:$0xff]
  %v4413 = vld [vmem:[%s4 + $0x470] sm:$0xff]
  %v4414 = vld [vmem:[%s4 + $0x478] sm:$0xff]
  %v4415 = vld [vmem:[%s4 + $0x480] sm:$0xff]
  %v4416 = vld [vmem:[%s4 + $0x488] sm:$0xff]
  %v4417 = vld [vmem:[%s4 + $0x490] sm:$0xff]
  %v4418 = vld [vmem:[%s4 + $0x498] sm:$0xff]
  %v4419 = vld [vmem:[%s4 + $0x4a0] sm:$0xff]
  %v4420 = vld [vmem:[%s4 + $0x4a8] sm:$0xff]
  %v4421 = vld [vmem:[%s4 + $0x4b0] sm:$0xff]
  %v4422 = vld [vmem:[%s4 + $0x4b8] sm:$0xff]
  %v4423 = vld [vmem:[%s4 + $0x4c0] sm:$0xff]
  %v4424 = vld [vmem:[%s4 + $0x4c8] sm:$0xff]
  %v4425 = vld [vmem:[%s4 + $0x4d0] sm:$0xff]
  %v4426 = vld [vmem:[%s4 + $0x4d8] sm:$0xff]
  %v4427 = vld [vmem:[%s4 + $0x4e0] sm:$0xff]
  %v4428 = vld [vmem:[%s4 + $0x4e8] sm:$0xff]
  %v4429 = vld [vmem:[%s4 + $0x4f0] sm:$0xff]
  %v4430 = vld [vmem:[%s4 + $0x4f8] sm:$0xff]
  %v4431 = vld [vmem:[%s4 + $0x500] sm:$0xff]
  %v4432 = vld [vmem:[%s4 + $0x508] sm:$0xff]
  %v4433 = vld [vmem:[%s4 + $0x510] sm:$0xff]
  %v4434 = vld [vmem:[%s4 + $0x518] sm:$0xff]
  %v4435 = vld [vmem:[%s4 + $0x520] sm:$0xff]
  %v4436 = vld [vmem:[%s4 + $0x528] sm:$0xff]
  %v4437 = vld [vmem:[%s4 + $0x530] sm:$0xff]
  %v4438 = vld [vmem:[%s4 + $0x538] sm:$0xff]
  %v4439 = vld [vmem:[%s4 + $0x540] sm:$0xff]
  %v4440 = vld [vmem:[%s4 + $0x548] sm:$0xff]
  %v4441 = vld [vmem:[%s4 + $0x550] sm:$0xff]
  %v4442 = vld [vmem:[%s4 + $0x558] sm:$0xff]
  %v4443 = vld [vmem:[%s4 + $0x560] sm:$0xff]
  %v4444 = vld [vmem:[%s4 + $0x568] sm:$0xff]
  %v4445 = vld [vmem:[%s4 + $0x570] sm:$0xff]
  %v4446 = vld [vmem:[%s4 + $0x578] sm:$0xff]
  %v4447 = vld [vmem:[%s4 + $0x580] sm:$0xff]
  %v4448 = vld [vmem:[%s4 + $0x588] sm:$0xff]
  %v4449 = vld [vmem:[%s4 + $0x590] sm:$0xff]
  %v4450 = vld [vmem:[%s4 + $0x598] sm:$0xff]
  %v4451 = vld [vmem:[%s4 + $0x5a0] sm:$0xff]
  %v4452 = vld [vmem:[%s4 + $0x5a8] sm:$0xff]
  %v4453 = vld [vmem:[%s4 + $0x5b0] sm:$0xff]
  %v4454 = vld [vmem:[%s4 + $0x5b8] sm:$0xff]
  %v4455 = vld [vmem:[%s4 + $0x5c0] sm:$0xff]
  %v4456 = vld [vmem:[%s4 + $0x5c8] sm:$0xff]
  %v4457 = vld [vmem:[%s4 + $0x5d0] sm:$0xff]
  %v4458 = vld [vmem:[%s4 + $0x5d8] sm:$0xff]
  %v4459 = vld [vmem:[%s4 + $0x5e0] sm:$0xff]
  %v4460 = vld [vmem:[%s4 + $0x5e8] sm:$0xff]
  %v4461 = vld [vmem:[%s4 + $0x5f0] sm:$0xff]
  %v4462 = vld [vmem:[%s4 + $0x5f8] sm:$0xff]
  %4463 = vmatprep.subr.mxu0 %v4362
  %4464 = vmatpush1.msra.mxu0 %v4361
  %4465 = vmatprep.subr.mxu0 %v4356
  %4466 = vmatpush1.msra.mxu0 %v4355
  %4467 = vmatprep.subr.mxu0 %v4350
  %4468 = vmatpush1.msra.mxu0 %v4349
  %4469 = vmatprep.subr.mxu0 %v4344
  %4470 = vmatpush1.msra.mxu0 %v4343
  %4471 = vmatprep.subr.mxu0 %v4338
  %4472 = vmatpush1.msra.mxu0 %v4337
  %4473 = vmatprep.subr.mxu0 %v4332
  %4474 = vmatpush1.msra.mxu0 %v4331
  %4475 = vmatprep.subr.mxu0 %v4326
  %4476 = vmatpush1.msra.mxu0 %v4325
  %4477 = vmatprep.subr.mxu0 %v4320
  %4478 = vmatpush1.msra.mxu0 %v4319
  %4479 = vmatprep.subr.mxu0 %v4314
  %4480 = vmatpush1.msra.mxu0 %v4313
  %4481 = vmatprep.subr.mxu0 %v4308
  %4482 = vmatpush1.msra.mxu0 %v4307
  %4483 = vmatprep.subr.mxu0 %v4302
  %4484 = vmatpush1.msra.mxu0 %v4301
  %4485 = vmatprep.subr.mxu0 %v4296
  %4486 = vmatpush1.msra.mxu0 %v4295
  %4487 = vmatprep.subr.mxu0 %v4290
  %4488 = vmatpush1.msra.mxu0 %v4289
  %4489 = vmatprep.subr.mxu0 %v4284
  %4490 = vmatpush1.msra.mxu0 %v4283
  %4491 = vmatprep.subr.mxu0 %v4278
  %4492 = vmatpush1.msra.mxu0 %v4277
  %4493 = vmatprep.subr.mxu0 %v4272
  %4494 = vmatpush1.msra.mxu0 %v4271
  %4495 = vmatprep.subr.mxu0 %v4458
  %4496 = vmatpush2.msra.mxu0 %v4457
  %4497 = vmatprep.subr.mxu0 %v4452
  %4498 = vmatpush2.msra.mxu0 %v4451
  %4499 = vmatprep.subr.mxu0 %v4446
  %4500 = vmatpush2.msra.mxu0 %v4445
  %4501 = vmatprep.subr.mxu0 %v4440
  %4502 = vmatpush2.msra.mxu0 %v4439
  %4503 = vmatprep.subr.mxu0 %v4434
  %4504 = vmatpush2.msra.mxu0 %v4433
  %4505 = vmatprep.subr.mxu0 %v4428
  %4506 = vmatpush2.msra.mxu0 %v4427
  %4507 = vmatprep.subr.mxu0 %v4422
  %4508 = vmatpush2.msra.mxu0 %v4421
  %4509 = vmatprep.subr.mxu0 %v4416
  %4510 = vmatpush2.msra.mxu0 %v4415
  %4511 = vmatprep.subr.mxu0 %v4410
  %4512 = vmatpush2.msra.mxu0 %v4409
  %4513 = vmatprep.subr.mxu0 %v4404
  %4514 = vmatpush2.msra.mxu0 %v4403
  %4515 = vmatprep.subr.mxu0 %v4398
  %4516 = vmatpush2.msra.mxu0 %v4397
  %4517 = vmatprep.subr.mxu0 %v4392
  %4518 = vmatpush2.msra.mxu0 %v4391
  %4519 = vmatprep.subr.mxu0 %v4386
  %4520 = vmatpush2.msra.mxu0 %v4385
  %4521 = vmatprep.subr.mxu0 %v4380
  %4522 = vmatpush2.msra.mxu0 %v4379
  %4523 = vmatprep.subr.mxu0 %v4374
  %4524 = vmatpush2.msra.mxu0 %v4373
  %4525 = vmatprep.subr.mxu0 %v4368
  %4526 = vmatpush2.msra.mxu0 %v4367
  %4527 = vmatprep.mubr.f32.mxu0 %v4270
  %4528 = vmatmul.mubr.f32.gmra.mxu0 %v4269
  %v4529 = vpop.f32.mrf.mxu0
  %v4530 = vadd.f32 0.0, %v4529
  %v4531 = vpop.f32.mrf.mxu0
  %v4532 = vadd.f32 0.0, %v4531
  %4533 = vdwg.mxu0
  %4534 = vmatprep.subr.mxu0 %v4364
  %4535 = vmatpush1.msra.mxu0 %v4363
  %4536 = vmatprep.subr.mxu0 %v4358
  %4537 = vmatpush1.msra.mxu0 %v4357
  %4538 = vmatprep.subr.mxu0 %v4352
  %4539 = vmatpush1.msra.mxu0 %v4351
  %4540 = vmatprep.subr.mxu0 %v4346
  %4541 = vmatpush1.msra.mxu0 %v4345
  %4542 = vmatprep.subr.mxu0 %v4340
  %4543 = vmatpush1.msra.mxu0 %v4339
  %4544 = vmatprep.subr.mxu0 %v4334
  %4545 = vmatpush1.msra.mxu0 %v4333
  %4546 = vmatprep.subr.mxu0 %v4328
  %4547 = vmatpush1.msra.mxu0 %v4327
  %4548 = vmatprep.subr.mxu0 %v4322
  %4549 = vmatpush1.msra.mxu0 %v4321
  %4550 = vmatprep.subr.mxu0 %v4316
  %4551 = vmatpush1.msra.mxu0 %v4315
  %4552 = vmatprep.subr.mxu0 %v4310
  %4553 = vmatpush1.msra.mxu0 %v4309
  %4554 = vmatprep.subr.mxu0 %v4304
  %4555 = vmatpush1.msra.mxu0 %v4303
  %4556 = vmatprep.subr.mxu0 %v4298
  %4557 = vmatpush1.msra.mxu0 %v4297
  %4558 = vmatprep.subr.mxu0 %v4292
  %4559 = vmatpush1.msra.mxu0 %v4291
  %4560 = vmatprep.subr.mxu0 %v4286
  %4561 = vmatpush1.msra.mxu0 %v4285
  %4562 = vmatprep.subr.mxu0 %v4280
  %4563 = vmatpush1.msra.mxu0 %v4279
  %4564 = vmatprep.subr.mxu0 %v4274
  %4565 = vmatpush1.msra.mxu0 %v4273
  %4566 = vmatprep.subr.mxu0 %v4460
  %4567 = vmatpush2.msra.mxu0 %v4459
  %4568 = vmatprep.subr.mxu0 %v4454
  %4569 = vmatpush2.msra.mxu0 %v4453
  %4570 = vmatprep.subr.mxu0 %v4448
  %4571 = vmatpush2.msra.mxu0 %v4447
  %4572 = vmatprep.subr.mxu0 %v4442
  %4573 = vmatpush2.msra.mxu0 %v4441
  %4574 = vmatprep.subr.mxu0 %v4436
  %4575 = vmatpush2.msra.mxu0 %v4435
  %4576 = vmatprep.subr.mxu0 %v4430
  %4577 = vmatpush2.msra.mxu0 %v4429
  %4578 = vmatprep.subr.mxu0 %v4424
  %4579 = vmatpush2.msra.mxu0 %v4423
  %4580 = vmatprep.subr.mxu0 %v4418
  %4581 = vmatpush2.msra.mxu0 %v4417
  %4582 = vmatprep.subr.mxu0 %v4412
  %4583 = vmatpush2.msra.mxu0 %v4411
  %4584 = vmatprep.subr.mxu0 %v4406
  %4585 = vmatpush2.msra.mxu0 %v4405
  %4586 = vmatprep.subr.mxu0 %v4400
  %4587 = vmatpush2.msra.mxu0 %v4399
  %4588 = vmatprep.subr.mxu0 %v4394
  %4589 = vmatpush2.msra.mxu0 %v4393
  %4590 = vmatprep.subr.mxu0 %v4388
  %4591 = vmatpush2.msra.mxu0 %v4387
  %4592 = vmatprep.subr.mxu0 %v4382
  %4593 = vmatpush2.msra.mxu0 %v4381
  %4594 = vmatprep.subr.mxu0 %v4376
  %4595 = vmatpush2.msra.mxu0 %v4375
  %4596 = vmatprep.subr.mxu0 %v4370
  %4597 = vmatpush2.msra.mxu0 %v4369
  %4598 = vmatprep.mubr.f32.mxu0 %v4270
  %4599 = vmatmul.mubr.f32.gmra.mxu0 %v4269
  %v4600 = vpop.f32.mrf.mxu0
  %v4601 = vadd.f32 0.0, %v4600
  %v4602 = vpop.f32.mrf.mxu0
  %v4603 = vadd.f32 0.0, %v4602
  %4604 = vdwg.mxu0
  %4605 = vmatprep.subr.mxu0 %v4366
  %4606 = vmatpush1.msra.mxu0 %v4365
  %4607 = vmatprep.subr.mxu0 %v4360
  %4608 = vmatpush1.msra.mxu0 %v4359
  %4609 = vmatprep.subr.mxu0 %v4354
  %4610 = vmatpush1.msra.mxu0 %v4353
  %4611 = vmatprep.subr.mxu0 %v4348
  %4612 = vmatpush1.msra.mxu0 %v4347
  %4613 = vmatprep.subr.mxu0 %v4342
  %4614 = vmatpush1.msra.mxu0 %v4341
  %4615 = vmatprep.subr.mxu0 %v4336
  %4616 = vmatpush1.msra.mxu0 %v4335
  %4617 = vmatprep.subr.mxu0 %v4330
  %4618 = vmatpush1.msra.mxu0 %v4329
  %4619 = vmatprep.subr.mxu0 %v4324
  %4620 = vmatpush1.msra.mxu0 %v4323
  %4621 = vmatprep.subr.mxu0 %v4318
  %4622 = vmatpush1.msra.mxu0 %v4317
  %4623 = vmatprep.subr.mxu0 %v4312
  %4624 = vmatpush1.msra.mxu0 %v4311
  %4625 = vmatprep.subr.mxu0 %v4306
  %4626 = vmatpush1.msra.mxu0 %v4305
  %4627 = vmatprep.subr.mxu0 %v4300
  %4628 = vmatpush1.msra.mxu0 %v4299
  %4629 = vmatprep.subr.mxu0 %v4294
  %4630 = vmatpush1.msra.mxu0 %v4293
  %4631 = vmatprep.subr.mxu0 %v4288
  %4632 = vmatpush1.msra.mxu0 %v4287
  %4633 = vmatprep.subr.mxu0 %v4282
  %4634 = vmatpush1.msra.mxu0 %v4281
  %4635 = vmatprep.subr.mxu0 %v4276
  %4636 = vmatpush1.msra.mxu0 %v4275
  %4637 = vmatprep.subr.mxu0 %v4462
  %4638 = vmatpush2.msra.mxu0 %v4461
  %4639 = vmatprep.subr.mxu0 %v4456
  %4640 = vmatpush2.msra.mxu0 %v4455
  %4641 = vmatprep.subr.mxu0 %v4450
  %4642 = vmatpush2.msra.mxu0 %v4449
  %4643 = vmatprep.subr.mxu0 %v4444
  %4644 = vmatpush2.msra.mxu0 %v4443
  %4645 = vmatprep.subr.mxu0 %v4438
  %4646 = vmatpush2.msra.mxu0 %v4437
  %4647 = vmatprep.subr.mxu0 %v4432
  %4648 = vmatpush2.msra.mxu0 %v4431
  %4649 = vmatprep.subr.mxu0 %v4426
  %4650 = vmatpush2.msra.mxu0 %v4425
  %4651 = vmatprep.subr.mxu0 %v4420
  %4652 = vmatpush2.msra.mxu0 %v4419
  %4653 = vmatprep.subr.mxu0 %v4414
  %4654 = vmatpush2.msra.mxu0 %v4413
  %4655 = vmatprep.subr.mxu0 %v4408
  %4656 = vmatpush2.msra.mxu0 %v4407
  %4657 = vmatprep.subr.mxu0 %v4402
  %4658 = vmatpush2.msra.mxu0 %v4401
  %4659 = vmatprep.subr.mxu0 %v4396
  %4660 = vmatpush2.msra.mxu0 %v4395
  %4661 = vmatprep.subr.mxu0 %v4390
  %4662 = vmatpush2.msra.mxu0 %v4389
  %4663 = vmatprep.subr.mxu0 %v4384
  %4664 = vmatpush2.msra.mxu0 %v4383
  %4665 = vmatprep.subr.mxu0 %v4378
  %4666 = vmatpush2.msra.mxu0 %v4377
  %4667 = vmatprep.subr.mxu0 %v4372
  %4668 = vmatpush2.msra.mxu0 %v4371
  %4669 = vmatprep.mubr.f32.mxu0 %v4270
  %4670 = vmatmul.mubr.f32.gmra.mxu0 %v4269
  %v4671 = vpop.f32.mrf.mxu0
  %v4672 = vadd.f32 0.0, %v4671
  %v4673 = vpop.f32.mrf.mxu0
  %v4674 = vadd.f32 0.0, %v4673
  %4675 = vdwg.mxu0
  %v4676 = vld [vmem:[%s961] sm:$0xff]
  %v4677 = vld [vmem:[%s961 + $0x8] sm:$0xff]
  %v4678 = vld [vmem:[%s961 + $0x10] sm:$0xff]
  %v4679 = vld [vmem:[#allocation2 + $0x18] sm:$0xff]
  %v4680 = vld [vmem:[#allocation2 + $0x20] sm:$0xff]
  %v4681 = vld [vmem:[#allocation2 + $0x28] sm:$0xff]
  %v4682 = vld [vmem:[%s5] sm:$0x1]
  %v4683 = vld [vmem:[%s5 + $0x1] sm:$0x1]
  %v4684 = vadd.f32 %v4676, %v4530
  %v4685 = vxor.u32 %v4684, 2147483648
  %v4686 = vmul.f32 %v4685, 1.442695
  %v4687 = vpow.pop %v4686
  %v4688 = vadd.f32 %v4687, 1.0
  %v4689 = vrcp.pop %v4688
  %v4690 = vmul.f32 1.0, %v4689
  %v4691 = vadd.f32 %v4677, %v4532
  %v4692 = vxor.u32 %v4691, 2147483648
  %v4693 = vmul.f32 %v4692, 1.442695
  %v4694 = vpow.pop %v4693
  %v4695 = vadd.f32 %v4694, 1.0
  %v4696 = vrcp.pop %v4695
  %v4697 = vmul.f32 1.0, %v4696
  %v4699 = vlaneseq
  %v4700 = vshrl.u32 %v4699, 7
  %v4701 = vsub.s32 0, %v4700
  %v4702 = vrot.slane %v4682, %v4701
  %v4704 = vadd.f32 %v4601, %v4702
  %v4705 = vmul.f32 %v4690, %v4704
  %v4706 = vadd.f32 %v4678, %v4705
  %v4707 = vtanh.pop %v4706
  %v4708 = vsub.f32 1.0, %v4697
  %v4709 = vmul.f32 %v4708, %v4707
  %v4710 = vmul.f32 %v4697, %v4269
  %v4711 = vadd.f32 %v4709, %v4710
  %v4712 = vadd.f32 %v4679, %v4603
  %v4713 = vxor.u32 %v4712, 2147483648
  %v4714 = vmul.f32 %v4713, 1.442695
  %v4715 = vpow.pop %v4714
  %v4716 = vadd.f32 %v4715, 1.0
  %v4717 = vrcp.pop %v4716
  %v4718 = vmul.f32 1.0, %v4717
  %v4719 = vadd.f32 %v4680, %v4672
  %v4720 = vxor.u32 %v4719, 2147483648
  %v4721 = vmul.f32 %v4720, 1.442695
  %v4722 = vpow.pop %v4721
  %v4723 = vadd.f32 %v4722, 1.0
  %v4724 = vrcp.pop %v4723
  %v4725 = vmul.f32 1.0, %v4724
  %v4727 = vlaneseq
  %v4728 = vshrl.u32 %v4727, 7
  %v4729 = vsub.s32 0, %v4728
  %v4730 = vrot.slane %v4683, %v4729
  %v4732 = vadd.f32 %v4674, %v4730
  %v4733 = vmul.f32 %v4718, %v4732
  %v4734 = vadd.f32 %v4681, %v4733
  %v4735 = vtanh.pop %v4734
  %v4736 = vsub.f32 1.0, %v4725
  %v4737 = vmul.f32 %v4736, %v4735
  %v4738 = vmul.f32 %v4725, %v4270
  %v4739 = vadd.f32 %v4737, %v4738
  %v4740 = vsel %vm1036, %v4711, 0.0
  %4741 = vst [vmem:[%s1038] sm:$0xff] %v4740
  %v4742 = vsel %vm1029, %v4739, 0.0
  %4743 = vst [vmem:[%s8 + $0x8] sm:$0xff] %v4742
  %v4744 = vld [vmem:[%s1038] sm:$0xff]
  %v4745 = vld [vmem:[%s1038 + $0x8] sm:$0xff]
  %v4746 = vadd.f32 %v4744, %v4745
  %4747 = vadd.xlane.f32.xlu0 %v4746
  %v4748 = vpop.xlane.xlu0 %4747
  %v4749 = vmul.f32 %v4748, 0.03125
  %v4750 = vsub.f32 %v4744, %v4749
  %v4751 = vsub.f32 %v4745, %v4749
  %v4752 = vmul.f32 %v4750, %v3019
  %v4753 = vmul.f32 %v4751, %v3020
  %v4754 = vmul.f32 %v4752, %v4752
  %v4755 = vmul.f32 %v4753, %v4753
  %v4756 = vadd.f32 %v4754, %v4755
  %4757 = vadd.xlane.f32.xlu0 %v4756
  %v4758 = vpop.xlane.xlu0 %4757
  %v4759 = vmul.f32 %v4758, 0.03125
  %v4760 = vadd.f32 %v4759, 1e-05
  %v4761 = vrsqrt.pop %v4760
  %v4762 = vmul.f32 %v4752, %v4761
  %v4763 = vmul.f32 %v4753, %v4761
  %v4764 = vld [vmem:[%s6] sm:$0x3]
  %v4766 = vlaneseq
  %v4767 = vshrl.u32 %v4766, 7
  %v4768 = vsub.s32 0, %v4767
  %v4769 = vrot.slane %v4764, %v4768
  %v4770 = vlaneseq
  %v4771 = vshrl.u32 %v4770, 7
  %v4772 = vsub.s32 1, %v4771
  %v4773 = vrot.slane %v4764, %v4772
  %v4776 = vmul.f32 %v4762, %v4769
  %v4777 = vmul.f32 %v4763, %v4773
  %v4778 = vld [vmem:[%s7] sm:$0x3]
  %v4780 = vlaneseq
  %v4781 = vshrl.u32 %v4780, 7
  %v4782 = vsub.s32 0, %v4781
  %v4783 = vrot.slane %v4778, %v4782
  %v4784 = vlaneseq
  %v4785 = vshrl.u32 %v4784, 7
  %v4786 = vsub.s32 1, %v4785
  %v4787 = vrot.slane %v4778, %v4786
  %v4790 = vadd.f32 %v4776, %v4783
  %v4791 = vadd.f32 %v4777, %v4787
  %4792 = vst [vmem:[%s1038] sm:$0xff] %v4790
  %4793 = vst [vmem:[%s1038 + $0x8] sm:$0xff] %v4791
  %v4794 = vld [vmem:[%s8] sm:$0xff]
  %v4795 = vld [vmem:[%s8 + $0x8] sm:$0xff]
  %v4796 = vadd.f32 %v4794, %v4795
  %4797 = vadd.xlane.f32.xlu0 %v4796
  %v4798 = vpop.xlane.xlu0 %4797
  %v4799 = vmul.f32 %v4798, 0.03125
  %v4800 = vsub.f32 %v4794, %v4799
  %v4801 = vsub.f32 %v4795, %v4799
  %v4802 = vmul.f32 %v4800, %v3019
  %v4803 = vmul.f32 %v4801, %v3020
  %v4804 = vmul.f32 %v4802, %v4802
  %v4805 = vmul.f32 %v4803, %v4803
  %v4806 = vadd.f32 %v4804, %v4805
  %4807 = vadd.xlane.f32.xlu0 %v4806
  %v4808 = vpop.xlane.xlu0 %4807
  %v4809 = vmul.f32 %v4808, 0.03125
  %v4810 = vadd.f32 %v4809, 1e-05
  %v4811 = vrsqrt.pop %v4810
  %v4812 = vmul.f32 %v4802, %v4811
  %v4813 = vmul.f32 %v4803, %v4811
  %v4814 = vld [vmem:[%s6] sm:$0x3]
  %v4816 = vlaneseq
  %v4817 = vshrl.u32 %v4816, 7
  %v4818 = vsub.s32 0, %v4817
  %v4819 = vrot.slane %v4814, %v4818
  %v4820 = vlaneseq
  %v4821 = vshrl.u32 %v4820, 7
  %v4822 = vsub.s32 1, %v4821
  %v4823 = vrot.slane %v4814, %v4822
  %v4826 = vmul.f32 %v4812, %v4819
  %v4827 = vmul.f32 %v4813, %v4823
  %v4828 = vld [vmem:[%s7] sm:$0x3]
  %v4830 = vlaneseq
  %v4831 = vshrl.u32 %v4830, 7
  %v4832 = vsub.s32 0, %v4831
  %v4833 = vrot.slane %v4828, %v4832
  %v4834 = vlaneseq
  %v4835 = vshrl.u32 %v4834, 7
  %v4836 = vsub.s32 1, %v4835
  %v4837 = vrot.slane %v4828, %v4836
  %v4840 = vadd.f32 %v4826, %v4833
  %v4841 = vadd.f32 %v4827, %v4837
  %4842 = vst [vmem:[%s8] sm:$0xff] %v4840
  %4843 = vst [vmem:[%s8 + $0x8] sm:$0xff] %v4841
  // Predicated region
  $region34: #{temporal_graph_encoder.1} parent=0 // pred_check
    _
  $region35: #{temporal_graph_encoder.1} parent=0 // pred_check_branch
    %4845 = sbr.rel (0) target = $region37
  $region36: #{temporal_graph_encoder.1} parent=0 // pred_region
    _
  $region37: #{temporal_graph_encoder.1} parent=0 // pred_fallthru
    _
  // Predicated region
  $region38: #{temporal_graph_encoder.1} parent=0 // pred_check
    _
  $region39: #{temporal_graph_encoder.1} parent=0 // pred_check_branch
    %4847 = sbr.rel (0) target = $region41
  $region40: #{temporal_graph_encoder.1} parent=0 // pred_region
    _
  $region41: #{temporal_graph_encoder.1} parent=0 // pred_fallthru
    _

</llo_original>
